<compile_context>
chip_gen: v7x
topology: tpu7x:2x2x1
jax: 0.10.0
libtpu: 0.0.40
codegen_flags: <defaults>
</compile_context>

<pallas_src>
import functools

import jax
import jax.numpy as jnp
from jax import lax
from jax.experimental import pallas as pl
from jax.experimental.pallas import tpu as pltpu


# ----------------------------------------------------------------------------
# Pallas kernel: the serial 2-layer LSTM recurrence only (skewed wavefront).
# ----------------------------------------------------------------------------
def _lstm_recurrence_kernel(
    xp_ref,     # (T, B, 4H) f32  precomputed x @ W_ih0 + (b_ih0 + b_hh0)
    whh0_ref,   # (H, 4H)         layer-0 hidden -> gates   (f32 or bf16)
    wih1_ref,   # (H, 4H)         layer-1 input(=h1) -> gates
    whh1_ref,   # (H, 4H)         layer-1 hidden(=h2) -> gates
    b1_ref,     # (1, 4H) f32     layer-1 bias (b_ih1 + b_hh1)
    h2_ref,     # (T, B, H) f32   output: layer-1 hidden state per step
):
    T, B, G = xp_ref.shape
    H = G // 4
    wdt = whh0_ref.dtype  # MXU operand dtype (f32 or bf16); accum stays f32

    # Hoisted once: JAX does not CSE broadcast_in_dim inside the loop.
    b1b = jnp.broadcast_to(b1_ref[...], (B, G))

    def _sig(x):
        # sigmoid(x) = 0.5*tanh(0.5*x) + 0.5 : single EUP op (vs exp + divide).
        return 0.5 * jnp.tanh(0.5 * x) + 0.5

    def cell_state(gates, c_prev):
        # PyTorch gate order: i, f, g, o.  All slices are 128-lane aligned.
        i_g = _sig(gates[:, 0 * H:1 * H])
        f_g = _sig(gates[:, 1 * H:2 * H])
        g_g = jnp.tanh(gates[:, 2 * H:3 * H])
        o_g = _sig(gates[:, 3 * H:4 * H])
        c_new = f_g * c_prev + i_g * g_g
        h_new = o_g * jnp.tanh(c_new)
        return h_new, c_new

    def layer0(t, h1, c1):
        # Input projection precomputed -> ONE matmul on the serial path.
        gates0 = xp_ref[t] + jnp.dot(
            h1.astype(wdt), whh0_ref[...], preferred_element_type=jnp.float32
        )
        return cell_state(gates0, c1)

    def layer1(h1, h2, c2):
        # Two accumulating dots instead of concat + fused weight: same weight
        # traffic, no per-iteration VMEM copy, maps onto v7x MRB accumulation.
        gates1 = (
            jnp.dot(h1.astype(wdt), wih1_ref[...],
                    preferred_element_type=jnp.float32)
            + jnp.dot(h2.astype(wdt), whh1_ref[...],
                      preferred_element_type=jnp.float32)
            + b1b
        )
        return cell_state(gates1, c2)

    z = jnp.zeros((B, H), jnp.float32)

    # ---- Prologue: layer-0 of step 0 ---------------------------------------
    h1_0, c1_0 = layer0(0, z, z)

    # ---- Skewed steady state ------------------------------------------------
    # Iteration t: layer-1 of step t-1 and layer-0 of step t.  The two cells
    # depend only on the previous iteration's carries, never on each other, so
    # their MXU/EUP chains interleave.
    def step(t, carry):
        h1, c1, h2, c2 = carry          # h1,c1: step t-1   h2,c2: step t-2
        h2n, c2n = layer1(h1, h2, c2)   # layer-1 for step t-1
        h2_ref[t - 1] = h2n             # lane-dense (B, 128) store
        h1n, c1n = layer0(t, h1, c1)    # layer-0 for step t (independent)
        return (h1n, c1n, h2n, c2n)

    unroll = True if T <= 16 else 4
    h1, c1, h2, c2 = lax.fori_loop(
        1, T, step, (h1_0, c1_0, z, z), unroll=unroll
    )

    # ---- Epilogue: layer-1 of step T-1 --------------------------------------
    h2n, _ = layer1(h1, h2, c2)
    h2_ref[T - 1] = h2n


# ----------------------------------------------------------------------------
# Wrapper
# ----------------------------------------------------------------------------
def lstm_decoder_pallas(input_feat, params, *, mxu_dtype=jnp.float32):
    """input_feat: (B, T, input_dim) f32. Returns (B, T, wpt_dim) f32.

    mxu_dtype=jnp.bfloat16 casts the recurrent-weight MXU operands (only) to
    bf16; gate math, c-state and accumulation stay f32.
    """
    B, T, Din = input_feat.shape
    H = params["whh0"].shape[0]
    Wpt = params["wdec"].shape[1]

    x_tm = jnp.transpose(input_feat, (1, 0, 2)).astype(jnp.float32)  # (T, B, Din)

    # Hoisted layer-0 input projection: one (T*B, Din) @ (Din, 4H) matmul in XLA.
    x_proj = (
        x_tm.reshape(T * B, Din) @ params["wih0"] + params["b0"]
    ).reshape(T, B, 4 * H)

    vmem = pl.BlockSpec(memory_space=pltpu.MemorySpace.VMEM)
    h2_all = pl.pallas_call(
        _lstm_recurrence_kernel,
        out_shape=jax.ShapeDtypeStruct((T, B, H), jnp.float32),
        in_specs=[vmem, vmem, vmem, vmem, vmem],
        out_specs=vmem,
    )(
        x_proj,
        params["whh0"].astype(mxu_dtype),
        params["wih1"].astype(mxu_dtype),
        params["whh1"].astype(mxu_dtype),
        params["b1"],
    )

    # Hoisted pos_decoder head: one (T*B, H) @ (H, Wpt) matmul in XLA.
    out_tm = (
        h2_all.reshape(T * B, H) @ params["wdec"] + params["bdec"]
    ).reshape(T, B, Wpt)
    return jnp.transpose(out_tm, (1, 0, 2))  # back to batch-first (B, T, Wpt)


# ----------------------------------------------------------------------------
# Pure-JAX reference (mirrors torch.nn.LSTM + nn.Linear semantics exactly)
# ----------------------------------------------------------------------------
def lstm_decoder_ref(input_feat, params):
    B, T, Din = input_feat.shape
    H = params["whh0"].shape[0]
    x_tm = jnp.transpose(input_feat, (1, 0, 2))

    def cell(x, h, c, wih, whh, b):
        gates = x @ wih + h @ whh + b
        i = jax.nn.sigmoid(gates[:, 0 * H:1 * H])
        f = jax.nn.sigmoid(gates[:, 1 * H:2 * H])
        g = jnp.tanh(gates[:, 2 * H:3 * H])
        o = jax.nn.sigmoid(gates[:, 3 * H:4 * H])
        c_new = f * c + i * g
        h_new = o * jnp.tanh(c_new)
        return h_new, c_new

    def step(carry, x_t):
        h1, c1, h2, c2 = carry
        h1, c1 = cell(x_t, h1, c1, params["wih0"], params["whh0"], params["b0"])
        h2, c2 = cell(h1, h2, c2, params["wih1"], params["whh1"], params["b1"])
        y = h2 @ params["wdec"] + params["bdec"]
        return (h1, c1, h2, c2), y

    z = jnp.zeros((B, H), jnp.float32)
    _, ys = jax.lax.scan(step, (z, z, z, z), x_tm)
    return jnp.transpose(ys, (1, 0, 2))


# ----------------------------------------------------------------------------
# Deterministic parameter init (PyTorch-style uniform(-1/sqrt(H), 1/sqrt(H)))
# ----------------------------------------------------------------------------
def init_params(key, input_dim, hidden_dim, wpt_dim):
    k = 1.0 / jnp.sqrt(hidden_dim)
    keys = jax.random.split(key, 12)
    u = lambda kk, shape, bound: jax.random.uniform(
        kk, shape, jnp.float32, -bound, bound
    )
    H = hidden_dim
    params = {
        # layer 0 (weights stored pre-transposed: (in_features, 4H))
        "wih0": u(keys[0], (input_dim, 4 * H), k),
        "whh0": u(keys[1], (H, 4 * H), k),
        "b0": (u(keys[2], (1, 4 * H), k) + u(keys[3], (1, 4 * H), k)),  # b_ih + b_hh
        # layer 1
        "wih1": u(keys[4], (H, 4 * H), k),
        "whh1": u(keys[5], (H, 4 * H), k),
        "b1": (u(keys[6], (1, 4 * H), k) + u(keys[7], (1, 4 * H), k)),
        # pos_decoder Linear(H -> wpt_dim), stored transposed (H, wpt_dim)
        "wdec": u(keys[8], (H, wpt_dim), 1.0 / jnp.sqrt(H)),
        "bdec": u(keys[9], (1, wpt_dim), 1.0 / jnp.sqrt(H)),
    }
    return params


# ----------------------------------------------------------------------------
if __name__ == "__main__":
    # Module defaults: input_dim=41, hidden_dim=128, wpt_dim=9, num_layers=2.
    B, T = 2, 8
    INPUT_DIM, HIDDEN_DIM, WPT_DIM = 41, 128, 9

    key = jax.random.PRNGKey(0)
    k_x, k_p = jax.random.split(key)
    x = jax.random.normal(k_x, (B, T, INPUT_DIM), jnp.float32)
    params = init_params(k_p, INPUT_DIM, HIDDEN_DIM, WPT_DIM)

    ref = lstm_decoder_ref(x, params)

    # f32 MXU operands: tight parity with the f32 / PyTorch reference.
    run_f32 = jax.jit(functools.partial(lstm_decoder_pallas, mxu_dtype=jnp.float32))
    out_f32 = jax.block_until_ready(run_f32(x, params))
    assert out_f32.shape == (B, T, WPT_DIM), out_f32.shape
    assert jnp.allclose(out_f32, ref, atol=1e-4, rtol=1e-4), (
        float(jnp.max(jnp.abs(out_f32 - ref)))
    )

    # bf16 MXU operands (perf mode on v6e/v7x): looser tolerance, per review.
    run_bf16 = jax.jit(functools.partial(lstm_decoder_pallas, mxu_dtype=jnp.bfloat16))
    out_bf16 = jax.block_until_ready(run_bf16(x, params))
    assert out_bf16.shape == (B, T, WPT_DIM), out_bf16.shape
    assert jnp.allclose(out_bf16, ref, atol=2e-2, rtol=2e-2), (
        float(jnp.max(jnp.abs(out_bf16 - ref)))
    )

    print("KERNEL_OK")
</pallas_src>

<mosaic_0001>
module attributes {stable_mosaic.version = 11 : i64} {
  func.func @_lstm_recurrence_kernel(%arg0: memref<8x2x512xf32, #tpu.memory_space<vmem>>, %arg1: memref<128x512xf32, #tpu.memory_space<vmem>>, %arg2: memref<128x512xf32, #tpu.memory_space<vmem>>, %arg3: memref<128x512xf32, #tpu.memory_space<vmem>>, %arg4: memref<1x512xf32, #tpu.memory_space<vmem>>, %arg5: memref<8x2x128xf32, #tpu.memory_space<vmem>>) attributes {dimension_semantics = [], scalar_prefetch = 0 : i64, scratch_operands = 0 : i64, tpu.core_type = #tpu.core_type<tc>} {
    %c0 = arith.constant 0 : index
    %c0_0 = arith.constant 0 : index
    %0 = vector.load %arg4[%c0, %c0_0] : memref<1x512xf32, #tpu.memory_space<vmem>>, vector<1x512xf32>
    %1 = vector.shape_cast %0 : vector<1x512xf32> to vector<1x512xf32>
    %2 = vector.broadcast %1 : vector<1x512xf32> to vector<2x512xf32>
    %cst = arith.constant 0.000000e+00 : f32
    %3 = vector.broadcast %cst : f32 to vector<2x128xf32>
    %c0_1 = arith.constant 0 : index
    %c0_2 = arith.constant 0 : index
    %c0_3 = arith.constant 0 : index
    %4 = vector.load %arg0[%c0_1, %c0_2, %c0_3] : memref<8x2x512xf32, #tpu.memory_space<vmem>>, vector<1x2x512xf32>
    %5 = vector.shape_cast %4 : vector<1x2x512xf32> to vector<2x512xf32>
    %c0_4 = arith.constant 0 : index
    %c0_5 = arith.constant 0 : index
    %6 = vector.load %arg1[%c0_4, %c0_5] : memref<128x512xf32, #tpu.memory_space<vmem>>, vector<128x512xf32>
    %cst_6 = arith.constant dense<0.000000e+00> : vector<2x512xf32>
    %7 = tpu.matmul %3, %6, %cst_6 {dimension_numbers = #tpu.dot_dimension_numbers<[1], [0], [0], [1], [0, 0, 1, 1], [], []>} : vector<2x128xf32>, vector<128x512xf32>, vector<2x512xf32> -> vector<2x512xf32>
    %8 = arith.addf %5, %7 : vector<2x512xf32>
    %9 = vector.extract_strided_slice %8 {offsets = [0, 0], sizes = [2, 128], strides = [1, 1]} : vector<2x512xf32> to vector<2x128xf32>
    %cst_7 = arith.constant 5.000000e-01 : f32
    %10 = vector.broadcast %cst_7 : f32 to vector<2x128xf32>
    %11 = arith.mulf %10, %9 : vector<2x128xf32>
    %12 = math.tanh %11 : vector<2x128xf32>
    %cst_8 = arith.constant 5.000000e-01 : f32
    %13 = vector.broadcast %cst_8 : f32 to vector<2x128xf32>
    %14 = arith.mulf %13, %12 : vector<2x128xf32>
    %cst_9 = arith.constant 5.000000e-01 : f32
    %15 = vector.broadcast %cst_9 : f32 to vector<2x128xf32>
    %16 = arith.addf %14, %15 : vector<2x128xf32>
    %17 = vector.extract_strided_slice %8 {offsets = [0, 128], sizes = [2, 128], strides = [1, 1]} : vector<2x512xf32> to vector<2x128xf32>
    %cst_10 = arith.constant 5.000000e-01 : f32
    %18 = vector.broadcast %cst_10 : f32 to vector<2x128xf32>
    %19 = arith.mulf %18, %17 : vector<2x128xf32>
    %20 = math.tanh %19 : vector<2x128xf32>
    %cst_11 = arith.constant 5.000000e-01 : f32
    %21 = vector.broadcast %cst_11 : f32 to vector<2x128xf32>
    %22 = arith.mulf %21, %20 : vector<2x128xf32>
    %cst_12 = arith.constant 5.000000e-01 : f32
    %23 = vector.broadcast %cst_12 : f32 to vector<2x128xf32>
    %24 = arith.addf %22, %23 : vector<2x128xf32>
    %25 = vector.extract_strided_slice %8 {offsets = [0, 256], sizes = [2, 128], strides = [1, 1]} : vector<2x512xf32> to vector<2x128xf32>
    %26 = math.tanh %25 : vector<2x128xf32>
    %27 = vector.extract_strided_slice %8 {offsets = [0, 384], sizes = [2, 128], strides = [1, 1]} : vector<2x512xf32> to vector<2x128xf32>
    %cst_13 = arith.constant 5.000000e-01 : f32
    %28 = vector.broadcast %cst_13 : f32 to vector<2x128xf32>
    %29 = arith.mulf %28, %27 : vector<2x128xf32>
    %30 = math.tanh %29 : vector<2x128xf32>
    %cst_14 = arith.constant 5.000000e-01 : f32
    %31 = vector.broadcast %cst_14 : f32 to vector<2x128xf32>
    %32 = arith.mulf %31, %30 : vector<2x128xf32>
    %cst_15 = arith.constant 5.000000e-01 : f32
    %33 = vector.broadcast %cst_15 : f32 to vector<2x128xf32>
    %34 = arith.addf %32, %33 : vector<2x128xf32>
    %35 = arith.mulf %24, %3 : vector<2x128xf32>
    %36 = arith.mulf %16, %26 : vector<2x128xf32>
    %37 = arith.addf %35, %36 : vector<2x128xf32>
    %38 = math.tanh %37 : vector<2x128xf32>
    %39 = arith.mulf %34, %38 : vector<2x128xf32>
    %c1_i32 = arith.constant 1 : i32
    %c0_16 = arith.constant 0 : index
    %c0_17 = arith.constant 0 : index
    %40 = vector.load %arg2[%c0_16, %c0_17] : memref<128x512xf32, #tpu.memory_space<vmem>>, vector<128x512xf32>
    %cst_18 = arith.constant dense<0.000000e+00> : vector<2x512xf32>
    %41 = tpu.matmul %39, %40, %cst_18 {dimension_numbers = #tpu.dot_dimension_numbers<[1], [0], [0], [1], [0, 0, 1, 1], [], []>} : vector<2x128xf32>, vector<128x512xf32>, vector<2x512xf32> -> vector<2x512xf32>
    %c0_19 = arith.constant 0 : index
    %c0_20 = arith.constant 0 : index
    %42 = vector.load %arg3[%c0_19, %c0_20] : memref<128x512xf32, #tpu.memory_space<vmem>>, vector<128x512xf32>
    %cst_21 = arith.constant dense<0.000000e+00> : vector<2x512xf32>
    %43 = tpu.matmul %3, %42, %cst_21 {dimension_numbers = #tpu.dot_dimension_numbers<[1], [0], [0], [1], [0, 0, 1, 1], [], []>} : vector<2x128xf32>, vector<128x512xf32>, vector<2x512xf32> -> vector<2x512xf32>
    %44 = arith.addf %41, %43 : vector<2x512xf32>
    %45 = arith.addf %44, %2 : vector<2x512xf32>
    %46 = vector.extract_strided_slice %45 {offsets = [0, 0], sizes = [2, 128], strides = [1, 1]} : vector<2x512xf32> to vector<2x128xf32>
    %cst_22 = arith.constant 5.000000e-01 : f32
    %47 = vector.broadcast %cst_22 : f32 to vector<2x128xf32>
    %48 = arith.mulf %47, %46 : vector<2x128xf32>
    %49 = math.tanh %48 : vector<2x128xf32>
    %cst_23 = arith.constant 5.000000e-01 : f32
    %50 = vector.broadcast %cst_23 : f32 to vector<2x128xf32>
    %51 = arith.mulf %50, %49 : vector<2x128xf32>
    %cst_24 = arith.constant 5.000000e-01 : f32
    %52 = vector.broadcast %cst_24 : f32 to vector<2x128xf32>
    %53 = arith.addf %51, %52 : vector<2x128xf32>
    %54 = vector.extract_strided_slice %45 {offsets = [0, 128], sizes = [2, 128], strides = [1, 1]} : vector<2x512xf32> to vector<2x128xf32>
    %cst_25 = arith.constant 5.000000e-01 : f32
    %55 = vector.broadcast %cst_25 : f32 to vector<2x128xf32>
    %56 = arith.mulf %55, %54 : vector<2x128xf32>
    %57 = math.tanh %56 : vector<2x128xf32>
    %cst_26 = arith.constant 5.000000e-01 : f32
    %58 = vector.broadcast %cst_26 : f32 to vector<2x128xf32>
    %59 = arith.mulf %58, %57 : vector<2x128xf32>
    %cst_27 = arith.constant 5.000000e-01 : f32
    %60 = vector.broadcast %cst_27 : f32 to vector<2x128xf32>
    %61 = arith.addf %59, %60 : vector<2x128xf32>
    %62 = vector.extract_strided_slice %45 {offsets = [0, 256], sizes = [2, 128], strides = [1, 1]} : vector<2x512xf32> to vector<2x128xf32>
    %63 = math.tanh %62 : vector<2x128xf32>
    %64 = vector.extract_strided_slice %45 {offsets = [0, 384], sizes = [2, 128], strides = [1, 1]} : vector<2x512xf32> to vector<2x128xf32>
    %cst_28 = arith.constant 5.000000e-01 : f32
    %65 = vector.broadcast %cst_28 : f32 to vector<2x128xf32>
    %66 = arith.mulf %65, %64 : vector<2x128xf32>
    %67 = math.tanh %66 : vector<2x128xf32>
    %cst_29 = arith.constant 5.000000e-01 : f32
    %68 = vector.broadcast %cst_29 : f32 to vector<2x128xf32>
    %69 = arith.mulf %68, %67 : vector<2x128xf32>
    %cst_30 = arith.constant 5.000000e-01 : f32
    %70 = vector.broadcast %cst_30 : f32 to vector<2x128xf32>
    %71 = arith.addf %69, %70 : vector<2x128xf32>
    %72 = arith.mulf %61, %3 : vector<2x128xf32>
    %73 = arith.mulf %53, %63 : vector<2x128xf32>
    %74 = arith.addf %72, %73 : vector<2x128xf32>
    %75 = math.tanh %74 : vector<2x128xf32>
    %76 = arith.mulf %71, %75 : vector<2x128xf32>
    %c1_i32_31 = arith.constant 1 : i32
    %77 = arith.subi %c1_i32, %c1_i32_31 : i32
    %78 = arith.index_cast %77 : i32 to index
    %c0_32 = arith.constant 0 : index
    %c0_33 = arith.constant 0 : index
    %79 = vector.load %arg5[%78, %c0_32, %c0_33] : memref<8x2x128xf32, #tpu.memory_space<vmem>>, vector<1x2x128xf32>
    %80 = vector.shape_cast %79 : vector<1x2x128xf32> to vector<2x128xf32>
    %81 = vector.shape_cast %76 : vector<2x128xf32> to vector<1x2x128xf32>
    tpu.vector_store %arg5[%78, %c0_32, %c0_33], %81 {strides = array<i32>} : memref<8x2x128xf32, #tpu.memory_space<vmem>>, vector<1x2x128xf32>,
    %82 = arith.index_cast %c1_i32 : i32 to index
    %c0_34 = arith.constant 0 : index
    %c0_35 = arith.constant 0 : index
    %83 = vector.load %arg0[%82, %c0_34, %c0_35] : memref<8x2x512xf32, #tpu.memory_space<vmem>>, vector<1x2x512xf32>
    %84 = vector.shape_cast %83 : vector<1x2x512xf32> to vector<2x512xf32>
    %c0_36 = arith.constant 0 : index
    %c0_37 = arith.constant 0 : index
    %85 = vector.load %arg1[%c0_36, %c0_37] : memref<128x512xf32, #tpu.memory_space<vmem>>, vector<128x512xf32>
    %cst_38 = arith.constant dense<0.000000e+00> : vector<2x512xf32>
    %86 = tpu.matmul %39, %85, %cst_38 {dimension_numbers = #tpu.dot_dimension_numbers<[1], [0], [0], [1], [0, 0, 1, 1], [], []>} : vector<2x128xf32>, vector<128x512xf32>, vector<2x512xf32> -> vector<2x512xf32>
    %87 = arith.addf %84, %86 : vector<2x512xf32>
    %88 = vector.extract_strided_slice %87 {offsets = [0, 0], sizes = [2, 128], strides = [1, 1]} : vector<2x512xf32> to vector<2x128xf32>
    %cst_39 = arith.constant 5.000000e-01 : f32
    %89 = vector.broadcast %cst_39 : f32 to vector<2x128xf32>
    %90 = arith.mulf %89, %88 : vector<2x128xf32>
    %91 = math.tanh %90 : vector<2x128xf32>
    %cst_40 = arith.constant 5.000000e-01 : f32
    %92 = vector.broadcast %cst_40 : f32 to vector<2x128xf32>
    %93 = arith.mulf %92, %91 : vector<2x128xf32>
    %cst_41 = arith.constant 5.000000e-01 : f32
    %94 = vector.broadcast %cst_41 : f32 to vector<2x128xf32>
    %95 = arith.addf %93, %94 : vector<2x128xf32>
    %96 = vector.extract_strided_slice %87 {offsets = [0, 128], sizes = [2, 128], strides = [1, 1]} : vector<2x512xf32> to vector<2x128xf32>
    %cst_42 = arith.constant 5.000000e-01 : f32
    %97 = vector.broadcast %cst_42 : f32 to vector<2x128xf32>
    %98 = arith.mulf %97, %96 : vector<2x128xf32>
    %99 = math.tanh %98 : vector<2x128xf32>
    %cst_43 = arith.constant 5.000000e-01 : f32
    %100 = vector.broadcast %cst_43 : f32 to vector<2x128xf32>
    %101 = arith.mulf %100, %99 : vector<2x128xf32>
    %cst_44 = arith.constant 5.000000e-01 : f32
    %102 = vector.broadcast %cst_44 : f32 to vector<2x128xf32>
    %103 = arith.addf %101, %102 : vector<2x128xf32>
    %104 = vector.extract_strided_slice %87 {offsets = [0, 256], sizes = [2, 128], strides = [1, 1]} : vector<2x512xf32> to vector<2x128xf32>
    %105 = math.tanh %104 : vector<2x128xf32>
    %106 = vector.extract_strided_slice %87 {offsets = [0, 384], sizes = [2, 128], strides = [1, 1]} : vector<2x512xf32> to vector<2x128xf32>
    %cst_45 = arith.constant 5.000000e-01 : f32
    %107 = vector.broadcast %cst_45 : f32 to vector<2x128xf32>
    %108 = arith.mulf %107, %106 : vector<2x128xf32>
    %109 = math.tanh %108 : vector<2x128xf32>
    %cst_46 = arith.constant 5.000000e-01 : f32
    %110 = vector.broadcast %cst_46 : f32 to vector<2x128xf32>
    %111 = arith.mulf %110, %109 : vector<2x128xf32>
    %cst_47 = arith.constant 5.000000e-01 : f32
    %112 = vector.broadcast %cst_47 : f32 to vector<2x128xf32>
    %113 = arith.addf %111, %112 : vector<2x128xf32>
    %114 = arith.mulf %103, %37 : vector<2x128xf32>
    %115 = arith.mulf %95, %105 : vector<2x128xf32>
    %116 = arith.addf %114, %115 : vector<2x128xf32>
    %117 = math.tanh %116 : vector<2x128xf32>
    %118 = arith.mulf %113, %117 : vector<2x128xf32>
    %c2_i32 = arith.constant 2 : i32
    %c0_48 = arith.constant 0 : index
    %c0_49 = arith.constant 0 : index
    %119 = vector.load %arg2[%c0_48, %c0_49] : memref<128x512xf32, #tpu.memory_space<vmem>>, vector<128x512xf32>
    %cst_50 = arith.constant dense<0.000000e+00> : vector<2x512xf32>
    %120 = tpu.matmul %118, %119, %cst_50 {dimension_numbers = #tpu.dot_dimension_numbers<[1], [0], [0], [1], [0, 0, 1, 1], [], []>} : vector<2x128xf32>, vector<128x512xf32>, vector<2x512xf32> -> vector<2x512xf32>
    %c0_51 = arith.constant 0 : index
    %c0_52 = arith.constant 0 : index
    %121 = vector.load %arg3[%c0_51, %c0_52] : memref<128x512xf32, #tpu.memory_space<vmem>>, vector<128x512xf32>
    %cst_53 = arith.constant dense<0.000000e+00> : vector<2x512xf32>
    %122 = tpu.matmul %76, %121, %cst_53 {dimension_numbers = #tpu.dot_dimension_numbers<[1], [0], [0], [1], [0, 0, 1, 1], [], []>} : vector<2x128xf32>, vector<128x512xf32>, vector<2x512xf32> -> vector<2x512xf32>
    %123 = arith.addf %120, %122 : vector<2x512xf32>
    %124 = arith.addf %123, %2 : vector<2x512xf32>
    %125 = vector.extract_strided_slice %124 {offsets = [0, 0], sizes = [2, 128], strides = [1, 1]} : vector<2x512xf32> to vector<2x128xf32>
    %cst_54 = arith.constant 5.000000e-01 : f32
    %126 = vector.broadcast %cst_54 : f32 to vector<2x128xf32>
    %127 = arith.mulf %126, %125 : vector<2x128xf32>
    %128 = math.tanh %127 : vector<2x128xf32>
    %cst_55 = arith.constant 5.000000e-01 : f32
    %129 = vector.broadcast %cst_55 : f32 to vector<2x128xf32>
    %130 = arith.mulf %129, %128 : vector<2x128xf32>
    %cst_56 = arith.constant 5.000000e-01 : f32
    %131 = vector.broadcast %cst_56 : f32 to vector<2x128xf32>
    %132 = arith.addf %130, %131 : vector<2x128xf32>
    %133 = vector.extract_strided_slice %124 {offsets = [0, 128], sizes = [2, 128], strides = [1, 1]} : vector<2x512xf32> to vector<2x128xf32>
    %cst_57 = arith.constant 5.000000e-01 : f32
    %134 = vector.broadcast %cst_57 : f32 to vector<2x128xf32>
    %135 = arith.mulf %134, %133 : vector<2x128xf32>
    %136 = math.tanh %135 : vector<2x128xf32>
    %cst_58 = arith.constant 5.000000e-01 : f32
    %137 = vector.broadcast %cst_58 : f32 to vector<2x128xf32>
    %138 = arith.mulf %137, %136 : vector<2x128xf32>
    %cst_59 = arith.constant 5.000000e-01 : f32
    %139 = vector.broadcast %cst_59 : f32 to vector<2x128xf32>
    %140 = arith.addf %138, %139 : vector<2x128xf32>
    %141 = vector.extract_strided_slice %124 {offsets = [0, 256], sizes = [2, 128], strides = [1, 1]} : vector<2x512xf32> to vector<2x128xf32>
    %142 = math.tanh %141 : vector<2x128xf32>
    %143 = vector.extract_strided_slice %124 {offsets = [0, 384], sizes = [2, 128], strides = [1, 1]} : vector<2x512xf32> to vector<2x128xf32>
    %cst_60 = arith.constant 5.000000e-01 : f32
    %144 = vector.broadcast %cst_60 : f32 to vector<2x128xf32>
    %145 = arith.mulf %144, %143 : vector<2x128xf32>
    %146 = math.tanh %145 : vector<2x128xf32>
    %cst_61 = arith.constant 5.000000e-01 : f32
    %147 = vector.broadcast %cst_61 : f32 to vector<2x128xf32>
    %148 = arith.mulf %147, %146 : vector<2x128xf32>
    %cst_62 = arith.constant 5.000000e-01 : f32
    %149 = vector.broadcast %cst_62 : f32 to vector<2x128xf32>
    %150 = arith.addf %148, %149 : vector<2x128xf32>
    %151 = arith.mulf %140, %74 : vector<2x128xf32>
    %152 = arith.mulf %132, %142 : vector<2x128xf32>
    %153 = arith.addf %151, %152 : vector<2x128xf32>
    %154 = math.tanh %153 : vector<2x128xf32>
    %155 = arith.mulf %150, %154 : vector<2x128xf32>
    %c1_i32_63 = arith.constant 1 : i32
    %156 = arith.subi %c2_i32, %c1_i32_63 : i32
    %157 = arith.index_cast %156 : i32 to index
    %c0_64 = arith.constant 0 : index
    %c0_65 = arith.constant 0 : index
    %158 = vector.load %arg5[%157, %c0_64, %c0_65] : memref<8x2x128xf32, #tpu.memory_space<vmem>>, vector<1x2x128xf32>
    %159 = vector.shape_cast %158 : vector<1x2x128xf32> to vector<2x128xf32>
    %160 = vector.shape_cast %155 : vector<2x128xf32> to vector<1x2x128xf32>
    tpu.vector_store %arg5[%157, %c0_64, %c0_65], %160 {strides = array<i32>} : memref<8x2x128xf32, #tpu.memory_space<vmem>>, vector<1x2x128xf32>,
    %161 = arith.index_cast %c2_i32 : i32 to index
    %c0_66 = arith.constant 0 : index
    %c0_67 = arith.constant 0 : index
    %162 = vector.load %arg0[%161, %c0_66, %c0_67] : memref<8x2x512xf32, #tpu.memory_space<vmem>>, vector<1x2x512xf32>
    %163 = vector.shape_cast %162 : vector<1x2x512xf32> to vector<2x512xf32>
    %c0_68 = arith.constant 0 : index
    %c0_69 = arith.constant 0 : index
    %164 = vector.load %arg1[%c0_68, %c0_69] : memref<128x512xf32, #tpu.memory_space<vmem>>, vector<128x512xf32>
    %cst_70 = arith.constant dense<0.000000e+00> : vector<2x512xf32>
    %165 = tpu.matmul %118, %164, %cst_70 {dimension_numbers = #tpu.dot_dimension_numbers<[1], [0], [0], [1], [0, 0, 1, 1], [], []>} : vector<2x128xf32>, vector<128x512xf32>, vector<2x512xf32> -> vector<2x512xf32>
    %166 = arith.addf %163, %165 : vector<2x512xf32>
    %167 = vector.extract_strided_slice %166 {offsets = [0, 0], sizes = [2, 128], strides = [1, 1]} : vector<2x512xf32> to vector<2x128xf32>
    %cst_71 = arith.constant 5.000000e-01 : f32
    %168 = vector.broadcast %cst_71 : f32 to vector<2x128xf32>
    %169 = arith.mulf %168, %167 : vector<2x128xf32>
    %170 = math.tanh %169 : vector<2x128xf32>
    %cst_72 = arith.constant 5.000000e-01 : f32
    %171 = vector.broadcast %cst_72 : f32 to vector<2x128xf32>
    %172 = arith.mulf %171, %170 : vector<2x128xf32>
    %cst_73 = arith.constant 5.000000e-01 : f32
    %173 = vector.broadcast %cst_73 : f32 to vector<2x128xf32>
    %174 = arith.addf %172, %173 : vector<2x128xf32>
    %175 = vector.extract_strided_slice %166 {offsets = [0, 128], sizes = [2, 128], strides = [1, 1]} : vector<2x512xf32> to vector<2x128xf32>
    %cst_74 = arith.constant 5.000000e-01 : f32
    %176 = vector.broadcast %cst_74 : f32 to vector<2x128xf32>
    %177 = arith.mulf %176, %175 : vector<2x128xf32>
    %178 = math.tanh %177 : vector<2x128xf32>
    %cst_75 = arith.constant 5.000000e-01 : f32
    %179 = vector.broadcast %cst_75 : f32 to vector<2x128xf32>
    %180 = arith.mulf %179, %178 : vector<2x128xf32>
    %cst_76 = arith.constant 5.000000e-01 : f32
    %181 = vector.broadcast %cst_76 : f32 to vector<2x128xf32>
    %182 = arith.addf %180, %181 : vector<2x128xf32>
    %183 = vector.extract_strided_slice %166 {offsets = [0, 256], sizes = [2, 128], strides = [1, 1]} : vector<2x512xf32> to vector<2x128xf32>
    %184 = math.tanh %183 : vector<2x128xf32>
    %185 = vector.extract_strided_slice %166 {offsets = [0, 384], sizes = [2, 128], strides = [1, 1]} : vector<2x512xf32> to vector<2x128xf32>
    %cst_77 = arith.constant 5.000000e-01 : f32
    %186 = vector.broadcast %cst_77 : f32 to vector<2x128xf32>
    %187 = arith.mulf %186, %185 : vector<2x128xf32>
    %188 = math.tanh %187 : vector<2x128xf32>
    %cst_78 = arith.constant 5.000000e-01 : f32
    %189 = vector.broadcast %cst_78 : f32 to vector<2x128xf32>
    %190 = arith.mulf %189, %188 : vector<2x128xf32>
    %cst_79 = arith.constant 5.000000e-01 : f32
    %191 = vector.broadcast %cst_79 : f32 to vector<2x128xf32>
    %192 = arith.addf %190, %191 : vector<2x128xf32>
    %193 = arith.mulf %182, %116 : vector<2x128xf32>
    %194 = arith.mulf %174, %184 : vector<2x128xf32>
    %195 = arith.addf %193, %194 : vector<2x128xf32>
    %196 = math.tanh %195 : vector<2x128xf32>
    %197 = arith.mulf %192, %196 : vector<2x128xf32>
    %c3_i32 = arith.constant 3 : i32
    %c0_80 = arith.constant 0 : index
    %c0_81 = arith.constant 0 : index
    %198 = vector.load %arg2[%c0_80, %c0_81] : memref<128x512xf32, #tpu.memory_space<vmem>>, vector<128x512xf32>
    %cst_82 = arith.constant dense<0.000000e+00> : vector<2x512xf32>
    %199 = tpu.matmul %197, %198, %cst_82 {dimension_numbers = #tpu.dot_dimension_numbers<[1], [0], [0], [1], [0, 0, 1, 1], [], []>} : vector<2x128xf32>, vector<128x512xf32>, vector<2x512xf32> -> vector<2x512xf32>
    %c0_83 = arith.constant 0 : index
    %c0_84 = arith.constant 0 : index
    %200 = vector.load %arg3[%c0_83, %c0_84] : memref<128x512xf32, #tpu.memory_space<vmem>>, vector<128x512xf32>
    %cst_85 = arith.constant dense<0.000000e+00> : vector<2x512xf32>
    %201 = tpu.matmul %155, %200, %cst_85 {dimension_numbers = #tpu.dot_dimension_numbers<[1], [0], [0], [1], [0, 0, 1, 1], [], []>} : vector<2x128xf32>, vector<128x512xf32>, vector<2x512xf32> -> vector<2x512xf32>
    %202 = arith.addf %199, %201 : vector<2x512xf32>
    %203 = arith.addf %202, %2 : vector<2x512xf32>
    %204 = vector.extract_strided_slice %203 {offsets = [0, 0], sizes = [2, 128], strides = [1, 1]} : vector<2x512xf32> to vector<2x128xf32>
    %cst_86 = arith.constant 5.000000e-01 : f32
    %205 = vector.broadcast %cst_86 : f32 to vector<2x128xf32>
    %206 = arith.mulf %205, %204 : vector<2x128xf32>
    %207 = math.tanh %206 : vector<2x128xf32>
    %cst_87 = arith.constant 5.000000e-01 : f32
    %208 = vector.broadcast %cst_87 : f32 to vector<2x128xf32>
    %209 = arith.mulf %208, %207 : vector<2x128xf32>
    %cst_88 = arith.constant 5.000000e-01 : f32
    %210 = vector.broadcast %cst_88 : f32 to vector<2x128xf32>
    %211 = arith.addf %209, %210 : vector<2x128xf32>
    %212 = vector.extract_strided_slice %203 {offsets = [0, 128], sizes = [2, 128], strides = [1, 1]} : vector<2x512xf32> to vector<2x128xf32>
    %cst_89 = arith.constant 5.000000e-01 : f32
    %213 = vector.broadcast %cst_89 : f32 to vector<2x128xf32>
    %214 = arith.mulf %213, %212 : vector<2x128xf32>
    %215 = math.tanh %214 : vector<2x128xf32>
    %cst_90 = arith.constant 5.000000e-01 : f32
    %216 = vector.broadcast %cst_90 : f32 to vector<2x128xf32>
    %217 = arith.mulf %216, %215 : vector<2x128xf32>
    %cst_91 = arith.constant 5.000000e-01 : f32
    %218 = vector.broadcast %cst_91 : f32 to vector<2x128xf32>
    %219 = arith.addf %217, %218 : vector<2x128xf32>
    %220 = vector.extract_strided_slice %203 {offsets = [0, 256], sizes = [2, 128], strides = [1, 1]} : vector<2x512xf32> to vector<2x128xf32>
    %221 = math.tanh %220 : vector<2x128xf32>
    %222 = vector.extract_strided_slice %203 {offsets = [0, 384], sizes = [2, 128], strides = [1, 1]} : vector<2x512xf32> to vector<2x128xf32>
    %cst_92 = arith.constant 5.000000e-01 : f32
    %223 = vector.broadcast %cst_92 : f32 to vector<2x128xf32>
    %224 = arith.mulf %223, %222 : vector<2x128xf32>
    %225 = math.tanh %224 : vector<2x128xf32>
    %cst_93 = arith.constant 5.000000e-01 : f32
    %226 = vector.broadcast %cst_93 : f32 to vector<2x128xf32>
    %227 = arith.mulf %226, %225 : vector<2x128xf32>
    %cst_94 = arith.constant 5.000000e-01 : f32
    %228 = vector.broadcast %cst_94 : f32 to vector<2x128xf32>
    %229 = arith.addf %227, %228 : vector<2x128xf32>
    %230 = arith.mulf %219, %153 : vector<2x128xf32>
    %231 = arith.mulf %211, %221 : vector<2x128xf32>
    %232 = arith.addf %230, %231 : vector<2x128xf32>
    %233 = math.tanh %232 : vector<2x128xf32>
    %234 = arith.mulf %229, %233 : vector<2x128xf32>
    %c1_i32_95 = arith.constant 1 : i32
    %235 = arith.subi %c3_i32, %c1_i32_95 : i32
    %236 = arith.index_cast %235 : i32 to index
    %c0_96 = arith.constant 0 : index
    %c0_97 = arith.constant 0 : index
    %237 = vector.load %arg5[%236, %c0_96, %c0_97] : memref<8x2x128xf32, #tpu.memory_space<vmem>>, vector<1x2x128xf32>
    %238 = vector.shape_cast %237 : vector<1x2x128xf32> to vector<2x128xf32>
    %239 = vector.shape_cast %234 : vector<2x128xf32> to vector<1x2x128xf32>
    tpu.vector_store %arg5[%236, %c0_96, %c0_97], %239 {strides = array<i32>} : memref<8x2x128xf32, #tpu.memory_space<vmem>>, vector<1x2x128xf32>,
    %240 = arith.index_cast %c3_i32 : i32 to index
    %c0_98 = arith.constant 0 : index
    %c0_99 = arith.constant 0 : index
    %241 = vector.load %arg0[%240, %c0_98, %c0_99] : memref<8x2x512xf32, #tpu.memory_space<vmem>>, vector<1x2x512xf32>
    %242 = vector.shape_cast %241 : vector<1x2x512xf32> to vector<2x512xf32>
    %c0_100 = arith.constant 0 : index
    %c0_101 = arith.constant 0 : index
    %243 = vector.load %arg1[%c0_100, %c0_101] : memref<128x512xf32, #tpu.memory_space<vmem>>, vector<128x512xf32>
    %cst_102 = arith.constant dense<0.000000e+00> : vector<2x512xf32>
    %244 = tpu.matmul %197, %243, %cst_102 {dimension_numbers = #tpu.dot_dimension_numbers<[1], [0], [0], [1], [0, 0, 1, 1], [], []>} : vector<2x128xf32>, vector<128x512xf32>, vector<2x512xf32> -> vector<2x512xf32>
    %245 = arith.addf %242, %244 : vector<2x512xf32>
    %246 = vector.extract_strided_slice %245 {offsets = [0, 0], sizes = [2, 128], strides = [1, 1]} : vector<2x512xf32> to vector<2x128xf32>
    %cst_103 = arith.constant 5.000000e-01 : f32
    %247 = vector.broadcast %cst_103 : f32 to vector<2x128xf32>
    %248 = arith.mulf %247, %246 : vector<2x128xf32>
    %249 = math.tanh %248 : vector<2x128xf32>
    %cst_104 = arith.constant 5.000000e-01 : f32
    %250 = vector.broadcast %cst_104 : f32 to vector<2x128xf32>
    %251 = arith.mulf %250, %249 : vector<2x128xf32>
    %cst_105 = arith.constant 5.000000e-01 : f32
    %252 = vector.broadcast %cst_105 : f32 to vector<2x128xf32>
    %253 = arith.addf %251, %252 : vector<2x128xf32>
    %254 = vector.extract_strided_slice %245 {offsets = [0, 128], sizes = [2, 128], strides = [1, 1]} : vector<2x512xf32> to vector<2x128xf32>
    %cst_106 = arith.constant 5.000000e-01 : f32
    %255 = vector.broadcast %cst_106 : f32 to vector<2x128xf32>
    %256 = arith.mulf %255, %254 : vector<2x128xf32>
    %257 = math.tanh %256 : vector<2x128xf32>
    %cst_107 = arith.constant 5.000000e-01 : f32
    %258 = vector.broadcast %cst_107 : f32 to vector<2x128xf32>
    %259 = arith.mulf %258, %257 : vector<2x128xf32>
    %cst_108 = arith.constant 5.000000e-01 : f32
    %260 = vector.broadcast %cst_108 : f32 to vector<2x128xf32>
    %261 = arith.addf %259, %260 : vector<2x128xf32>
    %262 = vector.extract_strided_slice %245 {offsets = [0, 256], sizes = [2, 128], strides = [1, 1]} : vector<2x512xf32> to vector<2x128xf32>
    %263 = math.tanh %262 : vector<2x128xf32>
    %264 = vector.extract_strided_slice %245 {offsets = [0, 384], sizes = [2, 128], strides = [1, 1]} : vector<2x512xf32> to vector<2x128xf32>
    %cst_109 = arith.constant 5.000000e-01 : f32
    %265 = vector.broadcast %cst_109 : f32 to vector<2x128xf32>
    %266 = arith.mulf %265, %264 : vector<2x128xf32>
    %267 = math.tanh %266 : vector<2x128xf32>
    %cst_110 = arith.constant 5.000000e-01 : f32
    %268 = vector.broadcast %cst_110 : f32 to vector<2x128xf32>
    %269 = arith.mulf %268, %267 : vector<2x128xf32>
    %cst_111 = arith.constant 5.000000e-01 : f32
    %270 = vector.broadcast %cst_111 : f32 to vector<2x128xf32>
    %271 = arith.addf %269, %270 : vector<2x128xf32>
    %272 = arith.mulf %261, %195 : vector<2x128xf32>
    %273 = arith.mulf %253, %263 : vector<2x128xf32>
    %274 = arith.addf %272, %273 : vector<2x128xf32>
    %275 = math.tanh %274 : vector<2x128xf32>
    %276 = arith.mulf %271, %275 : vector<2x128xf32>
    %c4_i32 = arith.constant 4 : i32
    %c0_112 = arith.constant 0 : index
    %c0_113 = arith.constant 0 : index
    %277 = vector.load %arg2[%c0_112, %c0_113] : memref<128x512xf32, #tpu.memory_space<vmem>>, vector<128x512xf32>
    %cst_114 = arith.constant dense<0.000000e+00> : vector<2x512xf32>
    %278 = tpu.matmul %276, %277, %cst_114 {dimension_numbers = #tpu.dot_dimension_numbers<[1], [0], [0], [1], [0, 0, 1, 1], [], []>} : vector<2x128xf32>, vector<128x512xf32>, vector<2x512xf32> -> vector<2x512xf32>
    %c0_115 = arith.constant 0 : index
    %c0_116 = arith.constant 0 : index
    %279 = vector.load %arg3[%c0_115, %c0_116] : memref<128x512xf32, #tpu.memory_space<vmem>>, vector<128x512xf32>
    %cst_117 = arith.constant dense<0.000000e+00> : vector<2x512xf32>
    %280 = tpu.matmul %234, %279, %cst_117 {dimension_numbers = #tpu.dot_dimension_numbers<[1], [0], [0], [1], [0, 0, 1, 1], [], []>} : vector<2x128xf32>, vector<128x512xf32>, vector<2x512xf32> -> vector<2x512xf32>
    %281 = arith.addf %278, %280 : vector<2x512xf32>
    %282 = arith.addf %281, %2 : vector<2x512xf32>
    %283 = vector.extract_strided_slice %282 {offsets = [0, 0], sizes = [2, 128], strides = [1, 1]} : vector<2x512xf32> to vector<2x128xf32>
    %cst_118 = arith.constant 5.000000e-01 : f32
    %284 = vector.broadcast %cst_118 : f32 to vector<2x128xf32>
    %285 = arith.mulf %284, %283 : vector<2x128xf32>
    %286 = math.tanh %285 : vector<2x128xf32>
    %cst_119 = arith.constant 5.000000e-01 : f32
    %287 = vector.broadcast %cst_119 : f32 to vector<2x128xf32>
    %288 = arith.mulf %287, %286 : vector<2x128xf32>
    %cst_120 = arith.constant 5.000000e-01 : f32
    %289 = vector.broadcast %cst_120 : f32 to vector<2x128xf32>
    %290 = arith.addf %288, %289 : vector<2x128xf32>
    %291 = vector.extract_strided_slice %282 {offsets = [0, 128], sizes = [2, 128], strides = [1, 1]} : vector<2x512xf32> to vector<2x128xf32>
    %cst_121 = arith.constant 5.000000e-01 : f32
    %292 = vector.broadcast %cst_121 : f32 to vector<2x128xf32>
    %293 = arith.mulf %292, %291 : vector<2x128xf32>
    %294 = math.tanh %293 : vector<2x128xf32>
    %cst_122 = arith.constant 5.000000e-01 : f32
    %295 = vector.broadcast %cst_122 : f32 to vector<2x128xf32>
    %296 = arith.mulf %295, %294 : vector<2x128xf32>
    %cst_123 = arith.constant 5.000000e-01 : f32
    %297 = vector.broadcast %cst_123 : f32 to vector<2x128xf32>
    %298 = arith.addf %296, %297 : vector<2x128xf32>
    %299 = vector.extract_strided_slice %282 {offsets = [0, 256], sizes = [2, 128], strides = [1, 1]} : vector<2x512xf32> to vector<2x128xf32>
    %300 = math.tanh %299 : vector<2x128xf32>
    %301 = vector.extract_strided_slice %282 {offsets = [0, 384], sizes = [2, 128], strides = [1, 1]} : vector<2x512xf32> to vector<2x128xf32>
    %cst_124 = arith.constant 5.000000e-01 : f32
    %302 = vector.broadcast %cst_124 : f32 to vector<2x128xf32>
    %303 = arith.mulf %302, %301 : vector<2x128xf32>
    %304 = math.tanh %303 : vector<2x128xf32>
    %cst_125 = arith.constant 5.000000e-01 : f32
    %305 = vector.broadcast %cst_125 : f32 to vector<2x128xf32>
    %306 = arith.mulf %305, %304 : vector<2x128xf32>
    %cst_126 = arith.constant 5.000000e-01 : f32
    %307 = vector.broadcast %cst_126 : f32 to vector<2x128xf32>
    %308 = arith.addf %306, %307 : vector<2x128xf32>
    %309 = arith.mulf %298, %232 : vector<2x128xf32>
    %310 = arith.mulf %290, %300 : vector<2x128xf32>
    %311 = arith.addf %309, %310 : vector<2x128xf32>
    %312 = math.tanh %311 : vector<2x128xf32>
    %313 = arith.mulf %308, %312 : vector<2x128xf32>
    %c1_i32_127 = arith.constant 1 : i32
    %314 = arith.subi %c4_i32, %c1_i32_127 : i32
    %315 = arith.index_cast %314 : i32 to index
    %c0_128 = arith.constant 0 : index
    %c0_129 = arith.constant 0 : index
    %316 = vector.load %arg5[%315, %c0_128, %c0_129] : memref<8x2x128xf32, #tpu.memory_space<vmem>>, vector<1x2x128xf32>
    %317 = vector.shape_cast %316 : vector<1x2x128xf32> to vector<2x128xf32>
    %318 = vector.shape_cast %313 : vector<2x128xf32> to vector<1x2x128xf32>
    tpu.vector_store %arg5[%315, %c0_128, %c0_129], %318 {strides = array<i32>} : memref<8x2x128xf32, #tpu.memory_space<vmem>>, vector<1x2x128xf32>,
    %319 = arith.index_cast %c4_i32 : i32 to index
    %c0_130 = arith.constant 0 : index
    %c0_131 = arith.constant 0 : index
    %320 = vector.load %arg0[%319, %c0_130, %c0_131] : memref<8x2x512xf32, #tpu.memory_space<vmem>>, vector<1x2x512xf32>
    %321 = vector.shape_cast %320 : vector<1x2x512xf32> to vector<2x512xf32>
    %c0_132 = arith.constant 0 : index
    %c0_133 = arith.constant 0 : index
    %322 = vector.load %arg1[%c0_132, %c0_133] : memref<128x512xf32, #tpu.memory_space<vmem>>, vector<128x512xf32>
    %cst_134 = arith.constant dense<0.000000e+00> : vector<2x512xf32>
    %323 = tpu.matmul %276, %322, %cst_134 {dimension_numbers = #tpu.dot_dimension_numbers<[1], [0], [0], [1], [0, 0, 1, 1], [], []>} : vector<2x128xf32>, vector<128x512xf32>, vector<2x512xf32> -> vector<2x512xf32>
    %324 = arith.addf %321, %323 : vector<2x512xf32>
    %325 = vector.extract_strided_slice %324 {offsets = [0, 0], sizes = [2, 128], strides = [1, 1]} : vector<2x512xf32> to vector<2x128xf32>
    %cst_135 = arith.constant 5.000000e-01 : f32
    %326 = vector.broadcast %cst_135 : f32 to vector<2x128xf32>
    %327 = arith.mulf %326, %325 : vector<2x128xf32>
    %328 = math.tanh %327 : vector<2x128xf32>
    %cst_136 = arith.constant 5.000000e-01 : f32
    %329 = vector.broadcast %cst_136 : f32 to vector<2x128xf32>
    %330 = arith.mulf %329, %328 : vector<2x128xf32>
    %cst_137 = arith.constant 5.000000e-01 : f32
    %331 = vector.broadcast %cst_137 : f32 to vector<2x128xf32>
    %332 = arith.addf %330, %331 : vector<2x128xf32>
    %333 = vector.extract_strided_slice %324 {offsets = [0, 128], sizes = [2, 128], strides = [1, 1]} : vector<2x512xf32> to vector<2x128xf32>
    %cst_138 = arith.constant 5.000000e-01 : f32
    %334 = vector.broadcast %cst_138 : f32 to vector<2x128xf32>
    %335 = arith.mulf %334, %333 : vector<2x128xf32>
    %336 = math.tanh %335 : vector<2x128xf32>
    %cst_139 = arith.constant 5.000000e-01 : f32
    %337 = vector.broadcast %cst_139 : f32 to vector<2x128xf32>
    %338 = arith.mulf %337, %336 : vector<2x128xf32>
    %cst_140 = arith.constant 5.000000e-01 : f32
    %339 = vector.broadcast %cst_140 : f32 to vector<2x128xf32>
    %340 = arith.addf %338, %339 : vector<2x128xf32>
    %341 = vector.extract_strided_slice %324 {offsets = [0, 256], sizes = [2, 128], strides = [1, 1]} : vector<2x512xf32> to vector<2x128xf32>
    %342 = math.tanh %341 : vector<2x128xf32>
    %343 = vector.extract_strided_slice %324 {offsets = [0, 384], sizes = [2, 128], strides = [1, 1]} : vector<2x512xf32> to vector<2x128xf32>
    %cst_141 = arith.constant 5.000000e-01 : f32
    %344 = vector.broadcast %cst_141 : f32 to vector<2x128xf32>
    %345 = arith.mulf %344, %343 : vector<2x128xf32>
    %346 = math.tanh %345 : vector<2x128xf32>
    %cst_142 = arith.constant 5.000000e-01 : f32
    %347 = vector.broadcast %cst_142 : f32 to vector<2x128xf32>
    %348 = arith.mulf %347, %346 : vector<2x128xf32>
    %cst_143 = arith.constant 5.000000e-01 : f32
    %349 = vector.broadcast %cst_143 : f32 to vector<2x128xf32>
    %350 = arith.addf %348, %349 : vector<2x128xf32>
    %351 = arith.mulf %340, %274 : vector<2x128xf32>
    %352 = arith.mulf %332, %342 : vector<2x128xf32>
    %353 = arith.addf %351, %352 : vector<2x128xf32>
    %354 = math.tanh %353 : vector<2x128xf32>
    %355 = arith.mulf %350, %354 : vector<2x128xf32>
    %c5_i32 = arith.constant 5 : i32
    %c0_144 = arith.constant 0 : index
    %c0_145 = arith.constant 0 : index
    %356 = vector.load %arg2[%c0_144, %c0_145] : memref<128x512xf32, #tpu.memory_space<vmem>>, vector<128x512xf32>
    %cst_146 = arith.constant dense<0.000000e+00> : vector<2x512xf32>
    %357 = tpu.matmul %355, %356, %cst_146 {dimension_numbers = #tpu.dot_dimension_numbers<[1], [0], [0], [1], [0, 0, 1, 1], [], []>} : vector<2x128xf32>, vector<128x512xf32>, vector<2x512xf32> -> vector<2x512xf32>
    %c0_147 = arith.constant 0 : index
    %c0_148 = arith.constant 0 : index
    %358 = vector.load %arg3[%c0_147, %c0_148] : memref<128x512xf32, #tpu.memory_space<vmem>>, vector<128x512xf32>
    %cst_149 = arith.constant dense<0.000000e+00> : vector<2x512xf32>
    %359 = tpu.matmul %313, %358, %cst_149 {dimension_numbers = #tpu.dot_dimension_numbers<[1], [0], [0], [1], [0, 0, 1, 1], [], []>} : vector<2x128xf32>, vector<128x512xf32>, vector<2x512xf32> -> vector<2x512xf32>
    %360 = arith.addf %357, %359 : vector<2x512xf32>
    %361 = arith.addf %360, %2 : vector<2x512xf32>
    %362 = vector.extract_strided_slice %361 {offsets = [0, 0], sizes = [2, 128], strides = [1, 1]} : vector<2x512xf32> to vector<2x128xf32>
    %cst_150 = arith.constant 5.000000e-01 : f32
    %363 = vector.broadcast %cst_150 : f32 to vector<2x128xf32>
    %364 = arith.mulf %363, %362 : vector<2x128xf32>
    %365 = math.tanh %364 : vector<2x128xf32>
    %cst_151 = arith.constant 5.000000e-01 : f32
    %366 = vector.broadcast %cst_151 : f32 to vector<2x128xf32>
    %367 = arith.mulf %366, %365 : vector<2x128xf32>
    %cst_152 = arith.constant 5.000000e-01 : f32
    %368 = vector.broadcast %cst_152 : f32 to vector<2x128xf32>
    %369 = arith.addf %367, %368 : vector<2x128xf32>
    %370 = vector.extract_strided_slice %361 {offsets = [0, 128], sizes = [2, 128], strides = [1, 1]} : vector<2x512xf32> to vector<2x128xf32>
    %cst_153 = arith.constant 5.000000e-01 : f32
    %371 = vector.broadcast %cst_153 : f32 to vector<2x128xf32>
    %372 = arith.mulf %371, %370 : vector<2x128xf32>
    %373 = math.tanh %372 : vector<2x128xf32>
    %cst_154 = arith.constant 5.000000e-01 : f32
    %374 = vector.broadcast %cst_154 : f32 to vector<2x128xf32>
    %375 = arith.mulf %374, %373 : vector<2x128xf32>
    %cst_155 = arith.constant 5.000000e-01 : f32
    %376 = vector.broadcast %cst_155 : f32 to vector<2x128xf32>
    %377 = arith.addf %375, %376 : vector<2x128xf32>
    %378 = vector.extract_strided_slice %361 {offsets = [0, 256], sizes = [2, 128], strides = [1, 1]} : vector<2x512xf32> to vector<2x128xf32>
    %379 = math.tanh %378 : vector<2x128xf32>
    %380 = vector.extract_strided_slice %361 {offsets = [0, 384], sizes = [2, 128], strides = [1, 1]} : vector<2x512xf32> to vector<2x128xf32>
    %cst_156 = arith.constant 5.000000e-01 : f32
    %381 = vector.broadcast %cst_156 : f32 to vector<2x128xf32>
    %382 = arith.mulf %381, %380 : vector<2x128xf32>
    %383 = math.tanh %382 : vector<2x128xf32>
    %cst_157 = arith.constant 5.000000e-01 : f32
    %384 = vector.broadcast %cst_157 : f32 to vector<2x128xf32>
    %385 = arith.mulf %384, %383 : vector<2x128xf32>
    %cst_158 = arith.constant 5.000000e-01 : f32
    %386 = vector.broadcast %cst_158 : f32 to vector<2x128xf32>
    %387 = arith.addf %385, %386 : vector<2x128xf32>
    %388 = arith.mulf %377, %311 : vector<2x128xf32>
    %389 = arith.mulf %369, %379 : vector<2x128xf32>
    %390 = arith.addf %388, %389 : vector<2x128xf32>
    %391 = math.tanh %390 : vector<2x128xf32>
    %392 = arith.mulf %387, %391 : vector<2x128xf32>
    %c1_i32_159 = arith.constant 1 : i32
    %393 = arith.subi %c5_i32, %c1_i32_159 : i32
    %394 = arith.index_cast %393 : i32 to index
    %c0_160 = arith.constant 0 : index
    %c0_161 = arith.constant 0 : index
    %395 = vector.load %arg5[%394, %c0_160, %c0_161] : memref<8x2x128xf32, #tpu.memory_space<vmem>>, vector<1x2x128xf32>
    %396 = vector.shape_cast %395 : vector<1x2x128xf32> to vector<2x128xf32>
    %397 = vector.shape_cast %392 : vector<2x128xf32> to vector<1x2x128xf32>
    tpu.vector_store %arg5[%394, %c0_160, %c0_161], %397 {strides = array<i32>} : memref<8x2x128xf32, #tpu.memory_space<vmem>>, vector<1x2x128xf32>,
    %398 = arith.index_cast %c5_i32 : i32 to index
    %c0_162 = arith.constant 0 : index
    %c0_163 = arith.constant 0 : index
    %399 = vector.load %arg0[%398, %c0_162, %c0_163] : memref<8x2x512xf32, #tpu.memory_space<vmem>>, vector<1x2x512xf32>
    %400 = vector.shape_cast %399 : vector<1x2x512xf32> to vector<2x512xf32>
    %c0_164 = arith.constant 0 : index
    %c0_165 = arith.constant 0 : index
    %401 = vector.load %arg1[%c0_164, %c0_165] : memref<128x512xf32, #tpu.memory_space<vmem>>, vector<128x512xf32>
    %cst_166 = arith.constant dense<0.000000e+00> : vector<2x512xf32>
    %402 = tpu.matmul %355, %401, %cst_166 {dimension_numbers = #tpu.dot_dimension_numbers<[1], [0], [0], [1], [0, 0, 1, 1], [], []>} : vector<2x128xf32>, vector<128x512xf32>, vector<2x512xf32> -> vector<2x512xf32>
    %403 = arith.addf %400, %402 : vector<2x512xf32>
    %404 = vector.extract_strided_slice %403 {offsets = [0, 0], sizes = [2, 128], strides = [1, 1]} : vector<2x512xf32> to vector<2x128xf32>
    %cst_167 = arith.constant 5.000000e-01 : f32
    %405 = vector.broadcast %cst_167 : f32 to vector<2x128xf32>
    %406 = arith.mulf %405, %404 : vector<2x128xf32>
    %407 = math.tanh %406 : vector<2x128xf32>
    %cst_168 = arith.constant 5.000000e-01 : f32
    %408 = vector.broadcast %cst_168 : f32 to vector<2x128xf32>
    %409 = arith.mulf %408, %407 : vector<2x128xf32>
    %cst_169 = arith.constant 5.000000e-01 : f32
    %410 = vector.broadcast %cst_169 : f32 to vector<2x128xf32>
    %411 = arith.addf %409, %410 : vector<2x128xf32>
    %412 = vector.extract_strided_slice %403 {offsets = [0, 128], sizes = [2, 128], strides = [1, 1]} : vector<2x512xf32> to vector<2x128xf32>
    %cst_170 = arith.constant 5.000000e-01 : f32
    %413 = vector.broadcast %cst_170 : f32 to vector<2x128xf32>
    %414 = arith.mulf %413, %412 : vector<2x128xf32>
    %415 = math.tanh %414 : vector<2x128xf32>
    %cst_171 = arith.constant 5.000000e-01 : f32
    %416 = vector.broadcast %cst_171 : f32 to vector<2x128xf32>
    %417 = arith.mulf %416, %415 : vector<2x128xf32>
    %cst_172 = arith.constant 5.000000e-01 : f32
    %418 = vector.broadcast %cst_172 : f32 to vector<2x128xf32>
    %419 = arith.addf %417, %418 : vector<2x128xf32>
    %420 = vector.extract_strided_slice %403 {offsets = [0, 256], sizes = [2, 128], strides = [1, 1]} : vector<2x512xf32> to vector<2x128xf32>
    %421 = math.tanh %420 : vector<2x128xf32>
    %422 = vector.extract_strided_slice %403 {offsets = [0, 384], sizes = [2, 128], strides = [1, 1]} : vector<2x512xf32> to vector<2x128xf32>
    %cst_173 = arith.constant 5.000000e-01 : f32
    %423 = vector.broadcast %cst_173 : f32 to vector<2x128xf32>
    %424 = arith.mulf %423, %422 : vector<2x128xf32>
    %425 = math.tanh %424 : vector<2x128xf32>
    %cst_174 = arith.constant 5.000000e-01 : f32
    %426 = vector.broadcast %cst_174 : f32 to vector<2x128xf32>
    %427 = arith.mulf %426, %425 : vector<2x128xf32>
    %cst_175 = arith.constant 5.000000e-01 : f32
    %428 = vector.broadcast %cst_175 : f32 to vector<2x128xf32>
    %429 = arith.addf %427, %428 : vector<2x128xf32>
    %430 = arith.mulf %419, %353 : vector<2x128xf32>
    %431 = arith.mulf %411, %421 : vector<2x128xf32>
    %432 = arith.addf %430, %431 : vector<2x128xf32>
    %433 = math.tanh %432 : vector<2x128xf32>
    %434 = arith.mulf %429, %433 : vector<2x128xf32>
    %c6_i32 = arith.constant 6 : i32
    %c0_176 = arith.constant 0 : index
    %c0_177 = arith.constant 0 : index
    %435 = vector.load %arg2[%c0_176, %c0_177] : memref<128x512xf32, #tpu.memory_space<vmem>>, vector<128x512xf32>
    %cst_178 = arith.constant dense<0.000000e+00> : vector<2x512xf32>
    %436 = tpu.matmul %434, %435, %cst_178 {dimension_numbers = #tpu.dot_dimension_numbers<[1], [0], [0], [1], [0, 0, 1, 1], [], []>} : vector<2x128xf32>, vector<128x512xf32>, vector<2x512xf32> -> vector<2x512xf32>
    %c0_179 = arith.constant 0 : index
    %c0_180 = arith.constant 0 : index
    %437 = vector.load %arg3[%c0_179, %c0_180] : memref<128x512xf32, #tpu.memory_space<vmem>>, vector<128x512xf32>
    %cst_181 = arith.constant dense<0.000000e+00> : vector<2x512xf32>
    %438 = tpu.matmul %392, %437, %cst_181 {dimension_numbers = #tpu.dot_dimension_numbers<[1], [0], [0], [1], [0, 0, 1, 1], [], []>} : vector<2x128xf32>, vector<128x512xf32>, vector<2x512xf32> -> vector<2x512xf32>
    %439 = arith.addf %436, %438 : vector<2x512xf32>
    %440 = arith.addf %439, %2 : vector<2x512xf32>
    %441 = vector.extract_strided_slice %440 {offsets = [0, 0], sizes = [2, 128], strides = [1, 1]} : vector<2x512xf32> to vector<2x128xf32>
    %cst_182 = arith.constant 5.000000e-01 : f32
    %442 = vector.broadcast %cst_182 : f32 to vector<2x128xf32>
    %443 = arith.mulf %442, %441 : vector<2x128xf32>
    %444 = math.tanh %443 : vector<2x128xf32>
    %cst_183 = arith.constant 5.000000e-01 : f32
    %445 = vector.broadcast %cst_183 : f32 to vector<2x128xf32>
    %446 = arith.mulf %445, %444 : vector<2x128xf32>
    %cst_184 = arith.constant 5.000000e-01 : f32
    %447 = vector.broadcast %cst_184 : f32 to vector<2x128xf32>
    %448 = arith.addf %446, %447 : vector<2x128xf32>
    %449 = vector.extract_strided_slice %440 {offsets = [0, 128], sizes = [2, 128], strides = [1, 1]} : vector<2x512xf32> to vector<2x128xf32>
    %cst_185 = arith.constant 5.000000e-01 : f32
    %450 = vector.broadcast %cst_185 : f32 to vector<2x128xf32>
    %451 = arith.mulf %450, %449 : vector<2x128xf32>
    %452 = math.tanh %451 : vector<2x128xf32>
    %cst_186 = arith.constant 5.000000e-01 : f32
    %453 = vector.broadcast %cst_186 : f32 to vector<2x128xf32>
    %454 = arith.mulf %453, %452 : vector<2x128xf32>
    %cst_187 = arith.constant 5.000000e-01 : f32
    %455 = vector.broadcast %cst_187 : f32 to vector<2x128xf32>
    %456 = arith.addf %454, %455 : vector<2x128xf32>
    %457 = vector.extract_strided_slice %440 {offsets = [0, 256], sizes = [2, 128], strides = [1, 1]} : vector<2x512xf32> to vector<2x128xf32>
    %458 = math.tanh %457 : vector<2x128xf32>
    %459 = vector.extract_strided_slice %440 {offsets = [0, 384], sizes = [2, 128], strides = [1, 1]} : vector<2x512xf32> to vector<2x128xf32>
    %cst_188 = arith.constant 5.000000e-01 : f32
    %460 = vector.broadcast %cst_188 : f32 to vector<2x128xf32>
    %461 = arith.mulf %460, %459 : vector<2x128xf32>
    %462 = math.tanh %461 : vector<2x128xf32>
    %cst_189 = arith.constant 5.000000e-01 : f32
    %463 = vector.broadcast %cst_189 : f32 to vector<2x128xf32>
    %464 = arith.mulf %463, %462 : vector<2x128xf32>
    %cst_190 = arith.constant 5.000000e-01 : f32
    %465 = vector.broadcast %cst_190 : f32 to vector<2x128xf32>
    %466 = arith.addf %464, %465 : vector<2x128xf32>
    %467 = arith.mulf %456, %390 : vector<2x128xf32>
    %468 = arith.mulf %448, %458 : vector<2x128xf32>
    %469 = arith.addf %467, %468 : vector<2x128xf32>
    %470 = math.tanh %469 : vector<2x128xf32>
    %471 = arith.mulf %466, %470 : vector<2x128xf32>
    %c1_i32_191 = arith.constant 1 : i32
    %472 = arith.subi %c6_i32, %c1_i32_191 : i32
    %473 = arith.index_cast %472 : i32 to index
    %c0_192 = arith.constant 0 : index
    %c0_193 = arith.constant 0 : index
    %474 = vector.load %arg5[%473, %c0_192, %c0_193] : memref<8x2x128xf32, #tpu.memory_space<vmem>>, vector<1x2x128xf32>
    %475 = vector.shape_cast %474 : vector<1x2x128xf32> to vector<2x128xf32>
    %476 = vector.shape_cast %471 : vector<2x128xf32> to vector<1x2x128xf32>
    tpu.vector_store %arg5[%473, %c0_192, %c0_193], %476 {strides = array<i32>} : memref<8x2x128xf32, #tpu.memory_space<vmem>>, vector<1x2x128xf32>,
    %477 = arith.index_cast %c6_i32 : i32 to index
    %c0_194 = arith.constant 0 : index
    %c0_195 = arith.constant 0 : index
    %478 = vector.load %arg0[%477, %c0_194, %c0_195] : memref<8x2x512xf32, #tpu.memory_space<vmem>>, vector<1x2x512xf32>
    %479 = vector.shape_cast %478 : vector<1x2x512xf32> to vector<2x512xf32>
    %c0_196 = arith.constant 0 : index
    %c0_197 = arith.constant 0 : index
    %480 = vector.load %arg1[%c0_196, %c0_197] : memref<128x512xf32, #tpu.memory_space<vmem>>, vector<128x512xf32>
    %cst_198 = arith.constant dense<0.000000e+00> : vector<2x512xf32>
    %481 = tpu.matmul %434, %480, %cst_198 {dimension_numbers = #tpu.dot_dimension_numbers<[1], [0], [0], [1], [0, 0, 1, 1], [], []>} : vector<2x128xf32>, vector<128x512xf32>, vector<2x512xf32> -> vector<2x512xf32>
    %482 = arith.addf %479, %481 : vector<2x512xf32>
    %483 = vector.extract_strided_slice %482 {offsets = [0, 0], sizes = [2, 128], strides = [1, 1]} : vector<2x512xf32> to vector<2x128xf32>
    %cst_199 = arith.constant 5.000000e-01 : f32
    %484 = vector.broadcast %cst_199 : f32 to vector<2x128xf32>
    %485 = arith.mulf %484, %483 : vector<2x128xf32>
    %486 = math.tanh %485 : vector<2x128xf32>
    %cst_200 = arith.constant 5.000000e-01 : f32
    %487 = vector.broadcast %cst_200 : f32 to vector<2x128xf32>
    %488 = arith.mulf %487, %486 : vector<2x128xf32>
    %cst_201 = arith.constant 5.000000e-01 : f32
    %489 = vector.broadcast %cst_201 : f32 to vector<2x128xf32>
    %490 = arith.addf %488, %489 : vector<2x128xf32>
    %491 = vector.extract_strided_slice %482 {offsets = [0, 128], sizes = [2, 128], strides = [1, 1]} : vector<2x512xf32> to vector<2x128xf32>
    %cst_202 = arith.constant 5.000000e-01 : f32
    %492 = vector.broadcast %cst_202 : f32 to vector<2x128xf32>
    %493 = arith.mulf %492, %491 : vector<2x128xf32>
    %494 = math.tanh %493 : vector<2x128xf32>
    %cst_203 = arith.constant 5.000000e-01 : f32
    %495 = vector.broadcast %cst_203 : f32 to vector<2x128xf32>
    %496 = arith.mulf %495, %494 : vector<2x128xf32>
    %cst_204 = arith.constant 5.000000e-01 : f32
    %497 = vector.broadcast %cst_204 : f32 to vector<2x128xf32>
    %498 = arith.addf %496, %497 : vector<2x128xf32>
    %499 = vector.extract_strided_slice %482 {offsets = [0, 256], sizes = [2, 128], strides = [1, 1]} : vector<2x512xf32> to vector<2x128xf32>
    %500 = math.tanh %499 : vector<2x128xf32>
    %501 = vector.extract_strided_slice %482 {offsets = [0, 384], sizes = [2, 128], strides = [1, 1]} : vector<2x512xf32> to vector<2x128xf32>
    %cst_205 = arith.constant 5.000000e-01 : f32
    %502 = vector.broadcast %cst_205 : f32 to vector<2x128xf32>
    %503 = arith.mulf %502, %501 : vector<2x128xf32>
    %504 = math.tanh %503 : vector<2x128xf32>
    %cst_206 = arith.constant 5.000000e-01 : f32
    %505 = vector.broadcast %cst_206 : f32 to vector<2x128xf32>
    %506 = arith.mulf %505, %504 : vector<2x128xf32>
    %cst_207 = arith.constant 5.000000e-01 : f32
    %507 = vector.broadcast %cst_207 : f32 to vector<2x128xf32>
    %508 = arith.addf %506, %507 : vector<2x128xf32>
    %509 = arith.mulf %498, %432 : vector<2x128xf32>
    %510 = arith.mulf %490, %500 : vector<2x128xf32>
    %511 = arith.addf %509, %510 : vector<2x128xf32>
    %512 = math.tanh %511 : vector<2x128xf32>
    %513 = arith.mulf %508, %512 : vector<2x128xf32>
    %c7_i32 = arith.constant 7 : i32
    %c0_208 = arith.constant 0 : index
    %c0_209 = arith.constant 0 : index
    %514 = vector.load %arg2[%c0_208, %c0_209] : memref<128x512xf32, #tpu.memory_space<vmem>>, vector<128x512xf32>
    %cst_210 = arith.constant dense<0.000000e+00> : vector<2x512xf32>
    %515 = tpu.matmul %513, %514, %cst_210 {dimension_numbers = #tpu.dot_dimension_numbers<[1], [0], [0], [1], [0, 0, 1, 1], [], []>} : vector<2x128xf32>, vector<128x512xf32>, vector<2x512xf32> -> vector<2x512xf32>
    %c0_211 = arith.constant 0 : index
    %c0_212 = arith.constant 0 : index
    %516 = vector.load %arg3[%c0_211, %c0_212] : memref<128x512xf32, #tpu.memory_space<vmem>>, vector<128x512xf32>
    %cst_213 = arith.constant dense<0.000000e+00> : vector<2x512xf32>
    %517 = tpu.matmul %471, %516, %cst_213 {dimension_numbers = #tpu.dot_dimension_numbers<[1], [0], [0], [1], [0, 0, 1, 1], [], []>} : vector<2x128xf32>, vector<128x512xf32>, vector<2x512xf32> -> vector<2x512xf32>
    %518 = arith.addf %515, %517 : vector<2x512xf32>
    %519 = arith.addf %518, %2 : vector<2x512xf32>
    %520 = vector.extract_strided_slice %519 {offsets = [0, 0], sizes = [2, 128], strides = [1, 1]} : vector<2x512xf32> to vector<2x128xf32>
    %cst_214 = arith.constant 5.000000e-01 : f32
    %521 = vector.broadcast %cst_214 : f32 to vector<2x128xf32>
    %522 = arith.mulf %521, %520 : vector<2x128xf32>
    %523 = math.tanh %522 : vector<2x128xf32>
    %cst_215 = arith.constant 5.000000e-01 : f32
    %524 = vector.broadcast %cst_215 : f32 to vector<2x128xf32>
    %525 = arith.mulf %524, %523 : vector<2x128xf32>
    %cst_216 = arith.constant 5.000000e-01 : f32
    %526 = vector.broadcast %cst_216 : f32 to vector<2x128xf32>
    %527 = arith.addf %525, %526 : vector<2x128xf32>
    %528 = vector.extract_strided_slice %519 {offsets = [0, 128], sizes = [2, 128], strides = [1, 1]} : vector<2x512xf32> to vector<2x128xf32>
    %cst_217 = arith.constant 5.000000e-01 : f32
    %529 = vector.broadcast %cst_217 : f32 to vector<2x128xf32>
    %530 = arith.mulf %529, %528 : vector<2x128xf32>
    %531 = math.tanh %530 : vector<2x128xf32>
    %cst_218 = arith.constant 5.000000e-01 : f32
    %532 = vector.broadcast %cst_218 : f32 to vector<2x128xf32>
    %533 = arith.mulf %532, %531 : vector<2x128xf32>
    %cst_219 = arith.constant 5.000000e-01 : f32
    %534 = vector.broadcast %cst_219 : f32 to vector<2x128xf32>
    %535 = arith.addf %533, %534 : vector<2x128xf32>
    %536 = vector.extract_strided_slice %519 {offsets = [0, 256], sizes = [2, 128], strides = [1, 1]} : vector<2x512xf32> to vector<2x128xf32>
    %537 = math.tanh %536 : vector<2x128xf32>
    %538 = vector.extract_strided_slice %519 {offsets = [0, 384], sizes = [2, 128], strides = [1, 1]} : vector<2x512xf32> to vector<2x128xf32>
    %cst_220 = arith.constant 5.000000e-01 : f32
    %539 = vector.broadcast %cst_220 : f32 to vector<2x128xf32>
    %540 = arith.mulf %539, %538 : vector<2x128xf32>
    %541 = math.tanh %540 : vector<2x128xf32>
    %cst_221 = arith.constant 5.000000e-01 : f32
    %542 = vector.broadcast %cst_221 : f32 to vector<2x128xf32>
    %543 = arith.mulf %542, %541 : vector<2x128xf32>
    %cst_222 = arith.constant 5.000000e-01 : f32
    %544 = vector.broadcast %cst_222 : f32 to vector<2x128xf32>
    %545 = arith.addf %543, %544 : vector<2x128xf32>
    %546 = arith.mulf %535, %469 : vector<2x128xf32>
    %547 = arith.mulf %527, %537 : vector<2x128xf32>
    %548 = arith.addf %546, %547 : vector<2x128xf32>
    %549 = math.tanh %548 : vector<2x128xf32>
    %550 = arith.mulf %545, %549 : vector<2x128xf32>
    %c1_i32_223 = arith.constant 1 : i32
    %551 = arith.subi %c7_i32, %c1_i32_223 : i32
    %552 = arith.index_cast %551 : i32 to index
    %c0_224 = arith.constant 0 : index
    %c0_225 = arith.constant 0 : index
    %553 = vector.load %arg5[%552, %c0_224, %c0_225] : memref<8x2x128xf32, #tpu.memory_space<vmem>>, vector<1x2x128xf32>
    %554 = vector.shape_cast %553 : vector<1x2x128xf32> to vector<2x128xf32>
    %555 = vector.shape_cast %550 : vector<2x128xf32> to vector<1x2x128xf32>
    tpu.vector_store %arg5[%552, %c0_224, %c0_225], %555 {strides = array<i32>} : memref<8x2x128xf32, #tpu.memory_space<vmem>>, vector<1x2x128xf32>,
    %556 = arith.index_cast %c7_i32 : i32 to index
    %c0_226 = arith.constant 0 : index
    %c0_227 = arith.constant 0 : index
    %557 = vector.load %arg0[%556, %c0_226, %c0_227] : memref<8x2x512xf32, #tpu.memory_space<vmem>>, vector<1x2x512xf32>
    %558 = vector.shape_cast %557 : vector<1x2x512xf32> to vector<2x512xf32>
    %c0_228 = arith.constant 0 : index
    %c0_229 = arith.constant 0 : index
    %559 = vector.load %arg1[%c0_228, %c0_229] : memref<128x512xf32, #tpu.memory_space<vmem>>, vector<128x512xf32>
    %cst_230 = arith.constant dense<0.000000e+00> : vector<2x512xf32>
    %560 = tpu.matmul %513, %559, %cst_230 {dimension_numbers = #tpu.dot_dimension_numbers<[1], [0], [0], [1], [0, 0, 1, 1], [], []>} : vector<2x128xf32>, vector<128x512xf32>, vector<2x512xf32> -> vector<2x512xf32>
    %561 = arith.addf %558, %560 : vector<2x512xf32>
    %562 = vector.extract_strided_slice %561 {offsets = [0, 0], sizes = [2, 128], strides = [1, 1]} : vector<2x512xf32> to vector<2x128xf32>
    %cst_231 = arith.constant 5.000000e-01 : f32
    %563 = vector.broadcast %cst_231 : f32 to vector<2x128xf32>
    %564 = arith.mulf %563, %562 : vector<2x128xf32>
    %565 = math.tanh %564 : vector<2x128xf32>
    %cst_232 = arith.constant 5.000000e-01 : f32
    %566 = vector.broadcast %cst_232 : f32 to vector<2x128xf32>
    %567 = arith.mulf %566, %565 : vector<2x128xf32>
    %cst_233 = arith.constant 5.000000e-01 : f32
    %568 = vector.broadcast %cst_233 : f32 to vector<2x128xf32>
    %569 = arith.addf %567, %568 : vector<2x128xf32>
    %570 = vector.extract_strided_slice %561 {offsets = [0, 128], sizes = [2, 128], strides = [1, 1]} : vector<2x512xf32> to vector<2x128xf32>
    %cst_234 = arith.constant 5.000000e-01 : f32
    %571 = vector.broadcast %cst_234 : f32 to vector<2x128xf32>
    %572 = arith.mulf %571, %570 : vector<2x128xf32>
    %573 = math.tanh %572 : vector<2x128xf32>
    %cst_235 = arith.constant 5.000000e-01 : f32
    %574 = vector.broadcast %cst_235 : f32 to vector<2x128xf32>
    %575 = arith.mulf %574, %573 : vector<2x128xf32>
    %cst_236 = arith.constant 5.000000e-01 : f32
    %576 = vector.broadcast %cst_236 : f32 to vector<2x128xf32>
    %577 = arith.addf %575, %576 : vector<2x128xf32>
    %578 = vector.extract_strided_slice %561 {offsets = [0, 256], sizes = [2, 128], strides = [1, 1]} : vector<2x512xf32> to vector<2x128xf32>
    %579 = math.tanh %578 : vector<2x128xf32>
    %580 = vector.extract_strided_slice %561 {offsets = [0, 384], sizes = [2, 128], strides = [1, 1]} : vector<2x512xf32> to vector<2x128xf32>
    %cst_237 = arith.constant 5.000000e-01 : f32
    %581 = vector.broadcast %cst_237 : f32 to vector<2x128xf32>
    %582 = arith.mulf %581, %580 : vector<2x128xf32>
    %583 = math.tanh %582 : vector<2x128xf32>
    %cst_238 = arith.constant 5.000000e-01 : f32
    %584 = vector.broadcast %cst_238 : f32 to vector<2x128xf32>
    %585 = arith.mulf %584, %583 : vector<2x128xf32>
    %cst_239 = arith.constant 5.000000e-01 : f32
    %586 = vector.broadcast %cst_239 : f32 to vector<2x128xf32>
    %587 = arith.addf %585, %586 : vector<2x128xf32>
    %588 = arith.mulf %577, %511 : vector<2x128xf32>
    %589 = arith.mulf %569, %579 : vector<2x128xf32>
    %590 = arith.addf %588, %589 : vector<2x128xf32>
    %591 = math.tanh %590 : vector<2x128xf32>
    %592 = arith.mulf %587, %591 : vector<2x128xf32>
    %c7_i32_240 = arith.constant 7 : i32
    %c0_241 = arith.constant 0 : index
    %c0_242 = arith.constant 0 : index
    %593 = vector.load %arg2[%c0_241, %c0_242] : memref<128x512xf32, #tpu.memory_space<vmem>>, vector<128x512xf32>
    %cst_243 = arith.constant dense<0.000000e+00> : vector<2x512xf32>
    %594 = tpu.matmul %592, %593, %cst_243 {dimension_numbers = #tpu.dot_dimension_numbers<[1], [0], [0], [1], [0, 0, 1, 1], [], []>} : vector<2x128xf32>, vector<128x512xf32>, vector<2x512xf32> -> vector<2x512xf32>
    %c0_244 = arith.constant 0 : index
    %c0_245 = arith.constant 0 : index
    %595 = vector.load %arg3[%c0_244, %c0_245] : memref<128x512xf32, #tpu.memory_space<vmem>>, vector<128x512xf32>
    %cst_246 = arith.constant dense<0.000000e+00> : vector<2x512xf32>
    %596 = tpu.matmul %550, %595, %cst_246 {dimension_numbers = #tpu.dot_dimension_numbers<[1], [0], [0], [1], [0, 0, 1, 1], [], []>} : vector<2x128xf32>, vector<128x512xf32>, vector<2x512xf32> -> vector<2x512xf32>
    %597 = arith.addf %594, %596 : vector<2x512xf32>
    %598 = arith.addf %597, %2 : vector<2x512xf32>
    %599 = vector.extract_strided_slice %598 {offsets = [0, 0], sizes = [2, 128], strides = [1, 1]} : vector<2x512xf32> to vector<2x128xf32>
    %cst_247 = arith.constant 5.000000e-01 : f32
    %600 = vector.broadcast %cst_247 : f32 to vector<2x128xf32>
    %601 = arith.mulf %600, %599 : vector<2x128xf32>
    %602 = math.tanh %601 : vector<2x128xf32>
    %cst_248 = arith.constant 5.000000e-01 : f32
    %603 = vector.broadcast %cst_248 : f32 to vector<2x128xf32>
    %604 = arith.mulf %603, %602 : vector<2x128xf32>
    %cst_249 = arith.constant 5.000000e-01 : f32
    %605 = vector.broadcast %cst_249 : f32 to vector<2x128xf32>
    %606 = arith.addf %604, %605 : vector<2x128xf32>
    %607 = vector.extract_strided_slice %598 {offsets = [0, 128], sizes = [2, 128], strides = [1, 1]} : vector<2x512xf32> to vector<2x128xf32>
    %cst_250 = arith.constant 5.000000e-01 : f32
    %608 = vector.broadcast %cst_250 : f32 to vector<2x128xf32>
    %609 = arith.mulf %608, %607 : vector<2x128xf32>
    %610 = math.tanh %609 : vector<2x128xf32>
    %cst_251 = arith.constant 5.000000e-01 : f32
    %611 = vector.broadcast %cst_251 : f32 to vector<2x128xf32>
    %612 = arith.mulf %611, %610 : vector<2x128xf32>
    %cst_252 = arith.constant 5.000000e-01 : f32
    %613 = vector.broadcast %cst_252 : f32 to vector<2x128xf32>
    %614 = arith.addf %612, %613 : vector<2x128xf32>
    %615 = vector.extract_strided_slice %598 {offsets = [0, 256], sizes = [2, 128], strides = [1, 1]} : vector<2x512xf32> to vector<2x128xf32>
    %616 = math.tanh %615 : vector<2x128xf32>
    %617 = vector.extract_strided_slice %598 {offsets = [0, 384], sizes = [2, 128], strides = [1, 1]} : vector<2x512xf32> to vector<2x128xf32>
    %cst_253 = arith.constant 5.000000e-01 : f32
    %618 = vector.broadcast %cst_253 : f32 to vector<2x128xf32>
    %619 = arith.mulf %618, %617 : vector<2x128xf32>
    %620 = math.tanh %619 : vector<2x128xf32>
    %cst_254 = arith.constant 5.000000e-01 : f32
    %621 = vector.broadcast %cst_254 : f32 to vector<2x128xf32>
    %622 = arith.mulf %621, %620 : vector<2x128xf32>
    %cst_255 = arith.constant 5.000000e-01 : f32
    %623 = vector.broadcast %cst_255 : f32 to vector<2x128xf32>
    %624 = arith.addf %622, %623 : vector<2x128xf32>
    %625 = arith.mulf %614, %548 : vector<2x128xf32>
    %626 = arith.mulf %606, %616 : vector<2x128xf32>
    %627 = arith.addf %625, %626 : vector<2x128xf32>
    %628 = math.tanh %627 : vector<2x128xf32>
    %629 = arith.mulf %624, %628 : vector<2x128xf32>
    %c7 = arith.constant 7 : index
    %c0_256 = arith.constant 0 : index
    %c0_257 = arith.constant 0 : index
    %630 = vector.load %arg5[%c7, %c0_256, %c0_257] : memref<8x2x128xf32, #tpu.memory_space<vmem>>, vector<1x2x128xf32>
    %631 = vector.shape_cast %630 : vector<1x2x128xf32> to vector<2x128xf32>
    %632 = vector.shape_cast %629 : vector<2x128xf32> to vector<1x2x128xf32>
    tpu.vector_store %arg5[%c7, %c0_256, %c0_257], %632 {strides = array<i32>} : memref<8x2x128xf32, #tpu.memory_space<vmem>>, vector<1x2x128xf32>,
    return
  }
}

</mosaic_0001>

<llo_original>
// kernel: lstm_decoder_pallas.1
$region0: #{lstm_decoder_pallas.1}
  #allocation0 [shape = 'u32[]', space=smem, size = 0x4, offset = 0x4, fixed_abs, tag = 'smem constant byte address 0x4 - core index']
  #allocation1 [shape = 'u32[144,128]{1,0:T(1,128)}', space=vmem, size = 0x12000, scoped, tag = 'internal scratch']
  %s0 = inlined_call_operand.vmem [shape: f32[8,2,512], index: 0, kind: input, shape index: {}]
  %s1 = inlined_call_operand.hbm [shape: f32[128,512], index: 1, kind: input, shape index: {}]
  %s2 = inlined_call_operand.hbm [shape: f32[128,512], index: 2, kind: input, shape index: {}]
  %s3 = inlined_call_operand.hbm [shape: f32[128,512], index: 3, kind: input, shape index: {}]
  %s4 = inlined_call_operand.vmem [shape: f32[1,512], index: 4, kind: input, shape index: {}]
  %s5 = inlined_call_operand.vmem [shape: f32[8,2,128], index: 5, kind: output, shape index: {}]
  %s6 = sld [smem:[#allocation0]]
  $region42: #{lstm_decoder_pallas.1} parent=0
    _
  %s8 = ssub.s32 1, %s6
  %s9 = scalar_select 0, %s8, %s6
  $region1: #{lstm_decoder_pallas.1} parent=0
    #allocation2 [shape = 'u8[262144]{0}', space=vmem, size = 0x40000, scoped, tag = 'input window, operand 1, single buffered']
    #allocation3 [shape = 's32[1]{0}', space=sflag, size = 0x4, scoped, tag = 'scoped memory for lstm_decoder_pallas.1']
    #allocation4 [shape = 'u8[262144]{0}', space=vmem, size = 0x40000, scoped, tag = 'input window, operand 2, single buffered']
    #allocation5 [shape = 's32[1]{0}', space=sflag, size = 0x4, scoped, tag = 'scoped memory for lstm_decoder_pallas.1']
    #allocation6 [shape = 'u8[262144]{0}', space=vmem, size = 0x40000, scoped, tag = 'input window, operand 3, single buffered']
    %10 = vsyncpa [#allocation3], 0
    %11 = vsyncpa [#allocation5], 0
    // Predicated region
    $region2: #{lstm_decoder_pallas.1} parent=1 // pred_check
      _
    $region3: #{lstm_decoder_pallas.1} parent=1 // pred_check_branch
      %13 = sbr.rel (0) target = $region5
    $region4: #{lstm_decoder_pallas.1} parent=1 // pred_region
      _
    $region5: #{lstm_decoder_pallas.1} parent=1 // pred_fallthru
      _
    // Predicated region
    $region6: #{lstm_decoder_pallas.1} parent=1 // pred_check
      _
    $region7: #{lstm_decoder_pallas.1} parent=1 // pred_check_branch
      %15 = sbr.rel (0) target = $region9
    $region8: #{lstm_decoder_pallas.1} parent=1 // pred_region
      %s17 = ssub.s32 8192, 8192
      %18 = vsyncadd [#allocation3], %s17
      %s19 = sshll.u32 [#allocation2], 4
      %s20 = int_to_ptr.vmem [resolvable:$true] %s19
      %25 = dma.hbm_to_vmem [thread:$0]  %s1, 8192, %s20, [#allocation3], 512, 512, 32
    $region9: #{lstm_decoder_pallas.1} parent=1 // pred_fallthru
      _
    // Predicated region
    $region10: #{lstm_decoder_pallas.1} parent=1 // pred_check
      _
    $region11: #{lstm_decoder_pallas.1} parent=1 // pred_check_branch
      %27 = sbr.rel (0) target = $region13
    $region12: #{lstm_decoder_pallas.1} parent=1 // pred_region
      %s29 = ssub.s32 8192, 8192
      %30 = vsyncadd [#allocation5], %s29
      %s31 = sshll.u32 [#allocation4], 4
      %s32 = int_to_ptr.vmem [resolvable:$true] %s31
      %37 = dma.hbm_to_vmem [thread:$0]  %s2, 8192, %s32, [#allocation5], 512, 512, 32
    $region13: #{lstm_decoder_pallas.1} parent=1 // pred_fallthru
      _
    // Predicated region
    $region14: #{lstm_decoder_pallas.1} parent=1 // pred_check
      _
    $region15: #{lstm_decoder_pallas.1} parent=1 // pred_check_branch
      %39 = sbr.rel (0) target = $region17
    $region16: #{lstm_decoder_pallas.1} parent=1 // pred_region
      %s41 = ssub.s32 8192, 8192
      %42 = vsyncadd [#allocation5], %s41
      %s43 = sshll.u32 [#allocation6], 4
      %s44 = int_to_ptr.vmem [resolvable:$true] %s43
      %49 = dma.hbm_to_vmem [thread:$0]  %s3, 8192, %s44, [#allocation5], 512, 512, 32
    $region17: #{lstm_decoder_pallas.1} parent=1 // pred_fallthru
      _
    // Predicated region
    $region18: #{lstm_decoder_pallas.1} parent=1 // pred_check
      _
    $region19: #{lstm_decoder_pallas.1} parent=1 // pred_check_branch
      %51 = sbr.rel (0) target = $region21
    $region20: #{lstm_decoder_pallas.1} parent=1 // pred_region
      _
    $region21: #{lstm_decoder_pallas.1} parent=1 // pred_fallthru
      _
    // Predicated region
    $region22: #{lstm_decoder_pallas.1} parent=1 // pred_check
      _
    $region23: #{lstm_decoder_pallas.1} parent=1 // pred_check_branch
      %53 = sbr.rel (0) target = $region25
    $region24: #{lstm_decoder_pallas.1} parent=1 // pred_region
      %54 = dma.done [#allocation3], 8192
    $region25: #{lstm_decoder_pallas.1} parent=1 // pred_fallthru
      _
    // Predicated region
    $region26: #{lstm_decoder_pallas.1} parent=1 // pred_check
      _
    $region27: #{lstm_decoder_pallas.1} parent=1 // pred_check_branch
      %56 = sbr.rel (0) target = $region29
    $region28: #{lstm_decoder_pallas.1} parent=1 // pred_region
      %57 = dma.done [#allocation5], 8192
    $region29: #{lstm_decoder_pallas.1} parent=1 // pred_fallthru
      _
    // Predicated region
    $region30: #{lstm_decoder_pallas.1} parent=1 // pred_check
      _
    $region31: #{lstm_decoder_pallas.1} parent=1 // pred_check_branch
      %59 = sbr.rel (0) target = $region33
    $region32: #{lstm_decoder_pallas.1} parent=1 // pred_region
      %60 = dma.done [#allocation5], 8192
    $region33: #{lstm_decoder_pallas.1} parent=1 // pred_fallthru
      _
    %v61 = vld [vmem:[%s4] sm:$0xf]
    %v63 = vlaneseq
    %v64 = vshrl.u32 %v63, 7
    %v65 = vsub.s32 0, %v64
    %v66 = vrot.slane %v61, %v65
    %v67 = vlaneseq
    %v68 = vshrl.u32 %v67, 7
    %v69 = vsub.s32 1, %v68
    %v70 = vrot.slane %v61, %v69
    %v71 = vlaneseq
    %v72 = vshrl.u32 %v71, 7
    %v73 = vsub.s32 2, %v72
    %v74 = vrot.slane %v61, %v73
    %v75 = vlaneseq
    %v76 = vshrl.u32 %v75, 7
    %v77 = vsub.s32 3, %v76
    %v78 = vrot.slane %v61, %v77
    %v83 = vld [vmem:[%s0] sm:$0xff]
    %v84 = vld [vmem:[#allocation2] sm:$0xff]
    %v85 = vld [vmem:[#allocation2 + $0x8] sm:$0xff]
    %v86 = vld [vmem:[#allocation2 + $0x10] sm:$0xff]
    %v87 = vld [vmem:[#allocation2 + $0x18] sm:$0xff]
    %v88 = vld [vmem:[#allocation2 + $0x20] sm:$0xff]
    %v89 = vld [vmem:[#allocation2 + $0x28] sm:$0xff]
    %v90 = vld [vmem:[#allocation2 + $0x30] sm:$0xff]
    %v91 = vld [vmem:[#allocation2 + $0x38] sm:$0xff]
    %v92 = vld [vmem:[#allocation2 + $0x40] sm:$0xff]
    %v93 = vld [vmem:[#allocation2 + $0x48] sm:$0xff]
    %v94 = vld [vmem:[#allocation2 + $0x50] sm:$0xff]
    %v95 = vld [vmem:[#allocation2 + $0x58] sm:$0xff]
    %v96 = vld [vmem:[#allocation2 + $0x60] sm:$0xff]
    %v97 = vld [vmem:[#allocation2 + $0x68] sm:$0xff]
    %v98 = vld [vmem:[#allocation2 + $0x70] sm:$0xff]
    %v99 = vld [vmem:[#allocation2 + $0x78] sm:$0xff]
    %v100 = vld [vmem:[#allocation2 + $0x80] sm:$0xff]
    %v101 = vld [vmem:[#allocation2 + $0x88] sm:$0xff]
    %v102 = vld [vmem:[#allocation2 + $0x90] sm:$0xff]
    %v103 = vld [vmem:[#allocation2 + $0x98] sm:$0xff]
    %v104 = vld [vmem:[#allocation2 + $0xa0] sm:$0xff]
    %v105 = vld [vmem:[#allocation2 + $0xa8] sm:$0xff]
    %v106 = vld [vmem:[#allocation2 + $0xb0] sm:$0xff]
    %v107 = vld [vmem:[#allocation2 + $0xb8] sm:$0xff]
    %v108 = vld [vmem:[#allocation2 + $0xc0] sm:$0xff]
    %v109 = vld [vmem:[#allocation2 + $0xc8] sm:$0xff]
    %v110 = vld [vmem:[#allocation2 + $0xd0] sm:$0xff]
    %v111 = vld [vmem:[#allocation2 + $0xd8] sm:$0xff]
    %v112 = vld [vmem:[#allocation2 + $0xe0] sm:$0xff]
    %v113 = vld [vmem:[#allocation2 + $0xe8] sm:$0xff]
    %v114 = vld [vmem:[#allocation2 + $0xf0] sm:$0xff]
    %v115 = vld [vmem:[#allocation2 + $0xf8] sm:$0xff]
    %v116 = vld [vmem:[#allocation2 + $0x100] sm:$0xff]
    %v117 = vld [vmem:[#allocation2 + $0x108] sm:$0xff]
    %v118 = vld [vmem:[#allocation2 + $0x110] sm:$0xff]
    %v119 = vld [vmem:[#allocation2 + $0x118] sm:$0xff]
    %v120 = vld [vmem:[#allocation2 + $0x120] sm:$0xff]
    %v121 = vld [vmem:[#allocation2 + $0x128] sm:$0xff]
    %v122 = vld [vmem:[#allocation2 + $0x130] sm:$0xff]
    %v123 = vld [vmem:[#allocation2 + $0x138] sm:$0xff]
    %v124 = vld [vmem:[#allocation2 + $0x140] sm:$0xff]
    %v125 = vld [vmem:[#allocation2 + $0x148] sm:$0xff]
    %v126 = vld [vmem:[#allocation2 + $0x150] sm:$0xff]
    %v127 = vld [vmem:[#allocation2 + $0x158] sm:$0xff]
    %v128 = vld [vmem:[#allocation2 + $0x160] sm:$0xff]
    %v129 = vld [vmem:[#allocation2 + $0x168] sm:$0xff]
    %v130 = vld [vmem:[#allocation2 + $0x170] sm:$0xff]
    %v131 = vld [vmem:[#allocation2 + $0x178] sm:$0xff]
    %v132 = vld [vmem:[#allocation2 + $0x180] sm:$0xff]
    %v133 = vld [vmem:[#allocation2 + $0x188] sm:$0xff]
    %v134 = vld [vmem:[#allocation2 + $0x190] sm:$0xff]
    %v135 = vld [vmem:[#allocation2 + $0x198] sm:$0xff]
    %v136 = vld [vmem:[#allocation2 + $0x1a0] sm:$0xff]
    %v137 = vld [vmem:[#allocation2 + $0x1a8] sm:$0xff]
    %v138 = vld [vmem:[#allocation2 + $0x1b0] sm:$0xff]
    %v139 = vld [vmem:[#allocation2 + $0x1b8] sm:$0xff]
    %v140 = vld [vmem:[#allocation2 + $0x1c0] sm:$0xff]
    %v141 = vld [vmem:[#allocation2 + $0x1c8] sm:$0xff]
    %v142 = vld [vmem:[#allocation2 + $0x1d0] sm:$0xff]
    %v143 = vld [vmem:[#allocation2 + $0x1d8] sm:$0xff]
    %v144 = vld [vmem:[#allocation2 + $0x1e0] sm:$0xff]
    %v145 = vld [vmem:[#allocation2 + $0x1e8] sm:$0xff]
    %v146 = vld [vmem:[#allocation2 + $0x1f0] sm:$0xff]
    %v147 = vld [vmem:[#allocation2 + $0x1f8] sm:$0xff]
    %148 = vmatprep.subr.mxu0 %v85
    %149 = vmatpush1.msra.mxu0 %v84
    %150 = vmatprep.subr.mxu0 %v89
    %151 = vmatpush1.msra.mxu0 %v88
    %152 = vmatprep.subr.mxu0 %v93
    %153 = vmatpush1.msra.mxu0 %v92
    %154 = vmatprep.subr.mxu0 %v97
    %155 = vmatpush1.msra.mxu0 %v96
    %156 = vmatprep.subr.mxu0 %v101
    %157 = vmatpush1.msra.mxu0 %v100
    %158 = vmatprep.subr.mxu0 %v105
    %159 = vmatpush1.msra.mxu0 %v104
    %160 = vmatprep.subr.mxu0 %v109
    %161 = vmatpush1.msra.mxu0 %v108
    %162 = vmatprep.subr.mxu0 %v113
    %163 = vmatpush1.msra.mxu0 %v112
    %164 = vmatprep.subr.mxu0 %v117
    %165 = vmatpush1.msra.mxu0 %v116
    %166 = vmatprep.subr.mxu0 %v121
    %167 = vmatpush1.msra.mxu0 %v120
    %168 = vmatprep.subr.mxu0 %v125
    %169 = vmatpush1.msra.mxu0 %v124
    %170 = vmatprep.subr.mxu0 %v129
    %171 = vmatpush1.msra.mxu0 %v128
    %172 = vmatprep.subr.mxu0 %v133
    %173 = vmatpush1.msra.mxu0 %v132
    %174 = vmatprep.subr.mxu0 %v137
    %175 = vmatpush1.msra.mxu0 %v136
    %176 = vmatprep.subr.mxu0 %v141
    %177 = vmatpush1.msra.mxu0 %v140
    %178 = vmatprep.subr.mxu0 %v145
    %179 = vmatpush1.msra.mxu0 %v144
    %180 = vmatprep.subr.mxu0 0.0
    %181 = vmatpush1.msra.mxu0 0.0
    %182 = vmatprep.subr.mxu0 0.0
    %183 = vmatpush1.msra.mxu0 0.0
    %184 = vmatprep.subr.mxu0 0.0
    %185 = vmatpush1.msra.mxu0 0.0
    %186 = vmatprep.subr.mxu0 0.0
    %187 = vmatpush1.msra.mxu0 0.0
    %188 = vmatprep.subr.mxu0 0.0
    %189 = vmatpush1.msra.mxu0 0.0
    %190 = vmatprep.subr.mxu0 0.0
    %191 = vmatpush1.msra.mxu0 0.0
    %192 = vmatprep.subr.mxu0 0.0
    %193 = vmatpush1.msra.mxu0 0.0
    %194 = vmatprep.subr.mxu0 0.0
    %195 = vmatpush1.msra.mxu0 0.0
    %196 = vmatprep.subr.mxu0 0.0
    %197 = vmatpush1.msra.mxu0 0.0
    %198 = vmatprep.subr.mxu0 0.0
    %199 = vmatpush1.msra.mxu0 0.0
    %200 = vmatprep.subr.mxu0 0.0
    %201 = vmatpush1.msra.mxu0 0.0
    %202 = vmatprep.subr.mxu0 0.0
    %203 = vmatpush1.msra.mxu0 0.0
    %204 = vmatprep.subr.mxu0 0.0
    %205 = vmatpush1.msra.mxu0 0.0
    %206 = vmatprep.subr.mxu0 0.0
    %207 = vmatpush1.msra.mxu0 0.0
    %208 = vmatprep.subr.mxu0 0.0
    %209 = vmatpush1.msra.mxu0 0.0
    %210 = vmatprep.subr.mxu0 0.0
    %211 = vmatpush1.msra.mxu0 0.0
    %212 = vmatprep.mubr.f32.mxu0 0.0
    %213 = vmatmul.mubr.f32.gmra.mrb[0].mxu0 0.0
    %v214 = vpop.f32.mrb[0].mxu0
    %v215 = vadd.f32 0.0, %v214
    %v216 = vpop.f32.mrb[0].mxu0
    %v217 = vadd.f32 0.0, %v216
    %218 = vdwg.mxu0
    %219 = vmatprep.subr.mxu0 %v87
    %220 = vmatpush1.msra.mxu0 %v86
    %221 = vmatprep.subr.mxu0 %v91
    %222 = vmatpush1.msra.mxu0 %v90
    %223 = vmatprep.subr.mxu0 %v95
    %224 = vmatpush1.msra.mxu0 %v94
    %225 = vmatprep.subr.mxu0 %v99
    %226 = vmatpush1.msra.mxu0 %v98
    %227 = vmatprep.subr.mxu0 %v103
    %228 = vmatpush1.msra.mxu0 %v102
    %229 = vmatprep.subr.mxu0 %v107
    %230 = vmatpush1.msra.mxu0 %v106
    %231 = vmatprep.subr.mxu0 %v111
    %232 = vmatpush1.msra.mxu0 %v110
    %233 = vmatprep.subr.mxu0 %v115
    %234 = vmatpush1.msra.mxu0 %v114
    %235 = vmatprep.subr.mxu0 %v119
    %236 = vmatpush1.msra.mxu0 %v118
    %237 = vmatprep.subr.mxu0 %v123
    %238 = vmatpush1.msra.mxu0 %v122
    %239 = vmatprep.subr.mxu0 %v127
    %240 = vmatpush1.msra.mxu0 %v126
    %241 = vmatprep.subr.mxu0 %v131
    %242 = vmatpush1.msra.mxu0 %v130
    %243 = vmatprep.subr.mxu0 %v135
    %244 = vmatpush1.msra.mxu0 %v134
    %245 = vmatprep.subr.mxu0 %v139
    %246 = vmatpush1.msra.mxu0 %v138
    %247 = vmatprep.subr.mxu0 %v143
    %248 = vmatpush1.msra.mxu0 %v142
    %249 = vmatprep.subr.mxu0 %v147
    %250 = vmatpush1.msra.mxu0 %v146
    %251 = vmatprep.subr.mxu0 0.0
    %252 = vmatpush1.msra.mxu0 0.0
    %253 = vmatprep.subr.mxu0 0.0
    %254 = vmatpush1.msra.mxu0 0.0
    %255 = vmatprep.subr.mxu0 0.0
    %256 = vmatpush1.msra.mxu0 0.0
    %257 = vmatprep.subr.mxu0 0.0
    %258 = vmatpush1.msra.mxu0 0.0
    %259 = vmatprep.subr.mxu0 0.0
    %260 = vmatpush1.msra.mxu0 0.0
    %261 = vmatprep.subr.mxu0 0.0
    %262 = vmatpush1.msra.mxu0 0.0
    %263 = vmatprep.subr.mxu0 0.0
    %264 = vmatpush1.msra.mxu0 0.0
    %265 = vmatprep.subr.mxu0 0.0
    %266 = vmatpush1.msra.mxu0 0.0
    %267 = vmatprep.subr.mxu0 0.0
    %268 = vmatpush1.msra.mxu0 0.0
    %269 = vmatprep.subr.mxu0 0.0
    %270 = vmatpush1.msra.mxu0 0.0
    %271 = vmatprep.subr.mxu0 0.0
    %272 = vmatpush1.msra.mxu0 0.0
    %273 = vmatprep.subr.mxu0 0.0
    %274 = vmatpush1.msra.mxu0 0.0
    %275 = vmatprep.subr.mxu0 0.0
    %276 = vmatpush1.msra.mxu0 0.0
    %277 = vmatprep.subr.mxu0 0.0
    %278 = vmatpush1.msra.mxu0 0.0
    %279 = vmatprep.subr.mxu0 0.0
    %280 = vmatpush1.msra.mxu0 0.0
    %281 = vmatprep.subr.mxu0 0.0
    %282 = vmatpush1.msra.mxu0 0.0
    %283 = vmatprep.mubr.f32.mxu0 0.0
    %284 = vmatmul.mubr.f32.gmra.mrb[0].mxu0 0.0
    %v285 = vpop.f32.mrb[0].mxu0
    %v286 = vadd.f32 0.0, %v285
    %v287 = vpop.f32.mrb[0].mxu0
    %v288 = vadd.f32 0.0, %v287
    %289 = vdwg.mxu0
    %v294 = vcombine.low %v215, %v217
    %v295 = vcombine.low %v286, %v288
    %v297 = vunpack.c.l.s4 1983009808
    %v298 = vunpack.c.0.s8 %v297
    %v299 = vlaneseq
    %v300 = vshrl.u32 %v299, 7
    %v301 = vsub.s32 %v298, %v300
    %v302 = vrot.slane %v294, %v301
    %v304 = vunpack.c.l.s4 1983009808
    %v305 = vunpack.c.0.s8 %v304
    %v306 = vlaneseq
    %v307 = vshrl.u32 %v306, 7
    %v308 = vsub.s32 %v305, %v307
    %v309 = vrot.slane %v295, %v308
    %v310 = vcombine.low %v302, %v309
    %v312 = vadd.f32 %v83, %v310
    %v313 = vmul.f32 %v312, 0.5
    %v314 = vtanh.pop %v313
    %v315 = vmul.f32 %v314, 0.5
    %v316 = vadd.f32 %v315, 0.5
    %v318 = vrot.slane %v312, 2
    %v320 = vmul.f32 %v318, 0.5
    %v321 = vtanh.pop %v320
    %v322 = vmul.f32 %v321, 0.5
    %v323 = vadd.f32 %v322, 0.5
    %v324 = vrot.slane %v312, 4
    %v326 = vtanh.pop %v324
    %v327 = vrot.slane %v312, 6
    %v329 = vmul.f32 %v327, 0.5
    %v330 = vtanh.pop %v329
    %v331 = vmul.f32 %v330, 0.5
    %v332 = vadd.f32 %v331, 0.5
    %v333 = vmul.f32 %v323, 0.0
    %v334 = vmul.f32 %v316, %v326
    %v335 = vadd.f32 %v333, %v334
    %v336 = vtanh.pop %v335
    %v337 = vmul.f32 %v332, %v336
    %v338 = vld [vmem:[#allocation4] sm:$0xff]
    %v339 = vld [vmem:[#allocation4 + $0x8] sm:$0xff]
    %v340 = vld [vmem:[#allocation4 + $0x10] sm:$0xff]
    %v341 = vld [vmem:[#allocation4 + $0x18] sm:$0xff]
    %v342 = vld [vmem:[#allocation4 + $0x20] sm:$0xff]
    %v343 = vld [vmem:[#allocation4 + $0x28] sm:$0xff]
    %v344 = vld [vmem:[#allocation4 + $0x30] sm:$0xff]
    %v345 = vld [vmem:[#allocation4 + $0x38] sm:$0xff]
    %v346 = vld [vmem:[#allocation4 + $0x40] sm:$0xff]
    %v347 = vld [vmem:[#allocation4 + $0x48] sm:$0xff]
    %v348 = vld [vmem:[#allocation4 + $0x50] sm:$0xff]
    %v349 = vld [vmem:[#allocation4 + $0x58] sm:$0xff]
    %v350 = vld [vmem:[#allocation4 + $0x60] sm:$0xff]
    %v351 = vld [vmem:[#allocation4 + $0x68] sm:$0xff]
    %v352 = vld [vmem:[#allocation4 + $0x70] sm:$0xff]
    %v353 = vld [vmem:[#allocation4 + $0x78] sm:$0xff]
    %v354 = vld [vmem:[#allocation4 + $0x80] sm:$0xff]
    %v355 = vld [vmem:[#allocation4 + $0x88] sm:$0xff]
    %v356 = vld [vmem:[#allocation4 + $0x90] sm:$0xff]
    %v357 = vld [vmem:[#allocation4 + $0x98] sm:$0xff]
    %v358 = vld [vmem:[#allocation4 + $0xa0] sm:$0xff]
    %v359 = vld [vmem:[#allocation4 + $0xa8] sm:$0xff]
    %v360 = vld [vmem:[#allocation4 + $0xb0] sm:$0xff]
    %v361 = vld [vmem:[#allocation4 + $0xb8] sm:$0xff]
    %v362 = vld [vmem:[#allocation4 + $0xc0] sm:$0xff]
    %v363 = vld [vmem:[#allocation4 + $0xc8] sm:$0xff]
    %v364 = vld [vmem:[#allocation4 + $0xd0] sm:$0xff]
    %v365 = vld [vmem:[#allocation4 + $0xd8] sm:$0xff]
    %v366 = vld [vmem:[#allocation4 + $0xe0] sm:$0xff]
    %v367 = vld [vmem:[#allocation4 + $0xe8] sm:$0xff]
    %v368 = vld [vmem:[#allocation4 + $0xf0] sm:$0xff]
    %v369 = vld [vmem:[#allocation4 + $0xf8] sm:$0xff]
    %v370 = vld [vmem:[#allocation4 + $0x100] sm:$0xff]
    %v371 = vld [vmem:[#allocation4 + $0x108] sm:$0xff]
    %v372 = vld [vmem:[#allocation4 + $0x110] sm:$0xff]
    %v373 = vld [vmem:[#allocation4 + $0x118] sm:$0xff]
    %v374 = vld [vmem:[#allocation4 + $0x120] sm:$0xff]
    %v375 = vld [vmem:[#allocation4 + $0x128] sm:$0xff]
    %v376 = vld [vmem:[#allocation4 + $0x130] sm:$0xff]
    %v377 = vld [vmem:[#allocation4 + $0x138] sm:$0xff]
    %v378 = vld [vmem:[#allocation4 + $0x140] sm:$0xff]
    %v379 = vld [vmem:[#allocation4 + $0x148] sm:$0xff]
    %v380 = vld [vmem:[#allocation4 + $0x150] sm:$0xff]
    %v381 = vld [vmem:[#allocation4 + $0x158] sm:$0xff]
    %v382 = vld [vmem:[#allocation4 + $0x160] sm:$0xff]
    %v383 = vld [vmem:[#allocation4 + $0x168] sm:$0xff]
    %v384 = vld [vmem:[#allocation4 + $0x170] sm:$0xff]
    %v385 = vld [vmem:[#allocation4 + $0x178] sm:$0xff]
    %v386 = vld [vmem:[#allocation4 + $0x180] sm:$0xff]
    %v387 = vld [vmem:[#allocation4 + $0x188] sm:$0xff]
    %v388 = vld [vmem:[#allocation4 + $0x190] sm:$0xff]
    %v389 = vld [vmem:[#allocation4 + $0x198] sm:$0xff]
    %v390 = vld [vmem:[#allocation4 + $0x1a0] sm:$0xff]
    %v391 = vld [vmem:[#allocation4 + $0x1a8] sm:$0xff]
    %v392 = vld [vmem:[#allocation4 + $0x1b0] sm:$0xff]
    %v393 = vld [vmem:[#allocation4 + $0x1b8] sm:$0xff]
    %v394 = vld [vmem:[#allocation4 + $0x1c0] sm:$0xff]
    %v395 = vld [vmem:[#allocation4 + $0x1c8] sm:$0xff]
    %v396 = vld [vmem:[#allocation4 + $0x1d0] sm:$0xff]
    %v397 = vld [vmem:[#allocation4 + $0x1d8] sm:$0xff]
    %v398 = vld [vmem:[#allocation4 + $0x1e0] sm:$0xff]
    %v399 = vld [vmem:[#allocation4 + $0x1e8] sm:$0xff]
    %v400 = vld [vmem:[#allocation4 + $0x1f0] sm:$0xff]
    %v401 = vld [vmem:[#allocation4 + $0x1f8] sm:$0xff]
    %v402 = vld [vmem:[#allocation6] sm:$0xff]
    %v403 = vld [vmem:[#allocation6 + $0x8] sm:$0xff]
    %v404 = vld [vmem:[#allocation6 + $0x10] sm:$0xff]
    %v405 = vld [vmem:[#allocation6 + $0x18] sm:$0xff]
    %v406 = vld [vmem:[#allocation6 + $0x20] sm:$0xff]
    %v407 = vld [vmem:[#allocation6 + $0x28] sm:$0xff]
    %v408 = vld [vmem:[#allocation6 + $0x30] sm:$0xff]
    %v409 = vld [vmem:[#allocation6 + $0x38] sm:$0xff]
    %v410 = vld [vmem:[#allocation6 + $0x40] sm:$0xff]
    %v411 = vld [vmem:[#allocation6 + $0x48] sm:$0xff]
    %v412 = vld [vmem:[#allocation6 + $0x50] sm:$0xff]
    %v413 = vld [vmem:[#allocation6 + $0x58] sm:$0xff]
    %v414 = vld [vmem:[#allocation6 + $0x60] sm:$0xff]
    %v415 = vld [vmem:[#allocation6 + $0x68] sm:$0xff]
    %v416 = vld [vmem:[#allocation6 + $0x70] sm:$0xff]
    %v417 = vld [vmem:[#allocation6 + $0x78] sm:$0xff]
    %v418 = vld [vmem:[#allocation6 + $0x80] sm:$0xff]
    %v419 = vld [vmem:[#allocation6 + $0x88] sm:$0xff]
    %v420 = vld [vmem:[#allocation6 + $0x90] sm:$0xff]
    %v421 = vld [vmem:[#allocation6 + $0x98] sm:$0xff]
    %v422 = vld [vmem:[#allocation6 + $0xa0] sm:$0xff]
    %v423 = vld [vmem:[#allocation6 + $0xa8] sm:$0xff]
    %v424 = vld [vmem:[#allocation6 + $0xb0] sm:$0xff]
    %v425 = vld [vmem:[#allocation6 + $0xb8] sm:$0xff]
    %v426 = vld [vmem:[#allocation6 + $0xc0] sm:$0xff]
    %v427 = vld [vmem:[#allocation6 + $0xc8] sm:$0xff]
    %v428 = vld [vmem:[#allocation6 + $0xd0] sm:$0xff]
    %v429 = vld [vmem:[#allocation6 + $0xd8] sm:$0xff]
    %v430 = vld [vmem:[#allocation6 + $0xe0] sm:$0xff]
    %v431 = vld [vmem:[#allocation6 + $0xe8] sm:$0xff]
    %v432 = vld [vmem:[#allocation6 + $0xf0] sm:$0xff]
    %v433 = vld [vmem:[#allocation6 + $0xf8] sm:$0xff]
    %v434 = vld [vmem:[#allocation6 + $0x100] sm:$0xff]
    %v435 = vld [vmem:[#allocation6 + $0x108] sm:$0xff]
    %v436 = vld [vmem:[#allocation6 + $0x110] sm:$0xff]
    %v437 = vld [vmem:[#allocation6 + $0x118] sm:$0xff]
    %v438 = vld [vmem:[#allocation6 + $0x120] sm:$0xff]
    %v439 = vld [vmem:[#allocation6 + $0x128] sm:$0xff]
    %v440 = vld [vmem:[#allocation6 + $0x130] sm:$0xff]
    %v441 = vld [vmem:[#allocation6 + $0x138] sm:$0xff]
    %v442 = vld [vmem:[#allocation6 + $0x140] sm:$0xff]
    %v443 = vld [vmem:[#allocation6 + $0x148] sm:$0xff]
    %v444 = vld [vmem:[#allocation6 + $0x150] sm:$0xff]
    %v445 = vld [vmem:[#allocation6 + $0x158] sm:$0xff]
    %v446 = vld [vmem:[#allocation6 + $0x160] sm:$0xff]
    %v447 = vld [vmem:[#allocation6 + $0x168] sm:$0xff]
    %v448 = vld [vmem:[#allocation6 + $0x170] sm:$0xff]
    %v449 = vld [vmem:[#allocation6 + $0x178] sm:$0xff]
    %v450 = vld [vmem:[#allocation6 + $0x180] sm:$0xff]
    %v451 = vld [vmem:[#allocation6 + $0x188] sm:$0xff]
    %v452 = vld [vmem:[#allocation6 + $0x190] sm:$0xff]
    %v453 = vld [vmem:[#allocation6 + $0x198] sm:$0xff]
    %v454 = vld [vmem:[#allocation6 + $0x1a0] sm:$0xff]
    %v455 = vld [vmem:[#allocation6 + $0x1a8] sm:$0xff]
    %v456 = vld [vmem:[#allocation6 + $0x1b0] sm:$0xff]
    %v457 = vld [vmem:[#allocation6 + $0x1b8] sm:$0xff]
    %v458 = vld [vmem:[#allocation6 + $0x1c0] sm:$0xff]
    %v459 = vld [vmem:[#allocation6 + $0x1c8] sm:$0xff]
    %v460 = vld [vmem:[#allocation6 + $0x1d0] sm:$0xff]
    %v461 = vld [vmem:[#allocation6 + $0x1d8] sm:$0xff]
    %v462 = vld [vmem:[#allocation6 + $0x1e0] sm:$0xff]
    %v463 = vld [vmem:[#allocation6 + $0x1e8] sm:$0xff]
    %v464 = vld [vmem:[#allocation6 + $0x1f0] sm:$0xff]
    %v465 = vld [vmem:[#allocation6 + $0x1f8] sm:$0xff]
    %466 = vmatprep.subr.mxu0 %v403
    %467 = vmatpush1.msra.mxu0 %v402
    %468 = vmatprep.subr.mxu0 %v407
    %469 = vmatpush1.msra.mxu0 %v406
    %470 = vmatprep.subr.mxu0 %v411
    %471 = vmatpush1.msra.mxu0 %v410
    %472 = vmatprep.subr.mxu0 %v415
    %473 = vmatpush1.msra.mxu0 %v414
    %474 = vmatprep.subr.mxu0 %v419
    %475 = vmatpush1.msra.mxu0 %v418
    %476 = vmatprep.subr.mxu0 %v423
    %477 = vmatpush1.msra.mxu0 %v422
    %478 = vmatprep.subr.mxu0 %v427
    %479 = vmatpush1.msra.mxu0 %v426
    %480 = vmatprep.subr.mxu0 %v431
    %481 = vmatpush1.msra.mxu0 %v430
    %482 = vmatprep.subr.mxu0 %v435
    %483 = vmatpush1.msra.mxu0 %v434
    %484 = vmatprep.subr.mxu0 %v439
    %485 = vmatpush1.msra.mxu0 %v438
    %486 = vmatprep.subr.mxu0 %v443
    %487 = vmatpush1.msra.mxu0 %v442
    %488 = vmatprep.subr.mxu0 %v447
    %489 = vmatpush1.msra.mxu0 %v446
    %490 = vmatprep.subr.mxu0 %v451
    %491 = vmatpush1.msra.mxu0 %v450
    %492 = vmatprep.subr.mxu0 %v455
    %493 = vmatpush1.msra.mxu0 %v454
    %494 = vmatprep.subr.mxu0 %v459
    %495 = vmatpush1.msra.mxu0 %v458
    %496 = vmatprep.subr.mxu0 %v463
    %497 = vmatpush1.msra.mxu0 %v462
    %498 = vmatprep.subr.mxu0 0.0
    %499 = vmatpush1.msra.mxu0 0.0
    %500 = vmatprep.subr.mxu0 0.0
    %501 = vmatpush1.msra.mxu0 0.0
    %502 = vmatprep.subr.mxu0 0.0
    %503 = vmatpush1.msra.mxu0 0.0
    %504 = vmatprep.subr.mxu0 0.0
    %505 = vmatpush1.msra.mxu0 0.0
    %506 = vmatprep.subr.mxu0 0.0
    %507 = vmatpush1.msra.mxu0 0.0
    %508 = vmatprep.subr.mxu0 0.0
    %509 = vmatpush1.msra.mxu0 0.0
    %510 = vmatprep.subr.mxu0 0.0
    %511 = vmatpush1.msra.mxu0 0.0
    %512 = vmatprep.subr.mxu0 0.0
    %513 = vmatpush1.msra.mxu0 0.0
    %514 = vmatprep.subr.mxu0 0.0
    %515 = vmatpush1.msra.mxu0 0.0
    %516 = vmatprep.subr.mxu0 0.0
    %517 = vmatpush1.msra.mxu0 0.0
    %518 = vmatprep.subr.mxu0 0.0
    %519 = vmatpush1.msra.mxu0 0.0
    %520 = vmatprep.subr.mxu0 0.0
    %521 = vmatpush1.msra.mxu0 0.0
    %522 = vmatprep.subr.mxu0 0.0
    %523 = vmatpush1.msra.mxu0 0.0
    %524 = vmatprep.subr.mxu0 0.0
    %525 = vmatpush1.msra.mxu0 0.0
    %526 = vmatprep.subr.mxu0 0.0
    %527 = vmatpush1.msra.mxu0 0.0
    %528 = vmatprep.subr.mxu0 0.0
    %529 = vmatpush1.msra.mxu0 0.0
    %530 = vmatprep.mubr.f32.mxu0 0.0
    %531 = vmatmul.mubr.f32.gmra.mrb[0].mxu0 0.0
    %v532 = vpop.f32.mrb[0].mxu0
    %v533 = vadd.f32 0.0, %v532
    %v534 = vpop.f32.mrb[0].mxu0
    %v535 = vadd.f32 0.0, %v534
    %536 = vdwg.mxu0
    %537 = vmatprep.subr.mxu0 %v405
    %538 = vmatpush1.msra.mxu0 %v404
    %539 = vmatprep.subr.mxu0 %v409
    %540 = vmatpush1.msra.mxu0 %v408
    %541 = vmatprep.subr.mxu0 %v413
    %542 = vmatpush1.msra.mxu0 %v412
    %543 = vmatprep.subr.mxu0 %v417
    %544 = vmatpush1.msra.mxu0 %v416
    %545 = vmatprep.subr.mxu0 %v421
    %546 = vmatpush1.msra.mxu0 %v420
    %547 = vmatprep.subr.mxu0 %v425
    %548 = vmatpush1.msra.mxu0 %v424
    %549 = vmatprep.subr.mxu0 %v429
    %550 = vmatpush1.msra.mxu0 %v428
    %551 = vmatprep.subr.mxu0 %v433
    %552 = vmatpush1.msra.mxu0 %v432
    %553 = vmatprep.subr.mxu0 %v437
    %554 = vmatpush1.msra.mxu0 %v436
    %555 = vmatprep.subr.mxu0 %v441
    %556 = vmatpush1.msra.mxu0 %v440
    %557 = vmatprep.subr.mxu0 %v445
    %558 = vmatpush1.msra.mxu0 %v444
    %559 = vmatprep.subr.mxu0 %v449
    %560 = vmatpush1.msra.mxu0 %v448
    %561 = vmatprep.subr.mxu0 %v453
    %562 = vmatpush1.msra.mxu0 %v452
    %563 = vmatprep.subr.mxu0 %v457
    %564 = vmatpush1.msra.mxu0 %v456
    %565 = vmatprep.subr.mxu0 %v461
    %566 = vmatpush1.msra.mxu0 %v460
    %567 = vmatprep.subr.mxu0 %v465
    %568 = vmatpush1.msra.mxu0 %v464
    %569 = vmatprep.subr.mxu0 0.0
    %570 = vmatpush1.msra.mxu0 0.0
    %571 = vmatprep.subr.mxu0 0.0
    %572 = vmatpush1.msra.mxu0 0.0
    %573 = vmatprep.subr.mxu0 0.0
    %574 = vmatpush1.msra.mxu0 0.0
    %575 = vmatprep.subr.mxu0 0.0
    %576 = vmatpush1.msra.mxu0 0.0
    %577 = vmatprep.subr.mxu0 0.0
    %578 = vmatpush1.msra.mxu0 0.0
    %579 = vmatprep.subr.mxu0 0.0
    %580 = vmatpush1.msra.mxu0 0.0
    %581 = vmatprep.subr.mxu0 0.0
    %582 = vmatpush1.msra.mxu0 0.0
    %583 = vmatprep.subr.mxu0 0.0
    %584 = vmatpush1.msra.mxu0 0.0
    %585 = vmatprep.subr.mxu0 0.0
    %586 = vmatpush1.msra.mxu0 0.0
    %587 = vmatprep.subr.mxu0 0.0
    %588 = vmatpush1.msra.mxu0 0.0
    %589 = vmatprep.subr.mxu0 0.0
    %590 = vmatpush1.msra.mxu0 0.0
    %591 = vmatprep.subr.mxu0 0.0
    %592 = vmatpush1.msra.mxu0 0.0
    %593 = vmatprep.subr.mxu0 0.0
    %594 = vmatpush1.msra.mxu0 0.0
    %595 = vmatprep.subr.mxu0 0.0
    %596 = vmatpush1.msra.mxu0 0.0
    %597 = vmatprep.subr.mxu0 0.0
    %598 = vmatpush1.msra.mxu0 0.0
    %599 = vmatprep.subr.mxu0 0.0
    %600 = vmatpush1.msra.mxu0 0.0
    %601 = vmatprep.mubr.f32.mxu0 0.0
    %602 = vmatmul.mubr.f32.gmra.mrb[0].mxu0 0.0
    %v603 = vpop.f32.mrb[0].mxu0
    %v604 = vadd.f32 0.0, %v603
    %v605 = vpop.f32.mrb[0].mxu0
    %v606 = vadd.f32 0.0, %v605
    %607 = vdwg.mxu0
    %608 = vmatprep.subr.mxu0 %v339
    %609 = vmatpush1.msra.mxu0 %v338
    %610 = vmatprep.subr.mxu0 %v343
    %611 = vmatpush1.msra.mxu0 %v342
    %612 = vmatprep.subr.mxu0 %v347
    %613 = vmatpush1.msra.mxu0 %v346
    %614 = vmatprep.subr.mxu0 %v351
    %615 = vmatpush1.msra.mxu0 %v350
    %616 = vmatprep.subr.mxu0 %v355
    %617 = vmatpush1.msra.mxu0 %v354
    %618 = vmatprep.subr.mxu0 %v359
    %619 = vmatpush1.msra.mxu0 %v358
    %620 = vmatprep.subr.mxu0 %v363
    %621 = vmatpush1.msra.mxu0 %v362
    %622 = vmatprep.subr.mxu0 %v367
    %623 = vmatpush1.msra.mxu0 %v366
    %624 = vmatprep.subr.mxu0 %v371
    %625 = vmatpush1.msra.mxu0 %v370
    %626 = vmatprep.subr.mxu0 %v375
    %627 = vmatpush1.msra.mxu0 %v374
    %628 = vmatprep.subr.mxu0 %v379
    %629 = vmatpush1.msra.mxu0 %v378
    %630 = vmatprep.subr.mxu0 %v383
    %631 = vmatpush1.msra.mxu0 %v382
    %632 = vmatprep.subr.mxu0 %v387
    %633 = vmatpush1.msra.mxu0 %v386
    %634 = vmatprep.subr.mxu0 %v391
    %635 = vmatpush1.msra.mxu0 %v390
    %636 = vmatprep.subr.mxu0 %v395
    %637 = vmatpush1.msra.mxu0 %v394
    %638 = vmatprep.subr.mxu0 %v399
    %639 = vmatpush1.msra.mxu0 %v398
    %640 = vmatprep.subr.mxu0 0.0
    %641 = vmatpush1.msra.mxu0 0.0
    %642 = vmatprep.subr.mxu0 0.0
    %643 = vmatpush1.msra.mxu0 0.0
    %644 = vmatprep.subr.mxu0 0.0
    %645 = vmatpush1.msra.mxu0 0.0
    %646 = vmatprep.subr.mxu0 0.0
    %647 = vmatpush1.msra.mxu0 0.0
    %648 = vmatprep.subr.mxu0 0.0
    %649 = vmatpush1.msra.mxu0 0.0
    %650 = vmatprep.subr.mxu0 0.0
    %651 = vmatpush1.msra.mxu0 0.0
    %652 = vmatprep.subr.mxu0 0.0
    %653 = vmatpush1.msra.mxu0 0.0
    %654 = vmatprep.subr.mxu0 0.0
    %655 = vmatpush1.msra.mxu0 0.0
    %656 = vmatprep.subr.mxu0 0.0
    %657 = vmatpush1.msra.mxu0 0.0
    %658 = vmatprep.subr.mxu0 0.0
    %659 = vmatpush1.msra.mxu0 0.0
    %660 = vmatprep.subr.mxu0 0.0
    %661 = vmatpush1.msra.mxu0 0.0
    %662 = vmatprep.subr.mxu0 0.0
    %663 = vmatpush1.msra.mxu0 0.0
    %664 = vmatprep.subr.mxu0 0.0
    %665 = vmatpush1.msra.mxu0 0.0
    %666 = vmatprep.subr.mxu0 0.0
    %667 = vmatpush1.msra.mxu0 0.0
    %668 = vmatprep.subr.mxu0 0.0
    %669 = vmatpush1.msra.mxu0 0.0
    %670 = vmatprep.subr.mxu0 0.0
    %671 = vmatpush1.msra.mxu0 0.0
    %672 = vmatprep.mubr.f32.mxu0 0.0
    %673 = vmatmul.mubr.f32.gmra.mrb[0].mxu0 %v337
    %v674 = vpop.f32.mrb[0].mxu0
    %v675 = vadd.f32 %v533, %v674
    %v676 = vpop.f32.mrb[0].mxu0
    %v677 = vadd.f32 %v535, %v676
    %678 = vdwg.mxu0
    %679 = vmatprep.subr.mxu0 %v341
    %680 = vmatpush1.msra.mxu0 %v340
    %681 = vmatprep.subr.mxu0 %v345
    %682 = vmatpush1.msra.mxu0 %v344
    %683 = vmatprep.subr.mxu0 %v349
    %684 = vmatpush1.msra.mxu0 %v348
    %685 = vmatprep.subr.mxu0 %v353
    %686 = vmatpush1.msra.mxu0 %v352
    %687 = vmatprep.subr.mxu0 %v357
    %688 = vmatpush1.msra.mxu0 %v356
    %689 = vmatprep.subr.mxu0 %v361
    %690 = vmatpush1.msra.mxu0 %v360
    %691 = vmatprep.subr.mxu0 %v365
    %692 = vmatpush1.msra.mxu0 %v364
    %693 = vmatprep.subr.mxu0 %v369
    %694 = vmatpush1.msra.mxu0 %v368
    %695 = vmatprep.subr.mxu0 %v373
    %696 = vmatpush1.msra.mxu0 %v372
    %697 = vmatprep.subr.mxu0 %v377
    %698 = vmatpush1.msra.mxu0 %v376
    %699 = vmatprep.subr.mxu0 %v381
    %700 = vmatpush1.msra.mxu0 %v380
    %701 = vmatprep.subr.mxu0 %v385
    %702 = vmatpush1.msra.mxu0 %v384
    %703 = vmatprep.subr.mxu0 %v389
    %704 = vmatpush1.msra.mxu0 %v388
    %705 = vmatprep.subr.mxu0 %v393
    %706 = vmatpush1.msra.mxu0 %v392
    %707 = vmatprep.subr.mxu0 %v397
    %708 = vmatpush1.msra.mxu0 %v396
    %709 = vmatprep.subr.mxu0 %v401
    %710 = vmatpush1.msra.mxu0 %v400
    %711 = vmatprep.subr.mxu0 0.0
    %712 = vmatpush1.msra.mxu0 0.0
    %713 = vmatprep.subr.mxu0 0.0
    %714 = vmatpush1.msra.mxu0 0.0
    %715 = vmatprep.subr.mxu0 0.0
    %716 = vmatpush1.msra.mxu0 0.0
    %717 = vmatprep.subr.mxu0 0.0
    %718 = vmatpush1.msra.mxu0 0.0
    %719 = vmatprep.subr.mxu0 0.0
    %720 = vmatpush1.msra.mxu0 0.0
    %721 = vmatprep.subr.mxu0 0.0
    %722 = vmatpush1.msra.mxu0 0.0
    %723 = vmatprep.subr.mxu0 0.0
    %724 = vmatpush1.msra.mxu0 0.0
    %725 = vmatprep.subr.mxu0 0.0
    %726 = vmatpush1.msra.mxu0 0.0
    %727 = vmatprep.subr.mxu0 0.0
    %728 = vmatpush1.msra.mxu0 0.0
    %729 = vmatprep.subr.mxu0 0.0
    %730 = vmatpush1.msra.mxu0 0.0
    %731 = vmatprep.subr.mxu0 0.0
    %732 = vmatpush1.msra.mxu0 0.0
    %733 = vmatprep.subr.mxu0 0.0
    %734 = vmatpush1.msra.mxu0 0.0
    %735 = vmatprep.subr.mxu0 0.0
    %736 = vmatpush1.msra.mxu0 0.0
    %737 = vmatprep.subr.mxu0 0.0
    %738 = vmatpush1.msra.mxu0 0.0
    %739 = vmatprep.subr.mxu0 0.0
    %740 = vmatpush1.msra.mxu0 0.0
    %741 = vmatprep.subr.mxu0 0.0
    %742 = vmatpush1.msra.mxu0 0.0
    %743 = vmatprep.mubr.f32.mxu0 0.0
    %744 = vmatmul.mubr.f32.gmra.mrb[0].mxu0 %v337
    %v745 = vpop.f32.mrb[0].mxu0
    %v746 = vadd.f32 %v604, %v745
    %v747 = vpop.f32.mrb[0].mxu0
    %v748 = vadd.f32 %v606, %v747
    %749 = vdwg.mxu0
    %v750 = vadd.f32 %v675, %v66
    %v751 = vadd.f32 %v677, %v70
    %v752 = vadd.f32 %v746, %v74
    %v753 = vadd.f32 %v748, %v78
    %v754 = vmul.f32 %v750, 0.5
    %v755 = vtanh.pop %v754
    %v756 = vmul.f32 %v755, 0.5
    %v757 = vadd.f32 %v756, 0.5
    %v758 = vmul.f32 %v751, 0.5
    %v759 = vtanh.pop %v758
    %v760 = vmul.f32 %v759, 0.5
    %v761 = vadd.f32 %v760, 0.5
    %v762 = vtanh.pop %v752
    %v763 = vmul.f32 %v753, 0.5
    %v764 = vtanh.pop %v763
    %v765 = vmul.f32 %v764, 0.5
    %v766 = vadd.f32 %v765, 0.5
    %v767 = vmul.f32 %v761, 0.0
    %v768 = vmul.f32 %v757, %v762
    %v769 = vadd.f32 %v767, %v768
    %v770 = vtanh.pop %v769
    %v771 = vmul.f32 %v766, %v770
    %772 = vst [vmem:[%s5] sm:$0x3] %v771
    %s773 = scalar_lea.vmem %s0, 8
    %v774 = vld [vmem:[%s773] sm:$0xff]
    %v775 = vld [vmem:[#allocation2] sm:$0xff]
    %v776 = vld [vmem:[#allocation2 + $0x8] sm:$0xff]
    %v777 = vld [vmem:[#allocation2 + $0x10] sm:$0xff]
    %v778 = vld [vmem:[#allocation2 + $0x18] sm:$0xff]
    %v779 = vld [vmem:[#allocation2 + $0x20] sm:$0xff]
    %v780 = vld [vmem:[#allocation2 + $0x28] sm:$0xff]
    %v781 = vld [vmem:[#allocation2 + $0x30] sm:$0xff]
    %v782 = vld [vmem:[#allocation2 + $0x38] sm:$0xff]
    %v783 = vld [vmem:[#allocation2 + $0x40] sm:$0xff]
    %v784 = vld [vmem:[#allocation2 + $0x48] sm:$0xff]
    %v785 = vld [vmem:[#allocation2 + $0x50] sm:$0xff]
    %v786 = vld [vmem:[#allocation2 + $0x58] sm:$0xff]
    %v787 = vld [vmem:[#allocation2 + $0x60] sm:$0xff]
    %v788 = vld [vmem:[#allocation2 + $0x68] sm:$0xff]
    %v789 = vld [vmem:[#allocation2 + $0x70] sm:$0xff]
    %v790 = vld [vmem:[#allocation2 + $0x78] sm:$0xff]
    %v791 = vld [vmem:[#allocation2 + $0x80] sm:$0xff]
    %v792 = vld [vmem:[#allocation2 + $0x88] sm:$0xff]
    %v793 = vld [vmem:[#allocation2 + $0x90] sm:$0xff]
    %v794 = vld [vmem:[#allocation2 + $0x98] sm:$0xff]
    %v795 = vld [vmem:[#allocation2 + $0xa0] sm:$0xff]
    %v796 = vld [vmem:[#allocation2 + $0xa8] sm:$0xff]
    %v797 = vld [vmem:[#allocation2 + $0xb0] sm:$0xff]
    %v798 = vld [vmem:[#allocation2 + $0xb8] sm:$0xff]
    %v799 = vld [vmem:[#allocation2 + $0xc0] sm:$0xff]
    %v800 = vld [vmem:[#allocation2 + $0xc8] sm:$0xff]
    %v801 = vld [vmem:[#allocation2 + $0xd0] sm:$0xff]
    %v802 = vld [vmem:[#allocation2 + $0xd8] sm:$0xff]
    %v803 = vld [vmem:[#allocation2 + $0xe0] sm:$0xff]
    %v804 = vld [vmem:[#allocation2 + $0xe8] sm:$0xff]
    %v805 = vld [vmem:[#allocation2 + $0xf0] sm:$0xff]
    %v806 = vld [vmem:[#allocation2 + $0xf8] sm:$0xff]
    %v807 = vld [vmem:[#allocation2 + $0x100] sm:$0xff]
    %v808 = vld [vmem:[#allocation2 + $0x108] sm:$0xff]
    %v809 = vld [vmem:[#allocation2 + $0x110] sm:$0xff]
    %v810 = vld [vmem:[#allocation2 + $0x118] sm:$0xff]
    %v811 = vld [vmem:[#allocation2 + $0x120] sm:$0xff]
    %v812 = vld [vmem:[#allocation2 + $0x128] sm:$0xff]
    %v813 = vld [vmem:[#allocation2 + $0x130] sm:$0xff]
    %v814 = vld [vmem:[#allocation2 + $0x138] sm:$0xff]
    %v815 = vld [vmem:[#allocation2 + $0x140] sm:$0xff]
    %v816 = vld [vmem:[#allocation2 + $0x148] sm:$0xff]
    %v817 = vld [vmem:[#allocation2 + $0x150] sm:$0xff]
    %v818 = vld [vmem:[#allocation2 + $0x158] sm:$0xff]
    %v819 = vld [vmem:[#allocation2 + $0x160] sm:$0xff]
    %v820 = vld [vmem:[#allocation2 + $0x168] sm:$0xff]
    %v821 = vld [vmem:[#allocation2 + $0x170] sm:$0xff]
    %v822 = vld [vmem:[#allocation2 + $0x178] sm:$0xff]
    %v823 = vld [vmem:[#allocation2 + $0x180] sm:$0xff]
    %v824 = vld [vmem:[#allocation2 + $0x188] sm:$0xff]
    %v825 = vld [vmem:[#allocation2 + $0x190] sm:$0xff]
    %v826 = vld [vmem:[#allocation2 + $0x198] sm:$0xff]
    %v827 = vld [vmem:[#allocation2 + $0x1a0] sm:$0xff]
    %v828 = vld [vmem:[#allocation2 + $0x1a8] sm:$0xff]
    %v829 = vld [vmem:[#allocation2 + $0x1b0] sm:$0xff]
    %v830 = vld [vmem:[#allocation2 + $0x1b8] sm:$0xff]
    %v831 = vld [vmem:[#allocation2 + $0x1c0] sm:$0xff]
    %v832 = vld [vmem:[#allocation2 + $0x1c8] sm:$0xff]
    %v833 = vld [vmem:[#allocation2 + $0x1d0] sm:$0xff]
    %v834 = vld [vmem:[#allocation2 + $0x1d8] sm:$0xff]
    %v835 = vld [vmem:[#allocation2 + $0x1e0] sm:$0xff]
    %v836 = vld [vmem:[#allocation2 + $0x1e8] sm:$0xff]
    %v837 = vld [vmem:[#allocation2 + $0x1f0] sm:$0xff]
    %v838 = vld [vmem:[#allocation2 + $0x1f8] sm:$0xff]
    %839 = vmatprep.subr.mxu0 %v776
    %840 = vmatpush1.msra.mxu0 %v775
    %841 = vmatprep.subr.mxu0 %v780
    %842 = vmatpush1.msra.mxu0 %v779
    %843 = vmatprep.subr.mxu0 %v784
    %844 = vmatpush1.msra.mxu0 %v783
    %845 = vmatprep.subr.mxu0 %v788
    %846 = vmatpush1.msra.mxu0 %v787
    %847 = vmatprep.subr.mxu0 %v792
    %848 = vmatpush1.msra.mxu0 %v791
    %849 = vmatprep.subr.mxu0 %v796
    %850 = vmatpush1.msra.mxu0 %v795
    %851 = vmatprep.subr.mxu0 %v800
    %852 = vmatpush1.msra.mxu0 %v799
    %853 = vmatprep.subr.mxu0 %v804
    %854 = vmatpush1.msra.mxu0 %v803
    %855 = vmatprep.subr.mxu0 %v808
    %856 = vmatpush1.msra.mxu0 %v807
    %857 = vmatprep.subr.mxu0 %v812
    %858 = vmatpush1.msra.mxu0 %v811
    %859 = vmatprep.subr.mxu0 %v816
    %860 = vmatpush1.msra.mxu0 %v815
    %861 = vmatprep.subr.mxu0 %v820
    %862 = vmatpush1.msra.mxu0 %v819
    %863 = vmatprep.subr.mxu0 %v824
    %864 = vmatpush1.msra.mxu0 %v823
    %865 = vmatprep.subr.mxu0 %v828
    %866 = vmatpush1.msra.mxu0 %v827
    %867 = vmatprep.subr.mxu0 %v832
    %868 = vmatpush1.msra.mxu0 %v831
    %869 = vmatprep.subr.mxu0 %v836
    %870 = vmatpush1.msra.mxu0 %v835
    %871 = vmatprep.subr.mxu0 0.0
    %872 = vmatpush1.msra.mxu0 0.0
    %873 = vmatprep.subr.mxu0 0.0
    %874 = vmatpush1.msra.mxu0 0.0
    %875 = vmatprep.subr.mxu0 0.0
    %876 = vmatpush1.msra.mxu0 0.0
    %877 = vmatprep.subr.mxu0 0.0
    %878 = vmatpush1.msra.mxu0 0.0
    %879 = vmatprep.subr.mxu0 0.0
    %880 = vmatpush1.msra.mxu0 0.0
    %881 = vmatprep.subr.mxu0 0.0
    %882 = vmatpush1.msra.mxu0 0.0
    %883 = vmatprep.subr.mxu0 0.0
    %884 = vmatpush1.msra.mxu0 0.0
    %885 = vmatprep.subr.mxu0 0.0
    %886 = vmatpush1.msra.mxu0 0.0
    %887 = vmatprep.subr.mxu0 0.0
    %888 = vmatpush1.msra.mxu0 0.0
    %889 = vmatprep.subr.mxu0 0.0
    %890 = vmatpush1.msra.mxu0 0.0
    %891 = vmatprep.subr.mxu0 0.0
    %892 = vmatpush1.msra.mxu0 0.0
    %893 = vmatprep.subr.mxu0 0.0
    %894 = vmatpush1.msra.mxu0 0.0
    %895 = vmatprep.subr.mxu0 0.0
    %896 = vmatpush1.msra.mxu0 0.0
    %897 = vmatprep.subr.mxu0 0.0
    %898 = vmatpush1.msra.mxu0 0.0
    %899 = vmatprep.subr.mxu0 0.0
    %900 = vmatpush1.msra.mxu0 0.0
    %901 = vmatprep.subr.mxu0 0.0
    %902 = vmatpush1.msra.mxu0 0.0
    %903 = vmatprep.mubr.f32.mxu0 0.0
    %904 = vmatmul.mubr.f32.gmra.mrb[0].mxu0 %v337
    %v905 = vpop.f32.mrb[0].mxu0
    %v906 = vadd.f32 0.0, %v905
    %v907 = vpop.f32.mrb[0].mxu0
    %v908 = vadd.f32 0.0, %v907
    %909 = vdwg.mxu0
    %910 = vmatprep.subr.mxu0 %v778
    %911 = vmatpush1.msra.mxu0 %v777
    %912 = vmatprep.subr.mxu0 %v782
    %913 = vmatpush1.msra.mxu0 %v781
    %914 = vmatprep.subr.mxu0 %v786
    %915 = vmatpush1.msra.mxu0 %v785
    %916 = vmatprep.subr.mxu0 %v790
    %917 = vmatpush1.msra.mxu0 %v789
    %918 = vmatprep.subr.mxu0 %v794
    %919 = vmatpush1.msra.mxu0 %v793
    %920 = vmatprep.subr.mxu0 %v798
    %921 = vmatpush1.msra.mxu0 %v797
    %922 = vmatprep.subr.mxu0 %v802
    %923 = vmatpush1.msra.mxu0 %v801
    %924 = vmatprep.subr.mxu0 %v806
    %925 = vmatpush1.msra.mxu0 %v805
    %926 = vmatprep.subr.mxu0 %v810
    %927 = vmatpush1.msra.mxu0 %v809
    %928 = vmatprep.subr.mxu0 %v814
    %929 = vmatpush1.msra.mxu0 %v813
    %930 = vmatprep.subr.mxu0 %v818
    %931 = vmatpush1.msra.mxu0 %v817
    %932 = vmatprep.subr.mxu0 %v822
    %933 = vmatpush1.msra.mxu0 %v821
    %934 = vmatprep.subr.mxu0 %v826
    %935 = vmatpush1.msra.mxu0 %v825
    %936 = vmatprep.subr.mxu0 %v830
    %937 = vmatpush1.msra.mxu0 %v829
    %938 = vmatprep.subr.mxu0 %v834
    %939 = vmatpush1.msra.mxu0 %v833
    %940 = vmatprep.subr.mxu0 %v838
    %941 = vmatpush1.msra.mxu0 %v837
    %942 = vmatprep.subr.mxu0 0.0
    %943 = vmatpush1.msra.mxu0 0.0
    %944 = vmatprep.subr.mxu0 0.0
    %945 = vmatpush1.msra.mxu0 0.0
    %946 = vmatprep.subr.mxu0 0.0
    %947 = vmatpush1.msra.mxu0 0.0
    %948 = vmatprep.subr.mxu0 0.0
    %949 = vmatpush1.msra.mxu0 0.0
    %950 = vmatprep.subr.mxu0 0.0
    %951 = vmatpush1.msra.mxu0 0.0
    %952 = vmatprep.subr.mxu0 0.0
    %953 = vmatpush1.msra.mxu0 0.0
    %954 = vmatprep.subr.mxu0 0.0
    %955 = vmatpush1.msra.mxu0 0.0
    %956 = vmatprep.subr.mxu0 0.0
    %957 = vmatpush1.msra.mxu0 0.0
    %958 = vmatprep.subr.mxu0 0.0
    %959 = vmatpush1.msra.mxu0 0.0
    %960 = vmatprep.subr.mxu0 0.0
    %961 = vmatpush1.msra.mxu0 0.0
    %962 = vmatprep.subr.mxu0 0.0
    %963 = vmatpush1.msra.mxu0 0.0
    %964 = vmatprep.subr.mxu0 0.0
    %965 = vmatpush1.msra.mxu0 0.0
    %966 = vmatprep.subr.mxu0 0.0
    %967 = vmatpush1.msra.mxu0 0.0
    %968 = vmatprep.subr.mxu0 0.0
    %969 = vmatpush1.msra.mxu0 0.0
    %970 = vmatprep.subr.mxu0 0.0
    %971 = vmatpush1.msra.mxu0 0.0
    %972 = vmatprep.subr.mxu0 0.0
    %973 = vmatpush1.msra.mxu0 0.0
    %974 = vmatprep.mubr.f32.mxu0 0.0
    %975 = vmatmul.mubr.f32.gmra.mrb[0].mxu0 %v337
    %v976 = vpop.f32.mrb[0].mxu0
    %v977 = vadd.f32 0.0, %v976
    %v978 = vpop.f32.mrb[0].mxu0
    %v979 = vadd.f32 0.0, %v978
    %980 = vdwg.mxu0
    %v985 = vcombine.low %v906, %v908
    %v986 = vcombine.low %v977, %v979
    %v988 = vunpack.c.l.s4 1983009808
    %v989 = vunpack.c.0.s8 %v988
    %v990 = vlaneseq
    %v991 = vshrl.u32 %v990, 7
    %v992 = vsub.s32 %v989, %v991
    %v993 = vrot.slane %v985, %v992
    %v995 = vunpack.c.l.s4 1983009808
    %v996 = vunpack.c.0.s8 %v995
    %v997 = vlaneseq
    %v998 = vshrl.u32 %v997, 7
    %v999 = vsub.s32 %v996, %v998
    %v1000 = vrot.slane %v986, %v999
    %v1001 = vcombine.low %v993, %v1000
    %v1003 = vadd.f32 %v774, %v1001
    %v1004 = vmul.f32 %v1003, 0.5
    %v1005 = vtanh.pop %v1004
    %v1006 = vmul.f32 %v1005, 0.5
    %v1007 = vadd.f32 %v1006, 0.5
    %v1009 = vrot.slane %v1003, 2
    %v1011 = vmul.f32 %v1009, 0.5
    %v1012 = vtanh.pop %v1011
    %v1013 = vmul.f32 %v1012, 0.5
    %v1014 = vadd.f32 %v1013, 0.5
    %v1015 = vrot.slane %v1003, 4
    %v1017 = vtanh.pop %v1015
    %v1018 = vrot.slane %v1003, 6
    %v1020 = vmul.f32 %v1018, 0.5
    %v1021 = vtanh.pop %v1020
    %v1022 = vmul.f32 %v1021, 0.5
    %v1023 = vadd.f32 %v1022, 0.5
    %v1024 = vmul.f32 %v1014, %v335
    %v1025 = vmul.f32 %v1007, %v1017
    %v1026 = vadd.f32 %v1024, %v1025
    %v1027 = vtanh.pop %v1026
    %v1028 = vmul.f32 %v1023, %v1027
    %v1029 = vld [vmem:[#allocation4] sm:$0xff]
    %v1030 = vld [vmem:[#allocation4 + $0x8] sm:$0xff]
    %v1031 = vld [vmem:[#allocation4 + $0x10] sm:$0xff]
    %v1032 = vld [vmem:[#allocation4 + $0x18] sm:$0xff]
    %v1033 = vld [vmem:[#allocation4 + $0x20] sm:$0xff]
    %v1034 = vld [vmem:[#allocation4 + $0x28] sm:$0xff]
    %v1035 = vld [vmem:[#allocation4 + $0x30] sm:$0xff]
    %v1036 = vld [vmem:[#allocation4 + $0x38] sm:$0xff]
    %v1037 = vld [vmem:[#allocation4 + $0x40] sm:$0xff]
    %v1038 = vld [vmem:[#allocation4 + $0x48] sm:$0xff]
    %v1039 = vld [vmem:[#allocation4 + $0x50] sm:$0xff]
    %v1040 = vld [vmem:[#allocation4 + $0x58] sm:$0xff]
    %v1041 = vld [vmem:[#allocation4 + $0x60] sm:$0xff]
    %v1042 = vld [vmem:[#allocation4 + $0x68] sm:$0xff]
    %v1043 = vld [vmem:[#allocation4 + $0x70] sm:$0xff]
    %v1044 = vld [vmem:[#allocation4 + $0x78] sm:$0xff]
    %v1045 = vld [vmem:[#allocation4 + $0x80] sm:$0xff]
    %v1046 = vld [vmem:[#allocation4 + $0x88] sm:$0xff]
    %v1047 = vld [vmem:[#allocation4 + $0x90] sm:$0xff]
    %v1048 = vld [vmem:[#allocation4 + $0x98] sm:$0xff]
    %v1049 = vld [vmem:[#allocation4 + $0xa0] sm:$0xff]
    %v1050 = vld [vmem:[#allocation4 + $0xa8] sm:$0xff]
    %v1051 = vld [vmem:[#allocation4 + $0xb0] sm:$0xff]
    %v1052 = vld [vmem:[#allocation4 + $0xb8] sm:$0xff]
    %v1053 = vld [vmem:[#allocation4 + $0xc0] sm:$0xff]
    %v1054 = vld [vmem:[#allocation4 + $0xc8] sm:$0xff]
    %v1055 = vld [vmem:[#allocation4 + $0xd0] sm:$0xff]
    %v1056 = vld [vmem:[#allocation4 + $0xd8] sm:$0xff]
    %v1057 = vld [vmem:[#allocation4 + $0xe0] sm:$0xff]
    %v1058 = vld [vmem:[#allocation4 + $0xe8] sm:$0xff]
    %v1059 = vld [vmem:[#allocation4 + $0xf0] sm:$0xff]
    %v1060 = vld [vmem:[#allocation4 + $0xf8] sm:$0xff]
    %v1061 = vld [vmem:[#allocation4 + $0x100] sm:$0xff]
    %v1062 = vld [vmem:[#allocation4 + $0x108] sm:$0xff]
    %v1063 = vld [vmem:[#allocation4 + $0x110] sm:$0xff]
    %v1064 = vld [vmem:[#allocation4 + $0x118] sm:$0xff]
    %v1065 = vld [vmem:[#allocation4 + $0x120] sm:$0xff]
    %v1066 = vld [vmem:[#allocation4 + $0x128] sm:$0xff]
    %v1067 = vld [vmem:[#allocation4 + $0x130] sm:$0xff]
    %v1068 = vld [vmem:[#allocation4 + $0x138] sm:$0xff]
    %v1069 = vld [vmem:[#allocation4 + $0x140] sm:$0xff]
    %v1070 = vld [vmem:[#allocation4 + $0x148] sm:$0xff]
    %v1071 = vld [vmem:[#allocation4 + $0x150] sm:$0xff]
    %v1072 = vld [vmem:[#allocation4 + $0x158] sm:$0xff]
    %v1073 = vld [vmem:[#allocation4 + $0x160] sm:$0xff]
    %v1074 = vld [vmem:[#allocation4 + $0x168] sm:$0xff]
    %v1075 = vld [vmem:[#allocation4 + $0x170] sm:$0xff]
    %v1076 = vld [vmem:[#allocation4 + $0x178] sm:$0xff]
    %v1077 = vld [vmem:[#allocation4 + $0x180] sm:$0xff]
    %v1078 = vld [vmem:[#allocation4 + $0x188] sm:$0xff]
    %v1079 = vld [vmem:[#allocation4 + $0x190] sm:$0xff]
    %v1080 = vld [vmem:[#allocation4 + $0x198] sm:$0xff]
    %v1081 = vld [vmem:[#allocation4 + $0x1a0] sm:$0xff]
    %v1082 = vld [vmem:[#allocation4 + $0x1a8] sm:$0xff]
    %v1083 = vld [vmem:[#allocation4 + $0x1b0] sm:$0xff]
    %v1084 = vld [vmem:[#allocation4 + $0x1b8] sm:$0xff]
    %v1085 = vld [vmem:[#allocation4 + $0x1c0] sm:$0xff]
    %v1086 = vld [vmem:[#allocation4 + $0x1c8] sm:$0xff]
    %v1087 = vld [vmem:[#allocation4 + $0x1d0] sm:$0xff]
    %v1088 = vld [vmem:[#allocation4 + $0x1d8] sm:$0xff]
    %v1089 = vld [vmem:[#allocation4 + $0x1e0] sm:$0xff]
    %v1090 = vld [vmem:[#allocation4 + $0x1e8] sm:$0xff]
    %v1091 = vld [vmem:[#allocation4 + $0x1f0] sm:$0xff]
    %v1092 = vld [vmem:[#allocation4 + $0x1f8] sm:$0xff]
    %v1093 = vld [vmem:[#allocation6] sm:$0xff]
    %v1094 = vld [vmem:[#allocation6 + $0x8] sm:$0xff]
    %v1095 = vld [vmem:[#allocation6 + $0x10] sm:$0xff]
    %v1096 = vld [vmem:[#allocation6 + $0x18] sm:$0xff]
    %v1097 = vld [vmem:[#allocation6 + $0x20] sm:$0xff]
    %v1098 = vld [vmem:[#allocation6 + $0x28] sm:$0xff]
    %v1099 = vld [vmem:[#allocation6 + $0x30] sm:$0xff]
    %v1100 = vld [vmem:[#allocation6 + $0x38] sm:$0xff]
    %v1101 = vld [vmem:[#allocation6 + $0x40] sm:$0xff]
    %v1102 = vld [vmem:[#allocation6 + $0x48] sm:$0xff]
    %v1103 = vld [vmem:[#allocation6 + $0x50] sm:$0xff]
    %v1104 = vld [vmem:[#allocation6 + $0x58] sm:$0xff]
    %v1105 = vld [vmem:[#allocation6 + $0x60] sm:$0xff]
    %v1106 = vld [vmem:[#allocation6 + $0x68] sm:$0xff]
    %v1107 = vld [vmem:[#allocation6 + $0x70] sm:$0xff]
    %v1108 = vld [vmem:[#allocation6 + $0x78] sm:$0xff]
    %v1109 = vld [vmem:[#allocation6 + $0x80] sm:$0xff]
    %v1110 = vld [vmem:[#allocation6 + $0x88] sm:$0xff]
    %v1111 = vld [vmem:[#allocation6 + $0x90] sm:$0xff]
    %v1112 = vld [vmem:[#allocation6 + $0x98] sm:$0xff]
    %v1113 = vld [vmem:[#allocation6 + $0xa0] sm:$0xff]
    %v1114 = vld [vmem:[#allocation6 + $0xa8] sm:$0xff]
    %v1115 = vld [vmem:[#allocation6 + $0xb0] sm:$0xff]
    %v1116 = vld [vmem:[#allocation6 + $0xb8] sm:$0xff]
    %v1117 = vld [vmem:[#allocation6 + $0xc0] sm:$0xff]
    %v1118 = vld [vmem:[#allocation6 + $0xc8] sm:$0xff]
    %v1119 = vld [vmem:[#allocation6 + $0xd0] sm:$0xff]
    %v1120 = vld [vmem:[#allocation6 + $0xd8] sm:$0xff]
    %v1121 = vld [vmem:[#allocation6 + $0xe0] sm:$0xff]
    %v1122 = vld [vmem:[#allocation6 + $0xe8] sm:$0xff]
    %v1123 = vld [vmem:[#allocation6 + $0xf0] sm:$0xff]
    %v1124 = vld [vmem:[#allocation6 + $0xf8] sm:$0xff]
    %v1125 = vld [vmem:[#allocation6 + $0x100] sm:$0xff]
    %v1126 = vld [vmem:[#allocation6 + $0x108] sm:$0xff]
    %v1127 = vld [vmem:[#allocation6 + $0x110] sm:$0xff]
    %v1128 = vld [vmem:[#allocation6 + $0x118] sm:$0xff]
    %v1129 = vld [vmem:[#allocation6 + $0x120] sm:$0xff]
    %v1130 = vld [vmem:[#allocation6 + $0x128] sm:$0xff]
    %v1131 = vld [vmem:[#allocation6 + $0x130] sm:$0xff]
    %v1132 = vld [vmem:[#allocation6 + $0x138] sm:$0xff]
    %v1133 = vld [vmem:[#allocation6 + $0x140] sm:$0xff]
    %v1134 = vld [vmem:[#allocation6 + $0x148] sm:$0xff]
    %v1135 = vld [vmem:[#allocation6 + $0x150] sm:$0xff]
    %v1136 = vld [vmem:[#allocation6 + $0x158] sm:$0xff]
    %v1137 = vld [vmem:[#allocation6 + $0x160] sm:$0xff]
    %v1138 = vld [vmem:[#allocation6 + $0x168] sm:$0xff]
    %v1139 = vld [vmem:[#allocation6 + $0x170] sm:$0xff]
    %v1140 = vld [vmem:[#allocation6 + $0x178] sm:$0xff]
    %v1141 = vld [vmem:[#allocation6 + $0x180] sm:$0xff]
    %v1142 = vld [vmem:[#allocation6 + $0x188] sm:$0xff]
    %v1143 = vld [vmem:[#allocation6 + $0x190] sm:$0xff]
    %v1144 = vld [vmem:[#allocation6 + $0x198] sm:$0xff]
    %v1145 = vld [vmem:[#allocation6 + $0x1a0] sm:$0xff]
    %v1146 = vld [vmem:[#allocation6 + $0x1a8] sm:$0xff]
    %v1147 = vld [vmem:[#allocation6 + $0x1b0] sm:$0xff]
    %v1148 = vld [vmem:[#allocation6 + $0x1b8] sm:$0xff]
    %v1149 = vld [vmem:[#allocation6 + $0x1c0] sm:$0xff]
    %v1150 = vld [vmem:[#allocation6 + $0x1c8] sm:$0xff]
    %v1151 = vld [vmem:[#allocation6 + $0x1d0] sm:$0xff]
    %v1152 = vld [vmem:[#allocation6 + $0x1d8] sm:$0xff]
    %v1153 = vld [vmem:[#allocation6 + $0x1e0] sm:$0xff]
    %v1154 = vld [vmem:[#allocation6 + $0x1e8] sm:$0xff]
    %v1155 = vld [vmem:[#allocation6 + $0x1f0] sm:$0xff]
    %v1156 = vld [vmem:[#allocation6 + $0x1f8] sm:$0xff]
    %1157 = vmatprep.subr.mxu0 %v1094
    %1158 = vmatpush1.msra.mxu0 %v1093
    %1159 = vmatprep.subr.mxu0 %v1098
    %1160 = vmatpush1.msra.mxu0 %v1097
    %1161 = vmatprep.subr.mxu0 %v1102
    %1162 = vmatpush1.msra.mxu0 %v1101
    %1163 = vmatprep.subr.mxu0 %v1106
    %1164 = vmatpush1.msra.mxu0 %v1105
    %1165 = vmatprep.subr.mxu0 %v1110
    %1166 = vmatpush1.msra.mxu0 %v1109
    %1167 = vmatprep.subr.mxu0 %v1114
    %1168 = vmatpush1.msra.mxu0 %v1113
    %1169 = vmatprep.subr.mxu0 %v1118
    %1170 = vmatpush1.msra.mxu0 %v1117
    %1171 = vmatprep.subr.mxu0 %v1122
    %1172 = vmatpush1.msra.mxu0 %v1121
    %1173 = vmatprep.subr.mxu0 %v1126
    %1174 = vmatpush1.msra.mxu0 %v1125
    %1175 = vmatprep.subr.mxu0 %v1130
    %1176 = vmatpush1.msra.mxu0 %v1129
    %1177 = vmatprep.subr.mxu0 %v1134
    %1178 = vmatpush1.msra.mxu0 %v1133
    %1179 = vmatprep.subr.mxu0 %v1138
    %1180 = vmatpush1.msra.mxu0 %v1137
    %1181 = vmatprep.subr.mxu0 %v1142
    %1182 = vmatpush1.msra.mxu0 %v1141
    %1183 = vmatprep.subr.mxu0 %v1146
    %1184 = vmatpush1.msra.mxu0 %v1145
    %1185 = vmatprep.subr.mxu0 %v1150
    %1186 = vmatpush1.msra.mxu0 %v1149
    %1187 = vmatprep.subr.mxu0 %v1154
    %1188 = vmatpush1.msra.mxu0 %v1153
    %1189 = vmatprep.subr.mxu0 0.0
    %1190 = vmatpush1.msra.mxu0 0.0
    %1191 = vmatprep.subr.mxu0 0.0
    %1192 = vmatpush1.msra.mxu0 0.0
    %1193 = vmatprep.subr.mxu0 0.0
    %1194 = vmatpush1.msra.mxu0 0.0
    %1195 = vmatprep.subr.mxu0 0.0
    %1196 = vmatpush1.msra.mxu0 0.0
    %1197 = vmatprep.subr.mxu0 0.0
    %1198 = vmatpush1.msra.mxu0 0.0
    %1199 = vmatprep.subr.mxu0 0.0
    %1200 = vmatpush1.msra.mxu0 0.0
    %1201 = vmatprep.subr.mxu0 0.0
    %1202 = vmatpush1.msra.mxu0 0.0
    %1203 = vmatprep.subr.mxu0 0.0
    %1204 = vmatpush1.msra.mxu0 0.0
    %1205 = vmatprep.subr.mxu0 0.0
    %1206 = vmatpush1.msra.mxu0 0.0
    %1207 = vmatprep.subr.mxu0 0.0
    %1208 = vmatpush1.msra.mxu0 0.0
    %1209 = vmatprep.subr.mxu0 0.0
    %1210 = vmatpush1.msra.mxu0 0.0
    %1211 = vmatprep.subr.mxu0 0.0
    %1212 = vmatpush1.msra.mxu0 0.0
    %1213 = vmatprep.subr.mxu0 0.0
    %1214 = vmatpush1.msra.mxu0 0.0
    %1215 = vmatprep.subr.mxu0 0.0
    %1216 = vmatpush1.msra.mxu0 0.0
    %1217 = vmatprep.subr.mxu0 0.0
    %1218 = vmatpush1.msra.mxu0 0.0
    %1219 = vmatprep.subr.mxu0 0.0
    %1220 = vmatpush1.msra.mxu0 0.0
    %1221 = vmatprep.mubr.f32.mxu0 0.0
    %1222 = vmatmul.mubr.f32.gmra.mrb[0].mxu0 %v771
    %v1223 = vpop.f32.mrb[0].mxu0
    %v1224 = vadd.f32 0.0, %v1223
    %v1225 = vpop.f32.mrb[0].mxu0
    %v1226 = vadd.f32 0.0, %v1225
    %1227 = vdwg.mxu0
    %1228 = vmatprep.subr.mxu0 %v1096
    %1229 = vmatpush1.msra.mxu0 %v1095
    %1230 = vmatprep.subr.mxu0 %v1100
    %1231 = vmatpush1.msra.mxu0 %v1099
    %1232 = vmatprep.subr.mxu0 %v1104
    %1233 = vmatpush1.msra.mxu0 %v1103
    %1234 = vmatprep.subr.mxu0 %v1108
    %1235 = vmatpush1.msra.mxu0 %v1107
    %1236 = vmatprep.subr.mxu0 %v1112
    %1237 = vmatpush1.msra.mxu0 %v1111
    %1238 = vmatprep.subr.mxu0 %v1116
    %1239 = vmatpush1.msra.mxu0 %v1115
    %1240 = vmatprep.subr.mxu0 %v1120
    %1241 = vmatpush1.msra.mxu0 %v1119
    %1242 = vmatprep.subr.mxu0 %v1124
    %1243 = vmatpush1.msra.mxu0 %v1123
    %1244 = vmatprep.subr.mxu0 %v1128
    %1245 = vmatpush1.msra.mxu0 %v1127
    %1246 = vmatprep.subr.mxu0 %v1132
    %1247 = vmatpush1.msra.mxu0 %v1131
    %1248 = vmatprep.subr.mxu0 %v1136
    %1249 = vmatpush1.msra.mxu0 %v1135
    %1250 = vmatprep.subr.mxu0 %v1140
    %1251 = vmatpush1.msra.mxu0 %v1139
    %1252 = vmatprep.subr.mxu0 %v1144
    %1253 = vmatpush1.msra.mxu0 %v1143
    %1254 = vmatprep.subr.mxu0 %v1148
    %1255 = vmatpush1.msra.mxu0 %v1147
    %1256 = vmatprep.subr.mxu0 %v1152
    %1257 = vmatpush1.msra.mxu0 %v1151
    %1258 = vmatprep.subr.mxu0 %v1156
    %1259 = vmatpush1.msra.mxu0 %v1155
    %1260 = vmatprep.subr.mxu0 0.0
    %1261 = vmatpush1.msra.mxu0 0.0
    %1262 = vmatprep.subr.mxu0 0.0
    %1263 = vmatpush1.msra.mxu0 0.0
    %1264 = vmatprep.subr.mxu0 0.0
    %1265 = vmatpush1.msra.mxu0 0.0
    %1266 = vmatprep.subr.mxu0 0.0
    %1267 = vmatpush1.msra.mxu0 0.0
    %1268 = vmatprep.subr.mxu0 0.0
    %1269 = vmatpush1.msra.mxu0 0.0
    %1270 = vmatprep.subr.mxu0 0.0
    %1271 = vmatpush1.msra.mxu0 0.0
    %1272 = vmatprep.subr.mxu0 0.0
    %1273 = vmatpush1.msra.mxu0 0.0
    %1274 = vmatprep.subr.mxu0 0.0
    %1275 = vmatpush1.msra.mxu0 0.0
    %1276 = vmatprep.subr.mxu0 0.0
    %1277 = vmatpush1.msra.mxu0 0.0
    %1278 = vmatprep.subr.mxu0 0.0
    %1279 = vmatpush1.msra.mxu0 0.0
    %1280 = vmatprep.subr.mxu0 0.0
    %1281 = vmatpush1.msra.mxu0 0.0
    %1282 = vmatprep.subr.mxu0 0.0
    %1283 = vmatpush1.msra.mxu0 0.0
    %1284 = vmatprep.subr.mxu0 0.0
    %1285 = vmatpush1.msra.mxu0 0.0
    %1286 = vmatprep.subr.mxu0 0.0
    %1287 = vmatpush1.msra.mxu0 0.0
    %1288 = vmatprep.subr.mxu0 0.0
    %1289 = vmatpush1.msra.mxu0 0.0
    %1290 = vmatprep.subr.mxu0 0.0
    %1291 = vmatpush1.msra.mxu0 0.0
    %1292 = vmatprep.mubr.f32.mxu0 0.0
    %1293 = vmatmul.mubr.f32.gmra.mrb[0].mxu0 %v771
    %v1294 = vpop.f32.mrb[0].mxu0
    %v1295 = vadd.f32 0.0, %v1294
    %v1296 = vpop.f32.mrb[0].mxu0
    %v1297 = vadd.f32 0.0, %v1296
    %1298 = vdwg.mxu0
    %1299 = vmatprep.subr.mxu0 %v1030
    %1300 = vmatpush1.msra.mxu0 %v1029
    %1301 = vmatprep.subr.mxu0 %v1034
    %1302 = vmatpush1.msra.mxu0 %v1033
    %1303 = vmatprep.subr.mxu0 %v1038
    %1304 = vmatpush1.msra.mxu0 %v1037
    %1305 = vmatprep.subr.mxu0 %v1042
    %1306 = vmatpush1.msra.mxu0 %v1041
    %1307 = vmatprep.subr.mxu0 %v1046
    %1308 = vmatpush1.msra.mxu0 %v1045
    %1309 = vmatprep.subr.mxu0 %v1050
    %1310 = vmatpush1.msra.mxu0 %v1049
    %1311 = vmatprep.subr.mxu0 %v1054
    %1312 = vmatpush1.msra.mxu0 %v1053
    %1313 = vmatprep.subr.mxu0 %v1058
    %1314 = vmatpush1.msra.mxu0 %v1057
    %1315 = vmatprep.subr.mxu0 %v1062
    %1316 = vmatpush1.msra.mxu0 %v1061
    %1317 = vmatprep.subr.mxu0 %v1066
    %1318 = vmatpush1.msra.mxu0 %v1065
    %1319 = vmatprep.subr.mxu0 %v1070
    %1320 = vmatpush1.msra.mxu0 %v1069
    %1321 = vmatprep.subr.mxu0 %v1074
    %1322 = vmatpush1.msra.mxu0 %v1073
    %1323 = vmatprep.subr.mxu0 %v1078
    %1324 = vmatpush1.msra.mxu0 %v1077
    %1325 = vmatprep.subr.mxu0 %v1082
    %1326 = vmatpush1.msra.mxu0 %v1081
    %1327 = vmatprep.subr.mxu0 %v1086
    %1328 = vmatpush1.msra.mxu0 %v1085
    %1329 = vmatprep.subr.mxu0 %v1090
    %1330 = vmatpush1.msra.mxu0 %v1089
    %1331 = vmatprep.subr.mxu0 0.0
    %1332 = vmatpush1.msra.mxu0 0.0
    %1333 = vmatprep.subr.mxu0 0.0
    %1334 = vmatpush1.msra.mxu0 0.0
    %1335 = vmatprep.subr.mxu0 0.0
    %1336 = vmatpush1.msra.mxu0 0.0
    %1337 = vmatprep.subr.mxu0 0.0
    %1338 = vmatpush1.msra.mxu0 0.0
    %1339 = vmatprep.subr.mxu0 0.0
    %1340 = vmatpush1.msra.mxu0 0.0
    %1341 = vmatprep.subr.mxu0 0.0
    %1342 = vmatpush1.msra.mxu0 0.0
    %1343 = vmatprep.subr.mxu0 0.0
    %1344 = vmatpush1.msra.mxu0 0.0
    %1345 = vmatprep.subr.mxu0 0.0
    %1346 = vmatpush1.msra.mxu0 0.0
    %1347 = vmatprep.subr.mxu0 0.0
    %1348 = vmatpush1.msra.mxu0 0.0
    %1349 = vmatprep.subr.mxu0 0.0
    %1350 = vmatpush1.msra.mxu0 0.0
    %1351 = vmatprep.subr.mxu0 0.0
    %1352 = vmatpush1.msra.mxu0 0.0
    %1353 = vmatprep.subr.mxu0 0.0
    %1354 = vmatpush1.msra.mxu0 0.0
    %1355 = vmatprep.subr.mxu0 0.0
    %1356 = vmatpush1.msra.mxu0 0.0
    %1357 = vmatprep.subr.mxu0 0.0
    %1358 = vmatpush1.msra.mxu0 0.0
    %1359 = vmatprep.subr.mxu0 0.0
    %1360 = vmatpush1.msra.mxu0 0.0
    %1361 = vmatprep.subr.mxu0 0.0
    %1362 = vmatpush1.msra.mxu0 0.0
    %1363 = vmatprep.mubr.f32.mxu0 0.0
    %1364 = vmatmul.mubr.f32.gmra.mrb[0].mxu0 %v1028
    %v1365 = vpop.f32.mrb[0].mxu0
    %v1366 = vadd.f32 %v1224, %v1365
    %v1367 = vpop.f32.mrb[0].mxu0
    %v1368 = vadd.f32 %v1226, %v1367
    %1369 = vdwg.mxu0
    %1370 = vmatprep.subr.mxu0 %v1032
    %1371 = vmatpush1.msra.mxu0 %v1031
    %1372 = vmatprep.subr.mxu0 %v1036
    %1373 = vmatpush1.msra.mxu0 %v1035
    %1374 = vmatprep.subr.mxu0 %v1040
    %1375 = vmatpush1.msra.mxu0 %v1039
    %1376 = vmatprep.subr.mxu0 %v1044
    %1377 = vmatpush1.msra.mxu0 %v1043
    %1378 = vmatprep.subr.mxu0 %v1048
    %1379 = vmatpush1.msra.mxu0 %v1047
    %1380 = vmatprep.subr.mxu0 %v1052
    %1381 = vmatpush1.msra.mxu0 %v1051
    %1382 = vmatprep.subr.mxu0 %v1056
    %1383 = vmatpush1.msra.mxu0 %v1055
    %1384 = vmatprep.subr.mxu0 %v1060
    %1385 = vmatpush1.msra.mxu0 %v1059
    %1386 = vmatprep.subr.mxu0 %v1064
    %1387 = vmatpush1.msra.mxu0 %v1063
    %1388 = vmatprep.subr.mxu0 %v1068
    %1389 = vmatpush1.msra.mxu0 %v1067
    %1390 = vmatprep.subr.mxu0 %v1072
    %1391 = vmatpush1.msra.mxu0 %v1071
    %1392 = vmatprep.subr.mxu0 %v1076
    %1393 = vmatpush1.msra.mxu0 %v1075
    %1394 = vmatprep.subr.mxu0 %v1080
    %1395 = vmatpush1.msra.mxu0 %v1079
    %1396 = vmatprep.subr.mxu0 %v1084
    %1397 = vmatpush1.msra.mxu0 %v1083
    %1398 = vmatprep.subr.mxu0 %v1088
    %1399 = vmatpush1.msra.mxu0 %v1087
    %1400 = vmatprep.subr.mxu0 %v1092
    %1401 = vmatpush1.msra.mxu0 %v1091
    %1402 = vmatprep.subr.mxu0 0.0
    %1403 = vmatpush1.msra.mxu0 0.0
    %1404 = vmatprep.subr.mxu0 0.0
    %1405 = vmatpush1.msra.mxu0 0.0
    %1406 = vmatprep.subr.mxu0 0.0
    %1407 = vmatpush1.msra.mxu0 0.0
    %1408 = vmatprep.subr.mxu0 0.0
    %1409 = vmatpush1.msra.mxu0 0.0
    %1410 = vmatprep.subr.mxu0 0.0
    %1411 = vmatpush1.msra.mxu0 0.0
    %1412 = vmatprep.subr.mxu0 0.0
    %1413 = vmatpush1.msra.mxu0 0.0
    %1414 = vmatprep.subr.mxu0 0.0
    %1415 = vmatpush1.msra.mxu0 0.0
    %1416 = vmatprep.subr.mxu0 0.0
    %1417 = vmatpush1.msra.mxu0 0.0
    %1418 = vmatprep.subr.mxu0 0.0
    %1419 = vmatpush1.msra.mxu0 0.0
    %1420 = vmatprep.subr.mxu0 0.0
    %1421 = vmatpush1.msra.mxu0 0.0
    %1422 = vmatprep.subr.mxu0 0.0
    %1423 = vmatpush1.msra.mxu0 0.0
    %1424 = vmatprep.subr.mxu0 0.0
    %1425 = vmatpush1.msra.mxu0 0.0
    %1426 = vmatprep.subr.mxu0 0.0
    %1427 = vmatpush1.msra.mxu0 0.0
    %1428 = vmatprep.subr.mxu0 0.0
    %1429 = vmatpush1.msra.mxu0 0.0
    %1430 = vmatprep.subr.mxu0 0.0
    %1431 = vmatpush1.msra.mxu0 0.0
    %1432 = vmatprep.subr.mxu0 0.0
    %1433 = vmatpush1.msra.mxu0 0.0
    %1434 = vmatprep.mubr.f32.mxu0 0.0
    %1435 = vmatmul.mubr.f32.gmra.mrb[0].mxu0 %v1028
    %v1436 = vpop.f32.mrb[0].mxu0
    %v1437 = vadd.f32 %v1295, %v1436
    %v1438 = vpop.f32.mrb[0].mxu0
    %v1439 = vadd.f32 %v1297, %v1438
    %1440 = vdwg.mxu0
    %v1441 = vadd.f32 %v1366, %v66
    %v1442 = vadd.f32 %v1368, %v70
    %v1443 = vadd.f32 %v1437, %v74
    %v1444 = vadd.f32 %v1439, %v78
    %v1445 = vmul.f32 %v1441, 0.5
    %v1446 = vtanh.pop %v1445
    %v1447 = vmul.f32 %v1446, 0.5
    %v1448 = vadd.f32 %v1447, 0.5
    %v1449 = vmul.f32 %v1442, 0.5
    %v1450 = vtanh.pop %v1449
    %v1451 = vmul.f32 %v1450, 0.5
    %v1452 = vadd.f32 %v1451, 0.5
    %v1453 = vtanh.pop %v1443
    %v1454 = vmul.f32 %v1444, 0.5
    %v1455 = vtanh.pop %v1454
    %v1456 = vmul.f32 %v1455, 0.5
    %v1457 = vadd.f32 %v1456, 0.5
    %v1458 = vmul.f32 %v1452, %v769
    %v1459 = vmul.f32 %v1448, %v1453
    %v1460 = vadd.f32 %v1458, %v1459
    %v1461 = vtanh.pop %v1460
    %v1462 = vmul.f32 %v1457, %v1461
    %s1463 = scalar_lea.vmem %s5, 2
    %1464 = vst [vmem:[%s1463] sm:$0x3] %v1462
    %s1465 = scalar_lea.vmem %s0, 16
    %v1466 = vld [vmem:[%s1465] sm:$0xff]
    %v1467 = vld [vmem:[#allocation2] sm:$0xff]
    %v1468 = vld [vmem:[#allocation2 + $0x8] sm:$0xff]
    %v1469 = vld [vmem:[#allocation2 + $0x10] sm:$0xff]
    %v1470 = vld [vmem:[#allocation2 + $0x18] sm:$0xff]
    %v1471 = vld [vmem:[#allocation2 + $0x20] sm:$0xff]
    %v1472 = vld [vmem:[#allocation2 + $0x28] sm:$0xff]
    %v1473 = vld [vmem:[#allocation2 + $0x30] sm:$0xff]
    %v1474 = vld [vmem:[#allocation2 + $0x38] sm:$0xff]
    %v1475 = vld [vmem:[#allocation2 + $0x40] sm:$0xff]
    %v1476 = vld [vmem:[#allocation2 + $0x48] sm:$0xff]
    %v1477 = vld [vmem:[#allocation2 + $0x50] sm:$0xff]
    %v1478 = vld [vmem:[#allocation2 + $0x58] sm:$0xff]
    %v1479 = vld [vmem:[#allocation2 + $0x60] sm:$0xff]
    %v1480 = vld [vmem:[#allocation2 + $0x68] sm:$0xff]
    %v1481 = vld [vmem:[#allocation2 + $0x70] sm:$0xff]
    %v1482 = vld [vmem:[#allocation2 + $0x78] sm:$0xff]
    %v1483 = vld [vmem:[#allocation2 + $0x80] sm:$0xff]
    %v1484 = vld [vmem:[#allocation2 + $0x88] sm:$0xff]
    %v1485 = vld [vmem:[#allocation2 + $0x90] sm:$0xff]
    %v1486 = vld [vmem:[#allocation2 + $0x98] sm:$0xff]
    %v1487 = vld [vmem:[#allocation2 + $0xa0] sm:$0xff]
    %v1488 = vld [vmem:[#allocation2 + $0xa8] sm:$0xff]
    %v1489 = vld [vmem:[#allocation2 + $0xb0] sm:$0xff]
    %v1490 = vld [vmem:[#allocation2 + $0xb8] sm:$0xff]
    %v1491 = vld [vmem:[#allocation2 + $0xc0] sm:$0xff]
    %v1492 = vld [vmem:[#allocation2 + $0xc8] sm:$0xff]
    %v1493 = vld [vmem:[#allocation2 + $0xd0] sm:$0xff]
    %v1494 = vld [vmem:[#allocation2 + $0xd8] sm:$0xff]
    %v1495 = vld [vmem:[#allocation2 + $0xe0] sm:$0xff]
    %v1496 = vld [vmem:[#allocation2 + $0xe8] sm:$0xff]
    %v1497 = vld [vmem:[#allocation2 + $0xf0] sm:$0xff]
    %v1498 = vld [vmem:[#allocation2 + $0xf8] sm:$0xff]
    %v1499 = vld [vmem:[#allocation2 + $0x100] sm:$0xff]
    %v1500 = vld [vmem:[#allocation2 + $0x108] sm:$0xff]
    %v1501 = vld [vmem:[#allocation2 + $0x110] sm:$0xff]
    %v1502 = vld [vmem:[#allocation2 + $0x118] sm:$0xff]
    %v1503 = vld [vmem:[#allocation2 + $0x120] sm:$0xff]
    %v1504 = vld [vmem:[#allocation2 + $0x128] sm:$0xff]
    %v1505 = vld [vmem:[#allocation2 + $0x130] sm:$0xff]
    %v1506 = vld [vmem:[#allocation2 + $0x138] sm:$0xff]
    %v1507 = vld [vmem:[#allocation2 + $0x140] sm:$0xff]
    %v1508 = vld [vmem:[#allocation2 + $0x148] sm:$0xff]
    %v1509 = vld [vmem:[#allocation2 + $0x150] sm:$0xff]
    %v1510 = vld [vmem:[#allocation2 + $0x158] sm:$0xff]
    %v1511 = vld [vmem:[#allocation2 + $0x160] sm:$0xff]
    %v1512 = vld [vmem:[#allocation2 + $0x168] sm:$0xff]
    %v1513 = vld [vmem:[#allocation2 + $0x170] sm:$0xff]
    %v1514 = vld [vmem:[#allocation2 + $0x178] sm:$0xff]
    %v1515 = vld [vmem:[#allocation2 + $0x180] sm:$0xff]
    %v1516 = vld [vmem:[#allocation2 + $0x188] sm:$0xff]
    %v1517 = vld [vmem:[#allocation2 + $0x190] sm:$0xff]
    %v1518 = vld [vmem:[#allocation2 + $0x198] sm:$0xff]
    %v1519 = vld [vmem:[#allocation2 + $0x1a0] sm:$0xff]
    %v1520 = vld [vmem:[#allocation2 + $0x1a8] sm:$0xff]
    %v1521 = vld [vmem:[#allocation2 + $0x1b0] sm:$0xff]
    %v1522 = vld [vmem:[#allocation2 + $0x1b8] sm:$0xff]
    %v1523 = vld [vmem:[#allocation2 + $0x1c0] sm:$0xff]
    %v1524 = vld [vmem:[#allocation2 + $0x1c8] sm:$0xff]
    %v1525 = vld [vmem:[#allocation2 + $0x1d0] sm:$0xff]
    %v1526 = vld [vmem:[#allocation2 + $0x1d8] sm:$0xff]
    %v1527 = vld [vmem:[#allocation2 + $0x1e0] sm:$0xff]
    %v1528 = vld [vmem:[#allocation2 + $0x1e8] sm:$0xff]
    %v1529 = vld [vmem:[#allocation2 + $0x1f0] sm:$0xff]
    %v1530 = vld [vmem:[#allocation2 + $0x1f8] sm:$0xff]
    %1531 = vmatprep.subr.mxu0 %v1468
    %1532 = vmatpush1.msra.mxu0 %v1467
    %1533 = vmatprep.subr.mxu0 %v1472
    %1534 = vmatpush1.msra.mxu0 %v1471
    %1535 = vmatprep.subr.mxu0 %v1476
    %1536 = vmatpush1.msra.mxu0 %v1475
    %1537 = vmatprep.subr.mxu0 %v1480
    %1538 = vmatpush1.msra.mxu0 %v1479
    %1539 = vmatprep.subr.mxu0 %v1484
    %1540 = vmatpush1.msra.mxu0 %v1483
    %1541 = vmatprep.subr.mxu0 %v1488
    %1542 = vmatpush1.msra.mxu0 %v1487
    %1543 = vmatprep.subr.mxu0 %v1492
    %1544 = vmatpush1.msra.mxu0 %v1491
    %1545 = vmatprep.subr.mxu0 %v1496
    %1546 = vmatpush1.msra.mxu0 %v1495
    %1547 = vmatprep.subr.mxu0 %v1500
    %1548 = vmatpush1.msra.mxu0 %v1499
    %1549 = vmatprep.subr.mxu0 %v1504
    %1550 = vmatpush1.msra.mxu0 %v1503
    %1551 = vmatprep.subr.mxu0 %v1508
    %1552 = vmatpush1.msra.mxu0 %v1507
    %1553 = vmatprep.subr.mxu0 %v1512
    %1554 = vmatpush1.msra.mxu0 %v1511
    %1555 = vmatprep.subr.mxu0 %v1516
    %1556 = vmatpush1.msra.mxu0 %v1515
    %1557 = vmatprep.subr.mxu0 %v1520
    %1558 = vmatpush1.msra.mxu0 %v1519
    %1559 = vmatprep.subr.mxu0 %v1524
    %1560 = vmatpush1.msra.mxu0 %v1523
    %1561 = vmatprep.subr.mxu0 %v1528
    %1562 = vmatpush1.msra.mxu0 %v1527
    %1563 = vmatprep.subr.mxu0 0.0
    %1564 = vmatpush1.msra.mxu0 0.0
    %1565 = vmatprep.subr.mxu0 0.0
    %1566 = vmatpush1.msra.mxu0 0.0
    %1567 = vmatprep.subr.mxu0 0.0
    %1568 = vmatpush1.msra.mxu0 0.0
    %1569 = vmatprep.subr.mxu0 0.0
    %1570 = vmatpush1.msra.mxu0 0.0
    %1571 = vmatprep.subr.mxu0 0.0
    %1572 = vmatpush1.msra.mxu0 0.0
    %1573 = vmatprep.subr.mxu0 0.0
    %1574 = vmatpush1.msra.mxu0 0.0
    %1575 = vmatprep.subr.mxu0 0.0
    %1576 = vmatpush1.msra.mxu0 0.0
    %1577 = vmatprep.subr.mxu0 0.0
    %1578 = vmatpush1.msra.mxu0 0.0
    %1579 = vmatprep.subr.mxu0 0.0
    %1580 = vmatpush1.msra.mxu0 0.0
    %1581 = vmatprep.subr.mxu0 0.0
    %1582 = vmatpush1.msra.mxu0 0.0
    %1583 = vmatprep.subr.mxu0 0.0
    %1584 = vmatpush1.msra.mxu0 0.0
    %1585 = vmatprep.subr.mxu0 0.0
    %1586 = vmatpush1.msra.mxu0 0.0
    %1587 = vmatprep.subr.mxu0 0.0
    %1588 = vmatpush1.msra.mxu0 0.0
    %1589 = vmatprep.subr.mxu0 0.0
    %1590 = vmatpush1.msra.mxu0 0.0
    %1591 = vmatprep.subr.mxu0 0.0
    %1592 = vmatpush1.msra.mxu0 0.0
    %1593 = vmatprep.subr.mxu0 0.0
    %1594 = vmatpush1.msra.mxu0 0.0
    %1595 = vmatprep.mubr.f32.mxu0 0.0
    %1596 = vmatmul.mubr.f32.gmra.mrb[0].mxu0 %v1028
    %v1597 = vpop.f32.mrb[0].mxu0
    %v1598 = vadd.f32 0.0, %v1597
    %v1599 = vpop.f32.mrb[0].mxu0
    %v1600 = vadd.f32 0.0, %v1599
    %1601 = vdwg.mxu0
    %1602 = vmatprep.subr.mxu0 %v1470
    %1603 = vmatpush1.msra.mxu0 %v1469
    %1604 = vmatprep.subr.mxu0 %v1474
    %1605 = vmatpush1.msra.mxu0 %v1473
    %1606 = vmatprep.subr.mxu0 %v1478
    %1607 = vmatpush1.msra.mxu0 %v1477
    %1608 = vmatprep.subr.mxu0 %v1482
    %1609 = vmatpush1.msra.mxu0 %v1481
    %1610 = vmatprep.subr.mxu0 %v1486
    %1611 = vmatpush1.msra.mxu0 %v1485
    %1612 = vmatprep.subr.mxu0 %v1490
    %1613 = vmatpush1.msra.mxu0 %v1489
    %1614 = vmatprep.subr.mxu0 %v1494
    %1615 = vmatpush1.msra.mxu0 %v1493
    %1616 = vmatprep.subr.mxu0 %v1498
    %1617 = vmatpush1.msra.mxu0 %v1497
    %1618 = vmatprep.subr.mxu0 %v1502
    %1619 = vmatpush1.msra.mxu0 %v1501
    %1620 = vmatprep.subr.mxu0 %v1506
    %1621 = vmatpush1.msra.mxu0 %v1505
    %1622 = vmatprep.subr.mxu0 %v1510
    %1623 = vmatpush1.msra.mxu0 %v1509
    %1624 = vmatprep.subr.mxu0 %v1514
    %1625 = vmatpush1.msra.mxu0 %v1513
    %1626 = vmatprep.subr.mxu0 %v1518
    %1627 = vmatpush1.msra.mxu0 %v1517
    %1628 = vmatprep.subr.mxu0 %v1522
    %1629 = vmatpush1.msra.mxu0 %v1521
    %1630 = vmatprep.subr.mxu0 %v1526
    %1631 = vmatpush1.msra.mxu0 %v1525
    %1632 = vmatprep.subr.mxu0 %v1530
    %1633 = vmatpush1.msra.mxu0 %v1529
    %1634 = vmatprep.subr.mxu0 0.0
    %1635 = vmatpush1.msra.mxu0 0.0
    %1636 = vmatprep.subr.mxu0 0.0
    %1637 = vmatpush1.msra.mxu0 0.0
    %1638 = vmatprep.subr.mxu0 0.0
    %1639 = vmatpush1.msra.mxu0 0.0
    %1640 = vmatprep.subr.mxu0 0.0
    %1641 = vmatpush1.msra.mxu0 0.0
    %1642 = vmatprep.subr.mxu0 0.0
    %1643 = vmatpush1.msra.mxu0 0.0
    %1644 = vmatprep.subr.mxu0 0.0
    %1645 = vmatpush1.msra.mxu0 0.0
    %1646 = vmatprep.subr.mxu0 0.0
    %1647 = vmatpush1.msra.mxu0 0.0
    %1648 = vmatprep.subr.mxu0 0.0
    %1649 = vmatpush1.msra.mxu0 0.0
    %1650 = vmatprep.subr.mxu0 0.0
    %1651 = vmatpush1.msra.mxu0 0.0
    %1652 = vmatprep.subr.mxu0 0.0
    %1653 = vmatpush1.msra.mxu0 0.0
    %1654 = vmatprep.subr.mxu0 0.0
    %1655 = vmatpush1.msra.mxu0 0.0
    %1656 = vmatprep.subr.mxu0 0.0
    %1657 = vmatpush1.msra.mxu0 0.0
    %1658 = vmatprep.subr.mxu0 0.0
    %1659 = vmatpush1.msra.mxu0 0.0
    %1660 = vmatprep.subr.mxu0 0.0
    %1661 = vmatpush1.msra.mxu0 0.0
    %1662 = vmatprep.subr.mxu0 0.0
    %1663 = vmatpush1.msra.mxu0 0.0
    %1664 = vmatprep.subr.mxu0 0.0
    %1665 = vmatpush1.msra.mxu0 0.0
    %1666 = vmatprep.mubr.f32.mxu0 0.0
    %1667 = vmatmul.mubr.f32.gmra.mrb[0].mxu0 %v1028
    %v1668 = vpop.f32.mrb[0].mxu0
    %v1669 = vadd.f32 0.0, %v1668
    %v1670 = vpop.f32.mrb[0].mxu0
    %v1671 = vadd.f32 0.0, %v1670
    %1672 = vdwg.mxu0
    %v1677 = vcombine.low %v1598, %v1600
    %v1678 = vcombine.low %v1669, %v1671
    %v1680 = vunpack.c.l.s4 1983009808
    %v1681 = vunpack.c.0.s8 %v1680
    %v1682 = vlaneseq
    %v1683 = vshrl.u32 %v1682, 7
    %v1684 = vsub.s32 %v1681, %v1683
    %v1685 = vrot.slane %v1677, %v1684
    %v1687 = vunpack.c.l.s4 1983009808
    %v1688 = vunpack.c.0.s8 %v1687
    %v1689 = vlaneseq
    %v1690 = vshrl.u32 %v1689, 7
    %v1691 = vsub.s32 %v1688, %v1690
    %v1692 = vrot.slane %v1678, %v1691
    %v1693 = vcombine.low %v1685, %v1692
    %v1695 = vadd.f32 %v1466, %v1693
    %v1696 = vmul.f32 %v1695, 0.5
    %v1697 = vtanh.pop %v1696
    %v1698 = vmul.f32 %v1697, 0.5
    %v1699 = vadd.f32 %v1698, 0.5
    %v1701 = vrot.slane %v1695, 2
    %v1703 = vmul.f32 %v1701, 0.5
    %v1704 = vtanh.pop %v1703
    %v1705 = vmul.f32 %v1704, 0.5
    %v1706 = vadd.f32 %v1705, 0.5
    %v1707 = vrot.slane %v1695, 4
    %v1709 = vtanh.pop %v1707
    %v1710 = vrot.slane %v1695, 6
    %v1712 = vmul.f32 %v1710, 0.5
    %v1713 = vtanh.pop %v1712
    %v1714 = vmul.f32 %v1713, 0.5
    %v1715 = vadd.f32 %v1714, 0.5
    %v1716 = vmul.f32 %v1706, %v1026
    %v1717 = vmul.f32 %v1699, %v1709
    %v1718 = vadd.f32 %v1716, %v1717
    %v1719 = vtanh.pop %v1718
    %v1720 = vmul.f32 %v1715, %v1719
    %v1721 = vld [vmem:[#allocation4] sm:$0xff]
    %v1722 = vld [vmem:[#allocation4 + $0x8] sm:$0xff]
    %v1723 = vld [vmem:[#allocation4 + $0x10] sm:$0xff]
    %v1724 = vld [vmem:[#allocation4 + $0x18] sm:$0xff]
    %v1725 = vld [vmem:[#allocation4 + $0x20] sm:$0xff]
    %v1726 = vld [vmem:[#allocation4 + $0x28] sm:$0xff]
    %v1727 = vld [vmem:[#allocation4 + $0x30] sm:$0xff]
    %v1728 = vld [vmem:[#allocation4 + $0x38] sm:$0xff]
    %v1729 = vld [vmem:[#allocation4 + $0x40] sm:$0xff]
    %v1730 = vld [vmem:[#allocation4 + $0x48] sm:$0xff]
    %v1731 = vld [vmem:[#allocation4 + $0x50] sm:$0xff]
    %v1732 = vld [vmem:[#allocation4 + $0x58] sm:$0xff]
    %v1733 = vld [vmem:[#allocation4 + $0x60] sm:$0xff]
    %v1734 = vld [vmem:[#allocation4 + $0x68] sm:$0xff]
    %v1735 = vld [vmem:[#allocation4 + $0x70] sm:$0xff]
    %v1736 = vld [vmem:[#allocation4 + $0x78] sm:$0xff]
    %v1737 = vld [vmem:[#allocation4 + $0x80] sm:$0xff]
    %v1738 = vld [vmem:[#allocation4 + $0x88] sm:$0xff]
    %v1739 = vld [vmem:[#allocation4 + $0x90] sm:$0xff]
    %v1740 = vld [vmem:[#allocation4 + $0x98] sm:$0xff]
    %v1741 = vld [vmem:[#allocation4 + $0xa0] sm:$0xff]
    %v1742 = vld [vmem:[#allocation4 + $0xa8] sm:$0xff]
    %v1743 = vld [vmem:[#allocation4 + $0xb0] sm:$0xff]
    %v1744 = vld [vmem:[#allocation4 + $0xb8] sm:$0xff]
    %v1745 = vld [vmem:[#allocation4 + $0xc0] sm:$0xff]
    %v1746 = vld [vmem:[#allocation4 + $0xc8] sm:$0xff]
    %v1747 = vld [vmem:[#allocation4 + $0xd0] sm:$0xff]
    %v1748 = vld [vmem:[#allocation4 + $0xd8] sm:$0xff]
    %v1749 = vld [vmem:[#allocation4 + $0xe0] sm:$0xff]
    %v1750 = vld [vmem:[#allocation4 + $0xe8] sm:$0xff]
    %v1751 = vld [vmem:[#allocation4 + $0xf0] sm:$0xff]
    %v1752 = vld [vmem:[#allocation4 + $0xf8] sm:$0xff]
    %v1753 = vld [vmem:[#allocation4 + $0x100] sm:$0xff]
    %v1754 = vld [vmem:[#allocation4 + $0x108] sm:$0xff]
    %v1755 = vld [vmem:[#allocation4 + $0x110] sm:$0xff]
    %v1756 = vld [vmem:[#allocation4 + $0x118] sm:$0xff]
    %v1757 = vld [vmem:[#allocation4 + $0x120] sm:$0xff]
    %v1758 = vld [vmem:[#allocation4 + $0x128] sm:$0xff]
    %v1759 = vld [vmem:[#allocation4 + $0x130] sm:$0xff]
    %v1760 = vld [vmem:[#allocation4 + $0x138] sm:$0xff]
    %v1761 = vld [vmem:[#allocation4 + $0x140] sm:$0xff]
    %v1762 = vld [vmem:[#allocation4 + $0x148] sm:$0xff]
    %v1763 = vld [vmem:[#allocation4 + $0x150] sm:$0xff]
    %v1764 = vld [vmem:[#allocation4 + $0x158] sm:$0xff]
    %v1765 = vld [vmem:[#allocation4 + $0x160] sm:$0xff]
    %v1766 = vld [vmem:[#allocation4 + $0x168] sm:$0xff]
    %v1767 = vld [vmem:[#allocation4 + $0x170] sm:$0xff]
    %v1768 = vld [vmem:[#allocation4 + $0x178] sm:$0xff]
    %v1769 = vld [vmem:[#allocation4 + $0x180] sm:$0xff]
    %v1770 = vld [vmem:[#allocation4 + $0x188] sm:$0xff]
    %v1771 = vld [vmem:[#allocation4 + $0x190] sm:$0xff]
    %v1772 = vld [vmem:[#allocation4 + $0x198] sm:$0xff]
    %v1773 = vld [vmem:[#allocation4 + $0x1a0] sm:$0xff]
    %v1774 = vld [vmem:[#allocation4 + $0x1a8] sm:$0xff]
    %v1775 = vld [vmem:[#allocation4 + $0x1b0] sm:$0xff]
    %v1776 = vld [vmem:[#allocation4 + $0x1b8] sm:$0xff]
    %v1777 = vld [vmem:[#allocation4 + $0x1c0] sm:$0xff]
    %v1778 = vld [vmem:[#allocation4 + $0x1c8] sm:$0xff]
    %v1779 = vld [vmem:[#allocation4 + $0x1d0] sm:$0xff]
    %v1780 = vld [vmem:[#allocation4 + $0x1d8] sm:$0xff]
    %v1781 = vld [vmem:[#allocation4 + $0x1e0] sm:$0xff]
    %v1782 = vld [vmem:[#allocation4 + $0x1e8] sm:$0xff]
    %v1783 = vld [vmem:[#allocation4 + $0x1f0] sm:$0xff]
    %v1784 = vld [vmem:[#allocation4 + $0x1f8] sm:$0xff]
    %v1785 = vld [vmem:[#allocation6] sm:$0xff]
    %v1786 = vld [vmem:[#allocation6 + $0x8] sm:$0xff]
    %v1787 = vld [vmem:[#allocation6 + $0x10] sm:$0xff]
    %v1788 = vld [vmem:[#allocation6 + $0x18] sm:$0xff]
    %v1789 = vld [vmem:[#allocation6 + $0x20] sm:$0xff]
    %v1790 = vld [vmem:[#allocation6 + $0x28] sm:$0xff]
    %v1791 = vld [vmem:[#allocation6 + $0x30] sm:$0xff]
    %v1792 = vld [vmem:[#allocation6 + $0x38] sm:$0xff]
    %v1793 = vld [vmem:[#allocation6 + $0x40] sm:$0xff]
    %v1794 = vld [vmem:[#allocation6 + $0x48] sm:$0xff]
    %v1795 = vld [vmem:[#allocation6 + $0x50] sm:$0xff]
    %v1796 = vld [vmem:[#allocation6 + $0x58] sm:$0xff]
    %v1797 = vld [vmem:[#allocation6 + $0x60] sm:$0xff]
    %v1798 = vld [vmem:[#allocation6 + $0x68] sm:$0xff]
    %v1799 = vld [vmem:[#allocation6 + $0x70] sm:$0xff]
    %v1800 = vld [vmem:[#allocation6 + $0x78] sm:$0xff]
    %v1801 = vld [vmem:[#allocation6 + $0x80] sm:$0xff]
    %v1802 = vld [vmem:[#allocation6 + $0x88] sm:$0xff]
    %v1803 = vld [vmem:[#allocation6 + $0x90] sm:$0xff]
    %v1804 = vld [vmem:[#allocation6 + $0x98] sm:$0xff]
    %v1805 = vld [vmem:[#allocation6 + $0xa0] sm:$0xff]
    %v1806 = vld [vmem:[#allocation6 + $0xa8] sm:$0xff]
    %v1807 = vld [vmem:[#allocation6 + $0xb0] sm:$0xff]
    %v1808 = vld [vmem:[#allocation6 + $0xb8] sm:$0xff]
    %v1809 = vld [vmem:[#allocation6 + $0xc0] sm:$0xff]
    %v1810 = vld [vmem:[#allocation6 + $0xc8] sm:$0xff]
    %v1811 = vld [vmem:[#allocation6 + $0xd0] sm:$0xff]
    %v1812 = vld [vmem:[#allocation6 + $0xd8] sm:$0xff]
    %v1813 = vld [vmem:[#allocation6 + $0xe0] sm:$0xff]
    %v1814 = vld [vmem:[#allocation6 + $0xe8] sm:$0xff]
    %v1815 = vld [vmem:[#allocation6 + $0xf0] sm:$0xff]
    %v1816 = vld [vmem:[#allocation6 + $0xf8] sm:$0xff]
    %v1817 = vld [vmem:[#allocation6 + $0x100] sm:$0xff]
    %v1818 = vld [vmem:[#allocation6 + $0x108] sm:$0xff]
    %v1819 = vld [vmem:[#allocation6 + $0x110] sm:$0xff]
    %v1820 = vld [vmem:[#allocation6 + $0x118] sm:$0xff]
    %v1821 = vld [vmem:[#allocation6 + $0x120] sm:$0xff]
    %v1822 = vld [vmem:[#allocation6 + $0x128] sm:$0xff]
    %v1823 = vld [vmem:[#allocation6 + $0x130] sm:$0xff]
    %v1824 = vld [vmem:[#allocation6 + $0x138] sm:$0xff]
    %v1825 = vld [vmem:[#allocation6 + $0x140] sm:$0xff]
    %v1826 = vld [vmem:[#allocation6 + $0x148] sm:$0xff]
    %v1827 = vld [vmem:[#allocation6 + $0x150] sm:$0xff]
    %v1828 = vld [vmem:[#allocation6 + $0x158] sm:$0xff]
    %v1829 = vld [vmem:[#allocation6 + $0x160] sm:$0xff]
    %v1830 = vld [vmem:[#allocation6 + $0x168] sm:$0xff]
    %v1831 = vld [vmem:[#allocation6 + $0x170] sm:$0xff]
    %v1832 = vld [vmem:[#allocation6 + $0x178] sm:$0xff]
    %v1833 = vld [vmem:[#allocation6 + $0x180] sm:$0xff]
    %v1834 = vld [vmem:[#allocation6 + $0x188] sm:$0xff]
    %v1835 = vld [vmem:[#allocation6 + $0x190] sm:$0xff]
    %v1836 = vld [vmem:[#allocation6 + $0x198] sm:$0xff]
    %v1837 = vld [vmem:[#allocation6 + $0x1a0] sm:$0xff]
    %v1838 = vld [vmem:[#allocation6 + $0x1a8] sm:$0xff]
    %v1839 = vld [vmem:[#allocation6 + $0x1b0] sm:$0xff]
    %v1840 = vld [vmem:[#allocation6 + $0x1b8] sm:$0xff]
    %v1841 = vld [vmem:[#allocation6 + $0x1c0] sm:$0xff]
    %v1842 = vld [vmem:[#allocation6 + $0x1c8] sm:$0xff]
    %v1843 = vld [vmem:[#allocation6 + $0x1d0] sm:$0xff]
    %v1844 = vld [vmem:[#allocation6 + $0x1d8] sm:$0xff]
    %v1845 = vld [vmem:[#allocation6 + $0x1e0] sm:$0xff]
    %v1846 = vld [vmem:[#allocation6 + $0x1e8] sm:$0xff]
    %v1847 = vld [vmem:[#allocation6 + $0x1f0] sm:$0xff]
    %v1848 = vld [vmem:[#allocation6 + $0x1f8] sm:$0xff]
    %1849 = vmatprep.subr.mxu0 %v1786
    %1850 = vmatpush1.msra.mxu0 %v1785
    %1851 = vmatprep.subr.mxu0 %v1790
    %1852 = vmatpush1.msra.mxu0 %v1789
    %1853 = vmatprep.subr.mxu0 %v1794
    %1854 = vmatpush1.msra.mxu0 %v1793
    %1855 = vmatprep.subr.mxu0 %v1798
    %1856 = vmatpush1.msra.mxu0 %v1797
    %1857 = vmatprep.subr.mxu0 %v1802
    %1858 = vmatpush1.msra.mxu0 %v1801
    %1859 = vmatprep.subr.mxu0 %v1806
    %1860 = vmatpush1.msra.mxu0 %v1805
    %1861 = vmatprep.subr.mxu0 %v1810
    %1862 = vmatpush1.msra.mxu0 %v1809
    %1863 = vmatprep.subr.mxu0 %v1814
    %1864 = vmatpush1.msra.mxu0 %v1813
    %1865 = vmatprep.subr.mxu0 %v1818
    %1866 = vmatpush1.msra.mxu0 %v1817
    %1867 = vmatprep.subr.mxu0 %v1822
    %1868 = vmatpush1.msra.mxu0 %v1821
    %1869 = vmatprep.subr.mxu0 %v1826
    %1870 = vmatpush1.msra.mxu0 %v1825
    %1871 = vmatprep.subr.mxu0 %v1830
    %1872 = vmatpush1.msra.mxu0 %v1829
    %1873 = vmatprep.subr.mxu0 %v1834
    %1874 = vmatpush1.msra.mxu0 %v1833
    %1875 = vmatprep.subr.mxu0 %v1838
    %1876 = vmatpush1.msra.mxu0 %v1837
    %1877 = vmatprep.subr.mxu0 %v1842
    %1878 = vmatpush1.msra.mxu0 %v1841
    %1879 = vmatprep.subr.mxu0 %v1846
    %1880 = vmatpush1.msra.mxu0 %v1845
    %1881 = vmatprep.subr.mxu0 0.0
    %1882 = vmatpush1.msra.mxu0 0.0
    %1883 = vmatprep.subr.mxu0 0.0
    %1884 = vmatpush1.msra.mxu0 0.0
    %1885 = vmatprep.subr.mxu0 0.0
    %1886 = vmatpush1.msra.mxu0 0.0
    %1887 = vmatprep.subr.mxu0 0.0
    %1888 = vmatpush1.msra.mxu0 0.0
    %1889 = vmatprep.subr.mxu0 0.0
    %1890 = vmatpush1.msra.mxu0 0.0
    %1891 = vmatprep.subr.mxu0 0.0
    %1892 = vmatpush1.msra.mxu0 0.0
    %1893 = vmatprep.subr.mxu0 0.0
    %1894 = vmatpush1.msra.mxu0 0.0
    %1895 = vmatprep.subr.mxu0 0.0
    %1896 = vmatpush1.msra.mxu0 0.0
    %1897 = vmatprep.subr.mxu0 0.0
    %1898 = vmatpush1.msra.mxu0 0.0
    %1899 = vmatprep.subr.mxu0 0.0
    %1900 = vmatpush1.msra.mxu0 0.0
    %1901 = vmatprep.subr.mxu0 0.0
    %1902 = vmatpush1.msra.mxu0 0.0
    %1903 = vmatprep.subr.mxu0 0.0
    %1904 = vmatpush1.msra.mxu0 0.0
    %1905 = vmatprep.subr.mxu0 0.0
    %1906 = vmatpush1.msra.mxu0 0.0
    %1907 = vmatprep.subr.mxu0 0.0
    %1908 = vmatpush1.msra.mxu0 0.0
    %1909 = vmatprep.subr.mxu0 0.0
    %1910 = vmatpush1.msra.mxu0 0.0
    %1911 = vmatprep.subr.mxu0 0.0
    %1912 = vmatpush1.msra.mxu0 0.0
    %1913 = vmatprep.mubr.f32.mxu0 0.0
    %1914 = vmatmul.mubr.f32.gmra.mrb[0].mxu0 %v1462
    %v1915 = vpop.f32.mrb[0].mxu0
    %v1916 = vadd.f32 0.0, %v1915
    %v1917 = vpop.f32.mrb[0].mxu0
    %v1918 = vadd.f32 0.0, %v1917
    %1919 = vdwg.mxu0
    %1920 = vmatprep.subr.mxu0 %v1788
    %1921 = vmatpush1.msra.mxu0 %v1787
    %1922 = vmatprep.subr.mxu0 %v1792
    %1923 = vmatpush1.msra.mxu0 %v1791
    %1924 = vmatprep.subr.mxu0 %v1796
    %1925 = vmatpush1.msra.mxu0 %v1795
    %1926 = vmatprep.subr.mxu0 %v1800
    %1927 = vmatpush1.msra.mxu0 %v1799
    %1928 = vmatprep.subr.mxu0 %v1804
    %1929 = vmatpush1.msra.mxu0 %v1803
    %1930 = vmatprep.subr.mxu0 %v1808
    %1931 = vmatpush1.msra.mxu0 %v1807
    %1932 = vmatprep.subr.mxu0 %v1812
    %1933 = vmatpush1.msra.mxu0 %v1811
    %1934 = vmatprep.subr.mxu0 %v1816
    %1935 = vmatpush1.msra.mxu0 %v1815
    %1936 = vmatprep.subr.mxu0 %v1820
    %1937 = vmatpush1.msra.mxu0 %v1819
    %1938 = vmatprep.subr.mxu0 %v1824
    %1939 = vmatpush1.msra.mxu0 %v1823
    %1940 = vmatprep.subr.mxu0 %v1828
    %1941 = vmatpush1.msra.mxu0 %v1827
    %1942 = vmatprep.subr.mxu0 %v1832
    %1943 = vmatpush1.msra.mxu0 %v1831
    %1944 = vmatprep.subr.mxu0 %v1836
    %1945 = vmatpush1.msra.mxu0 %v1835
    %1946 = vmatprep.subr.mxu0 %v1840
    %1947 = vmatpush1.msra.mxu0 %v1839
    %1948 = vmatprep.subr.mxu0 %v1844
    %1949 = vmatpush1.msra.mxu0 %v1843
    %1950 = vmatprep.subr.mxu0 %v1848
    %1951 = vmatpush1.msra.mxu0 %v1847
    %1952 = vmatprep.subr.mxu0 0.0
    %1953 = vmatpush1.msra.mxu0 0.0
    %1954 = vmatprep.subr.mxu0 0.0
    %1955 = vmatpush1.msra.mxu0 0.0
    %1956 = vmatprep.subr.mxu0 0.0
    %1957 = vmatpush1.msra.mxu0 0.0
    %1958 = vmatprep.subr.mxu0 0.0
    %1959 = vmatpush1.msra.mxu0 0.0
    %1960 = vmatprep.subr.mxu0 0.0
    %1961 = vmatpush1.msra.mxu0 0.0
    %1962 = vmatprep.subr.mxu0 0.0
    %1963 = vmatpush1.msra.mxu0 0.0
    %1964 = vmatprep.subr.mxu0 0.0
    %1965 = vmatpush1.msra.mxu0 0.0
    %1966 = vmatprep.subr.mxu0 0.0
    %1967 = vmatpush1.msra.mxu0 0.0
    %1968 = vmatprep.subr.mxu0 0.0
    %1969 = vmatpush1.msra.mxu0 0.0
    %1970 = vmatprep.subr.mxu0 0.0
    %1971 = vmatpush1.msra.mxu0 0.0
    %1972 = vmatprep.subr.mxu0 0.0
    %1973 = vmatpush1.msra.mxu0 0.0
    %1974 = vmatprep.subr.mxu0 0.0
    %1975 = vmatpush1.msra.mxu0 0.0
    %1976 = vmatprep.subr.mxu0 0.0
    %1977 = vmatpush1.msra.mxu0 0.0
    %1978 = vmatprep.subr.mxu0 0.0
    %1979 = vmatpush1.msra.mxu0 0.0
    %1980 = vmatprep.subr.mxu0 0.0
    %1981 = vmatpush1.msra.mxu0 0.0
    %1982 = vmatprep.subr.mxu0 0.0
    %1983 = vmatpush1.msra.mxu0 0.0
    %1984 = vmatprep.mubr.f32.mxu0 0.0
    %1985 = vmatmul.mubr.f32.gmra.mrb[0].mxu0 %v1462
    %v1986 = vpop.f32.mrb[0].mxu0
    %v1987 = vadd.f32 0.0, %v1986
    %v1988 = vpop.f32.mrb[0].mxu0
    %v1989 = vadd.f32 0.0, %v1988
    %1990 = vdwg.mxu0
    %1991 = vmatprep.subr.mxu0 %v1722
    %1992 = vmatpush1.msra.mxu0 %v1721
    %1993 = vmatprep.subr.mxu0 %v1726
    %1994 = vmatpush1.msra.mxu0 %v1725
    %1995 = vmatprep.subr.mxu0 %v1730
    %1996 = vmatpush1.msra.mxu0 %v1729
    %1997 = vmatprep.subr.mxu0 %v1734
    %1998 = vmatpush1.msra.mxu0 %v1733
    %1999 = vmatprep.subr.mxu0 %v1738
    %2000 = vmatpush1.msra.mxu0 %v1737
    %2001 = vmatprep.subr.mxu0 %v1742
    %2002 = vmatpush1.msra.mxu0 %v1741
    %2003 = vmatprep.subr.mxu0 %v1746
    %2004 = vmatpush1.msra.mxu0 %v1745
    %2005 = vmatprep.subr.mxu0 %v1750
    %2006 = vmatpush1.msra.mxu0 %v1749
    %2007 = vmatprep.subr.mxu0 %v1754
    %2008 = vmatpush1.msra.mxu0 %v1753
    %2009 = vmatprep.subr.mxu0 %v1758
    %2010 = vmatpush1.msra.mxu0 %v1757
    %2011 = vmatprep.subr.mxu0 %v1762
    %2012 = vmatpush1.msra.mxu0 %v1761
    %2013 = vmatprep.subr.mxu0 %v1766
    %2014 = vmatpush1.msra.mxu0 %v1765
    %2015 = vmatprep.subr.mxu0 %v1770
    %2016 = vmatpush1.msra.mxu0 %v1769
    %2017 = vmatprep.subr.mxu0 %v1774
    %2018 = vmatpush1.msra.mxu0 %v1773
    %2019 = vmatprep.subr.mxu0 %v1778
    %2020 = vmatpush1.msra.mxu0 %v1777
    %2021 = vmatprep.subr.mxu0 %v1782
    %2022 = vmatpush1.msra.mxu0 %v1781
    %2023 = vmatprep.subr.mxu0 0.0
    %2024 = vmatpush1.msra.mxu0 0.0
    %2025 = vmatprep.subr.mxu0 0.0
    %2026 = vmatpush1.msra.mxu0 0.0
    %2027 = vmatprep.subr.mxu0 0.0
    %2028 = vmatpush1.msra.mxu0 0.0
    %2029 = vmatprep.subr.mxu0 0.0
    %2030 = vmatpush1.msra.mxu0 0.0
    %2031 = vmatprep.subr.mxu0 0.0
    %2032 = vmatpush1.msra.mxu0 0.0
    %2033 = vmatprep.subr.mxu0 0.0
    %2034 = vmatpush1.msra.mxu0 0.0
    %2035 = vmatprep.subr.mxu0 0.0
    %2036 = vmatpush1.msra.mxu0 0.0
    %2037 = vmatprep.subr.mxu0 0.0
    %2038 = vmatpush1.msra.mxu0 0.0
    %2039 = vmatprep.subr.mxu0 0.0
    %2040 = vmatpush1.msra.mxu0 0.0
    %2041 = vmatprep.subr.mxu0 0.0
    %2042 = vmatpush1.msra.mxu0 0.0
    %2043 = vmatprep.subr.mxu0 0.0
    %2044 = vmatpush1.msra.mxu0 0.0
    %2045 = vmatprep.subr.mxu0 0.0
    %2046 = vmatpush1.msra.mxu0 0.0
    %2047 = vmatprep.subr.mxu0 0.0
    %2048 = vmatpush1.msra.mxu0 0.0
    %2049 = vmatprep.subr.mxu0 0.0
    %2050 = vmatpush1.msra.mxu0 0.0
    %2051 = vmatprep.subr.mxu0 0.0
    %2052 = vmatpush1.msra.mxu0 0.0
    %2053 = vmatprep.subr.mxu0 0.0
    %2054 = vmatpush1.msra.mxu0 0.0
    %2055 = vmatprep.mubr.f32.mxu0 0.0
    %2056 = vmatmul.mubr.f32.gmra.mrb[0].mxu0 %v1720
    %v2057 = vpop.f32.mrb[0].mxu0
    %v2058 = vadd.f32 %v1916, %v2057
    %v2059 = vpop.f32.mrb[0].mxu0
    %v2060 = vadd.f32 %v1918, %v2059
    %2061 = vdwg.mxu0
    %2062 = vmatprep.subr.mxu0 %v1724
    %2063 = vmatpush1.msra.mxu0 %v1723
    %2064 = vmatprep.subr.mxu0 %v1728
    %2065 = vmatpush1.msra.mxu0 %v1727
    %2066 = vmatprep.subr.mxu0 %v1732
    %2067 = vmatpush1.msra.mxu0 %v1731
    %2068 = vmatprep.subr.mxu0 %v1736
    %2069 = vmatpush1.msra.mxu0 %v1735
    %2070 = vmatprep.subr.mxu0 %v1740
    %2071 = vmatpush1.msra.mxu0 %v1739
    %2072 = vmatprep.subr.mxu0 %v1744
    %2073 = vmatpush1.msra.mxu0 %v1743
    %2074 = vmatprep.subr.mxu0 %v1748
    %2075 = vmatpush1.msra.mxu0 %v1747
    %2076 = vmatprep.subr.mxu0 %v1752
    %2077 = vmatpush1.msra.mxu0 %v1751
    %2078 = vmatprep.subr.mxu0 %v1756
    %2079 = vmatpush1.msra.mxu0 %v1755
    %2080 = vmatprep.subr.mxu0 %v1760
    %2081 = vmatpush1.msra.mxu0 %v1759
    %2082 = vmatprep.subr.mxu0 %v1764
    %2083 = vmatpush1.msra.mxu0 %v1763
    %2084 = vmatprep.subr.mxu0 %v1768
    %2085 = vmatpush1.msra.mxu0 %v1767
    %2086 = vmatprep.subr.mxu0 %v1772
    %2087 = vmatpush1.msra.mxu0 %v1771
    %2088 = vmatprep.subr.mxu0 %v1776
    %2089 = vmatpush1.msra.mxu0 %v1775
    %2090 = vmatprep.subr.mxu0 %v1780
    %2091 = vmatpush1.msra.mxu0 %v1779
    %2092 = vmatprep.subr.mxu0 %v1784
    %2093 = vmatpush1.msra.mxu0 %v1783
    %2094 = vmatprep.subr.mxu0 0.0
    %2095 = vmatpush1.msra.mxu0 0.0
    %2096 = vmatprep.subr.mxu0 0.0
    %2097 = vmatpush1.msra.mxu0 0.0
    %2098 = vmatprep.subr.mxu0 0.0
    %2099 = vmatpush1.msra.mxu0 0.0
    %2100 = vmatprep.subr.mxu0 0.0
    %2101 = vmatpush1.msra.mxu0 0.0
    %2102 = vmatprep.subr.mxu0 0.0
    %2103 = vmatpush1.msra.mxu0 0.0
    %2104 = vmatprep.subr.mxu0 0.0
    %2105 = vmatpush1.msra.mxu0 0.0
    %2106 = vmatprep.subr.mxu0 0.0
    %2107 = vmatpush1.msra.mxu0 0.0
    %2108 = vmatprep.subr.mxu0 0.0
    %2109 = vmatpush1.msra.mxu0 0.0
    %2110 = vmatprep.subr.mxu0 0.0
    %2111 = vmatpush1.msra.mxu0 0.0
    %2112 = vmatprep.subr.mxu0 0.0
    %2113 = vmatpush1.msra.mxu0 0.0
    %2114 = vmatprep.subr.mxu0 0.0
    %2115 = vmatpush1.msra.mxu0 0.0
    %2116 = vmatprep.subr.mxu0 0.0
    %2117 = vmatpush1.msra.mxu0 0.0
    %2118 = vmatprep.subr.mxu0 0.0
    %2119 = vmatpush1.msra.mxu0 0.0
    %2120 = vmatprep.subr.mxu0 0.0
    %2121 = vmatpush1.msra.mxu0 0.0
    %2122 = vmatprep.subr.mxu0 0.0
    %2123 = vmatpush1.msra.mxu0 0.0
    %2124 = vmatprep.subr.mxu0 0.0
    %2125 = vmatpush1.msra.mxu0 0.0
    %2126 = vmatprep.mubr.f32.mxu0 0.0
    %2127 = vmatmul.mubr.f32.gmra.mrb[0].mxu0 %v1720
    %v2128 = vpop.f32.mrb[0].mxu0
    %v2129 = vadd.f32 %v1987, %v2128
    %v2130 = vpop.f32.mrb[0].mxu0
    %v2131 = vadd.f32 %v1989, %v2130
    %2132 = vdwg.mxu0
    %v2133 = vadd.f32 %v2058, %v66
    %v2134 = vadd.f32 %v2060, %v70
    %v2135 = vadd.f32 %v2129, %v74
    %v2136 = vadd.f32 %v2131, %v78
    %v2137 = vmul.f32 %v2133, 0.5
    %v2138 = vtanh.pop %v2137
    %v2139 = vmul.f32 %v2138, 0.5
    %v2140 = vadd.f32 %v2139, 0.5
    %v2141 = vmul.f32 %v2134, 0.5
    %v2142 = vtanh.pop %v2141
    %v2143 = vmul.f32 %v2142, 0.5
    %v2144 = vadd.f32 %v2143, 0.5
    %v2145 = vtanh.pop %v2135
    %v2146 = vmul.f32 %v2136, 0.5
    %v2147 = vtanh.pop %v2146
    %v2148 = vmul.f32 %v2147, 0.5
    %v2149 = vadd.f32 %v2148, 0.5
    %v2150 = vmul.f32 %v2144, %v1460
    %v2151 = vmul.f32 %v2140, %v2145
    %v2152 = vadd.f32 %v2150, %v2151
    %v2153 = vtanh.pop %v2152
    %v2154 = vmul.f32 %v2149, %v2153
    %s2155 = scalar_lea.vmem %s5, 4
    %2156 = vst [vmem:[%s2155] sm:$0x3] %v2154
    %s2157 = scalar_lea.vmem %s0, 24
    %v2158 = vld [vmem:[%s2157] sm:$0xff]
    %v2159 = vld [vmem:[#allocation2] sm:$0xff]
    %v2160 = vld [vmem:[#allocation2 + $0x8] sm:$0xff]
    %v2161 = vld [vmem:[#allocation2 + $0x10] sm:$0xff]
    %v2162 = vld [vmem:[#allocation2 + $0x18] sm:$0xff]
    %v2163 = vld [vmem:[#allocation2 + $0x20] sm:$0xff]
    %v2164 = vld [vmem:[#allocation2 + $0x28] sm:$0xff]
    %v2165 = vld [vmem:[#allocation2 + $0x30] sm:$0xff]
    %v2166 = vld [vmem:[#allocation2 + $0x38] sm:$0xff]
    %v2167 = vld [vmem:[#allocation2 + $0x40] sm:$0xff]
    %v2168 = vld [vmem:[#allocation2 + $0x48] sm:$0xff]
    %v2169 = vld [vmem:[#allocation2 + $0x50] sm:$0xff]
    %v2170 = vld [vmem:[#allocation2 + $0x58] sm:$0xff]
    %v2171 = vld [vmem:[#allocation2 + $0x60] sm:$0xff]
    %v2172 = vld [vmem:[#allocation2 + $0x68] sm:$0xff]
    %v2173 = vld [vmem:[#allocation2 + $0x70] sm:$0xff]
    %v2174 = vld [vmem:[#allocation2 + $0x78] sm:$0xff]
    %v2175 = vld [vmem:[#allocation2 + $0x80] sm:$0xff]
    %v2176 = vld [vmem:[#allocation2 + $0x88] sm:$0xff]
    %v2177 = vld [vmem:[#allocation2 + $0x90] sm:$0xff]
    %v2178 = vld [vmem:[#allocation2 + $0x98] sm:$0xff]
    %v2179 = vld [vmem:[#allocation2 + $0xa0] sm:$0xff]
    %v2180 = vld [vmem:[#allocation2 + $0xa8] sm:$0xff]
    %v2181 = vld [vmem:[#allocation2 + $0xb0] sm:$0xff]
    %v2182 = vld [vmem:[#allocation2 + $0xb8] sm:$0xff]
    %v2183 = vld [vmem:[#allocation2 + $0xc0] sm:$0xff]
    %v2184 = vld [vmem:[#allocation2 + $0xc8] sm:$0xff]
    %v2185 = vld [vmem:[#allocation2 + $0xd0] sm:$0xff]
    %v2186 = vld [vmem:[#allocation2 + $0xd8] sm:$0xff]
    %v2187 = vld [vmem:[#allocation2 + $0xe0] sm:$0xff]
    %v2188 = vld [vmem:[#allocation2 + $0xe8] sm:$0xff]
    %v2189 = vld [vmem:[#allocation2 + $0xf0] sm:$0xff]
    %v2190 = vld [vmem:[#allocation2 + $0xf8] sm:$0xff]
    %v2191 = vld [vmem:[#allocation2 + $0x100] sm:$0xff]
    %v2192 = vld [vmem:[#allocation2 + $0x108] sm:$0xff]
    %v2193 = vld [vmem:[#allocation2 + $0x110] sm:$0xff]
    %v2194 = vld [vmem:[#allocation2 + $0x118] sm:$0xff]
    %v2195 = vld [vmem:[#allocation2 + $0x120] sm:$0xff]
    %v2196 = vld [vmem:[#allocation2 + $0x128] sm:$0xff]
    %v2197 = vld [vmem:[#allocation2 + $0x130] sm:$0xff]
    %v2198 = vld [vmem:[#allocation2 + $0x138] sm:$0xff]
    %v2199 = vld [vmem:[#allocation2 + $0x140] sm:$0xff]
    %v2200 = vld [vmem:[#allocation2 + $0x148] sm:$0xff]
    %v2201 = vld [vmem:[#allocation2 + $0x150] sm:$0xff]
    %v2202 = vld [vmem:[#allocation2 + $0x158] sm:$0xff]
    %v2203 = vld [vmem:[#allocation2 + $0x160] sm:$0xff]
    %v2204 = vld [vmem:[#allocation2 + $0x168] sm:$0xff]
    %v2205 = vld [vmem:[#allocation2 + $0x170] sm:$0xff]
    %v2206 = vld [vmem:[#allocation2 + $0x178] sm:$0xff]
    %v2207 = vld [vmem:[#allocation2 + $0x180] sm:$0xff]
    %v2208 = vld [vmem:[#allocation2 + $0x188] sm:$0xff]
    %v2209 = vld [vmem:[#allocation2 + $0x190] sm:$0xff]
    %v2210 = vld [vmem:[#allocation2 + $0x198] sm:$0xff]
    %v2211 = vld [vmem:[#allocation2 + $0x1a0] sm:$0xff]
    %v2212 = vld [vmem:[#allocation2 + $0x1a8] sm:$0xff]
    %v2213 = vld [vmem:[#allocation2 + $0x1b0] sm:$0xff]
    %v2214 = vld [vmem:[#allocation2 + $0x1b8] sm:$0xff]
    %v2215 = vld [vmem:[#allocation2 + $0x1c0] sm:$0xff]
    %v2216 = vld [vmem:[#allocation2 + $0x1c8] sm:$0xff]
    %v2217 = vld [vmem:[#allocation2 + $0x1d0] sm:$0xff]
    %v2218 = vld [vmem:[#allocation2 + $0x1d8] sm:$0xff]
    %v2219 = vld [vmem:[#allocation2 + $0x1e0] sm:$0xff]
    %v2220 = vld [vmem:[#allocation2 + $0x1e8] sm:$0xff]
    %v2221 = vld [vmem:[#allocation2 + $0x1f0] sm:$0xff]
    %v2222 = vld [vmem:[#allocation2 + $0x1f8] sm:$0xff]
    %2223 = vmatprep.subr.mxu0 %v2160
    %2224 = vmatpush1.msra.mxu0 %v2159
    %2225 = vmatprep.subr.mxu0 %v2164
    %2226 = vmatpush1.msra.mxu0 %v2163
    %2227 = vmatprep.subr.mxu0 %v2168
    %2228 = vmatpush1.msra.mxu0 %v2167
    %2229 = vmatprep.subr.mxu0 %v2172
    %2230 = vmatpush1.msra.mxu0 %v2171
    %2231 = vmatprep.subr.mxu0 %v2176
    %2232 = vmatpush1.msra.mxu0 %v2175
    %2233 = vmatprep.subr.mxu0 %v2180
    %2234 = vmatpush1.msra.mxu0 %v2179
    %2235 = vmatprep.subr.mxu0 %v2184
    %2236 = vmatpush1.msra.mxu0 %v2183
    %2237 = vmatprep.subr.mxu0 %v2188
    %2238 = vmatpush1.msra.mxu0 %v2187
    %2239 = vmatprep.subr.mxu0 %v2192
    %2240 = vmatpush1.msra.mxu0 %v2191
    %2241 = vmatprep.subr.mxu0 %v2196
    %2242 = vmatpush1.msra.mxu0 %v2195
    %2243 = vmatprep.subr.mxu0 %v2200
    %2244 = vmatpush1.msra.mxu0 %v2199
    %2245 = vmatprep.subr.mxu0 %v2204
    %2246 = vmatpush1.msra.mxu0 %v2203
    %2247 = vmatprep.subr.mxu0 %v2208
    %2248 = vmatpush1.msra.mxu0 %v2207
    %2249 = vmatprep.subr.mxu0 %v2212
    %2250 = vmatpush1.msra.mxu0 %v2211
    %2251 = vmatprep.subr.mxu0 %v2216
    %2252 = vmatpush1.msra.mxu0 %v2215
    %2253 = vmatprep.subr.mxu0 %v2220
    %2254 = vmatpush1.msra.mxu0 %v2219
    %2255 = vmatprep.subr.mxu0 0.0
    %2256 = vmatpush1.msra.mxu0 0.0
    %2257 = vmatprep.subr.mxu0 0.0
    %2258 = vmatpush1.msra.mxu0 0.0
    %2259 = vmatprep.subr.mxu0 0.0
    %2260 = vmatpush1.msra.mxu0 0.0
    %2261 = vmatprep.subr.mxu0 0.0
    %2262 = vmatpush1.msra.mxu0 0.0
    %2263 = vmatprep.subr.mxu0 0.0
    %2264 = vmatpush1.msra.mxu0 0.0
    %2265 = vmatprep.subr.mxu0 0.0
    %2266 = vmatpush1.msra.mxu0 0.0
    %2267 = vmatprep.subr.mxu0 0.0
    %2268 = vmatpush1.msra.mxu0 0.0
    %2269 = vmatprep.subr.mxu0 0.0
    %2270 = vmatpush1.msra.mxu0 0.0
    %2271 = vmatprep.subr.mxu0 0.0
    %2272 = vmatpush1.msra.mxu0 0.0
    %2273 = vmatprep.subr.mxu0 0.0
    %2274 = vmatpush1.msra.mxu0 0.0
    %2275 = vmatprep.subr.mxu0 0.0
    %2276 = vmatpush1.msra.mxu0 0.0
    %2277 = vmatprep.subr.mxu0 0.0
    %2278 = vmatpush1.msra.mxu0 0.0
    %2279 = vmatprep.subr.mxu0 0.0
    %2280 = vmatpush1.msra.mxu0 0.0
    %2281 = vmatprep.subr.mxu0 0.0
    %2282 = vmatpush1.msra.mxu0 0.0
    %2283 = vmatprep.subr.mxu0 0.0
    %2284 = vmatpush1.msra.mxu0 0.0
    %2285 = vmatprep.subr.mxu0 0.0
    %2286 = vmatpush1.msra.mxu0 0.0
    %2287 = vmatprep.mubr.f32.mxu0 0.0
    %2288 = vmatmul.mubr.f32.gmra.mrb[0].mxu0 %v1720
    %v2289 = vpop.f32.mrb[0].mxu0
    %v2290 = vadd.f32 0.0, %v2289
    %v2291 = vpop.f32.mrb[0].mxu0
    %v2292 = vadd.f32 0.0, %v2291
    %2293 = vdwg.mxu0
    %2294 = vmatprep.subr.mxu0 %v2162
    %2295 = vmatpush1.msra.mxu0 %v2161
    %2296 = vmatprep.subr.mxu0 %v2166
    %2297 = vmatpush1.msra.mxu0 %v2165
    %2298 = vmatprep.subr.mxu0 %v2170
    %2299 = vmatpush1.msra.mxu0 %v2169
    %2300 = vmatprep.subr.mxu0 %v2174
    %2301 = vmatpush1.msra.mxu0 %v2173
    %2302 = vmatprep.subr.mxu0 %v2178
    %2303 = vmatpush1.msra.mxu0 %v2177
    %2304 = vmatprep.subr.mxu0 %v2182
    %2305 = vmatpush1.msra.mxu0 %v2181
    %2306 = vmatprep.subr.mxu0 %v2186
    %2307 = vmatpush1.msra.mxu0 %v2185
    %2308 = vmatprep.subr.mxu0 %v2190
    %2309 = vmatpush1.msra.mxu0 %v2189
    %2310 = vmatprep.subr.mxu0 %v2194
    %2311 = vmatpush1.msra.mxu0 %v2193
    %2312 = vmatprep.subr.mxu0 %v2198
    %2313 = vmatpush1.msra.mxu0 %v2197
    %2314 = vmatprep.subr.mxu0 %v2202
    %2315 = vmatpush1.msra.mxu0 %v2201
    %2316 = vmatprep.subr.mxu0 %v2206
    %2317 = vmatpush1.msra.mxu0 %v2205
    %2318 = vmatprep.subr.mxu0 %v2210
    %2319 = vmatpush1.msra.mxu0 %v2209
    %2320 = vmatprep.subr.mxu0 %v2214
    %2321 = vmatpush1.msra.mxu0 %v2213
    %2322 = vmatprep.subr.mxu0 %v2218
    %2323 = vmatpush1.msra.mxu0 %v2217
    %2324 = vmatprep.subr.mxu0 %v2222
    %2325 = vmatpush1.msra.mxu0 %v2221
    %2326 = vmatprep.subr.mxu0 0.0
    %2327 = vmatpush1.msra.mxu0 0.0
    %2328 = vmatprep.subr.mxu0 0.0
    %2329 = vmatpush1.msra.mxu0 0.0
    %2330 = vmatprep.subr.mxu0 0.0
    %2331 = vmatpush1.msra.mxu0 0.0
    %2332 = vmatprep.subr.mxu0 0.0
    %2333 = vmatpush1.msra.mxu0 0.0
    %2334 = vmatprep.subr.mxu0 0.0
    %2335 = vmatpush1.msra.mxu0 0.0
    %2336 = vmatprep.subr.mxu0 0.0
    %2337 = vmatpush1.msra.mxu0 0.0
    %2338 = vmatprep.subr.mxu0 0.0
    %2339 = vmatpush1.msra.mxu0 0.0
    %2340 = vmatprep.subr.mxu0 0.0
    %2341 = vmatpush1.msra.mxu0 0.0
    %2342 = vmatprep.subr.mxu0 0.0
    %2343 = vmatpush1.msra.mxu0 0.0
    %2344 = vmatprep.subr.mxu0 0.0
    %2345 = vmatpush1.msra.mxu0 0.0
    %2346 = vmatprep.subr.mxu0 0.0
    %2347 = vmatpush1.msra.mxu0 0.0
    %2348 = vmatprep.subr.mxu0 0.0
    %2349 = vmatpush1.msra.mxu0 0.0
    %2350 = vmatprep.subr.mxu0 0.0
    %2351 = vmatpush1.msra.mxu0 0.0
    %2352 = vmatprep.subr.mxu0 0.0
    %2353 = vmatpush1.msra.mxu0 0.0
    %2354 = vmatprep.subr.mxu0 0.0
    %2355 = vmatpush1.msra.mxu0 0.0
    %2356 = vmatprep.subr.mxu0 0.0
    %2357 = vmatpush1.msra.mxu0 0.0
    %2358 = vmatprep.mubr.f32.mxu0 0.0
    %2359 = vmatmul.mubr.f32.gmra.mrb[0].mxu0 %v1720
    %v2360 = vpop.f32.mrb[0].mxu0
    %v2361 = vadd.f32 0.0, %v2360
    %v2362 = vpop.f32.mrb[0].mxu0
    %v2363 = vadd.f32 0.0, %v2362
    %2364 = vdwg.mxu0
    %v2369 = vcombine.low %v2290, %v2292
    %v2370 = vcombine.low %v2361, %v2363
    %v2372 = vunpack.c.l.s4 1983009808
    %v2373 = vunpack.c.0.s8 %v2372
    %v2374 = vlaneseq
    %v2375 = vshrl.u32 %v2374, 7
    %v2376 = vsub.s32 %v2373, %v2375
    %v2377 = vrot.slane %v2369, %v2376
    %v2379 = vunpack.c.l.s4 1983009808
    %v2380 = vunpack.c.0.s8 %v2379
    %v2381 = vlaneseq
    %v2382 = vshrl.u32 %v2381, 7
    %v2383 = vsub.s32 %v2380, %v2382
    %v2384 = vrot.slane %v2370, %v2383
    %v2385 = vcombine.low %v2377, %v2384
    %v2387 = vadd.f32 %v2158, %v2385
    %v2388 = vmul.f32 %v2387, 0.5
    %v2389 = vtanh.pop %v2388
    %v2390 = vmul.f32 %v2389, 0.5
    %v2391 = vadd.f32 %v2390, 0.5
    %v2393 = vrot.slane %v2387, 2
    %v2395 = vmul.f32 %v2393, 0.5
    %v2396 = vtanh.pop %v2395
    %v2397 = vmul.f32 %v2396, 0.5
    %v2398 = vadd.f32 %v2397, 0.5
    %v2399 = vrot.slane %v2387, 4
    %v2401 = vtanh.pop %v2399
    %v2402 = vrot.slane %v2387, 6
    %v2404 = vmul.f32 %v2402, 0.5
    %v2405 = vtanh.pop %v2404
    %v2406 = vmul.f32 %v2405, 0.5
    %v2407 = vadd.f32 %v2406, 0.5
    %v2408 = vmul.f32 %v2398, %v1718
    %v2409 = vmul.f32 %v2391, %v2401
    %v2410 = vadd.f32 %v2408, %v2409
    %v2411 = vtanh.pop %v2410
    %v2412 = vmul.f32 %v2407, %v2411
    %v2413 = vld [vmem:[#allocation4] sm:$0xff]
    %v2414 = vld [vmem:[#allocation4 + $0x8] sm:$0xff]
    %v2415 = vld [vmem:[#allocation4 + $0x10] sm:$0xff]
    %v2416 = vld [vmem:[#allocation4 + $0x18] sm:$0xff]
    %v2417 = vld [vmem:[#allocation4 + $0x20] sm:$0xff]
    %v2418 = vld [vmem:[#allocation4 + $0x28] sm:$0xff]
    %v2419 = vld [vmem:[#allocation4 + $0x30] sm:$0xff]
    %v2420 = vld [vmem:[#allocation4 + $0x38] sm:$0xff]
    %v2421 = vld [vmem:[#allocation4 + $0x40] sm:$0xff]
    %v2422 = vld [vmem:[#allocation4 + $0x48] sm:$0xff]
    %v2423 = vld [vmem:[#allocation4 + $0x50] sm:$0xff]
    %v2424 = vld [vmem:[#allocation4 + $0x58] sm:$0xff]
    %v2425 = vld [vmem:[#allocation4 + $0x60] sm:$0xff]
    %v2426 = vld [vmem:[#allocation4 + $0x68] sm:$0xff]
    %v2427 = vld [vmem:[#allocation4 + $0x70] sm:$0xff]
    %v2428 = vld [vmem:[#allocation4 + $0x78] sm:$0xff]
    %v2429 = vld [vmem:[#allocation4 + $0x80] sm:$0xff]
    %v2430 = vld [vmem:[#allocation4 + $0x88] sm:$0xff]
    %v2431 = vld [vmem:[#allocation4 + $0x90] sm:$0xff]
    %v2432 = vld [vmem:[#allocation4 + $0x98] sm:$0xff]
    %v2433 = vld [vmem:[#allocation4 + $0xa0] sm:$0xff]
    %v2434 = vld [vmem:[#allocation4 + $0xa8] sm:$0xff]
    %v2435 = vld [vmem:[#allocation4 + $0xb0] sm:$0xff]
    %v2436 = vld [vmem:[#allocation4 + $0xb8] sm:$0xff]
    %v2437 = vld [vmem:[#allocation4 + $0xc0] sm:$0xff]
    %v2438 = vld [vmem:[#allocation4 + $0xc8] sm:$0xff]
    %v2439 = vld [vmem:[#allocation4 + $0xd0] sm:$0xff]
    %v2440 = vld [vmem:[#allocation4 + $0xd8] sm:$0xff]
    %v2441 = vld [vmem:[#allocation4 + $0xe0] sm:$0xff]
    %v2442 = vld [vmem:[#allocation4 + $0xe8] sm:$0xff]
    %v2443 = vld [vmem:[#allocation4 + $0xf0] sm:$0xff]
    %v2444 = vld [vmem:[#allocation4 + $0xf8] sm:$0xff]
    %v2445 = vld [vmem:[#allocation4 + $0x100] sm:$0xff]
    %v2446 = vld [vmem:[#allocation4 + $0x108] sm:$0xff]
    %v2447 = vld [vmem:[#allocation4 + $0x110] sm:$0xff]
    %v2448 = vld [vmem:[#allocation4 + $0x118] sm:$0xff]
    %v2449 = vld [vmem:[#allocation4 + $0x120] sm:$0xff]
    %v2450 = vld [vmem:[#allocation4 + $0x128] sm:$0xff]
    %v2451 = vld [vmem:[#allocation4 + $0x130] sm:$0xff]
    %v2452 = vld [vmem:[#allocation4 + $0x138] sm:$0xff]
    %v2453 = vld [vmem:[#allocation4 + $0x140] sm:$0xff]
    %v2454 = vld [vmem:[#allocation4 + $0x148] sm:$0xff]
    %v2455 = vld [vmem:[#allocation4 + $0x150] sm:$0xff]
    %v2456 = vld [vmem:[#allocation4 + $0x158] sm:$0xff]
    %v2457 = vld [vmem:[#allocation4 + $0x160] sm:$0xff]
    %v2458 = vld [vmem:[#allocation4 + $0x168] sm:$0xff]
    %v2459 = vld [vmem:[#allocation4 + $0x170] sm:$0xff]
    %v2460 = vld [vmem:[#allocation4 + $0x178] sm:$0xff]
    %v2461 = vld [vmem:[#allocation4 + $0x180] sm:$0xff]
    %v2462 = vld [vmem:[#allocation4 + $0x188] sm:$0xff]
    %v2463 = vld [vmem:[#allocation4 + $0x190] sm:$0xff]
    %v2464 = vld [vmem:[#allocation4 + $0x198] sm:$0xff]
    %v2465 = vld [vmem:[#allocation4 + $0x1a0] sm:$0xff]
    %v2466 = vld [vmem:[#allocation4 + $0x1a8] sm:$0xff]
    %v2467 = vld [vmem:[#allocation4 + $0x1b0] sm:$0xff]
    %v2468 = vld [vmem:[#allocation4 + $0x1b8] sm:$0xff]
    %v2469 = vld [vmem:[#allocation4 + $0x1c0] sm:$0xff]
    %v2470 = vld [vmem:[#allocation4 + $0x1c8] sm:$0xff]
    %v2471 = vld [vmem:[#allocation4 + $0x1d0] sm:$0xff]
    %v2472 = vld [vmem:[#allocation4 + $0x1d8] sm:$0xff]
    %v2473 = vld [vmem:[#allocation4 + $0x1e0] sm:$0xff]
    %v2474 = vld [vmem:[#allocation4 + $0x1e8] sm:$0xff]
    %v2475 = vld [vmem:[#allocation4 + $0x1f0] sm:$0xff]
    %v2476 = vld [vmem:[#allocation4 + $0x1f8] sm:$0xff]
    %v2477 = vld [vmem:[#allocation6] sm:$0xff]
    %v2478 = vld [vmem:[#allocation6 + $0x8] sm:$0xff]
    %v2479 = vld [vmem:[#allocation6 + $0x10] sm:$0xff]
    %v2480 = vld [vmem:[#allocation6 + $0x18] sm:$0xff]
    %v2481 = vld [vmem:[#allocation6 + $0x20] sm:$0xff]
    %v2482 = vld [vmem:[#allocation6 + $0x28] sm:$0xff]
    %v2483 = vld [vmem:[#allocation6 + $0x30] sm:$0xff]
    %v2484 = vld [vmem:[#allocation6 + $0x38] sm:$0xff]
    %v2485 = vld [vmem:[#allocation6 + $0x40] sm:$0xff]
    %v2486 = vld [vmem:[#allocation6 + $0x48] sm:$0xff]
    %v2487 = vld [vmem:[#allocation6 + $0x50] sm:$0xff]
    %v2488 = vld [vmem:[#allocation6 + $0x58] sm:$0xff]
    %v2489 = vld [vmem:[#allocation6 + $0x60] sm:$0xff]
    %v2490 = vld [vmem:[#allocation6 + $0x68] sm:$0xff]
    %v2491 = vld [vmem:[#allocation6 + $0x70] sm:$0xff]
    %v2492 = vld [vmem:[#allocation6 + $0x78] sm:$0xff]
    %v2493 = vld [vmem:[#allocation6 + $0x80] sm:$0xff]
    %v2494 = vld [vmem:[#allocation6 + $0x88] sm:$0xff]
    %v2495 = vld [vmem:[#allocation6 + $0x90] sm:$0xff]
    %v2496 = vld [vmem:[#allocation6 + $0x98] sm:$0xff]
    %v2497 = vld [vmem:[#allocation6 + $0xa0] sm:$0xff]
    %v2498 = vld [vmem:[#allocation6 + $0xa8] sm:$0xff]
    %v2499 = vld [vmem:[#allocation6 + $0xb0] sm:$0xff]
    %v2500 = vld [vmem:[#allocation6 + $0xb8] sm:$0xff]
    %v2501 = vld [vmem:[#allocation6 + $0xc0] sm:$0xff]
    %v2502 = vld [vmem:[#allocation6 + $0xc8] sm:$0xff]
    %v2503 = vld [vmem:[#allocation6 + $0xd0] sm:$0xff]
    %v2504 = vld [vmem:[#allocation6 + $0xd8] sm:$0xff]
    %v2505 = vld [vmem:[#allocation6 + $0xe0] sm:$0xff]
    %v2506 = vld [vmem:[#allocation6 + $0xe8] sm:$0xff]
    %v2507 = vld [vmem:[#allocation6 + $0xf0] sm:$0xff]
    %v2508 = vld [vmem:[#allocation6 + $0xf8] sm:$0xff]
    %v2509 = vld [vmem:[#allocation6 + $0x100] sm:$0xff]
    %v2510 = vld [vmem:[#allocation6 + $0x108] sm:$0xff]
    %v2511 = vld [vmem:[#allocation6 + $0x110] sm:$0xff]
    %v2512 = vld [vmem:[#allocation6 + $0x118] sm:$0xff]
    %v2513 = vld [vmem:[#allocation6 + $0x120] sm:$0xff]
    %v2514 = vld [vmem:[#allocation6 + $0x128] sm:$0xff]
    %v2515 = vld [vmem:[#allocation6 + $0x130] sm:$0xff]
    %v2516 = vld [vmem:[#allocation6 + $0x138] sm:$0xff]
    %v2517 = vld [vmem:[#allocation6 + $0x140] sm:$0xff]
    %v2518 = vld [vmem:[#allocation6 + $0x148] sm:$0xff]
    %v2519 = vld [vmem:[#allocation6 + $0x150] sm:$0xff]
    %v2520 = vld [vmem:[#allocation6 + $0x158] sm:$0xff]
    %v2521 = vld [vmem:[#allocation6 + $0x160] sm:$0xff]
    %v2522 = vld [vmem:[#allocation6 + $0x168] sm:$0xff]
    %v2523 = vld [vmem:[#allocation6 + $0x170] sm:$0xff]
    %v2524 = vld [vmem:[#allocation6 + $0x178] sm:$0xff]
    %v2525 = vld [vmem:[#allocation6 + $0x180] sm:$0xff]
    %v2526 = vld [vmem:[#allocation6 + $0x188] sm:$0xff]
    %v2527 = vld [vmem:[#allocation6 + $0x190] sm:$0xff]
    %v2528 = vld [vmem:[#allocation6 + $0x198] sm:$0xff]
    %v2529 = vld [vmem:[#allocation6 + $0x1a0] sm:$0xff]
    %v2530 = vld [vmem:[#allocation6 + $0x1a8] sm:$0xff]
    %v2531 = vld [vmem:[#allocation6 + $0x1b0] sm:$0xff]
    %v2532 = vld [vmem:[#allocation6 + $0x1b8] sm:$0xff]
    %v2533 = vld [vmem:[#allocation6 + $0x1c0] sm:$0xff]
    %v2534 = vld [vmem:[#allocation6 + $0x1c8] sm:$0xff]
    %v2535 = vld [vmem:[#allocation6 + $0x1d0] sm:$0xff]
    %v2536 = vld [vmem:[#allocation6 + $0x1d8] sm:$0xff]
    %v2537 = vld [vmem:[#allocation6 + $0x1e0] sm:$0xff]
    %v2538 = vld [vmem:[#allocation6 + $0x1e8] sm:$0xff]
    %v2539 = vld [vmem:[#allocation6 + $0x1f0] sm:$0xff]
    %v2540 = vld [vmem:[#allocation6 + $0x1f8] sm:$0xff]
    %2541 = vmatprep.subr.mxu0 %v2478
    %2542 = vmatpush1.msra.mxu0 %v2477
    %2543 = vmatprep.subr.mxu0 %v2482
    %2544 = vmatpush1.msra.mxu0 %v2481
    %2545 = vmatprep.subr.mxu0 %v2486
    %2546 = vmatpush1.msra.mxu0 %v2485
    %2547 = vmatprep.subr.mxu0 %v2490
    %2548 = vmatpush1.msra.mxu0 %v2489
    %2549 = vmatprep.subr.mxu0 %v2494
    %2550 = vmatpush1.msra.mxu0 %v2493
    %2551 = vmatprep.subr.mxu0 %v2498
    %2552 = vmatpush1.msra.mxu0 %v2497
    %2553 = vmatprep.subr.mxu0 %v2502
    %2554 = vmatpush1.msra.mxu0 %v2501
    %2555 = vmatprep.subr.mxu0 %v2506
    %2556 = vmatpush1.msra.mxu0 %v2505
    %2557 = vmatprep.subr.mxu0 %v2510
    %2558 = vmatpush1.msra.mxu0 %v2509
    %2559 = vmatprep.subr.mxu0 %v2514
    %2560 = vmatpush1.msra.mxu0 %v2513
    %2561 = vmatprep.subr.mxu0 %v2518
    %2562 = vmatpush1.msra.mxu0 %v2517
    %2563 = vmatprep.subr.mxu0 %v2522
    %2564 = vmatpush1.msra.mxu0 %v2521
    %2565 = vmatprep.subr.mxu0 %v2526
    %2566 = vmatpush1.msra.mxu0 %v2525
    %2567 = vmatprep.subr.mxu0 %v2530
    %2568 = vmatpush1.msra.mxu0 %v2529
    %2569 = vmatprep.subr.mxu0 %v2534
    %2570 = vmatpush1.msra.mxu0 %v2533
    %2571 = vmatprep.subr.mxu0 %v2538
    %2572 = vmatpush1.msra.mxu0 %v2537
    %2573 = vmatprep.subr.mxu0 0.0
    %2574 = vmatpush1.msra.mxu0 0.0
    %2575 = vmatprep.subr.mxu0 0.0
    %2576 = vmatpush1.msra.mxu0 0.0
    %2577 = vmatprep.subr.mxu0 0.0
    %2578 = vmatpush1.msra.mxu0 0.0
    %2579 = vmatprep.subr.mxu0 0.0
    %2580 = vmatpush1.msra.mxu0 0.0
    %2581 = vmatprep.subr.mxu0 0.0
    %2582 = vmatpush1.msra.mxu0 0.0
    %2583 = vmatprep.subr.mxu0 0.0
    %2584 = vmatpush1.msra.mxu0 0.0
    %2585 = vmatprep.subr.mxu0 0.0
    %2586 = vmatpush1.msra.mxu0 0.0
    %2587 = vmatprep.subr.mxu0 0.0
    %2588 = vmatpush1.msra.mxu0 0.0
    %2589 = vmatprep.subr.mxu0 0.0
    %2590 = vmatpush1.msra.mxu0 0.0
    %2591 = vmatprep.subr.mxu0 0.0
    %2592 = vmatpush1.msra.mxu0 0.0
    %2593 = vmatprep.subr.mxu0 0.0
    %2594 = vmatpush1.msra.mxu0 0.0
    %2595 = vmatprep.subr.mxu0 0.0
    %2596 = vmatpush1.msra.mxu0 0.0
    %2597 = vmatprep.subr.mxu0 0.0
    %2598 = vmatpush1.msra.mxu0 0.0
    %2599 = vmatprep.subr.mxu0 0.0
    %2600 = vmatpush1.msra.mxu0 0.0
    %2601 = vmatprep.subr.mxu0 0.0
    %2602 = vmatpush1.msra.mxu0 0.0
    %2603 = vmatprep.subr.mxu0 0.0
    %2604 = vmatpush1.msra.mxu0 0.0
    %2605 = vmatprep.mubr.f32.mxu0 0.0
    %2606 = vmatmul.mubr.f32.gmra.mrb[0].mxu0 %v2154
    %v2607 = vpop.f32.mrb[0].mxu0
    %v2608 = vadd.f32 0.0, %v2607
    %v2609 = vpop.f32.mrb[0].mxu0
    %v2610 = vadd.f32 0.0, %v2609
    %2611 = vdwg.mxu0
    %2612 = vmatprep.subr.mxu0 %v2480
    %2613 = vmatpush1.msra.mxu0 %v2479
    %2614 = vmatprep.subr.mxu0 %v2484
    %2615 = vmatpush1.msra.mxu0 %v2483
    %2616 = vmatprep.subr.mxu0 %v2488
    %2617 = vmatpush1.msra.mxu0 %v2487
    %2618 = vmatprep.subr.mxu0 %v2492
    %2619 = vmatpush1.msra.mxu0 %v2491
    %2620 = vmatprep.subr.mxu0 %v2496
    %2621 = vmatpush1.msra.mxu0 %v2495
    %2622 = vmatprep.subr.mxu0 %v2500
    %2623 = vmatpush1.msra.mxu0 %v2499
    %2624 = vmatprep.subr.mxu0 %v2504
    %2625 = vmatpush1.msra.mxu0 %v2503
    %2626 = vmatprep.subr.mxu0 %v2508
    %2627 = vmatpush1.msra.mxu0 %v2507
    %2628 = vmatprep.subr.mxu0 %v2512
    %2629 = vmatpush1.msra.mxu0 %v2511
    %2630 = vmatprep.subr.mxu0 %v2516
    %2631 = vmatpush1.msra.mxu0 %v2515
    %2632 = vmatprep.subr.mxu0 %v2520
    %2633 = vmatpush1.msra.mxu0 %v2519
    %2634 = vmatprep.subr.mxu0 %v2524
    %2635 = vmatpush1.msra.mxu0 %v2523
    %2636 = vmatprep.subr.mxu0 %v2528
    %2637 = vmatpush1.msra.mxu0 %v2527
    %2638 = vmatprep.subr.mxu0 %v2532
    %2639 = vmatpush1.msra.mxu0 %v2531
    %2640 = vmatprep.subr.mxu0 %v2536
    %2641 = vmatpush1.msra.mxu0 %v2535
    %2642 = vmatprep.subr.mxu0 %v2540
    %2643 = vmatpush1.msra.mxu0 %v2539
    %2644 = vmatprep.subr.mxu0 0.0
    %2645 = vmatpush1.msra.mxu0 0.0
    %2646 = vmatprep.subr.mxu0 0.0
    %2647 = vmatpush1.msra.mxu0 0.0
    %2648 = vmatprep.subr.mxu0 0.0
    %2649 = vmatpush1.msra.mxu0 0.0
    %2650 = vmatprep.subr.mxu0 0.0
    %2651 = vmatpush1.msra.mxu0 0.0
    %2652 = vmatprep.subr.mxu0 0.0
    %2653 = vmatpush1.msra.mxu0 0.0
    %2654 = vmatprep.subr.mxu0 0.0
    %2655 = vmatpush1.msra.mxu0 0.0
    %2656 = vmatprep.subr.mxu0 0.0
    %2657 = vmatpush1.msra.mxu0 0.0
    %2658 = vmatprep.subr.mxu0 0.0
    %2659 = vmatpush1.msra.mxu0 0.0
    %2660 = vmatprep.subr.mxu0 0.0
    %2661 = vmatpush1.msra.mxu0 0.0
    %2662 = vmatprep.subr.mxu0 0.0
    %2663 = vmatpush1.msra.mxu0 0.0
    %2664 = vmatprep.subr.mxu0 0.0
    %2665 = vmatpush1.msra.mxu0 0.0
    %2666 = vmatprep.subr.mxu0 0.0
    %2667 = vmatpush1.msra.mxu0 0.0
    %2668 = vmatprep.subr.mxu0 0.0
    %2669 = vmatpush1.msra.mxu0 0.0
    %2670 = vmatprep.subr.mxu0 0.0
    %2671 = vmatpush1.msra.mxu0 0.0
    %2672 = vmatprep.subr.mxu0 0.0
    %2673 = vmatpush1.msra.mxu0 0.0
    %2674 = vmatprep.subr.mxu0 0.0
    %2675 = vmatpush1.msra.mxu0 0.0
    %2676 = vmatprep.mubr.f32.mxu0 0.0
    %2677 = vmatmul.mubr.f32.gmra.mrb[0].mxu0 %v2154
    %v2678 = vpop.f32.mrb[0].mxu0
    %v2679 = vadd.f32 0.0, %v2678
    %v2680 = vpop.f32.mrb[0].mxu0
    %v2681 = vadd.f32 0.0, %v2680
    %2682 = vdwg.mxu0
    %2683 = vmatprep.subr.mxu0 %v2414
    %2684 = vmatpush1.msra.mxu0 %v2413
    %2685 = vmatprep.subr.mxu0 %v2418
    %2686 = vmatpush1.msra.mxu0 %v2417
    %2687 = vmatprep.subr.mxu0 %v2422
    %2688 = vmatpush1.msra.mxu0 %v2421
    %2689 = vmatprep.subr.mxu0 %v2426
    %2690 = vmatpush1.msra.mxu0 %v2425
    %2691 = vmatprep.subr.mxu0 %v2430
    %2692 = vmatpush1.msra.mxu0 %v2429
    %2693 = vmatprep.subr.mxu0 %v2434
    %2694 = vmatpush1.msra.mxu0 %v2433
    %2695 = vmatprep.subr.mxu0 %v2438
    %2696 = vmatpush1.msra.mxu0 %v2437
    %2697 = vmatprep.subr.mxu0 %v2442
    %2698 = vmatpush1.msra.mxu0 %v2441
    %2699 = vmatprep.subr.mxu0 %v2446
    %2700 = vmatpush1.msra.mxu0 %v2445
    %2701 = vmatprep.subr.mxu0 %v2450
    %2702 = vmatpush1.msra.mxu0 %v2449
    %2703 = vmatprep.subr.mxu0 %v2454
    %2704 = vmatpush1.msra.mxu0 %v2453
    %2705 = vmatprep.subr.mxu0 %v2458
    %2706 = vmatpush1.msra.mxu0 %v2457
    %2707 = vmatprep.subr.mxu0 %v2462
    %2708 = vmatpush1.msra.mxu0 %v2461
    %2709 = vmatprep.subr.mxu0 %v2466
    %2710 = vmatpush1.msra.mxu0 %v2465
    %2711 = vmatprep.subr.mxu0 %v2470
    %2712 = vmatpush1.msra.mxu0 %v2469
    %2713 = vmatprep.subr.mxu0 %v2474
    %2714 = vmatpush1.msra.mxu0 %v2473
    %2715 = vmatprep.subr.mxu0 0.0
    %2716 = vmatpush1.msra.mxu0 0.0
    %2717 = vmatprep.subr.mxu0 0.0
    %2718 = vmatpush1.msra.mxu0 0.0
    %2719 = vmatprep.subr.mxu0 0.0
    %2720 = vmatpush1.msra.mxu0 0.0
    %2721 = vmatprep.subr.mxu0 0.0
    %2722 = vmatpush1.msra.mxu0 0.0
    %2723 = vmatprep.subr.mxu0 0.0
    %2724 = vmatpush1.msra.mxu0 0.0
    %2725 = vmatprep.subr.mxu0 0.0
    %2726 = vmatpush1.msra.mxu0 0.0
    %2727 = vmatprep.subr.mxu0 0.0
    %2728 = vmatpush1.msra.mxu0 0.0
    %2729 = vmatprep.subr.mxu0 0.0
    %2730 = vmatpush1.msra.mxu0 0.0
    %2731 = vmatprep.subr.mxu0 0.0
    %2732 = vmatpush1.msra.mxu0 0.0
    %2733 = vmatprep.subr.mxu0 0.0
    %2734 = vmatpush1.msra.mxu0 0.0
    %2735 = vmatprep.subr.mxu0 0.0
    %2736 = vmatpush1.msra.mxu0 0.0
    %2737 = vmatprep.subr.mxu0 0.0
    %2738 = vmatpush1.msra.mxu0 0.0
    %2739 = vmatprep.subr.mxu0 0.0
    %2740 = vmatpush1.msra.mxu0 0.0
    %2741 = vmatprep.subr.mxu0 0.0
    %2742 = vmatpush1.msra.mxu0 0.0
    %2743 = vmatprep.subr.mxu0 0.0
    %2744 = vmatpush1.msra.mxu0 0.0
    %2745 = vmatprep.subr.mxu0 0.0
    %2746 = vmatpush1.msra.mxu0 0.0
    %2747 = vmatprep.mubr.f32.mxu0 0.0
    %2748 = vmatmul.mubr.f32.gmra.mrb[0].mxu0 %v2412
    %v2749 = vpop.f32.mrb[0].mxu0
    %v2750 = vadd.f32 %v2608, %v2749
    %v2751 = vpop.f32.mrb[0].mxu0
    %v2752 = vadd.f32 %v2610, %v2751
    %2753 = vdwg.mxu0
    %2754 = vmatprep.subr.mxu0 %v2416
    %2755 = vmatpush1.msra.mxu0 %v2415
    %2756 = vmatprep.subr.mxu0 %v2420
    %2757 = vmatpush1.msra.mxu0 %v2419
    %2758 = vmatprep.subr.mxu0 %v2424
    %2759 = vmatpush1.msra.mxu0 %v2423
    %2760 = vmatprep.subr.mxu0 %v2428
    %2761 = vmatpush1.msra.mxu0 %v2427
    %2762 = vmatprep.subr.mxu0 %v2432
    %2763 = vmatpush1.msra.mxu0 %v2431
    %2764 = vmatprep.subr.mxu0 %v2436
    %2765 = vmatpush1.msra.mxu0 %v2435
    %2766 = vmatprep.subr.mxu0 %v2440
    %2767 = vmatpush1.msra.mxu0 %v2439
    %2768 = vmatprep.subr.mxu0 %v2444
    %2769 = vmatpush1.msra.mxu0 %v2443
    %2770 = vmatprep.subr.mxu0 %v2448
    %2771 = vmatpush1.msra.mxu0 %v2447
    %2772 = vmatprep.subr.mxu0 %v2452
    %2773 = vmatpush1.msra.mxu0 %v2451
    %2774 = vmatprep.subr.mxu0 %v2456
    %2775 = vmatpush1.msra.mxu0 %v2455
    %2776 = vmatprep.subr.mxu0 %v2460
    %2777 = vmatpush1.msra.mxu0 %v2459
    %2778 = vmatprep.subr.mxu0 %v2464
    %2779 = vmatpush1.msra.mxu0 %v2463
    %2780 = vmatprep.subr.mxu0 %v2468
    %2781 = vmatpush1.msra.mxu0 %v2467
    %2782 = vmatprep.subr.mxu0 %v2472
    %2783 = vmatpush1.msra.mxu0 %v2471
    %2784 = vmatprep.subr.mxu0 %v2476
    %2785 = vmatpush1.msra.mxu0 %v2475
    %2786 = vmatprep.subr.mxu0 0.0
    %2787 = vmatpush1.msra.mxu0 0.0
    %2788 = vmatprep.subr.mxu0 0.0
    %2789 = vmatpush1.msra.mxu0 0.0
    %2790 = vmatprep.subr.mxu0 0.0
    %2791 = vmatpush1.msra.mxu0 0.0
    %2792 = vmatprep.subr.mxu0 0.0
    %2793 = vmatpush1.msra.mxu0 0.0
    %2794 = vmatprep.subr.mxu0 0.0
    %2795 = vmatpush1.msra.mxu0 0.0
    %2796 = vmatprep.subr.mxu0 0.0
    %2797 = vmatpush1.msra.mxu0 0.0
    %2798 = vmatprep.subr.mxu0 0.0
    %2799 = vmatpush1.msra.mxu0 0.0
    %2800 = vmatprep.subr.mxu0 0.0
    %2801 = vmatpush1.msra.mxu0 0.0
    %2802 = vmatprep.subr.mxu0 0.0
    %2803 = vmatpush1.msra.mxu0 0.0
    %2804 = vmatprep.subr.mxu0 0.0
    %2805 = vmatpush1.msra.mxu0 0.0
    %2806 = vmatprep.subr.mxu0 0.0
    %2807 = vmatpush1.msra.mxu0 0.0
    %2808 = vmatprep.subr.mxu0 0.0
    %2809 = vmatpush1.msra.mxu0 0.0
    %2810 = vmatprep.subr.mxu0 0.0
    %2811 = vmatpush1.msra.mxu0 0.0
    %2812 = vmatprep.subr.mxu0 0.0
    %2813 = vmatpush1.msra.mxu0 0.0
    %2814 = vmatprep.subr.mxu0 0.0
    %2815 = vmatpush1.msra.mxu0 0.0
    %2816 = vmatprep.subr.mxu0 0.0
    %2817 = vmatpush1.msra.mxu0 0.0
    %2818 = vmatprep.mubr.f32.mxu0 0.0
    %2819 = vmatmul.mubr.f32.gmra.mrb[0].mxu0 %v2412
    %v2820 = vpop.f32.mrb[0].mxu0
    %v2821 = vadd.f32 %v2679, %v2820
    %v2822 = vpop.f32.mrb[0].mxu0
    %v2823 = vadd.f32 %v2681, %v2822
    %2824 = vdwg.mxu0
    %v2825 = vadd.f32 %v2750, %v66
    %v2826 = vadd.f32 %v2752, %v70
    %v2827 = vadd.f32 %v2821, %v74
    %v2828 = vadd.f32 %v2823, %v78
    %v2829 = vmul.f32 %v2825, 0.5
    %v2830 = vtanh.pop %v2829
    %v2831 = vmul.f32 %v2830, 0.5
    %v2832 = vadd.f32 %v2831, 0.5
    %v2833 = vmul.f32 %v2826, 0.5
    %v2834 = vtanh.pop %v2833
    %v2835 = vmul.f32 %v2834, 0.5
    %v2836 = vadd.f32 %v2835, 0.5
    %v2837 = vtanh.pop %v2827
    %v2838 = vmul.f32 %v2828, 0.5
    %v2839 = vtanh.pop %v2838
    %v2840 = vmul.f32 %v2839, 0.5
    %v2841 = vadd.f32 %v2840, 0.5
    %v2842 = vmul.f32 %v2836, %v2152
    %v2843 = vmul.f32 %v2832, %v2837
    %v2844 = vadd.f32 %v2842, %v2843
    %v2845 = vtanh.pop %v2844
    %v2846 = vmul.f32 %v2841, %v2845
    %s2847 = scalar_lea.vmem %s5, 6
    %2848 = vst [vmem:[%s2847] sm:$0x3] %v2846
    %s2849 = scalar_lea.vmem %s0, 32
    %v2850 = vld [vmem:[%s2849] sm:$0xff]
    %v2851 = vld [vmem:[#allocation2] sm:$0xff]
    %v2852 = vld [vmem:[#allocation2 + $0x8] sm:$0xff]
    %v2853 = vld [vmem:[#allocation2 + $0x10] sm:$0xff]
    %v2854 = vld [vmem:[#allocation2 + $0x18] sm:$0xff]
    %v2855 = vld [vmem:[#allocation2 + $0x20] sm:$0xff]
    %v2856 = vld [vmem:[#allocation2 + $0x28] sm:$0xff]
    %v2857 = vld [vmem:[#allocation2 + $0x30] sm:$0xff]
    %v2858 = vld [vmem:[#allocation2 + $0x38] sm:$0xff]
    %v2859 = vld [vmem:[#allocation2 + $0x40] sm:$0xff]
    %v2860 = vld [vmem:[#allocation2 + $0x48] sm:$0xff]
    %v2861 = vld [vmem:[#allocation2 + $0x50] sm:$0xff]
    %v2862 = vld [vmem:[#allocation2 + $0x58] sm:$0xff]
    %v2863 = vld [vmem:[#allocation2 + $0x60] sm:$0xff]
    %v2864 = vld [vmem:[#allocation2 + $0x68] sm:$0xff]
    %v2865 = vld [vmem:[#allocation2 + $0x70] sm:$0xff]
    %v2866 = vld [vmem:[#allocation2 + $0x78] sm:$0xff]
    %v2867 = vld [vmem:[#allocation2 + $0x80] sm:$0xff]
    %v2868 = vld [vmem:[#allocation2 + $0x88] sm:$0xff]
    %v2869 = vld [vmem:[#allocation2 + $0x90] sm:$0xff]
    %v2870 = vld [vmem:[#allocation2 + $0x98] sm:$0xff]
    %v2871 = vld [vmem:[#allocation2 + $0xa0] sm:$0xff]
    %v2872 = vld [vmem:[#allocation2 + $0xa8] sm:$0xff]
    %v2873 = vld [vmem:[#allocation2 + $0xb0] sm:$0xff]
    %v2874 = vld [vmem:[#allocation2 + $0xb8] sm:$0xff]
    %v2875 = vld [vmem:[#allocation2 + $0xc0] sm:$0xff]
    %v2876 = vld [vmem:[#allocation2 + $0xc8] sm:$0xff]
    %v2877 = vld [vmem:[#allocation2 + $0xd0] sm:$0xff]
    %v2878 = vld [vmem:[#allocation2 + $0xd8] sm:$0xff]
    %v2879 = vld [vmem:[#allocation2 + $0xe0] sm:$0xff]
    %v2880 = vld [vmem:[#allocation2 + $0xe8] sm:$0xff]
    %v2881 = vld [vmem:[#allocation2 + $0xf0] sm:$0xff]
    %v2882 = vld [vmem:[#allocation2 + $0xf8] sm:$0xff]
    %v2883 = vld [vmem:[#allocation2 + $0x100] sm:$0xff]
    %v2884 = vld [vmem:[#allocation2 + $0x108] sm:$0xff]
    %v2885 = vld [vmem:[#allocation2 + $0x110] sm:$0xff]
    %v2886 = vld [vmem:[#allocation2 + $0x118] sm:$0xff]
    %v2887 = vld [vmem:[#allocation2 + $0x120] sm:$0xff]
    %v2888 = vld [vmem:[#allocation2 + $0x128] sm:$0xff]
    %v2889 = vld [vmem:[#allocation2 + $0x130] sm:$0xff]
    %v2890 = vld [vmem:[#allocation2 + $0x138] sm:$0xff]
    %v2891 = vld [vmem:[#allocation2 + $0x140] sm:$0xff]
    %v2892 = vld [vmem:[#allocation2 + $0x148] sm:$0xff]
    %v2893 = vld [vmem:[#allocation2 + $0x150] sm:$0xff]
    %v2894 = vld [vmem:[#allocation2 + $0x158] sm:$0xff]
    %v2895 = vld [vmem:[#allocation2 + $0x160] sm:$0xff]
    %v2896 = vld [vmem:[#allocation2 + $0x168] sm:$0xff]
    %v2897 = vld [vmem:[#allocation2 + $0x170] sm:$0xff]
    %v2898 = vld [vmem:[#allocation2 + $0x178] sm:$0xff]
    %v2899 = vld [vmem:[#allocation2 + $0x180] sm:$0xff]
    %v2900 = vld [vmem:[#allocation2 + $0x188] sm:$0xff]
    %v2901 = vld [vmem:[#allocation2 + $0x190] sm:$0xff]
    %v2902 = vld [vmem:[#allocation2 + $0x198] sm:$0xff]
    %v2903 = vld [vmem:[#allocation2 + $0x1a0] sm:$0xff]
    %v2904 = vld [vmem:[#allocation2 + $0x1a8] sm:$0xff]
    %v2905 = vld [vmem:[#allocation2 + $0x1b0] sm:$0xff]
    %v2906 = vld [vmem:[#allocation2 + $0x1b8] sm:$0xff]
    %v2907 = vld [vmem:[#allocation2 + $0x1c0] sm:$0xff]
    %v2908 = vld [vmem:[#allocation2 + $0x1c8] sm:$0xff]
    %v2909 = vld [vmem:[#allocation2 + $0x1d0] sm:$0xff]
    %v2910 = vld [vmem:[#allocation2 + $0x1d8] sm:$0xff]
    %v2911 = vld [vmem:[#allocation2 + $0x1e0] sm:$0xff]
    %v2912 = vld [vmem:[#allocation2 + $0x1e8] sm:$0xff]
    %v2913 = vld [vmem:[#allocation2 + $0x1f0] sm:$0xff]
    %v2914 = vld [vmem:[#allocation2 + $0x1f8] sm:$0xff]
    %2915 = vmatprep.subr.mxu0 %v2852
    %2916 = vmatpush1.msra.mxu0 %v2851
    %2917 = vmatprep.subr.mxu0 %v2856
    %2918 = vmatpush1.msra.mxu0 %v2855
    %2919 = vmatprep.subr.mxu0 %v2860
    %2920 = vmatpush1.msra.mxu0 %v2859
    %2921 = vmatprep.subr.mxu0 %v2864
    %2922 = vmatpush1.msra.mxu0 %v2863
    %2923 = vmatprep.subr.mxu0 %v2868
    %2924 = vmatpush1.msra.mxu0 %v2867
    %2925 = vmatprep.subr.mxu0 %v2872
    %2926 = vmatpush1.msra.mxu0 %v2871
    %2927 = vmatprep.subr.mxu0 %v2876
    %2928 = vmatpush1.msra.mxu0 %v2875
    %2929 = vmatprep.subr.mxu0 %v2880
    %2930 = vmatpush1.msra.mxu0 %v2879
    %2931 = vmatprep.subr.mxu0 %v2884
    %2932 = vmatpush1.msra.mxu0 %v2883
    %2933 = vmatprep.subr.mxu0 %v2888
    %2934 = vmatpush1.msra.mxu0 %v2887
    %2935 = vmatprep.subr.mxu0 %v2892
    %2936 = vmatpush1.msra.mxu0 %v2891
    %2937 = vmatprep.subr.mxu0 %v2896
    %2938 = vmatpush1.msra.mxu0 %v2895
    %2939 = vmatprep.subr.mxu0 %v2900
    %2940 = vmatpush1.msra.mxu0 %v2899
    %2941 = vmatprep.subr.mxu0 %v2904
    %2942 = vmatpush1.msra.mxu0 %v2903
    %2943 = vmatprep.subr.mxu0 %v2908
    %2944 = vmatpush1.msra.mxu0 %v2907
    %2945 = vmatprep.subr.mxu0 %v2912
    %2946 = vmatpush1.msra.mxu0 %v2911
    %2947 = vmatprep.subr.mxu0 0.0
    %2948 = vmatpush1.msra.mxu0 0.0
    %2949 = vmatprep.subr.mxu0 0.0
    %2950 = vmatpush1.msra.mxu0 0.0
    %2951 = vmatprep.subr.mxu0 0.0
    %2952 = vmatpush1.msra.mxu0 0.0
    %2953 = vmatprep.subr.mxu0 0.0
    %2954 = vmatpush1.msra.mxu0 0.0
    %2955 = vmatprep.subr.mxu0 0.0
    %2956 = vmatpush1.msra.mxu0 0.0
    %2957 = vmatprep.subr.mxu0 0.0
    %2958 = vmatpush1.msra.mxu0 0.0
    %2959 = vmatprep.subr.mxu0 0.0
    %2960 = vmatpush1.msra.mxu0 0.0
    %2961 = vmatprep.subr.mxu0 0.0
    %2962 = vmatpush1.msra.mxu0 0.0
    %2963 = vmatprep.subr.mxu0 0.0
    %2964 = vmatpush1.msra.mxu0 0.0
    %2965 = vmatprep.subr.mxu0 0.0
    %2966 = vmatpush1.msra.mxu0 0.0
    %2967 = vmatprep.subr.mxu0 0.0
    %2968 = vmatpush1.msra.mxu0 0.0
    %2969 = vmatprep.subr.mxu0 0.0
    %2970 = vmatpush1.msra.mxu0 0.0
    %2971 = vmatprep.subr.mxu0 0.0
    %2972 = vmatpush1.msra.mxu0 0.0
    %2973 = vmatprep.subr.mxu0 0.0
    %2974 = vmatpush1.msra.mxu0 0.0
    %2975 = vmatprep.subr.mxu0 0.0
    %2976 = vmatpush1.msra.mxu0 0.0
    %2977 = vmatprep.subr.mxu0 0.0
    %2978 = vmatpush1.msra.mxu0 0.0
    %2979 = vmatprep.mubr.f32.mxu0 0.0
    %2980 = vmatmul.mubr.f32.gmra.mrb[0].mxu0 %v2412
    %v2981 = vpop.f32.mrb[0].mxu0
    %v2982 = vadd.f32 0.0, %v2981
    %v2983 = vpop.f32.mrb[0].mxu0
    %v2984 = vadd.f32 0.0, %v2983
    %2985 = vdwg.mxu0
    %2986 = vmatprep.subr.mxu0 %v2854
    %2987 = vmatpush1.msra.mxu0 %v2853
    %2988 = vmatprep.subr.mxu0 %v2858
    %2989 = vmatpush1.msra.mxu0 %v2857
    %2990 = vmatprep.subr.mxu0 %v2862
    %2991 = vmatpush1.msra.mxu0 %v2861
    %2992 = vmatprep.subr.mxu0 %v2866
    %2993 = vmatpush1.msra.mxu0 %v2865
    %2994 = vmatprep.subr.mxu0 %v2870
    %2995 = vmatpush1.msra.mxu0 %v2869
    %2996 = vmatprep.subr.mxu0 %v2874
    %2997 = vmatpush1.msra.mxu0 %v2873
    %2998 = vmatprep.subr.mxu0 %v2878
    %2999 = vmatpush1.msra.mxu0 %v2877
    %3000 = vmatprep.subr.mxu0 %v2882
    %3001 = vmatpush1.msra.mxu0 %v2881
    %3002 = vmatprep.subr.mxu0 %v2886
    %3003 = vmatpush1.msra.mxu0 %v2885
    %3004 = vmatprep.subr.mxu0 %v2890
    %3005 = vmatpush1.msra.mxu0 %v2889
    %3006 = vmatprep.subr.mxu0 %v2894
    %3007 = vmatpush1.msra.mxu0 %v2893
    %3008 = vmatprep.subr.mxu0 %v2898
    %3009 = vmatpush1.msra.mxu0 %v2897
    %3010 = vmatprep.subr.mxu0 %v2902
    %3011 = vmatpush1.msra.mxu0 %v2901
    %3012 = vmatprep.subr.mxu0 %v2906
    %3013 = vmatpush1.msra.mxu0 %v2905
    %3014 = vmatprep.subr.mxu0 %v2910
    %3015 = vmatpush1.msra.mxu0 %v2909
    %3016 = vmatprep.subr.mxu0 %v2914
    %3017 = vmatpush1.msra.mxu0 %v2913
    %3018 = vmatprep.subr.mxu0 0.0
    %3019 = vmatpush1.msra.mxu0 0.0
    %3020 = vmatprep.subr.mxu0 0.0
    %3021 = vmatpush1.msra.mxu0 0.0
    %3022 = vmatprep.subr.mxu0 0.0
    %3023 = vmatpush1.msra.mxu0 0.0
    %3024 = vmatprep.subr.mxu0 0.0
    %3025 = vmatpush1.msra.mxu0 0.0
    %3026 = vmatprep.subr.mxu0 0.0
    %3027 = vmatpush1.msra.mxu0 0.0
    %3028 = vmatprep.subr.mxu0 0.0
    %3029 = vmatpush1.msra.mxu0 0.0
    %3030 = vmatprep.subr.mxu0 0.0
    %3031 = vmatpush1.msra.mxu0 0.0
    %3032 = vmatprep.subr.mxu0 0.0
    %3033 = vmatpush1.msra.mxu0 0.0
    %3034 = vmatprep.subr.mxu0 0.0
    %3035 = vmatpush1.msra.mxu0 0.0
    %3036 = vmatprep.subr.mxu0 0.0
    %3037 = vmatpush1.msra.mxu0 0.0
    %3038 = vmatprep.subr.mxu0 0.0
    %3039 = vmatpush1.msra.mxu0 0.0
    %3040 = vmatprep.subr.mxu0 0.0
    %3041 = vmatpush1.msra.mxu0 0.0
    %3042 = vmatprep.subr.mxu0 0.0
    %3043 = vmatpush1.msra.mxu0 0.0
    %3044 = vmatprep.subr.mxu0 0.0
    %3045 = vmatpush1.msra.mxu0 0.0
    %3046 = vmatprep.subr.mxu0 0.0
    %3047 = vmatpush1.msra.mxu0 0.0
    %3048 = vmatprep.subr.mxu0 0.0
    %3049 = vmatpush1.msra.mxu0 0.0
    %3050 = vmatprep.mubr.f32.mxu0 0.0
    %3051 = vmatmul.mubr.f32.gmra.mrb[0].mxu0 %v2412
    %v3052 = vpop.f32.mrb[0].mxu0
    %v3053 = vadd.f32 0.0, %v3052
    %v3054 = vpop.f32.mrb[0].mxu0
    %v3055 = vadd.f32 0.0, %v3054
    %3056 = vdwg.mxu0
    %v3061 = vcombine.low %v2982, %v2984
    %v3062 = vcombine.low %v3053, %v3055
    %v3064 = vunpack.c.l.s4 1983009808
    %v3065 = vunpack.c.0.s8 %v3064
    %v3066 = vlaneseq
    %v3067 = vshrl.u32 %v3066, 7
    %v3068 = vsub.s32 %v3065, %v3067
    %v3069 = vrot.slane %v3061, %v3068
    %v3071 = vunpack.c.l.s4 1983009808
    %v3072 = vunpack.c.0.s8 %v3071
    %v3073 = vlaneseq
    %v3074 = vshrl.u32 %v3073, 7
    %v3075 = vsub.s32 %v3072, %v3074
    %v3076 = vrot.slane %v3062, %v3075
    %v3077 = vcombine.low %v3069, %v3076
    %v3079 = vadd.f32 %v2850, %v3077
    %v3080 = vmul.f32 %v3079, 0.5
    %v3081 = vtanh.pop %v3080
    %v3082 = vmul.f32 %v3081, 0.5
    %v3083 = vadd.f32 %v3082, 0.5
    %v3085 = vrot.slane %v3079, 2
    %v3087 = vmul.f32 %v3085, 0.5
    %v3088 = vtanh.pop %v3087
    %v3089 = vmul.f32 %v3088, 0.5
    %v3090 = vadd.f32 %v3089, 0.5
    %v3091 = vrot.slane %v3079, 4
    %v3093 = vtanh.pop %v3091
    %v3094 = vrot.slane %v3079, 6
    %v3096 = vmul.f32 %v3094, 0.5
    %v3097 = vtanh.pop %v3096
    %v3098 = vmul.f32 %v3097, 0.5
    %v3099 = vadd.f32 %v3098, 0.5
    %v3100 = vmul.f32 %v3090, %v2410
    %v3101 = vmul.f32 %v3083, %v3093
    %v3102 = vadd.f32 %v3100, %v3101
    %v3103 = vtanh.pop %v3102
    %v3104 = vmul.f32 %v3099, %v3103
    %v3105 = vld [vmem:[#allocation4] sm:$0xff]
    %v3106 = vld [vmem:[#allocation4 + $0x8] sm:$0xff]
    %v3107 = vld [vmem:[#allocation4 + $0x10] sm:$0xff]
    %v3108 = vld [vmem:[#allocation4 + $0x18] sm:$0xff]
    %v3109 = vld [vmem:[#allocation4 + $0x20] sm:$0xff]
    %v3110 = vld [vmem:[#allocation4 + $0x28] sm:$0xff]
    %v3111 = vld [vmem:[#allocation4 + $0x30] sm:$0xff]
    %v3112 = vld [vmem:[#allocation4 + $0x38] sm:$0xff]
    %v3113 = vld [vmem:[#allocation4 + $0x40] sm:$0xff]
    %v3114 = vld [vmem:[#allocation4 + $0x48] sm:$0xff]
    %v3115 = vld [vmem:[#allocation4 + $0x50] sm:$0xff]
    %v3116 = vld [vmem:[#allocation4 + $0x58] sm:$0xff]
    %v3117 = vld [vmem:[#allocation4 + $0x60] sm:$0xff]
    %v3118 = vld [vmem:[#allocation4 + $0x68] sm:$0xff]
    %v3119 = vld [vmem:[#allocation4 + $0x70] sm:$0xff]
    %v3120 = vld [vmem:[#allocation4 + $0x78] sm:$0xff]
    %v3121 = vld [vmem:[#allocation4 + $0x80] sm:$0xff]
    %v3122 = vld [vmem:[#allocation4 + $0x88] sm:$0xff]
    %v3123 = vld [vmem:[#allocation4 + $0x90] sm:$0xff]
    %v3124 = vld [vmem:[#allocation4 + $0x98] sm:$0xff]
    %v3125 = vld [vmem:[#allocation4 + $0xa0] sm:$0xff]
    %v3126 = vld [vmem:[#allocation4 + $0xa8] sm:$0xff]
    %v3127 = vld [vmem:[#allocation4 + $0xb0] sm:$0xff]
    %v3128 = vld [vmem:[#allocation4 + $0xb8] sm:$0xff]
    %v3129 = vld [vmem:[#allocation4 + $0xc0] sm:$0xff]
    %v3130 = vld [vmem:[#allocation4 + $0xc8] sm:$0xff]
    %v3131 = vld [vmem:[#allocation4 + $0xd0] sm:$0xff]
    %v3132 = vld [vmem:[#allocation4 + $0xd8] sm:$0xff]
    %v3133 = vld [vmem:[#allocation4 + $0xe0] sm:$0xff]
    %v3134 = vld [vmem:[#allocation4 + $0xe8] sm:$0xff]
    %v3135 = vld [vmem:[#allocation4 + $0xf0] sm:$0xff]
    %v3136 = vld [vmem:[#allocation4 + $0xf8] sm:$0xff]
    %v3137 = vld [vmem:[#allocation4 + $0x100] sm:$0xff]
    %v3138 = vld [vmem:[#allocation4 + $0x108] sm:$0xff]
    %v3139 = vld [vmem:[#allocation4 + $0x110] sm:$0xff]
    %v3140 = vld [vmem:[#allocation4 + $0x118] sm:$0xff]
    %v3141 = vld [vmem:[#allocation4 + $0x120] sm:$0xff]
    %v3142 = vld [vmem:[#allocation4 + $0x128] sm:$0xff]
    %v3143 = vld [vmem:[#allocation4 + $0x130] sm:$0xff]
    %v3144 = vld [vmem:[#allocation4 + $0x138] sm:$0xff]
    %v3145 = vld [vmem:[#allocation4 + $0x140] sm:$0xff]
    %v3146 = vld [vmem:[#allocation4 + $0x148] sm:$0xff]
    %v3147 = vld [vmem:[#allocation4 + $0x150] sm:$0xff]
    %v3148 = vld [vmem:[#allocation4 + $0x158] sm:$0xff]
    %v3149 = vld [vmem:[#allocation4 + $0x160] sm:$0xff]
    %v3150 = vld [vmem:[#allocation4 + $0x168] sm:$0xff]
    %v3151 = vld [vmem:[#allocation4 + $0x170] sm:$0xff]
    %v3152 = vld [vmem:[#allocation4 + $0x178] sm:$0xff]
    %v3153 = vld [vmem:[#allocation4 + $0x180] sm:$0xff]
    %v3154 = vld [vmem:[#allocation4 + $0x188] sm:$0xff]
    %v3155 = vld [vmem:[#allocation4 + $0x190] sm:$0xff]
    %v3156 = vld [vmem:[#allocation4 + $0x198] sm:$0xff]
    %v3157 = vld [vmem:[#allocation4 + $0x1a0] sm:$0xff]
    %v3158 = vld [vmem:[#allocation4 + $0x1a8] sm:$0xff]
    %v3159 = vld [vmem:[#allocation4 + $0x1b0] sm:$0xff]
    %v3160 = vld [vmem:[#allocation4 + $0x1b8] sm:$0xff]
    %v3161 = vld [vmem:[#allocation4 + $0x1c0] sm:$0xff]
    %v3162 = vld [vmem:[#allocation4 + $0x1c8] sm:$0xff]
    %v3163 = vld [vmem:[#allocation4 + $0x1d0] sm:$0xff]
    %v3164 = vld [vmem:[#allocation4 + $0x1d8] sm:$0xff]
    %v3165 = vld [vmem:[#allocation4 + $0x1e0] sm:$0xff]
    %v3166 = vld [vmem:[#allocation4 + $0x1e8] sm:$0xff]
    %v3167 = vld [vmem:[#allocation4 + $0x1f0] sm:$0xff]
    %v3168 = vld [vmem:[#allocation4 + $0x1f8] sm:$0xff]
    %v3169 = vld [vmem:[#allocation6] sm:$0xff]
    %v3170 = vld [vmem:[#allocation6 + $0x8] sm:$0xff]
    %v3171 = vld [vmem:[#allocation6 + $0x10] sm:$0xff]
    %v3172 = vld [vmem:[#allocation6 + $0x18] sm:$0xff]
    %v3173 = vld [vmem:[#allocation6 + $0x20] sm:$0xff]
    %v3174 = vld [vmem:[#allocation6 + $0x28] sm:$0xff]
    %v3175 = vld [vmem:[#allocation6 + $0x30] sm:$0xff]
    %v3176 = vld [vmem:[#allocation6 + $0x38] sm:$0xff]
    %v3177 = vld [vmem:[#allocation6 + $0x40] sm:$0xff]
    %v3178 = vld [vmem:[#allocation6 + $0x48] sm:$0xff]
    %v3179 = vld [vmem:[#allocation6 + $0x50] sm:$0xff]
    %v3180 = vld [vmem:[#allocation6 + $0x58] sm:$0xff]
    %v3181 = vld [vmem:[#allocation6 + $0x60] sm:$0xff]
    %v3182 = vld [vmem:[#allocation6 + $0x68] sm:$0xff]
    %v3183 = vld [vmem:[#allocation6 + $0x70] sm:$0xff]
    %v3184 = vld [vmem:[#allocation6 + $0x78] sm:$0xff]
    %v3185 = vld [vmem:[#allocation6 + $0x80] sm:$0xff]
    %v3186 = vld [vmem:[#allocation6 + $0x88] sm:$0xff]
    %v3187 = vld [vmem:[#allocation6 + $0x90] sm:$0xff]
    %v3188 = vld [vmem:[#allocation6 + $0x98] sm:$0xff]
    %v3189 = vld [vmem:[#allocation6 + $0xa0] sm:$0xff]
    %v3190 = vld [vmem:[#allocation6 + $0xa8] sm:$0xff]
    %v3191 = vld [vmem:[#allocation6 + $0xb0] sm:$0xff]
    %v3192 = vld [vmem:[#allocation6 + $0xb8] sm:$0xff]
    %v3193 = vld [vmem:[#allocation6 + $0xc0] sm:$0xff]
    %v3194 = vld [vmem:[#allocation6 + $0xc8] sm:$0xff]
    %v3195 = vld [vmem:[#allocation6 + $0xd0] sm:$0xff]
    %v3196 = vld [vmem:[#allocation6 + $0xd8] sm:$0xff]
    %v3197 = vld [vmem:[#allocation6 + $0xe0] sm:$0xff]
    %v3198 = vld [vmem:[#allocation6 + $0xe8] sm:$0xff]
    %v3199 = vld [vmem:[#allocation6 + $0xf0] sm:$0xff]
    %v3200 = vld [vmem:[#allocation6 + $0xf8] sm:$0xff]
    %v3201 = vld [vmem:[#allocation6 + $0x100] sm:$0xff]
    %v3202 = vld [vmem:[#allocation6 + $0x108] sm:$0xff]
    %v3203 = vld [vmem:[#allocation6 + $0x110] sm:$0xff]
    %v3204 = vld [vmem:[#allocation6 + $0x118] sm:$0xff]
    %v3205 = vld [vmem:[#allocation6 + $0x120] sm:$0xff]
    %v3206 = vld [vmem:[#allocation6 + $0x128] sm:$0xff]
    %v3207 = vld [vmem:[#allocation6 + $0x130] sm:$0xff]
    %v3208 = vld [vmem:[#allocation6 + $0x138] sm:$0xff]
    %v3209 = vld [vmem:[#allocation6 + $0x140] sm:$0xff]
    %v3210 = vld [vmem:[#allocation6 + $0x148] sm:$0xff]
    %v3211 = vld [vmem:[#allocation6 + $0x150] sm:$0xff]
    %v3212 = vld [vmem:[#allocation6 + $0x158] sm:$0xff]
    %v3213 = vld [vmem:[#allocation6 + $0x160] sm:$0xff]
    %v3214 = vld [vmem:[#allocation6 + $0x168] sm:$0xff]
    %v3215 = vld [vmem:[#allocation6 + $0x170] sm:$0xff]
    %v3216 = vld [vmem:[#allocation6 + $0x178] sm:$0xff]
    %v3217 = vld [vmem:[#allocation6 + $0x180] sm:$0xff]
    %v3218 = vld [vmem:[#allocation6 + $0x188] sm:$0xff]
    %v3219 = vld [vmem:[#allocation6 + $0x190] sm:$0xff]
    %v3220 = vld [vmem:[#allocation6 + $0x198] sm:$0xff]
    %v3221 = vld [vmem:[#allocation6 + $0x1a0] sm:$0xff]
    %v3222 = vld [vmem:[#allocation6 + $0x1a8] sm:$0xff]
    %v3223 = vld [vmem:[#allocation6 + $0x1b0] sm:$0xff]
    %v3224 = vld [vmem:[#allocation6 + $0x1b8] sm:$0xff]
    %v3225 = vld [vmem:[#allocation6 + $0x1c0] sm:$0xff]
    %v3226 = vld [vmem:[#allocation6 + $0x1c8] sm:$0xff]
    %v3227 = vld [vmem:[#allocation6 + $0x1d0] sm:$0xff]
    %v3228 = vld [vmem:[#allocation6 + $0x1d8] sm:$0xff]
    %v3229 = vld [vmem:[#allocation6 + $0x1e0] sm:$0xff]
    %v3230 = vld [vmem:[#allocation6 + $0x1e8] sm:$0xff]
    %v3231 = vld [vmem:[#allocation6 + $0x1f0] sm:$0xff]
    %v3232 = vld [vmem:[#allocation6 + $0x1f8] sm:$0xff]
    %3233 = vmatprep.subr.mxu0 %v3170
    %3234 = vmatpush1.msra.mxu0 %v3169
    %3235 = vmatprep.subr.mxu0 %v3174
    %3236 = vmatpush1.msra.mxu0 %v3173
    %3237 = vmatprep.subr.mxu0 %v3178
    %3238 = vmatpush1.msra.mxu0 %v3177
    %3239 = vmatprep.subr.mxu0 %v3182
    %3240 = vmatpush1.msra.mxu0 %v3181
    %3241 = vmatprep.subr.mxu0 %v3186
    %3242 = vmatpush1.msra.mxu0 %v3185
    %3243 = vmatprep.subr.mxu0 %v3190
    %3244 = vmatpush1.msra.mxu0 %v3189
    %3245 = vmatprep.subr.mxu0 %v3194
    %3246 = vmatpush1.msra.mxu0 %v3193
    %3247 = vmatprep.subr.mxu0 %v3198
    %3248 = vmatpush1.msra.mxu0 %v3197
    %3249 = vmatprep.subr.mxu0 %v3202
    %3250 = vmatpush1.msra.mxu0 %v3201
    %3251 = vmatprep.subr.mxu0 %v3206
    %3252 = vmatpush1.msra.mxu0 %v3205
    %3253 = vmatprep.subr.mxu0 %v3210
    %3254 = vmatpush1.msra.mxu0 %v3209
    %3255 = vmatprep.subr.mxu0 %v3214
    %3256 = vmatpush1.msra.mxu0 %v3213
    %3257 = vmatprep.subr.mxu0 %v3218
    %3258 = vmatpush1.msra.mxu0 %v3217
    %3259 = vmatprep.subr.mxu0 %v3222
    %3260 = vmatpush1.msra.mxu0 %v3221
    %3261 = vmatprep.subr.mxu0 %v3226
    %3262 = vmatpush1.msra.mxu0 %v3225
    %3263 = vmatprep.subr.mxu0 %v3230
    %3264 = vmatpush1.msra.mxu0 %v3229
    %3265 = vmatprep.subr.mxu0 0.0
    %3266 = vmatpush1.msra.mxu0 0.0
    %3267 = vmatprep.subr.mxu0 0.0
    %3268 = vmatpush1.msra.mxu0 0.0
    %3269 = vmatprep.subr.mxu0 0.0
    %3270 = vmatpush1.msra.mxu0 0.0
    %3271 = vmatprep.subr.mxu0 0.0
    %3272 = vmatpush1.msra.mxu0 0.0
    %3273 = vmatprep.subr.mxu0 0.0
    %3274 = vmatpush1.msra.mxu0 0.0
    %3275 = vmatprep.subr.mxu0 0.0
    %3276 = vmatpush1.msra.mxu0 0.0
    %3277 = vmatprep.subr.mxu0 0.0
    %3278 = vmatpush1.msra.mxu0 0.0
    %3279 = vmatprep.subr.mxu0 0.0
    %3280 = vmatpush1.msra.mxu0 0.0
    %3281 = vmatprep.subr.mxu0 0.0
    %3282 = vmatpush1.msra.mxu0 0.0
    %3283 = vmatprep.subr.mxu0 0.0
    %3284 = vmatpush1.msra.mxu0 0.0
    %3285 = vmatprep.subr.mxu0 0.0
    %3286 = vmatpush1.msra.mxu0 0.0
    %3287 = vmatprep.subr.mxu0 0.0
    %3288 = vmatpush1.msra.mxu0 0.0
    %3289 = vmatprep.subr.mxu0 0.0
    %3290 = vmatpush1.msra.mxu0 0.0
    %3291 = vmatprep.subr.mxu0 0.0
    %3292 = vmatpush1.msra.mxu0 0.0
    %3293 = vmatprep.subr.mxu0 0.0
    %3294 = vmatpush1.msra.mxu0 0.0
    %3295 = vmatprep.subr.mxu0 0.0
    %3296 = vmatpush1.msra.mxu0 0.0
    %3297 = vmatprep.mubr.f32.mxu0 0.0
    %3298 = vmatmul.mubr.f32.gmra.mrb[0].mxu0 %v2846
    %v3299 = vpop.f32.mrb[0].mxu0
    %v3300 = vadd.f32 0.0, %v3299
    %v3301 = vpop.f32.mrb[0].mxu0
    %v3302 = vadd.f32 0.0, %v3301
    %3303 = vdwg.mxu0
    %3304 = vmatprep.subr.mxu0 %v3172
    %3305 = vmatpush1.msra.mxu0 %v3171
    %3306 = vmatprep.subr.mxu0 %v3176
    %3307 = vmatpush1.msra.mxu0 %v3175
    %3308 = vmatprep.subr.mxu0 %v3180
    %3309 = vmatpush1.msra.mxu0 %v3179
    %3310 = vmatprep.subr.mxu0 %v3184
    %3311 = vmatpush1.msra.mxu0 %v3183
    %3312 = vmatprep.subr.mxu0 %v3188
    %3313 = vmatpush1.msra.mxu0 %v3187
    %3314 = vmatprep.subr.mxu0 %v3192
    %3315 = vmatpush1.msra.mxu0 %v3191
    %3316 = vmatprep.subr.mxu0 %v3196
    %3317 = vmatpush1.msra.mxu0 %v3195
    %3318 = vmatprep.subr.mxu0 %v3200
    %3319 = vmatpush1.msra.mxu0 %v3199
    %3320 = vmatprep.subr.mxu0 %v3204
    %3321 = vmatpush1.msra.mxu0 %v3203
    %3322 = vmatprep.subr.mxu0 %v3208
    %3323 = vmatpush1.msra.mxu0 %v3207
    %3324 = vmatprep.subr.mxu0 %v3212
    %3325 = vmatpush1.msra.mxu0 %v3211
    %3326 = vmatprep.subr.mxu0 %v3216
    %3327 = vmatpush1.msra.mxu0 %v3215
    %3328 = vmatprep.subr.mxu0 %v3220
    %3329 = vmatpush1.msra.mxu0 %v3219
    %3330 = vmatprep.subr.mxu0 %v3224
    %3331 = vmatpush1.msra.mxu0 %v3223
    %3332 = vmatprep.subr.mxu0 %v3228
    %3333 = vmatpush1.msra.mxu0 %v3227
    %3334 = vmatprep.subr.mxu0 %v3232
    %3335 = vmatpush1.msra.mxu0 %v3231
    %3336 = vmatprep.subr.mxu0 0.0
    %3337 = vmatpush1.msra.mxu0 0.0
    %3338 = vmatprep.subr.mxu0 0.0
    %3339 = vmatpush1.msra.mxu0 0.0
    %3340 = vmatprep.subr.mxu0 0.0
    %3341 = vmatpush1.msra.mxu0 0.0
    %3342 = vmatprep.subr.mxu0 0.0
    %3343 = vmatpush1.msra.mxu0 0.0
    %3344 = vmatprep.subr.mxu0 0.0
    %3345 = vmatpush1.msra.mxu0 0.0
    %3346 = vmatprep.subr.mxu0 0.0
    %3347 = vmatpush1.msra.mxu0 0.0
    %3348 = vmatprep.subr.mxu0 0.0
    %3349 = vmatpush1.msra.mxu0 0.0
    %3350 = vmatprep.subr.mxu0 0.0
    %3351 = vmatpush1.msra.mxu0 0.0
    %3352 = vmatprep.subr.mxu0 0.0
    %3353 = vmatpush1.msra.mxu0 0.0
    %3354 = vmatprep.subr.mxu0 0.0
    %3355 = vmatpush1.msra.mxu0 0.0
    %3356 = vmatprep.subr.mxu0 0.0
    %3357 = vmatpush1.msra.mxu0 0.0
    %3358 = vmatprep.subr.mxu0 0.0
    %3359 = vmatpush1.msra.mxu0 0.0
    %3360 = vmatprep.subr.mxu0 0.0
    %3361 = vmatpush1.msra.mxu0 0.0
    %3362 = vmatprep.subr.mxu0 0.0
    %3363 = vmatpush1.msra.mxu0 0.0
    %3364 = vmatprep.subr.mxu0 0.0
    %3365 = vmatpush1.msra.mxu0 0.0
    %3366 = vmatprep.subr.mxu0 0.0
    %3367 = vmatpush1.msra.mxu0 0.0
    %3368 = vmatprep.mubr.f32.mxu0 0.0
    %3369 = vmatmul.mubr.f32.gmra.mrb[0].mxu0 %v2846
    %v3370 = vpop.f32.mrb[0].mxu0
    %v3371 = vadd.f32 0.0, %v3370
    %v3372 = vpop.f32.mrb[0].mxu0
    %v3373 = vadd.f32 0.0, %v3372
    %3374 = vdwg.mxu0
    %3375 = vmatprep.subr.mxu0 %v3106
    %3376 = vmatpush1.msra.mxu0 %v3105
    %3377 = vmatprep.subr.mxu0 %v3110
    %3378 = vmatpush1.msra.mxu0 %v3109
    %3379 = vmatprep.subr.mxu0 %v3114
    %3380 = vmatpush1.msra.mxu0 %v3113
    %3381 = vmatprep.subr.mxu0 %v3118
    %3382 = vmatpush1.msra.mxu0 %v3117
    %3383 = vmatprep.subr.mxu0 %v3122
    %3384 = vmatpush1.msra.mxu0 %v3121
    %3385 = vmatprep.subr.mxu0 %v3126
    %3386 = vmatpush1.msra.mxu0 %v3125
    %3387 = vmatprep.subr.mxu0 %v3130
    %3388 = vmatpush1.msra.mxu0 %v3129
    %3389 = vmatprep.subr.mxu0 %v3134
    %3390 = vmatpush1.msra.mxu0 %v3133
    %3391 = vmatprep.subr.mxu0 %v3138
    %3392 = vmatpush1.msra.mxu0 %v3137
    %3393 = vmatprep.subr.mxu0 %v3142
    %3394 = vmatpush1.msra.mxu0 %v3141
    %3395 = vmatprep.subr.mxu0 %v3146
    %3396 = vmatpush1.msra.mxu0 %v3145
    %3397 = vmatprep.subr.mxu0 %v3150
    %3398 = vmatpush1.msra.mxu0 %v3149
    %3399 = vmatprep.subr.mxu0 %v3154
    %3400 = vmatpush1.msra.mxu0 %v3153
    %3401 = vmatprep.subr.mxu0 %v3158
    %3402 = vmatpush1.msra.mxu0 %v3157
    %3403 = vmatprep.subr.mxu0 %v3162
    %3404 = vmatpush1.msra.mxu0 %v3161
    %3405 = vmatprep.subr.mxu0 %v3166
    %3406 = vmatpush1.msra.mxu0 %v3165
    %3407 = vmatprep.subr.mxu0 0.0
    %3408 = vmatpush1.msra.mxu0 0.0
    %3409 = vmatprep.subr.mxu0 0.0
    %3410 = vmatpush1.msra.mxu0 0.0
    %3411 = vmatprep.subr.mxu0 0.0
    %3412 = vmatpush1.msra.mxu0 0.0
    %3413 = vmatprep.subr.mxu0 0.0
    %3414 = vmatpush1.msra.mxu0 0.0
    %3415 = vmatprep.subr.mxu0 0.0
    %3416 = vmatpush1.msra.mxu0 0.0
    %3417 = vmatprep.subr.mxu0 0.0
    %3418 = vmatpush1.msra.mxu0 0.0
    %3419 = vmatprep.subr.mxu0 0.0
    %3420 = vmatpush1.msra.mxu0 0.0
    %3421 = vmatprep.subr.mxu0 0.0
    %3422 = vmatpush1.msra.mxu0 0.0
    %3423 = vmatprep.subr.mxu0 0.0
    %3424 = vmatpush1.msra.mxu0 0.0
    %3425 = vmatprep.subr.mxu0 0.0
    %3426 = vmatpush1.msra.mxu0 0.0
    %3427 = vmatprep.subr.mxu0 0.0
    %3428 = vmatpush1.msra.mxu0 0.0
    %3429 = vmatprep.subr.mxu0 0.0
    %3430 = vmatpush1.msra.mxu0 0.0
    %3431 = vmatprep.subr.mxu0 0.0
    %3432 = vmatpush1.msra.mxu0 0.0
    %3433 = vmatprep.subr.mxu0 0.0
    %3434 = vmatpush1.msra.mxu0 0.0
    %3435 = vmatprep.subr.mxu0 0.0
    %3436 = vmatpush1.msra.mxu0 0.0
    %3437 = vmatprep.subr.mxu0 0.0
    %3438 = vmatpush1.msra.mxu0 0.0
    %3439 = vmatprep.mubr.f32.mxu0 0.0
    %3440 = vmatmul.mubr.f32.gmra.mrb[0].mxu0 %v3104
    %v3441 = vpop.f32.mrb[0].mxu0
    %v3442 = vadd.f32 %v3300, %v3441
    %v3443 = vpop.f32.mrb[0].mxu0
    %v3444 = vadd.f32 %v3302, %v3443
    %3445 = vdwg.mxu0
    %3446 = vmatprep.subr.mxu0 %v3108
    %3447 = vmatpush1.msra.mxu0 %v3107
    %3448 = vmatprep.subr.mxu0 %v3112
    %3449 = vmatpush1.msra.mxu0 %v3111
    %3450 = vmatprep.subr.mxu0 %v3116
    %3451 = vmatpush1.msra.mxu0 %v3115
    %3452 = vmatprep.subr.mxu0 %v3120
    %3453 = vmatpush1.msra.mxu0 %v3119
    %3454 = vmatprep.subr.mxu0 %v3124
    %3455 = vmatpush1.msra.mxu0 %v3123
    %3456 = vmatprep.subr.mxu0 %v3128
    %3457 = vmatpush1.msra.mxu0 %v3127
    %3458 = vmatprep.subr.mxu0 %v3132
    %3459 = vmatpush1.msra.mxu0 %v3131
    %3460 = vmatprep.subr.mxu0 %v3136
    %3461 = vmatpush1.msra.mxu0 %v3135
    %3462 = vmatprep.subr.mxu0 %v3140
    %3463 = vmatpush1.msra.mxu0 %v3139
    %3464 = vmatprep.subr.mxu0 %v3144
    %3465 = vmatpush1.msra.mxu0 %v3143
    %3466 = vmatprep.subr.mxu0 %v3148
    %3467 = vmatpush1.msra.mxu0 %v3147
    %3468 = vmatprep.subr.mxu0 %v3152
    %3469 = vmatpush1.msra.mxu0 %v3151
    %3470 = vmatprep.subr.mxu0 %v3156
    %3471 = vmatpush1.msra.mxu0 %v3155
    %3472 = vmatprep.subr.mxu0 %v3160
    %3473 = vmatpush1.msra.mxu0 %v3159
    %3474 = vmatprep.subr.mxu0 %v3164
    %3475 = vmatpush1.msra.mxu0 %v3163
    %3476 = vmatprep.subr.mxu0 %v3168
    %3477 = vmatpush1.msra.mxu0 %v3167
    %3478 = vmatprep.subr.mxu0 0.0
    %3479 = vmatpush1.msra.mxu0 0.0
    %3480 = vmatprep.subr.mxu0 0.0
    %3481 = vmatpush1.msra.mxu0 0.0
    %3482 = vmatprep.subr.mxu0 0.0
    %3483 = vmatpush1.msra.mxu0 0.0
    %3484 = vmatprep.subr.mxu0 0.0
    %3485 = vmatpush1.msra.mxu0 0.0
    %3486 = vmatprep.subr.mxu0 0.0
    %3487 = vmatpush1.msra.mxu0 0.0
    %3488 = vmatprep.subr.mxu0 0.0
    %3489 = vmatpush1.msra.mxu0 0.0
    %3490 = vmatprep.subr.mxu0 0.0
    %3491 = vmatpush1.msra.mxu0 0.0
    %3492 = vmatprep.subr.mxu0 0.0
    %3493 = vmatpush1.msra.mxu0 0.0
    %3494 = vmatprep.subr.mxu0 0.0
    %3495 = vmatpush1.msra.mxu0 0.0
    %3496 = vmatprep.subr.mxu0 0.0
    %3497 = vmatpush1.msra.mxu0 0.0
    %3498 = vmatprep.subr.mxu0 0.0
    %3499 = vmatpush1.msra.mxu0 0.0
    %3500 = vmatprep.subr.mxu0 0.0
    %3501 = vmatpush1.msra.mxu0 0.0
    %3502 = vmatprep.subr.mxu0 0.0
    %3503 = vmatpush1.msra.mxu0 0.0
    %3504 = vmatprep.subr.mxu0 0.0
    %3505 = vmatpush1.msra.mxu0 0.0
    %3506 = vmatprep.subr.mxu0 0.0
    %3507 = vmatpush1.msra.mxu0 0.0
    %3508 = vmatprep.subr.mxu0 0.0
    %3509 = vmatpush1.msra.mxu0 0.0
    %3510 = vmatprep.mubr.f32.mxu0 0.0
    %3511 = vmatmul.mubr.f32.gmra.mrb[0].mxu0 %v3104
    %v3512 = vpop.f32.mrb[0].mxu0
    %v3513 = vadd.f32 %v3371, %v3512
    %v3514 = vpop.f32.mrb[0].mxu0
    %v3515 = vadd.f32 %v3373, %v3514
    %3516 = vdwg.mxu0
    %v3517 = vadd.f32 %v3442, %v66
    %v3518 = vadd.f32 %v3444, %v70
    %v3519 = vadd.f32 %v3513, %v74
    %v3520 = vadd.f32 %v3515, %v78
    %v3521 = vmul.f32 %v3517, 0.5
    %v3522 = vtanh.pop %v3521
    %v3523 = vmul.f32 %v3522, 0.5
    %v3524 = vadd.f32 %v3523, 0.5
    %v3525 = vmul.f32 %v3518, 0.5
    %v3526 = vtanh.pop %v3525
    %v3527 = vmul.f32 %v3526, 0.5
    %v3528 = vadd.f32 %v3527, 0.5
    %v3529 = vtanh.pop %v3519
    %v3530 = vmul.f32 %v3520, 0.5
    %v3531 = vtanh.pop %v3530
    %v3532 = vmul.f32 %v3531, 0.5
    %v3533 = vadd.f32 %v3532, 0.5
    %v3534 = vmul.f32 %v3528, %v2844
    %v3535 = vmul.f32 %v3524, %v3529
    %v3536 = vadd.f32 %v3534, %v3535
    %v3537 = vtanh.pop %v3536
    %v3538 = vmul.f32 %v3533, %v3537
    %s3539 = scalar_lea.vmem %s5, 8
    %3540 = vst [vmem:[%s3539] sm:$0x3] %v3538
    %s3541 = scalar_lea.vmem %s0, 40
    %v3542 = vld [vmem:[%s3541] sm:$0xff]
    %v3543 = vld [vmem:[#allocation2] sm:$0xff]
    %v3544 = vld [vmem:[#allocation2 + $0x8] sm:$0xff]
    %v3545 = vld [vmem:[#allocation2 + $0x10] sm:$0xff]
    %v3546 = vld [vmem:[#allocation2 + $0x18] sm:$0xff]
    %v3547 = vld [vmem:[#allocation2 + $0x20] sm:$0xff]
    %v3548 = vld [vmem:[#allocation2 + $0x28] sm:$0xff]
    %v3549 = vld [vmem:[#allocation2 + $0x30] sm:$0xff]
    %v3550 = vld [vmem:[#allocation2 + $0x38] sm:$0xff]
    %v3551 = vld [vmem:[#allocation2 + $0x40] sm:$0xff]
    %v3552 = vld [vmem:[#allocation2 + $0x48] sm:$0xff]
    %v3553 = vld [vmem:[#allocation2 + $0x50] sm:$0xff]
    %v3554 = vld [vmem:[#allocation2 + $0x58] sm:$0xff]
    %v3555 = vld [vmem:[#allocation2 + $0x60] sm:$0xff]
    %v3556 = vld [vmem:[#allocation2 + $0x68] sm:$0xff]
    %v3557 = vld [vmem:[#allocation2 + $0x70] sm:$0xff]
    %v3558 = vld [vmem:[#allocation2 + $0x78] sm:$0xff]
    %v3559 = vld [vmem:[#allocation2 + $0x80] sm:$0xff]
    %v3560 = vld [vmem:[#allocation2 + $0x88] sm:$0xff]
    %v3561 = vld [vmem:[#allocation2 + $0x90] sm:$0xff]
    %v3562 = vld [vmem:[#allocation2 + $0x98] sm:$0xff]
    %v3563 = vld [vmem:[#allocation2 + $0xa0] sm:$0xff]
    %v3564 = vld [vmem:[#allocation2 + $0xa8] sm:$0xff]
    %v3565 = vld [vmem:[#allocation2 + $0xb0] sm:$0xff]
    %v3566 = vld [vmem:[#allocation2 + $0xb8] sm:$0xff]
    %v3567 = vld [vmem:[#allocation2 + $0xc0] sm:$0xff]
    %v3568 = vld [vmem:[#allocation2 + $0xc8] sm:$0xff]
    %v3569 = vld [vmem:[#allocation2 + $0xd0] sm:$0xff]
    %v3570 = vld [vmem:[#allocation2 + $0xd8] sm:$0xff]
    %v3571 = vld [vmem:[#allocation2 + $0xe0] sm:$0xff]
    %v3572 = vld [vmem:[#allocation2 + $0xe8] sm:$0xff]
    %v3573 = vld [vmem:[#allocation2 + $0xf0] sm:$0xff]
    %v3574 = vld [vmem:[#allocation2 + $0xf8] sm:$0xff]
    %v3575 = vld [vmem:[#allocation2 + $0x100] sm:$0xff]
    %v3576 = vld [vmem:[#allocation2 + $0x108] sm:$0xff]
    %v3577 = vld [vmem:[#allocation2 + $0x110] sm:$0xff]
    %v3578 = vld [vmem:[#allocation2 + $0x118] sm:$0xff]
    %v3579 = vld [vmem:[#allocation2 + $0x120] sm:$0xff]
    %v3580 = vld [vmem:[#allocation2 + $0x128] sm:$0xff]
    %v3581 = vld [vmem:[#allocation2 + $0x130] sm:$0xff]
    %v3582 = vld [vmem:[#allocation2 + $0x138] sm:$0xff]
    %v3583 = vld [vmem:[#allocation2 + $0x140] sm:$0xff]
    %v3584 = vld [vmem:[#allocation2 + $0x148] sm:$0xff]
    %v3585 = vld [vmem:[#allocation2 + $0x150] sm:$0xff]
    %v3586 = vld [vmem:[#allocation2 + $0x158] sm:$0xff]
    %v3587 = vld [vmem:[#allocation2 + $0x160] sm:$0xff]
    %v3588 = vld [vmem:[#allocation2 + $0x168] sm:$0xff]
    %v3589 = vld [vmem:[#allocation2 + $0x170] sm:$0xff]
    %v3590 = vld [vmem:[#allocation2 + $0x178] sm:$0xff]
    %v3591 = vld [vmem:[#allocation2 + $0x180] sm:$0xff]
    %v3592 = vld [vmem:[#allocation2 + $0x188] sm:$0xff]
    %v3593 = vld [vmem:[#allocation2 + $0x190] sm:$0xff]
    %v3594 = vld [vmem:[#allocation2 + $0x198] sm:$0xff]
    %v3595 = vld [vmem:[#allocation2 + $0x1a0] sm:$0xff]
    %v3596 = vld [vmem:[#allocation2 + $0x1a8] sm:$0xff]
    %v3597 = vld [vmem:[#allocation2 + $0x1b0] sm:$0xff]
    %v3598 = vld [vmem:[#allocation2 + $0x1b8] sm:$0xff]
    %v3599 = vld [vmem:[#allocation2 + $0x1c0] sm:$0xff]
    %v3600 = vld [vmem:[#allocation2 + $0x1c8] sm:$0xff]
    %v3601 = vld [vmem:[#allocation2 + $0x1d0] sm:$0xff]
    %v3602 = vld [vmem:[#allocation2 + $0x1d8] sm:$0xff]
    %v3603 = vld [vmem:[#allocation2 + $0x1e0] sm:$0xff]
    %v3604 = vld [vmem:[#allocation2 + $0x1e8] sm:$0xff]
    %v3605 = vld [vmem:[#allocation2 + $0x1f0] sm:$0xff]
    %v3606 = vld [vmem:[#allocation2 + $0x1f8] sm:$0xff]
    %3607 = vmatprep.subr.mxu0 %v3544
    %3608 = vmatpush1.msra.mxu0 %v3543
    %3609 = vmatprep.subr.mxu0 %v3548
    %3610 = vmatpush1.msra.mxu0 %v3547
    %3611 = vmatprep.subr.mxu0 %v3552
    %3612 = vmatpush1.msra.mxu0 %v3551
    %3613 = vmatprep.subr.mxu0 %v3556
    %3614 = vmatpush1.msra.mxu0 %v3555
    %3615 = vmatprep.subr.mxu0 %v3560
    %3616 = vmatpush1.msra.mxu0 %v3559
    %3617 = vmatprep.subr.mxu0 %v3564
    %3618 = vmatpush1.msra.mxu0 %v3563
    %3619 = vmatprep.subr.mxu0 %v3568
    %3620 = vmatpush1.msra.mxu0 %v3567
    %3621 = vmatprep.subr.mxu0 %v3572
    %3622 = vmatpush1.msra.mxu0 %v3571
    %3623 = vmatprep.subr.mxu0 %v3576
    %3624 = vmatpush1.msra.mxu0 %v3575
    %3625 = vmatprep.subr.mxu0 %v3580
    %3626 = vmatpush1.msra.mxu0 %v3579
    %3627 = vmatprep.subr.mxu0 %v3584
    %3628 = vmatpush1.msra.mxu0 %v3583
    %3629 = vmatprep.subr.mxu0 %v3588
    %3630 = vmatpush1.msra.mxu0 %v3587
    %3631 = vmatprep.subr.mxu0 %v3592
    %3632 = vmatpush1.msra.mxu0 %v3591
    %3633 = vmatprep.subr.mxu0 %v3596
    %3634 = vmatpush1.msra.mxu0 %v3595
    %3635 = vmatprep.subr.mxu0 %v3600
    %3636 = vmatpush1.msra.mxu0 %v3599
    %3637 = vmatprep.subr.mxu0 %v3604
    %3638 = vmatpush1.msra.mxu0 %v3603
    %3639 = vmatprep.subr.mxu0 0.0
    %3640 = vmatpush1.msra.mxu0 0.0
    %3641 = vmatprep.subr.mxu0 0.0
    %3642 = vmatpush1.msra.mxu0 0.0
    %3643 = vmatprep.subr.mxu0 0.0
    %3644 = vmatpush1.msra.mxu0 0.0
    %3645 = vmatprep.subr.mxu0 0.0
    %3646 = vmatpush1.msra.mxu0 0.0
    %3647 = vmatprep.subr.mxu0 0.0
    %3648 = vmatpush1.msra.mxu0 0.0
    %3649 = vmatprep.subr.mxu0 0.0
    %3650 = vmatpush1.msra.mxu0 0.0
    %3651 = vmatprep.subr.mxu0 0.0
    %3652 = vmatpush1.msra.mxu0 0.0
    %3653 = vmatprep.subr.mxu0 0.0
    %3654 = vmatpush1.msra.mxu0 0.0
    %3655 = vmatprep.subr.mxu0 0.0
    %3656 = vmatpush1.msra.mxu0 0.0
    %3657 = vmatprep.subr.mxu0 0.0
    %3658 = vmatpush1.msra.mxu0 0.0
    %3659 = vmatprep.subr.mxu0 0.0
    %3660 = vmatpush1.msra.mxu0 0.0
    %3661 = vmatprep.subr.mxu0 0.0
    %3662 = vmatpush1.msra.mxu0 0.0
    %3663 = vmatprep.subr.mxu0 0.0
    %3664 = vmatpush1.msra.mxu0 0.0
    %3665 = vmatprep.subr.mxu0 0.0
    %3666 = vmatpush1.msra.mxu0 0.0
    %3667 = vmatprep.subr.mxu0 0.0
    %3668 = vmatpush1.msra.mxu0 0.0
    %3669 = vmatprep.subr.mxu0 0.0
    %3670 = vmatpush1.msra.mxu0 0.0
    %3671 = vmatprep.mubr.f32.mxu0 0.0
    %3672 = vmatmul.mubr.f32.gmra.mrb[0].mxu0 %v3104
    %v3673 = vpop.f32.mrb[0].mxu0
    %v3674 = vadd.f32 0.0, %v3673
    %v3675 = vpop.f32.mrb[0].mxu0
    %v3676 = vadd.f32 0.0, %v3675
    %3677 = vdwg.mxu0
    %3678 = vmatprep.subr.mxu0 %v3546
    %3679 = vmatpush1.msra.mxu0 %v3545
    %3680 = vmatprep.subr.mxu0 %v3550
    %3681 = vmatpush1.msra.mxu0 %v3549
    %3682 = vmatprep.subr.mxu0 %v3554
    %3683 = vmatpush1.msra.mxu0 %v3553
    %3684 = vmatprep.subr.mxu0 %v3558
    %3685 = vmatpush1.msra.mxu0 %v3557
    %3686 = vmatprep.subr.mxu0 %v3562
    %3687 = vmatpush1.msra.mxu0 %v3561
    %3688 = vmatprep.subr.mxu0 %v3566
    %3689 = vmatpush1.msra.mxu0 %v3565
    %3690 = vmatprep.subr.mxu0 %v3570
    %3691 = vmatpush1.msra.mxu0 %v3569
    %3692 = vmatprep.subr.mxu0 %v3574
    %3693 = vmatpush1.msra.mxu0 %v3573
    %3694 = vmatprep.subr.mxu0 %v3578
    %3695 = vmatpush1.msra.mxu0 %v3577
    %3696 = vmatprep.subr.mxu0 %v3582
    %3697 = vmatpush1.msra.mxu0 %v3581
    %3698 = vmatprep.subr.mxu0 %v3586
    %3699 = vmatpush1.msra.mxu0 %v3585
    %3700 = vmatprep.subr.mxu0 %v3590
    %3701 = vmatpush1.msra.mxu0 %v3589
    %3702 = vmatprep.subr.mxu0 %v3594
    %3703 = vmatpush1.msra.mxu0 %v3593
    %3704 = vmatprep.subr.mxu0 %v3598
    %3705 = vmatpush1.msra.mxu0 %v3597
    %3706 = vmatprep.subr.mxu0 %v3602
    %3707 = vmatpush1.msra.mxu0 %v3601
    %3708 = vmatprep.subr.mxu0 %v3606
    %3709 = vmatpush1.msra.mxu0 %v3605
    %3710 = vmatprep.subr.mxu0 0.0
    %3711 = vmatpush1.msra.mxu0 0.0
    %3712 = vmatprep.subr.mxu0 0.0
    %3713 = vmatpush1.msra.mxu0 0.0
    %3714 = vmatprep.subr.mxu0 0.0
    %3715 = vmatpush1.msra.mxu0 0.0
    %3716 = vmatprep.subr.mxu0 0.0
    %3717 = vmatpush1.msra.mxu0 0.0
    %3718 = vmatprep.subr.mxu0 0.0
    %3719 = vmatpush1.msra.mxu0 0.0
    %3720 = vmatprep.subr.mxu0 0.0
    %3721 = vmatpush1.msra.mxu0 0.0
    %3722 = vmatprep.subr.mxu0 0.0
    %3723 = vmatpush1.msra.mxu0 0.0
    %3724 = vmatprep.subr.mxu0 0.0
    %3725 = vmatpush1.msra.mxu0 0.0
    %3726 = vmatprep.subr.mxu0 0.0
    %3727 = vmatpush1.msra.mxu0 0.0
    %3728 = vmatprep.subr.mxu0 0.0
    %3729 = vmatpush1.msra.mxu0 0.0
    %3730 = vmatprep.subr.mxu0 0.0
    %3731 = vmatpush1.msra.mxu0 0.0
    %3732 = vmatprep.subr.mxu0 0.0
    %3733 = vmatpush1.msra.mxu0 0.0
    %3734 = vmatprep.subr.mxu0 0.0
    %3735 = vmatpush1.msra.mxu0 0.0
    %3736 = vmatprep.subr.mxu0 0.0
    %3737 = vmatpush1.msra.mxu0 0.0
    %3738 = vmatprep.subr.mxu0 0.0
    %3739 = vmatpush1.msra.mxu0 0.0
    %3740 = vmatprep.subr.mxu0 0.0
    %3741 = vmatpush1.msra.mxu0 0.0
    %3742 = vmatprep.mubr.f32.mxu0 0.0
    %3743 = vmatmul.mubr.f32.gmra.mrb[0].mxu0 %v3104
    %v3744 = vpop.f32.mrb[0].mxu0
    %v3745 = vadd.f32 0.0, %v3744
    %v3746 = vpop.f32.mrb[0].mxu0
    %v3747 = vadd.f32 0.0, %v3746
    %3748 = vdwg.mxu0
    %v3753 = vcombine.low %v3674, %v3676
    %v3754 = vcombine.low %v3745, %v3747
    %v3756 = vunpack.c.l.s4 1983009808
    %v3757 = vunpack.c.0.s8 %v3756
    %v3758 = vlaneseq
    %v3759 = vshrl.u32 %v3758, 7
    %v3760 = vsub.s32 %v3757, %v3759
    %v3761 = vrot.slane %v3753, %v3760
    %v3763 = vunpack.c.l.s4 1983009808
    %v3764 = vunpack.c.0.s8 %v3763
    %v3765 = vlaneseq
    %v3766 = vshrl.u32 %v3765, 7
    %v3767 = vsub.s32 %v3764, %v3766
    %v3768 = vrot.slane %v3754, %v3767
    %v3769 = vcombine.low %v3761, %v3768
    %v3771 = vadd.f32 %v3542, %v3769
    %v3772 = vmul.f32 %v3771, 0.5
    %v3773 = vtanh.pop %v3772
    %v3774 = vmul.f32 %v3773, 0.5
    %v3775 = vadd.f32 %v3774, 0.5
    %v3777 = vrot.slane %v3771, 2
    %v3779 = vmul.f32 %v3777, 0.5
    %v3780 = vtanh.pop %v3779
    %v3781 = vmul.f32 %v3780, 0.5
    %v3782 = vadd.f32 %v3781, 0.5
    %v3783 = vrot.slane %v3771, 4
    %v3785 = vtanh.pop %v3783
    %v3786 = vrot.slane %v3771, 6
    %v3788 = vmul.f32 %v3786, 0.5
    %v3789 = vtanh.pop %v3788
    %v3790 = vmul.f32 %v3789, 0.5
    %v3791 = vadd.f32 %v3790, 0.5
    %v3792 = vmul.f32 %v3782, %v3102
    %v3793 = vmul.f32 %v3775, %v3785
    %v3794 = vadd.f32 %v3792, %v3793
    %v3795 = vtanh.pop %v3794
    %v3796 = vmul.f32 %v3791, %v3795
    %v3797 = vld [vmem:[#allocation4] sm:$0xff]
    %v3798 = vld [vmem:[#allocation4 + $0x8] sm:$0xff]
    %v3799 = vld [vmem:[#allocation4 + $0x10] sm:$0xff]
    %v3800 = vld [vmem:[#allocation4 + $0x18] sm:$0xff]
    %v3801 = vld [vmem:[#allocation4 + $0x20] sm:$0xff]
    %v3802 = vld [vmem:[#allocation4 + $0x28] sm:$0xff]
    %v3803 = vld [vmem:[#allocation4 + $0x30] sm:$0xff]
    %v3804 = vld [vmem:[#allocation4 + $0x38] sm:$0xff]
    %v3805 = vld [vmem:[#allocation4 + $0x40] sm:$0xff]
    %v3806 = vld [vmem:[#allocation4 + $0x48] sm:$0xff]
    %v3807 = vld [vmem:[#allocation4 + $0x50] sm:$0xff]
    %v3808 = vld [vmem:[#allocation4 + $0x58] sm:$0xff]
    %v3809 = vld [vmem:[#allocation4 + $0x60] sm:$0xff]
    %v3810 = vld [vmem:[#allocation4 + $0x68] sm:$0xff]
    %v3811 = vld [vmem:[#allocation4 + $0x70] sm:$0xff]
    %v3812 = vld [vmem:[#allocation4 + $0x78] sm:$0xff]
    %v3813 = vld [vmem:[#allocation4 + $0x80] sm:$0xff]
    %v3814 = vld [vmem:[#allocation4 + $0x88] sm:$0xff]
    %v3815 = vld [vmem:[#allocation4 + $0x90] sm:$0xff]
    %v3816 = vld [vmem:[#allocation4 + $0x98] sm:$0xff]
    %v3817 = vld [vmem:[#allocation4 + $0xa0] sm:$0xff]
    %v3818 = vld [vmem:[#allocation4 + $0xa8] sm:$0xff]
    %v3819 = vld [vmem:[#allocation4 + $0xb0] sm:$0xff]
    %v3820 = vld [vmem:[#allocation4 + $0xb8] sm:$0xff]
    %v3821 = vld [vmem:[#allocation4 + $0xc0] sm:$0xff]
    %v3822 = vld [vmem:[#allocation4 + $0xc8] sm:$0xff]
    %v3823 = vld [vmem:[#allocation4 + $0xd0] sm:$0xff]
    %v3824 = vld [vmem:[#allocation4 + $0xd8] sm:$0xff]
    %v3825 = vld [vmem:[#allocation4 + $0xe0] sm:$0xff]
    %v3826 = vld [vmem:[#allocation4 + $0xe8] sm:$0xff]
    %v3827 = vld [vmem:[#allocation4 + $0xf0] sm:$0xff]
    %v3828 = vld [vmem:[#allocation4 + $0xf8] sm:$0xff]
    %v3829 = vld [vmem:[#allocation4 + $0x100] sm:$0xff]
    %v3830 = vld [vmem:[#allocation4 + $0x108] sm:$0xff]
    %v3831 = vld [vmem:[#allocation4 + $0x110] sm:$0xff]
    %v3832 = vld [vmem:[#allocation4 + $0x118] sm:$0xff]
    %v3833 = vld [vmem:[#allocation4 + $0x120] sm:$0xff]
    %v3834 = vld [vmem:[#allocation4 + $0x128] sm:$0xff]
    %v3835 = vld [vmem:[#allocation4 + $0x130] sm:$0xff]
    %v3836 = vld [vmem:[#allocation4 + $0x138] sm:$0xff]
    %v3837 = vld [vmem:[#allocation4 + $0x140] sm:$0xff]
    %v3838 = vld [vmem:[#allocation4 + $0x148] sm:$0xff]
    %v3839 = vld [vmem:[#allocation4 + $0x150] sm:$0xff]
    %v3840 = vld [vmem:[#allocation4 + $0x158] sm:$0xff]
    %v3841 = vld [vmem:[#allocation4 + $0x160] sm:$0xff]
    %v3842 = vld [vmem:[#allocation4 + $0x168] sm:$0xff]
    %v3843 = vld [vmem:[#allocation4 + $0x170] sm:$0xff]
    %v3844 = vld [vmem:[#allocation4 + $0x178] sm:$0xff]
    %v3845 = vld [vmem:[#allocation4 + $0x180] sm:$0xff]
    %v3846 = vld [vmem:[#allocation4 + $0x188] sm:$0xff]
    %v3847 = vld [vmem:[#allocation4 + $0x190] sm:$0xff]
    %v3848 = vld [vmem:[#allocation4 + $0x198] sm:$0xff]
    %v3849 = vld [vmem:[#allocation4 + $0x1a0] sm:$0xff]
    %v3850 = vld [vmem:[#allocation4 + $0x1a8] sm:$0xff]
    %v3851 = vld [vmem:[#allocation4 + $0x1b0] sm:$0xff]
    %v3852 = vld [vmem:[#allocation4 + $0x1b8] sm:$0xff]
    %v3853 = vld [vmem:[#allocation4 + $0x1c0] sm:$0xff]
    %v3854 = vld [vmem:[#allocation4 + $0x1c8] sm:$0xff]
    %v3855 = vld [vmem:[#allocation4 + $0x1d0] sm:$0xff]
    %v3856 = vld [vmem:[#allocation4 + $0x1d8] sm:$0xff]
    %v3857 = vld [vmem:[#allocation4 + $0x1e0] sm:$0xff]
    %v3858 = vld [vmem:[#allocation4 + $0x1e8] sm:$0xff]
    %v3859 = vld [vmem:[#allocation4 + $0x1f0] sm:$0xff]
    %v3860 = vld [vmem:[#allocation4 + $0x1f8] sm:$0xff]
    %v3861 = vld [vmem:[#allocation6] sm:$0xff]
    %v3862 = vld [vmem:[#allocation6 + $0x8] sm:$0xff]
    %v3863 = vld [vmem:[#allocation6 + $0x10] sm:$0xff]
    %v3864 = vld [vmem:[#allocation6 + $0x18] sm:$0xff]
    %v3865 = vld [vmem:[#allocation6 + $0x20] sm:$0xff]
    %v3866 = vld [vmem:[#allocation6 + $0x28] sm:$0xff]
    %v3867 = vld [vmem:[#allocation6 + $0x30] sm:$0xff]
    %v3868 = vld [vmem:[#allocation6 + $0x38] sm:$0xff]
    %v3869 = vld [vmem:[#allocation6 + $0x40] sm:$0xff]
    %v3870 = vld [vmem:[#allocation6 + $0x48] sm:$0xff]
    %v3871 = vld [vmem:[#allocation6 + $0x50] sm:$0xff]
    %v3872 = vld [vmem:[#allocation6 + $0x58] sm:$0xff]
    %v3873 = vld [vmem:[#allocation6 + $0x60] sm:$0xff]
    %v3874 = vld [vmem:[#allocation6 + $0x68] sm:$0xff]
    %v3875 = vld [vmem:[#allocation6 + $0x70] sm:$0xff]
    %v3876 = vld [vmem:[#allocation6 + $0x78] sm:$0xff]
    %v3877 = vld [vmem:[#allocation6 + $0x80] sm:$0xff]
    %v3878 = vld [vmem:[#allocation6 + $0x88] sm:$0xff]
    %v3879 = vld [vmem:[#allocation6 + $0x90] sm:$0xff]
    %v3880 = vld [vmem:[#allocation6 + $0x98] sm:$0xff]
    %v3881 = vld [vmem:[#allocation6 + $0xa0] sm:$0xff]
    %v3882 = vld [vmem:[#allocation6 + $0xa8] sm:$0xff]
    %v3883 = vld [vmem:[#allocation6 + $0xb0] sm:$0xff]
    %v3884 = vld [vmem:[#allocation6 + $0xb8] sm:$0xff]
    %v3885 = vld [vmem:[#allocation6 + $0xc0] sm:$0xff]
    %v3886 = vld [vmem:[#allocation6 + $0xc8] sm:$0xff]
    %v3887 = vld [vmem:[#allocation6 + $0xd0] sm:$0xff]
    %v3888 = vld [vmem:[#allocation6 + $0xd8] sm:$0xff]
    %v3889 = vld [vmem:[#allocation6 + $0xe0] sm:$0xff]
    %v3890 = vld [vmem:[#allocation6 + $0xe8] sm:$0xff]
    %v3891 = vld [vmem:[#allocation6 + $0xf0] sm:$0xff]
    %v3892 = vld [vmem:[#allocation6 + $0xf8] sm:$0xff]
    %v3893 = vld [vmem:[#allocation6 + $0x100] sm:$0xff]
    %v3894 = vld [vmem:[#allocation6 + $0x108] sm:$0xff]
    %v3895 = vld [vmem:[#allocation6 + $0x110] sm:$0xff]
    %v3896 = vld [vmem:[#allocation6 + $0x118] sm:$0xff]
    %v3897 = vld [vmem:[#allocation6 + $0x120] sm:$0xff]
    %v3898 = vld [vmem:[#allocation6 + $0x128] sm:$0xff]
    %v3899 = vld [vmem:[#allocation6 + $0x130] sm:$0xff]
    %v3900 = vld [vmem:[#allocation6 + $0x138] sm:$0xff]
    %v3901 = vld [vmem:[#allocation6 + $0x140] sm:$0xff]
    %v3902 = vld [vmem:[#allocation6 + $0x148] sm:$0xff]
    %v3903 = vld [vmem:[#allocation6 + $0x150] sm:$0xff]
    %v3904 = vld [vmem:[#allocation6 + $0x158] sm:$0xff]
    %v3905 = vld [vmem:[#allocation6 + $0x160] sm:$0xff]
    %v3906 = vld [vmem:[#allocation6 + $0x168] sm:$0xff]
    %v3907 = vld [vmem:[#allocation6 + $0x170] sm:$0xff]
    %v3908 = vld [vmem:[#allocation6 + $0x178] sm:$0xff]
    %v3909 = vld [vmem:[#allocation6 + $0x180] sm:$0xff]
    %v3910 = vld [vmem:[#allocation6 + $0x188] sm:$0xff]
    %v3911 = vld [vmem:[#allocation6 + $0x190] sm:$0xff]
    %v3912 = vld [vmem:[#allocation6 + $0x198] sm:$0xff]
    %v3913 = vld [vmem:[#allocation6 + $0x1a0] sm:$0xff]
    %v3914 = vld [vmem:[#allocation6 + $0x1a8] sm:$0xff]
    %v3915 = vld [vmem:[#allocation6 + $0x1b0] sm:$0xff]
    %v3916 = vld [vmem:[#allocation6 + $0x1b8] sm:$0xff]
    %v3917 = vld [vmem:[#allocation6 + $0x1c0] sm:$0xff]
    %v3918 = vld [vmem:[#allocation6 + $0x1c8] sm:$0xff]
    %v3919 = vld [vmem:[#allocation6 + $0x1d0] sm:$0xff]
    %v3920 = vld [vmem:[#allocation6 + $0x1d8] sm:$0xff]
    %v3921 = vld [vmem:[#allocation6 + $0x1e0] sm:$0xff]
    %v3922 = vld [vmem:[#allocation6 + $0x1e8] sm:$0xff]
    %v3923 = vld [vmem:[#allocation6 + $0x1f0] sm:$0xff]
    %v3924 = vld [vmem:[#allocation6 + $0x1f8] sm:$0xff]
    %3925 = vmatprep.subr.mxu0 %v3862
    %3926 = vmatpush1.msra.mxu0 %v3861
    %3927 = vmatprep.subr.mxu0 %v3866
    %3928 = vmatpush1.msra.mxu0 %v3865
    %3929 = vmatprep.subr.mxu0 %v3870
    %3930 = vmatpush1.msra.mxu0 %v3869
    %3931 = vmatprep.subr.mxu0 %v3874
    %3932 = vmatpush1.msra.mxu0 %v3873
    %3933 = vmatprep.subr.mxu0 %v3878
    %3934 = vmatpush1.msra.mxu0 %v3877
    %3935 = vmatprep.subr.mxu0 %v3882
    %3936 = vmatpush1.msra.mxu0 %v3881
    %3937 = vmatprep.subr.mxu0 %v3886
    %3938 = vmatpush1.msra.mxu0 %v3885
    %3939 = vmatprep.subr.mxu0 %v3890
    %3940 = vmatpush1.msra.mxu0 %v3889
    %3941 = vmatprep.subr.mxu0 %v3894
    %3942 = vmatpush1.msra.mxu0 %v3893
    %3943 = vmatprep.subr.mxu0 %v3898
    %3944 = vmatpush1.msra.mxu0 %v3897
    %3945 = vmatprep.subr.mxu0 %v3902
    %3946 = vmatpush1.msra.mxu0 %v3901
    %3947 = vmatprep.subr.mxu0 %v3906
    %3948 = vmatpush1.msra.mxu0 %v3905
    %3949 = vmatprep.subr.mxu0 %v3910
    %3950 = vmatpush1.msra.mxu0 %v3909
    %3951 = vmatprep.subr.mxu0 %v3914
    %3952 = vmatpush1.msra.mxu0 %v3913
    %3953 = vmatprep.subr.mxu0 %v3918
    %3954 = vmatpush1.msra.mxu0 %v3917
    %3955 = vmatprep.subr.mxu0 %v3922
    %3956 = vmatpush1.msra.mxu0 %v3921
    %3957 = vmatprep.subr.mxu0 0.0
    %3958 = vmatpush1.msra.mxu0 0.0
    %3959 = vmatprep.subr.mxu0 0.0
    %3960 = vmatpush1.msra.mxu0 0.0
    %3961 = vmatprep.subr.mxu0 0.0
    %3962 = vmatpush1.msra.mxu0 0.0
    %3963 = vmatprep.subr.mxu0 0.0
    %3964 = vmatpush1.msra.mxu0 0.0
    %3965 = vmatprep.subr.mxu0 0.0
    %3966 = vmatpush1.msra.mxu0 0.0
    %3967 = vmatprep.subr.mxu0 0.0
    %3968 = vmatpush1.msra.mxu0 0.0
    %3969 = vmatprep.subr.mxu0 0.0
    %3970 = vmatpush1.msra.mxu0 0.0
    %3971 = vmatprep.subr.mxu0 0.0
    %3972 = vmatpush1.msra.mxu0 0.0
    %3973 = vmatprep.subr.mxu0 0.0
    %3974 = vmatpush1.msra.mxu0 0.0
    %3975 = vmatprep.subr.mxu0 0.0
    %3976 = vmatpush1.msra.mxu0 0.0
    %3977 = vmatprep.subr.mxu0 0.0
    %3978 = vmatpush1.msra.mxu0 0.0
    %3979 = vmatprep.subr.mxu0 0.0
    %3980 = vmatpush1.msra.mxu0 0.0
    %3981 = vmatprep.subr.mxu0 0.0
    %3982 = vmatpush1.msra.mxu0 0.0
    %3983 = vmatprep.subr.mxu0 0.0
    %3984 = vmatpush1.msra.mxu0 0.0
    %3985 = vmatprep.subr.mxu0 0.0
    %3986 = vmatpush1.msra.mxu0 0.0
    %3987 = vmatprep.subr.mxu0 0.0
    %3988 = vmatpush1.msra.mxu0 0.0
    %3989 = vmatprep.mubr.f32.mxu0 0.0
    %3990 = vmatmul.mubr.f32.gmra.mrb[0].mxu0 %v3538
    %v3991 = vpop.f32.mrb[0].mxu0
    %v3992 = vadd.f32 0.0, %v3991
    %v3993 = vpop.f32.mrb[0].mxu0
    %v3994 = vadd.f32 0.0, %v3993
    %3995 = vdwg.mxu0
    %3996 = vmatprep.subr.mxu0 %v3864
    %3997 = vmatpush1.msra.mxu0 %v3863
    %3998 = vmatprep.subr.mxu0 %v3868
    %3999 = vmatpush1.msra.mxu0 %v3867
    %4000 = vmatprep.subr.mxu0 %v3872
    %4001 = vmatpush1.msra.mxu0 %v3871
    %4002 = vmatprep.subr.mxu0 %v3876
    %4003 = vmatpush1.msra.mxu0 %v3875
    %4004 = vmatprep.subr.mxu0 %v3880
    %4005 = vmatpush1.msra.mxu0 %v3879
    %4006 = vmatprep.subr.mxu0 %v3884
    %4007 = vmatpush1.msra.mxu0 %v3883
    %4008 = vmatprep.subr.mxu0 %v3888
    %4009 = vmatpush1.msra.mxu0 %v3887
    %4010 = vmatprep.subr.mxu0 %v3892
    %4011 = vmatpush1.msra.mxu0 %v3891
    %4012 = vmatprep.subr.mxu0 %v3896
    %4013 = vmatpush1.msra.mxu0 %v3895
    %4014 = vmatprep.subr.mxu0 %v3900
    %4015 = vmatpush1.msra.mxu0 %v3899
    %4016 = vmatprep.subr.mxu0 %v3904
    %4017 = vmatpush1.msra.mxu0 %v3903
    %4018 = vmatprep.subr.mxu0 %v3908
    %4019 = vmatpush1.msra.mxu0 %v3907
    %4020 = vmatprep.subr.mxu0 %v3912
    %4021 = vmatpush1.msra.mxu0 %v3911
    %4022 = vmatprep.subr.mxu0 %v3916
    %4023 = vmatpush1.msra.mxu0 %v3915
    %4024 = vmatprep.subr.mxu0 %v3920
    %4025 = vmatpush1.msra.mxu0 %v3919
    %4026 = vmatprep.subr.mxu0 %v3924
    %4027 = vmatpush1.msra.mxu0 %v3923
    %4028 = vmatprep.subr.mxu0 0.0
    %4029 = vmatpush1.msra.mxu0 0.0
    %4030 = vmatprep.subr.mxu0 0.0
    %4031 = vmatpush1.msra.mxu0 0.0
    %4032 = vmatprep.subr.mxu0 0.0
    %4033 = vmatpush1.msra.mxu0 0.0
    %4034 = vmatprep.subr.mxu0 0.0
    %4035 = vmatpush1.msra.mxu0 0.0
    %4036 = vmatprep.subr.mxu0 0.0
    %4037 = vmatpush1.msra.mxu0 0.0
    %4038 = vmatprep.subr.mxu0 0.0
    %4039 = vmatpush1.msra.mxu0 0.0
    %4040 = vmatprep.subr.mxu0 0.0
    %4041 = vmatpush1.msra.mxu0 0.0
    %4042 = vmatprep.subr.mxu0 0.0
    %4043 = vmatpush1.msra.mxu0 0.0
    %4044 = vmatprep.subr.mxu0 0.0
    %4045 = vmatpush1.msra.mxu0 0.0
    %4046 = vmatprep.subr.mxu0 0.0
    %4047 = vmatpush1.msra.mxu0 0.0
    %4048 = vmatprep.subr.mxu0 0.0
    %4049 = vmatpush1.msra.mxu0 0.0
    %4050 = vmatprep.subr.mxu0 0.0
    %4051 = vmatpush1.msra.mxu0 0.0
    %4052 = vmatprep.subr.mxu0 0.0
    %4053 = vmatpush1.msra.mxu0 0.0
    %4054 = vmatprep.subr.mxu0 0.0
    %4055 = vmatpush1.msra.mxu0 0.0
    %4056 = vmatprep.subr.mxu0 0.0
    %4057 = vmatpush1.msra.mxu0 0.0
    %4058 = vmatprep.subr.mxu0 0.0
    %4059 = vmatpush1.msra.mxu0 0.0
    %4060 = vmatprep.mubr.f32.mxu0 0.0
    %4061 = vmatmul.mubr.f32.gmra.mrb[0].mxu0 %v3538
    %v4062 = vpop.f32.mrb[0].mxu0
    %v4063 = vadd.f32 0.0, %v4062
    %v4064 = vpop.f32.mrb[0].mxu0
    %v4065 = vadd.f32 0.0, %v4064
    %4066 = vdwg.mxu0
    %4067 = vmatprep.subr.mxu0 %v3798
    %4068 = vmatpush1.msra.mxu0 %v3797
    %4069 = vmatprep.subr.mxu0 %v3802
    %4070 = vmatpush1.msra.mxu0 %v3801
    %4071 = vmatprep.subr.mxu0 %v3806
    %4072 = vmatpush1.msra.mxu0 %v3805
    %4073 = vmatprep.subr.mxu0 %v3810
    %4074 = vmatpush1.msra.mxu0 %v3809
    %4075 = vmatprep.subr.mxu0 %v3814
    %4076 = vmatpush1.msra.mxu0 %v3813
    %4077 = vmatprep.subr.mxu0 %v3818
    %4078 = vmatpush1.msra.mxu0 %v3817
    %4079 = vmatprep.subr.mxu0 %v3822
    %4080 = vmatpush1.msra.mxu0 %v3821
    %4081 = vmatprep.subr.mxu0 %v3826
    %4082 = vmatpush1.msra.mxu0 %v3825
    %4083 = vmatprep.subr.mxu0 %v3830
    %4084 = vmatpush1.msra.mxu0 %v3829
    %4085 = vmatprep.subr.mxu0 %v3834
    %4086 = vmatpush1.msra.mxu0 %v3833
    %4087 = vmatprep.subr.mxu0 %v3838
    %4088 = vmatpush1.msra.mxu0 %v3837
    %4089 = vmatprep.subr.mxu0 %v3842
    %4090 = vmatpush1.msra.mxu0 %v3841
    %4091 = vmatprep.subr.mxu0 %v3846
    %4092 = vmatpush1.msra.mxu0 %v3845
    %4093 = vmatprep.subr.mxu0 %v3850
    %4094 = vmatpush1.msra.mxu0 %v3849
    %4095 = vmatprep.subr.mxu0 %v3854
    %4096 = vmatpush1.msra.mxu0 %v3853
    %4097 = vmatprep.subr.mxu0 %v3858
    %4098 = vmatpush1.msra.mxu0 %v3857
    %4099 = vmatprep.subr.mxu0 0.0
    %4100 = vmatpush1.msra.mxu0 0.0
    %4101 = vmatprep.subr.mxu0 0.0
    %4102 = vmatpush1.msra.mxu0 0.0
    %4103 = vmatprep.subr.mxu0 0.0
    %4104 = vmatpush1.msra.mxu0 0.0
    %4105 = vmatprep.subr.mxu0 0.0
    %4106 = vmatpush1.msra.mxu0 0.0
    %4107 = vmatprep.subr.mxu0 0.0
    %4108 = vmatpush1.msra.mxu0 0.0
    %4109 = vmatprep.subr.mxu0 0.0
    %4110 = vmatpush1.msra.mxu0 0.0
    %4111 = vmatprep.subr.mxu0 0.0
    %4112 = vmatpush1.msra.mxu0 0.0
    %4113 = vmatprep.subr.mxu0 0.0
    %4114 = vmatpush1.msra.mxu0 0.0
    %4115 = vmatprep.subr.mxu0 0.0
    %4116 = vmatpush1.msra.mxu0 0.0
    %4117 = vmatprep.subr.mxu0 0.0
    %4118 = vmatpush1.msra.mxu0 0.0
    %4119 = vmatprep.subr.mxu0 0.0
    %4120 = vmatpush1.msra.mxu0 0.0
    %4121 = vmatprep.subr.mxu0 0.0
    %4122 = vmatpush1.msra.mxu0 0.0
    %4123 = vmatprep.subr.mxu0 0.0
    %4124 = vmatpush1.msra.mxu0 0.0
    %4125 = vmatprep.subr.mxu0 0.0
    %4126 = vmatpush1.msra.mxu0 0.0
    %4127 = vmatprep.subr.mxu0 0.0
    %4128 = vmatpush1.msra.mxu0 0.0
    %4129 = vmatprep.subr.mxu0 0.0
    %4130 = vmatpush1.msra.mxu0 0.0
    %4131 = vmatprep.mubr.f32.mxu0 0.0
    %4132 = vmatmul.mubr.f32.gmra.mrb[0].mxu0 %v3796
    %v4133 = vpop.f32.mrb[0].mxu0
    %v4134 = vadd.f32 %v3992, %v4133
    %v4135 = vpop.f32.mrb[0].mxu0
    %v4136 = vadd.f32 %v3994, %v4135
    %4137 = vdwg.mxu0
    %4138 = vmatprep.subr.mxu0 %v3800
    %4139 = vmatpush1.msra.mxu0 %v3799
    %4140 = vmatprep.subr.mxu0 %v3804
    %4141 = vmatpush1.msra.mxu0 %v3803
    %4142 = vmatprep.subr.mxu0 %v3808
    %4143 = vmatpush1.msra.mxu0 %v3807
    %4144 = vmatprep.subr.mxu0 %v3812
    %4145 = vmatpush1.msra.mxu0 %v3811
    %4146 = vmatprep.subr.mxu0 %v3816
    %4147 = vmatpush1.msra.mxu0 %v3815
    %4148 = vmatprep.subr.mxu0 %v3820
    %4149 = vmatpush1.msra.mxu0 %v3819
    %4150 = vmatprep.subr.mxu0 %v3824
    %4151 = vmatpush1.msra.mxu0 %v3823
    %4152 = vmatprep.subr.mxu0 %v3828
    %4153 = vmatpush1.msra.mxu0 %v3827
    %4154 = vmatprep.subr.mxu0 %v3832
    %4155 = vmatpush1.msra.mxu0 %v3831
    %4156 = vmatprep.subr.mxu0 %v3836
    %4157 = vmatpush1.msra.mxu0 %v3835
    %4158 = vmatprep.subr.mxu0 %v3840
    %4159 = vmatpush1.msra.mxu0 %v3839
    %4160 = vmatprep.subr.mxu0 %v3844
    %4161 = vmatpush1.msra.mxu0 %v3843
    %4162 = vmatprep.subr.mxu0 %v3848
    %4163 = vmatpush1.msra.mxu0 %v3847
    %4164 = vmatprep.subr.mxu0 %v3852
    %4165 = vmatpush1.msra.mxu0 %v3851
    %4166 = vmatprep.subr.mxu0 %v3856
    %4167 = vmatpush1.msra.mxu0 %v3855
    %4168 = vmatprep.subr.mxu0 %v3860
    %4169 = vmatpush1.msra.mxu0 %v3859
    %4170 = vmatprep.subr.mxu0 0.0
    %4171 = vmatpush1.msra.mxu0 0.0
    %4172 = vmatprep.subr.mxu0 0.0
    %4173 = vmatpush1.msra.mxu0 0.0
    %4174 = vmatprep.subr.mxu0 0.0
    %4175 = vmatpush1.msra.mxu0 0.0
    %4176 = vmatprep.subr.mxu0 0.0
    %4177 = vmatpush1.msra.mxu0 0.0
    %4178 = vmatprep.subr.mxu0 0.0
    %4179 = vmatpush1.msra.mxu0 0.0
    %4180 = vmatprep.subr.mxu0 0.0
    %4181 = vmatpush1.msra.mxu0 0.0
    %4182 = vmatprep.subr.mxu0 0.0
    %4183 = vmatpush1.msra.mxu0 0.0
    %4184 = vmatprep.subr.mxu0 0.0
    %4185 = vmatpush1.msra.mxu0 0.0
    %4186 = vmatprep.subr.mxu0 0.0
    %4187 = vmatpush1.msra.mxu0 0.0
    %4188 = vmatprep.subr.mxu0 0.0
    %4189 = vmatpush1.msra.mxu0 0.0
    %4190 = vmatprep.subr.mxu0 0.0
    %4191 = vmatpush1.msra.mxu0 0.0
    %4192 = vmatprep.subr.mxu0 0.0
    %4193 = vmatpush1.msra.mxu0 0.0
    %4194 = vmatprep.subr.mxu0 0.0
    %4195 = vmatpush1.msra.mxu0 0.0
    %4196 = vmatprep.subr.mxu0 0.0
    %4197 = vmatpush1.msra.mxu0 0.0
    %4198 = vmatprep.subr.mxu0 0.0
    %4199 = vmatpush1.msra.mxu0 0.0
    %4200 = vmatprep.subr.mxu0 0.0
    %4201 = vmatpush1.msra.mxu0 0.0
    %4202 = vmatprep.mubr.f32.mxu0 0.0
    %4203 = vmatmul.mubr.f32.gmra.mrb[0].mxu0 %v3796
    %v4204 = vpop.f32.mrb[0].mxu0
    %v4205 = vadd.f32 %v4063, %v4204
    %v4206 = vpop.f32.mrb[0].mxu0
    %v4207 = vadd.f32 %v4065, %v4206
    %4208 = vdwg.mxu0
    %v4209 = vadd.f32 %v4134, %v66
    %v4210 = vadd.f32 %v4136, %v70
    %v4211 = vadd.f32 %v4205, %v74
    %v4212 = vadd.f32 %v4207, %v78
    %v4213 = vmul.f32 %v4209, 0.5
    %v4214 = vtanh.pop %v4213
    %v4215 = vmul.f32 %v4214, 0.5
    %v4216 = vadd.f32 %v4215, 0.5
    %v4217 = vmul.f32 %v4210, 0.5
    %v4218 = vtanh.pop %v4217
    %v4219 = vmul.f32 %v4218, 0.5
    %v4220 = vadd.f32 %v4219, 0.5
    %v4221 = vtanh.pop %v4211
    %v4222 = vmul.f32 %v4212, 0.5
    %v4223 = vtanh.pop %v4222
    %v4224 = vmul.f32 %v4223, 0.5
    %v4225 = vadd.f32 %v4224, 0.5
    %v4226 = vmul.f32 %v4220, %v3536
    %v4227 = vmul.f32 %v4216, %v4221
    %v4228 = vadd.f32 %v4226, %v4227
    %v4229 = vtanh.pop %v4228
    %v4230 = vmul.f32 %v4225, %v4229
    %s4231 = scalar_lea.vmem %s5, 10
    %4232 = vst [vmem:[%s4231] sm:$0x3] %v4230
    %s4233 = scalar_lea.vmem %s0, 48
    %v4234 = vld [vmem:[%s4233] sm:$0xff]
    %v4235 = vld [vmem:[#allocation2] sm:$0xff]
    %v4236 = vld [vmem:[#allocation2 + $0x8] sm:$0xff]
    %v4237 = vld [vmem:[#allocation2 + $0x10] sm:$0xff]
    %v4238 = vld [vmem:[#allocation2 + $0x18] sm:$0xff]
    %v4239 = vld [vmem:[#allocation2 + $0x20] sm:$0xff]
    %v4240 = vld [vmem:[#allocation2 + $0x28] sm:$0xff]
    %v4241 = vld [vmem:[#allocation2 + $0x30] sm:$0xff]
    %v4242 = vld [vmem:[#allocation2 + $0x38] sm:$0xff]
    %v4243 = vld [vmem:[#allocation2 + $0x40] sm:$0xff]
    %v4244 = vld [vmem:[#allocation2 + $0x48] sm:$0xff]
    %v4245 = vld [vmem:[#allocation2 + $0x50] sm:$0xff]
    %v4246 = vld [vmem:[#allocation2 + $0x58] sm:$0xff]
    %v4247 = vld [vmem:[#allocation2 + $0x60] sm:$0xff]
    %v4248 = vld [vmem:[#allocation2 + $0x68] sm:$0xff]
    %v4249 = vld [vmem:[#allocation2 + $0x70] sm:$0xff]
    %v4250 = vld [vmem:[#allocation2 + $0x78] sm:$0xff]
    %v4251 = vld [vmem:[#allocation2 + $0x80] sm:$0xff]
    %v4252 = vld [vmem:[#allocation2 + $0x88] sm:$0xff]
    %v4253 = vld [vmem:[#allocation2 + $0x90] sm:$0xff]
    %v4254 = vld [vmem:[#allocation2 + $0x98] sm:$0xff]
    %v4255 = vld [vmem:[#allocation2 + $0xa0] sm:$0xff]
    %v4256 = vld [vmem:[#allocation2 + $0xa8] sm:$0xff]
    %v4257 = vld [vmem:[#allocation2 + $0xb0] sm:$0xff]
    %v4258 = vld [vmem:[#allocation2 + $0xb8] sm:$0xff]
    %v4259 = vld [vmem:[#allocation2 + $0xc0] sm:$0xff]
    %v4260 = vld [vmem:[#allocation2 + $0xc8] sm:$0xff]
    %v4261 = vld [vmem:[#allocation2 + $0xd0] sm:$0xff]
    %v4262 = vld [vmem:[#allocation2 + $0xd8] sm:$0xff]
    %v4263 = vld [vmem:[#allocation2 + $0xe0] sm:$0xff]
    %v4264 = vld [vmem:[#allocation2 + $0xe8] sm:$0xff]
    %v4265 = vld [vmem:[#allocation2 + $0xf0] sm:$0xff]
    %v4266 = vld [vmem:[#allocation2 + $0xf8] sm:$0xff]
    %v4267 = vld [vmem:[#allocation2 + $0x100] sm:$0xff]
    %v4268 = vld [vmem:[#allocation2 + $0x108] sm:$0xff]
    %v4269 = vld [vmem:[#allocation2 + $0x110] sm:$0xff]
    %v4270 = vld [vmem:[#allocation2 + $0x118] sm:$0xff]
    %v4271 = vld [vmem:[#allocation2 + $0x120] sm:$0xff]
    %v4272 = vld [vmem:[#allocation2 + $0x128] sm:$0xff]
    %v4273 = vld [vmem:[#allocation2 + $0x130] sm:$0xff]
    %v4274 = vld [vmem:[#allocation2 + $0x138] sm:$0xff]
    %v4275 = vld [vmem:[#allocation2 + $0x140] sm:$0xff]
    %v4276 = vld [vmem:[#allocation2 + $0x148] sm:$0xff]
    %v4277 = vld [vmem:[#allocation2 + $0x150] sm:$0xff]
    %v4278 = vld [vmem:[#allocation2 + $0x158] sm:$0xff]
    %v4279 = vld [vmem:[#allocation2 + $0x160] sm:$0xff]
    %v4280 = vld [vmem:[#allocation2 + $0x168] sm:$0xff]
    %v4281 = vld [vmem:[#allocation2 + $0x170] sm:$0xff]
    %v4282 = vld [vmem:[#allocation2 + $0x178] sm:$0xff]
    %v4283 = vld [vmem:[#allocation2 + $0x180] sm:$0xff]
    %v4284 = vld [vmem:[#allocation2 + $0x188] sm:$0xff]
    %v4285 = vld [vmem:[#allocation2 + $0x190] sm:$0xff]
    %v4286 = vld [vmem:[#allocation2 + $0x198] sm:$0xff]
    %v4287 = vld [vmem:[#allocation2 + $0x1a0] sm:$0xff]
    %v4288 = vld [vmem:[#allocation2 + $0x1a8] sm:$0xff]
    %v4289 = vld [vmem:[#allocation2 + $0x1b0] sm:$0xff]
    %v4290 = vld [vmem:[#allocation2 + $0x1b8] sm:$0xff]
    %v4291 = vld [vmem:[#allocation2 + $0x1c0] sm:$0xff]
    %v4292 = vld [vmem:[#allocation2 + $0x1c8] sm:$0xff]
    %v4293 = vld [vmem:[#allocation2 + $0x1d0] sm:$0xff]
    %v4294 = vld [vmem:[#allocation2 + $0x1d8] sm:$0xff]
    %v4295 = vld [vmem:[#allocation2 + $0x1e0] sm:$0xff]
    %v4296 = vld [vmem:[#allocation2 + $0x1e8] sm:$0xff]
    %v4297 = vld [vmem:[#allocation2 + $0x1f0] sm:$0xff]
    %v4298 = vld [vmem:[#allocation2 + $0x1f8] sm:$0xff]
    %4299 = vmatprep.subr.mxu0 %v4236
    %4300 = vmatpush1.msra.mxu0 %v4235
    %4301 = vmatprep.subr.mxu0 %v4240
    %4302 = vmatpush1.msra.mxu0 %v4239
    %4303 = vmatprep.subr.mxu0 %v4244
    %4304 = vmatpush1.msra.mxu0 %v4243
    %4305 = vmatprep.subr.mxu0 %v4248
    %4306 = vmatpush1.msra.mxu0 %v4247
    %4307 = vmatprep.subr.mxu0 %v4252
    %4308 = vmatpush1.msra.mxu0 %v4251
    %4309 = vmatprep.subr.mxu0 %v4256
    %4310 = vmatpush1.msra.mxu0 %v4255
    %4311 = vmatprep.subr.mxu0 %v4260
    %4312 = vmatpush1.msra.mxu0 %v4259
    %4313 = vmatprep.subr.mxu0 %v4264
    %4314 = vmatpush1.msra.mxu0 %v4263
    %4315 = vmatprep.subr.mxu0 %v4268
    %4316 = vmatpush1.msra.mxu0 %v4267
    %4317 = vmatprep.subr.mxu0 %v4272
    %4318 = vmatpush1.msra.mxu0 %v4271
    %4319 = vmatprep.subr.mxu0 %v4276
    %4320 = vmatpush1.msra.mxu0 %v4275
    %4321 = vmatprep.subr.mxu0 %v4280
    %4322 = vmatpush1.msra.mxu0 %v4279
    %4323 = vmatprep.subr.mxu0 %v4284
    %4324 = vmatpush1.msra.mxu0 %v4283
    %4325 = vmatprep.subr.mxu0 %v4288
    %4326 = vmatpush1.msra.mxu0 %v4287
    %4327 = vmatprep.subr.mxu0 %v4292
    %4328 = vmatpush1.msra.mxu0 %v4291
    %4329 = vmatprep.subr.mxu0 %v4296
    %4330 = vmatpush1.msra.mxu0 %v4295
    %4331 = vmatprep.subr.mxu0 0.0
    %4332 = vmatpush1.msra.mxu0 0.0
    %4333 = vmatprep.subr.mxu0 0.0
    %4334 = vmatpush1.msra.mxu0 0.0
    %4335 = vmatprep.subr.mxu0 0.0
    %4336 = vmatpush1.msra.mxu0 0.0
    %4337 = vmatprep.subr.mxu0 0.0
    %4338 = vmatpush1.msra.mxu0 0.0
    %4339 = vmatprep.subr.mxu0 0.0
    %4340 = vmatpush1.msra.mxu0 0.0
    %4341 = vmatprep.subr.mxu0 0.0
    %4342 = vmatpush1.msra.mxu0 0.0
    %4343 = vmatprep.subr.mxu0 0.0
    %4344 = vmatpush1.msra.mxu0 0.0
    %4345 = vmatprep.subr.mxu0 0.0
    %4346 = vmatpush1.msra.mxu0 0.0
    %4347 = vmatprep.subr.mxu0 0.0
    %4348 = vmatpush1.msra.mxu0 0.0
    %4349 = vmatprep.subr.mxu0 0.0
    %4350 = vmatpush1.msra.mxu0 0.0
    %4351 = vmatprep.subr.mxu0 0.0
    %4352 = vmatpush1.msra.mxu0 0.0
    %4353 = vmatprep.subr.mxu0 0.0
    %4354 = vmatpush1.msra.mxu0 0.0
    %4355 = vmatprep.subr.mxu0 0.0
    %4356 = vmatpush1.msra.mxu0 0.0
    %4357 = vmatprep.subr.mxu0 0.0
    %4358 = vmatpush1.msra.mxu0 0.0
    %4359 = vmatprep.subr.mxu0 0.0
    %4360 = vmatpush1.msra.mxu0 0.0
    %4361 = vmatprep.subr.mxu0 0.0
    %4362 = vmatpush1.msra.mxu0 0.0
    %4363 = vmatprep.mubr.f32.mxu0 0.0
    %4364 = vmatmul.mubr.f32.gmra.mrb[0].mxu0 %v3796
    %v4365 = vpop.f32.mrb[0].mxu0
    %v4366 = vadd.f32 0.0, %v4365
    %v4367 = vpop.f32.mrb[0].mxu0
    %v4368 = vadd.f32 0.0, %v4367
    %4369 = vdwg.mxu0
    %4370 = vmatprep.subr.mxu0 %v4238
    %4371 = vmatpush1.msra.mxu0 %v4237
    %4372 = vmatprep.subr.mxu0 %v4242
    %4373 = vmatpush1.msra.mxu0 %v4241
    %4374 = vmatprep.subr.mxu0 %v4246
    %4375 = vmatpush1.msra.mxu0 %v4245
    %4376 = vmatprep.subr.mxu0 %v4250
    %4377 = vmatpush1.msra.mxu0 %v4249
    %4378 = vmatprep.subr.mxu0 %v4254
    %4379 = vmatpush1.msra.mxu0 %v4253
    %4380 = vmatprep.subr.mxu0 %v4258
    %4381 = vmatpush1.msra.mxu0 %v4257
    %4382 = vmatprep.subr.mxu0 %v4262
    %4383 = vmatpush1.msra.mxu0 %v4261
    %4384 = vmatprep.subr.mxu0 %v4266
    %4385 = vmatpush1.msra.mxu0 %v4265
    %4386 = vmatprep.subr.mxu0 %v4270
    %4387 = vmatpush1.msra.mxu0 %v4269
    %4388 = vmatprep.subr.mxu0 %v4274
    %4389 = vmatpush1.msra.mxu0 %v4273
    %4390 = vmatprep.subr.mxu0 %v4278
    %4391 = vmatpush1.msra.mxu0 %v4277
    %4392 = vmatprep.subr.mxu0 %v4282
    %4393 = vmatpush1.msra.mxu0 %v4281
    %4394 = vmatprep.subr.mxu0 %v4286
    %4395 = vmatpush1.msra.mxu0 %v4285
    %4396 = vmatprep.subr.mxu0 %v4290
    %4397 = vmatpush1.msra.mxu0 %v4289
    %4398 = vmatprep.subr.mxu0 %v4294
    %4399 = vmatpush1.msra.mxu0 %v4293
    %4400 = vmatprep.subr.mxu0 %v4298
    %4401 = vmatpush1.msra.mxu0 %v4297
    %4402 = vmatprep.subr.mxu0 0.0
    %4403 = vmatpush1.msra.mxu0 0.0
    %4404 = vmatprep.subr.mxu0 0.0
    %4405 = vmatpush1.msra.mxu0 0.0
    %4406 = vmatprep.subr.mxu0 0.0
    %4407 = vmatpush1.msra.mxu0 0.0
    %4408 = vmatprep.subr.mxu0 0.0
    %4409 = vmatpush1.msra.mxu0 0.0
    %4410 = vmatprep.subr.mxu0 0.0
    %4411 = vmatpush1.msra.mxu0 0.0
    %4412 = vmatprep.subr.mxu0 0.0
    %4413 = vmatpush1.msra.mxu0 0.0
    %4414 = vmatprep.subr.mxu0 0.0
    %4415 = vmatpush1.msra.mxu0 0.0
    %4416 = vmatprep.subr.mxu0 0.0
    %4417 = vmatpush1.msra.mxu0 0.0
    %4418 = vmatprep.subr.mxu0 0.0
    %4419 = vmatpush1.msra.mxu0 0.0
    %4420 = vmatprep.subr.mxu0 0.0
    %4421 = vmatpush1.msra.mxu0 0.0
    %4422 = vmatprep.subr.mxu0 0.0
    %4423 = vmatpush1.msra.mxu0 0.0
    %4424 = vmatprep.subr.mxu0 0.0
    %4425 = vmatpush1.msra.mxu0 0.0
    %4426 = vmatprep.subr.mxu0 0.0
    %4427 = vmatpush1.msra.mxu0 0.0
    %4428 = vmatprep.subr.mxu0 0.0
    %4429 = vmatpush1.msra.mxu0 0.0
    %4430 = vmatprep.subr.mxu0 0.0
    %4431 = vmatpush1.msra.mxu0 0.0
    %4432 = vmatprep.subr.mxu0 0.0
    %4433 = vmatpush1.msra.mxu0 0.0
    %4434 = vmatprep.mubr.f32.mxu0 0.0
    %4435 = vmatmul.mubr.f32.gmra.mrb[0].mxu0 %v3796
    %v4436 = vpop.f32.mrb[0].mxu0
    %v4437 = vadd.f32 0.0, %v4436
    %v4438 = vpop.f32.mrb[0].mxu0
    %v4439 = vadd.f32 0.0, %v4438
    %4440 = vdwg.mxu0
    %v4445 = vcombine.low %v4366, %v4368
    %v4446 = vcombine.low %v4437, %v4439
    %v4448 = vunpack.c.l.s4 1983009808
    %v4449 = vunpack.c.0.s8 %v4448
    %v4450 = vlaneseq
    %v4451 = vshrl.u32 %v4450, 7
    %v4452 = vsub.s32 %v4449, %v4451
    %v4453 = vrot.slane %v4445, %v4452
    %v4455 = vunpack.c.l.s4 1983009808
    %v4456 = vunpack.c.0.s8 %v4455
    %v4457 = vlaneseq
    %v4458 = vshrl.u32 %v4457, 7
    %v4459 = vsub.s32 %v4456, %v4458
    %v4460 = vrot.slane %v4446, %v4459
    %v4461 = vcombine.low %v4453, %v4460
    %v4463 = vadd.f32 %v4234, %v4461
    %v4464 = vmul.f32 %v4463, 0.5
    %v4465 = vtanh.pop %v4464
    %v4466 = vmul.f32 %v4465, 0.5
    %v4467 = vadd.f32 %v4466, 0.5
    %v4469 = vrot.slane %v4463, 2
    %v4471 = vmul.f32 %v4469, 0.5
    %v4472 = vtanh.pop %v4471
    %v4473 = vmul.f32 %v4472, 0.5
    %v4474 = vadd.f32 %v4473, 0.5
    %v4475 = vrot.slane %v4463, 4
    %v4477 = vtanh.pop %v4475
    %v4478 = vrot.slane %v4463, 6
    %v4480 = vmul.f32 %v4478, 0.5
    %v4481 = vtanh.pop %v4480
    %v4482 = vmul.f32 %v4481, 0.5
    %v4483 = vadd.f32 %v4482, 0.5
    %v4484 = vmul.f32 %v4474, %v3794
    %v4485 = vmul.f32 %v4467, %v4477
    %v4486 = vadd.f32 %v4484, %v4485
    %v4487 = vtanh.pop %v4486
    %v4488 = vmul.f32 %v4483, %v4487
    %v4489 = vld [vmem:[#allocation4] sm:$0xff]
    %v4490 = vld [vmem:[#allocation4 + $0x8] sm:$0xff]
    %v4491 = vld [vmem:[#allocation4 + $0x10] sm:$0xff]
    %v4492 = vld [vmem:[#allocation4 + $0x18] sm:$0xff]
    %v4493 = vld [vmem:[#allocation4 + $0x20] sm:$0xff]
    %v4494 = vld [vmem:[#allocation4 + $0x28] sm:$0xff]
    %v4495 = vld [vmem:[#allocation4 + $0x30] sm:$0xff]
    %v4496 = vld [vmem:[#allocation4 + $0x38] sm:$0xff]
    %v4497 = vld [vmem:[#allocation4 + $0x40] sm:$0xff]
    %v4498 = vld [vmem:[#allocation4 + $0x48] sm:$0xff]
    %v4499 = vld [vmem:[#allocation4 + $0x50] sm:$0xff]
    %v4500 = vld [vmem:[#allocation4 + $0x58] sm:$0xff]
    %v4501 = vld [vmem:[#allocation4 + $0x60] sm:$0xff]
    %v4502 = vld [vmem:[#allocation4 + $0x68] sm:$0xff]
    %v4503 = vld [vmem:[#allocation4 + $0x70] sm:$0xff]
    %v4504 = vld [vmem:[#allocation4 + $0x78] sm:$0xff]
    %v4505 = vld [vmem:[#allocation4 + $0x80] sm:$0xff]
    %v4506 = vld [vmem:[#allocation4 + $0x88] sm:$0xff]
    %v4507 = vld [vmem:[#allocation4 + $0x90] sm:$0xff]
    %v4508 = vld [vmem:[#allocation4 + $0x98] sm:$0xff]
    %v4509 = vld [vmem:[#allocation4 + $0xa0] sm:$0xff]
    %v4510 = vld [vmem:[#allocation4 + $0xa8] sm:$0xff]
    %v4511 = vld [vmem:[#allocation4 + $0xb0] sm:$0xff]
    %v4512 = vld [vmem:[#allocation4 + $0xb8] sm:$0xff]
    %v4513 = vld [vmem:[#allocation4 + $0xc0] sm:$0xff]
    %v4514 = vld [vmem:[#allocation4 + $0xc8] sm:$0xff]
    %v4515 = vld [vmem:[#allocation4 + $0xd0] sm:$0xff]
    %v4516 = vld [vmem:[#allocation4 + $0xd8] sm:$0xff]
    %v4517 = vld [vmem:[#allocation4 + $0xe0] sm:$0xff]
    %v4518 = vld [vmem:[#allocation4 + $0xe8] sm:$0xff]
    %v4519 = vld [vmem:[#allocation4 + $0xf0] sm:$0xff]
    %v4520 = vld [vmem:[#allocation4 + $0xf8] sm:$0xff]
    %v4521 = vld [vmem:[#allocation4 + $0x100] sm:$0xff]
    %v4522 = vld [vmem:[#allocation4 + $0x108] sm:$0xff]
    %v4523 = vld [vmem:[#allocation4 + $0x110] sm:$0xff]
    %v4524 = vld [vmem:[#allocation4 + $0x118] sm:$0xff]
    %v4525 = vld [vmem:[#allocation4 + $0x120] sm:$0xff]
    %v4526 = vld [vmem:[#allocation4 + $0x128] sm:$0xff]
    %v4527 = vld [vmem:[#allocation4 + $0x130] sm:$0xff]
    %v4528 = vld [vmem:[#allocation4 + $0x138] sm:$0xff]
    %v4529 = vld [vmem:[#allocation4 + $0x140] sm:$0xff]
    %v4530 = vld [vmem:[#allocation4 + $0x148] sm:$0xff]
    %v4531 = vld [vmem:[#allocation4 + $0x150] sm:$0xff]
    %v4532 = vld [vmem:[#allocation4 + $0x158] sm:$0xff]
    %v4533 = vld [vmem:[#allocation4 + $0x160] sm:$0xff]
    %v4534 = vld [vmem:[#allocation4 + $0x168] sm:$0xff]
    %v4535 = vld [vmem:[#allocation4 + $0x170] sm:$0xff]
    %v4536 = vld [vmem:[#allocation4 + $0x178] sm:$0xff]
    %v4537 = vld [vmem:[#allocation4 + $0x180] sm:$0xff]
    %v4538 = vld [vmem:[#allocation4 + $0x188] sm:$0xff]
    %v4539 = vld [vmem:[#allocation4 + $0x190] sm:$0xff]
    %v4540 = vld [vmem:[#allocation4 + $0x198] sm:$0xff]
    %v4541 = vld [vmem:[#allocation4 + $0x1a0] sm:$0xff]
    %v4542 = vld [vmem:[#allocation4 + $0x1a8] sm:$0xff]
    %v4543 = vld [vmem:[#allocation4 + $0x1b0] sm:$0xff]
    %v4544 = vld [vmem:[#allocation4 + $0x1b8] sm:$0xff]
    %v4545 = vld [vmem:[#allocation4 + $0x1c0] sm:$0xff]
    %v4546 = vld [vmem:[#allocation4 + $0x1c8] sm:$0xff]
    %v4547 = vld [vmem:[#allocation4 + $0x1d0] sm:$0xff]
    %v4548 = vld [vmem:[#allocation4 + $0x1d8] sm:$0xff]
    %v4549 = vld [vmem:[#allocation4 + $0x1e0] sm:$0xff]
    %v4550 = vld [vmem:[#allocation4 + $0x1e8] sm:$0xff]
    %v4551 = vld [vmem:[#allocation4 + $0x1f0] sm:$0xff]
    %v4552 = vld [vmem:[#allocation4 + $0x1f8] sm:$0xff]
    %v4553 = vld [vmem:[#allocation6] sm:$0xff]
    %v4554 = vld [vmem:[#allocation6 + $0x8] sm:$0xff]
    %v4555 = vld [vmem:[#allocation6 + $0x10] sm:$0xff]
    %v4556 = vld [vmem:[#allocation6 + $0x18] sm:$0xff]
    %v4557 = vld [vmem:[#allocation6 + $0x20] sm:$0xff]
    %v4558 = vld [vmem:[#allocation6 + $0x28] sm:$0xff]
    %v4559 = vld [vmem:[#allocation6 + $0x30] sm:$0xff]
    %v4560 = vld [vmem:[#allocation6 + $0x38] sm:$0xff]
    %v4561 = vld [vmem:[#allocation6 + $0x40] sm:$0xff]
    %v4562 = vld [vmem:[#allocation6 + $0x48] sm:$0xff]
    %v4563 = vld [vmem:[#allocation6 + $0x50] sm:$0xff]
    %v4564 = vld [vmem:[#allocation6 + $0x58] sm:$0xff]
    %v4565 = vld [vmem:[#allocation6 + $0x60] sm:$0xff]
    %v4566 = vld [vmem:[#allocation6 + $0x68] sm:$0xff]
    %v4567 = vld [vmem:[#allocation6 + $0x70] sm:$0xff]
    %v4568 = vld [vmem:[#allocation6 + $0x78] sm:$0xff]
    %v4569 = vld [vmem:[#allocation6 + $0x80] sm:$0xff]
    %v4570 = vld [vmem:[#allocation6 + $0x88] sm:$0xff]
    %v4571 = vld [vmem:[#allocation6 + $0x90] sm:$0xff]
    %v4572 = vld [vmem:[#allocation6 + $0x98] sm:$0xff]
    %v4573 = vld [vmem:[#allocation6 + $0xa0] sm:$0xff]
    %v4574 = vld [vmem:[#allocation6 + $0xa8] sm:$0xff]
    %v4575 = vld [vmem:[#allocation6 + $0xb0] sm:$0xff]
    %v4576 = vld [vmem:[#allocation6 + $0xb8] sm:$0xff]
    %v4577 = vld [vmem:[#allocation6 + $0xc0] sm:$0xff]
    %v4578 = vld [vmem:[#allocation6 + $0xc8] sm:$0xff]
    %v4579 = vld [vmem:[#allocation6 + $0xd0] sm:$0xff]
    %v4580 = vld [vmem:[#allocation6 + $0xd8] sm:$0xff]
    %v4581 = vld [vmem:[#allocation6 + $0xe0] sm:$0xff]
    %v4582 = vld [vmem:[#allocation6 + $0xe8] sm:$0xff]
    %v4583 = vld [vmem:[#allocation6 + $0xf0] sm:$0xff]
    %v4584 = vld [vmem:[#allocation6 + $0xf8] sm:$0xff]
    %v4585 = vld [vmem:[#allocation6 + $0x100] sm:$0xff]
    %v4586 = vld [vmem:[#allocation6 + $0x108] sm:$0xff]
    %v4587 = vld [vmem:[#allocation6 + $0x110] sm:$0xff]
    %v4588 = vld [vmem:[#allocation6 + $0x118] sm:$0xff]
    %v4589 = vld [vmem:[#allocation6 + $0x120] sm:$0xff]
    %v4590 = vld [vmem:[#allocation6 + $0x128] sm:$0xff]
    %v4591 = vld [vmem:[#allocation6 + $0x130] sm:$0xff]
    %v4592 = vld [vmem:[#allocation6 + $0x138] sm:$0xff]
    %v4593 = vld [vmem:[#allocation6 + $0x140] sm:$0xff]
    %v4594 = vld [vmem:[#allocation6 + $0x148] sm:$0xff]
    %v4595 = vld [vmem:[#allocation6 + $0x150] sm:$0xff]
    %v4596 = vld [vmem:[#allocation6 + $0x158] sm:$0xff]
    %v4597 = vld [vmem:[#allocation6 + $0x160] sm:$0xff]
    %v4598 = vld [vmem:[#allocation6 + $0x168] sm:$0xff]
    %v4599 = vld [vmem:[#allocation6 + $0x170] sm:$0xff]
    %v4600 = vld [vmem:[#allocation6 + $0x178] sm:$0xff]
    %v4601 = vld [vmem:[#allocation6 + $0x180] sm:$0xff]
    %v4602 = vld [vmem:[#allocation6 + $0x188] sm:$0xff]
    %v4603 = vld [vmem:[#allocation6 + $0x190] sm:$0xff]
    %v4604 = vld [vmem:[#allocation6 + $0x198] sm:$0xff]
    %v4605 = vld [vmem:[#allocation6 + $0x1a0] sm:$0xff]
    %v4606 = vld [vmem:[#allocation6 + $0x1a8] sm:$0xff]
    %v4607 = vld [vmem:[#allocation6 + $0x1b0] sm:$0xff]
    %v4608 = vld [vmem:[#allocation6 + $0x1b8] sm:$0xff]
    %v4609 = vld [vmem:[#allocation6 + $0x1c0] sm:$0xff]
    %v4610 = vld [vmem:[#allocation6 + $0x1c8] sm:$0xff]
    %v4611 = vld [vmem:[#allocation6 + $0x1d0] sm:$0xff]
    %v4612 = vld [vmem:[#allocation6 + $0x1d8] sm:$0xff]
    %v4613 = vld [vmem:[#allocation6 + $0x1e0] sm:$0xff]
    %v4614 = vld [vmem:[#allocation6 + $0x1e8] sm:$0xff]
    %v4615 = vld [vmem:[#allocation6 + $0x1f0] sm:$0xff]
    %v4616 = vld [vmem:[#allocation6 + $0x1f8] sm:$0xff]
    %4617 = vmatprep.subr.mxu0 %v4554
    %4618 = vmatpush1.msra.mxu0 %v4553
    %4619 = vmatprep.subr.mxu0 %v4558
    %4620 = vmatpush1.msra.mxu0 %v4557
    %4621 = vmatprep.subr.mxu0 %v4562
    %4622 = vmatpush1.msra.mxu0 %v4561
    %4623 = vmatprep.subr.mxu0 %v4566
    %4624 = vmatpush1.msra.mxu0 %v4565
    %4625 = vmatprep.subr.mxu0 %v4570
    %4626 = vmatpush1.msra.mxu0 %v4569
    %4627 = vmatprep.subr.mxu0 %v4574
    %4628 = vmatpush1.msra.mxu0 %v4573
    %4629 = vmatprep.subr.mxu0 %v4578
    %4630 = vmatpush1.msra.mxu0 %v4577
    %4631 = vmatprep.subr.mxu0 %v4582
    %4632 = vmatpush1.msra.mxu0 %v4581
    %4633 = vmatprep.subr.mxu0 %v4586
    %4634 = vmatpush1.msra.mxu0 %v4585
    %4635 = vmatprep.subr.mxu0 %v4590
    %4636 = vmatpush1.msra.mxu0 %v4589
    %4637 = vmatprep.subr.mxu0 %v4594
    %4638 = vmatpush1.msra.mxu0 %v4593
    %4639 = vmatprep.subr.mxu0 %v4598
    %4640 = vmatpush1.msra.mxu0 %v4597
    %4641 = vmatprep.subr.mxu0 %v4602
    %4642 = vmatpush1.msra.mxu0 %v4601
    %4643 = vmatprep.subr.mxu0 %v4606
    %4644 = vmatpush1.msra.mxu0 %v4605
    %4645 = vmatprep.subr.mxu0 %v4610
    %4646 = vmatpush1.msra.mxu0 %v4609
    %4647 = vmatprep.subr.mxu0 %v4614
    %4648 = vmatpush1.msra.mxu0 %v4613
    %4649 = vmatprep.subr.mxu0 0.0
    %4650 = vmatpush1.msra.mxu0 0.0
    %4651 = vmatprep.subr.mxu0 0.0
    %4652 = vmatpush1.msra.mxu0 0.0
    %4653 = vmatprep.subr.mxu0 0.0
    %4654 = vmatpush1.msra.mxu0 0.0
    %4655 = vmatprep.subr.mxu0 0.0
    %4656 = vmatpush1.msra.mxu0 0.0
    %4657 = vmatprep.subr.mxu0 0.0
    %4658 = vmatpush1.msra.mxu0 0.0
    %4659 = vmatprep.subr.mxu0 0.0
    %4660 = vmatpush1.msra.mxu0 0.0
    %4661 = vmatprep.subr.mxu0 0.0
    %4662 = vmatpush1.msra.mxu0 0.0
    %4663 = vmatprep.subr.mxu0 0.0
    %4664 = vmatpush1.msra.mxu0 0.0
    %4665 = vmatprep.subr.mxu0 0.0
    %4666 = vmatpush1.msra.mxu0 0.0
    %4667 = vmatprep.subr.mxu0 0.0
    %4668 = vmatpush1.msra.mxu0 0.0
    %4669 = vmatprep.subr.mxu0 0.0
    %4670 = vmatpush1.msra.mxu0 0.0
    %4671 = vmatprep.subr.mxu0 0.0
    %4672 = vmatpush1.msra.mxu0 0.0
    %4673 = vmatprep.subr.mxu0 0.0
    %4674 = vmatpush1.msra.mxu0 0.0
    %4675 = vmatprep.subr.mxu0 0.0
    %4676 = vmatpush1.msra.mxu0 0.0
    %4677 = vmatprep.subr.mxu0 0.0
    %4678 = vmatpush1.msra.mxu0 0.0
    %4679 = vmatprep.subr.mxu0 0.0
    %4680 = vmatpush1.msra.mxu0 0.0
    %4681 = vmatprep.mubr.f32.mxu0 0.0
    %4682 = vmatmul.mubr.f32.gmra.mrb[0].mxu0 %v4230
    %v4683 = vpop.f32.mrb[0].mxu0
    %v4684 = vadd.f32 0.0, %v4683
    %v4685 = vpop.f32.mrb[0].mxu0
    %v4686 = vadd.f32 0.0, %v4685
    %4687 = vdwg.mxu0
    %4688 = vmatprep.subr.mxu0 %v4556
    %4689 = vmatpush1.msra.mxu0 %v4555
    %4690 = vmatprep.subr.mxu0 %v4560
    %4691 = vmatpush1.msra.mxu0 %v4559
    %4692 = vmatprep.subr.mxu0 %v4564
    %4693 = vmatpush1.msra.mxu0 %v4563
    %4694 = vmatprep.subr.mxu0 %v4568
    %4695 = vmatpush1.msra.mxu0 %v4567
    %4696 = vmatprep.subr.mxu0 %v4572
    %4697 = vmatpush1.msra.mxu0 %v4571
    %4698 = vmatprep.subr.mxu0 %v4576
    %4699 = vmatpush1.msra.mxu0 %v4575
    %4700 = vmatprep.subr.mxu0 %v4580
    %4701 = vmatpush1.msra.mxu0 %v4579
    %4702 = vmatprep.subr.mxu0 %v4584
    %4703 = vmatpush1.msra.mxu0 %v4583
    %4704 = vmatprep.subr.mxu0 %v4588
    %4705 = vmatpush1.msra.mxu0 %v4587
    %4706 = vmatprep.subr.mxu0 %v4592
    %4707 = vmatpush1.msra.mxu0 %v4591
    %4708 = vmatprep.subr.mxu0 %v4596
    %4709 = vmatpush1.msra.mxu0 %v4595
    %4710 = vmatprep.subr.mxu0 %v4600
    %4711 = vmatpush1.msra.mxu0 %v4599
    %4712 = vmatprep.subr.mxu0 %v4604
    %4713 = vmatpush1.msra.mxu0 %v4603
    %4714 = vmatprep.subr.mxu0 %v4608
    %4715 = vmatpush1.msra.mxu0 %v4607
    %4716 = vmatprep.subr.mxu0 %v4612
    %4717 = vmatpush1.msra.mxu0 %v4611
    %4718 = vmatprep.subr.mxu0 %v4616
    %4719 = vmatpush1.msra.mxu0 %v4615
    %4720 = vmatprep.subr.mxu0 0.0
    %4721 = vmatpush1.msra.mxu0 0.0
    %4722 = vmatprep.subr.mxu0 0.0
    %4723 = vmatpush1.msra.mxu0 0.0
    %4724 = vmatprep.subr.mxu0 0.0
    %4725 = vmatpush1.msra.mxu0 0.0
    %4726 = vmatprep.subr.mxu0 0.0
    %4727 = vmatpush1.msra.mxu0 0.0
    %4728 = vmatprep.subr.mxu0 0.0
    %4729 = vmatpush1.msra.mxu0 0.0
    %4730 = vmatprep.subr.mxu0 0.0
    %4731 = vmatpush1.msra.mxu0 0.0
    %4732 = vmatprep.subr.mxu0 0.0
    %4733 = vmatpush1.msra.mxu0 0.0
    %4734 = vmatprep.subr.mxu0 0.0
    %4735 = vmatpush1.msra.mxu0 0.0
    %4736 = vmatprep.subr.mxu0 0.0
    %4737 = vmatpush1.msra.mxu0 0.0
    %4738 = vmatprep.subr.mxu0 0.0
    %4739 = vmatpush1.msra.mxu0 0.0
    %4740 = vmatprep.subr.mxu0 0.0
    %4741 = vmatpush1.msra.mxu0 0.0
    %4742 = vmatprep.subr.mxu0 0.0
    %4743 = vmatpush1.msra.mxu0 0.0
    %4744 = vmatprep.subr.mxu0 0.0
    %4745 = vmatpush1.msra.mxu0 0.0
    %4746 = vmatprep.subr.mxu0 0.0
    %4747 = vmatpush1.msra.mxu0 0.0
    %4748 = vmatprep.subr.mxu0 0.0
    %4749 = vmatpush1.msra.mxu0 0.0
    %4750 = vmatprep.subr.mxu0 0.0
    %4751 = vmatpush1.msra.mxu0 0.0
    %4752 = vmatprep.mubr.f32.mxu0 0.0
    %4753 = vmatmul.mubr.f32.gmra.mrb[0].mxu0 %v4230
    %v4754 = vpop.f32.mrb[0].mxu0
    %v4755 = vadd.f32 0.0, %v4754
    %v4756 = vpop.f32.mrb[0].mxu0
    %v4757 = vadd.f32 0.0, %v4756
    %4758 = vdwg.mxu0
    %4759 = vmatprep.subr.mxu0 %v4490
    %4760 = vmatpush1.msra.mxu0 %v4489
    %4761 = vmatprep.subr.mxu0 %v4494
    %4762 = vmatpush1.msra.mxu0 %v4493
    %4763 = vmatprep.subr.mxu0 %v4498
    %4764 = vmatpush1.msra.mxu0 %v4497
    %4765 = vmatprep.subr.mxu0 %v4502
    %4766 = vmatpush1.msra.mxu0 %v4501
    %4767 = vmatprep.subr.mxu0 %v4506
    %4768 = vmatpush1.msra.mxu0 %v4505
    %4769 = vmatprep.subr.mxu0 %v4510
    %4770 = vmatpush1.msra.mxu0 %v4509
    %4771 = vmatprep.subr.mxu0 %v4514
    %4772 = vmatpush1.msra.mxu0 %v4513
    %4773 = vmatprep.subr.mxu0 %v4518
    %4774 = vmatpush1.msra.mxu0 %v4517
    %4775 = vmatprep.subr.mxu0 %v4522
    %4776 = vmatpush1.msra.mxu0 %v4521
    %4777 = vmatprep.subr.mxu0 %v4526
    %4778 = vmatpush1.msra.mxu0 %v4525
    %4779 = vmatprep.subr.mxu0 %v4530
    %4780 = vmatpush1.msra.mxu0 %v4529
    %4781 = vmatprep.subr.mxu0 %v4534
    %4782 = vmatpush1.msra.mxu0 %v4533
    %4783 = vmatprep.subr.mxu0 %v4538
    %4784 = vmatpush1.msra.mxu0 %v4537
    %4785 = vmatprep.subr.mxu0 %v4542
    %4786 = vmatpush1.msra.mxu0 %v4541
    %4787 = vmatprep.subr.mxu0 %v4546
    %4788 = vmatpush1.msra.mxu0 %v4545
    %4789 = vmatprep.subr.mxu0 %v4550
    %4790 = vmatpush1.msra.mxu0 %v4549
    %4791 = vmatprep.subr.mxu0 0.0
    %4792 = vmatpush1.msra.mxu0 0.0
    %4793 = vmatprep.subr.mxu0 0.0
    %4794 = vmatpush1.msra.mxu0 0.0
    %4795 = vmatprep.subr.mxu0 0.0
    %4796 = vmatpush1.msra.mxu0 0.0
    %4797 = vmatprep.subr.mxu0 0.0
    %4798 = vmatpush1.msra.mxu0 0.0
    %4799 = vmatprep.subr.mxu0 0.0
    %4800 = vmatpush1.msra.mxu0 0.0
    %4801 = vmatprep.subr.mxu0 0.0
    %4802 = vmatpush1.msra.mxu0 0.0
    %4803 = vmatprep.subr.mxu0 0.0
    %4804 = vmatpush1.msra.mxu0 0.0
    %4805 = vmatprep.subr.mxu0 0.0
    %4806 = vmatpush1.msra.mxu0 0.0
    %4807 = vmatprep.subr.mxu0 0.0
    %4808 = vmatpush1.msra.mxu0 0.0
    %4809 = vmatprep.subr.mxu0 0.0
    %4810 = vmatpush1.msra.mxu0 0.0
    %4811 = vmatprep.subr.mxu0 0.0
    %4812 = vmatpush1.msra.mxu0 0.0
    %4813 = vmatprep.subr.mxu0 0.0
    %4814 = vmatpush1.msra.mxu0 0.0
    %4815 = vmatprep.subr.mxu0 0.0
    %4816 = vmatpush1.msra.mxu0 0.0
    %4817 = vmatprep.subr.mxu0 0.0
    %4818 = vmatpush1.msra.mxu0 0.0
    %4819 = vmatprep.subr.mxu0 0.0
    %4820 = vmatpush1.msra.mxu0 0.0
    %4821 = vmatprep.subr.mxu0 0.0
    %4822 = vmatpush1.msra.mxu0 0.0
    %4823 = vmatprep.mubr.f32.mxu0 0.0
    %4824 = vmatmul.mubr.f32.gmra.mrb[0].mxu0 %v4488
    %v4825 = vpop.f32.mrb[0].mxu0
    %v4826 = vadd.f32 %v4684, %v4825
    %v4827 = vpop.f32.mrb[0].mxu0
    %v4828 = vadd.f32 %v4686, %v4827
    %4829 = vdwg.mxu0
    %4830 = vmatprep.subr.mxu0 %v4492
    %4831 = vmatpush1.msra.mxu0 %v4491
    %4832 = vmatprep.subr.mxu0 %v4496
    %4833 = vmatpush1.msra.mxu0 %v4495
    %4834 = vmatprep.subr.mxu0 %v4500
    %4835 = vmatpush1.msra.mxu0 %v4499
    %4836 = vmatprep.subr.mxu0 %v4504
    %4837 = vmatpush1.msra.mxu0 %v4503
    %4838 = vmatprep.subr.mxu0 %v4508
    %4839 = vmatpush1.msra.mxu0 %v4507
    %4840 = vmatprep.subr.mxu0 %v4512
    %4841 = vmatpush1.msra.mxu0 %v4511
    %4842 = vmatprep.subr.mxu0 %v4516
    %4843 = vmatpush1.msra.mxu0 %v4515
    %4844 = vmatprep.subr.mxu0 %v4520
    %4845 = vmatpush1.msra.mxu0 %v4519
    %4846 = vmatprep.subr.mxu0 %v4524
    %4847 = vmatpush1.msra.mxu0 %v4523
    %4848 = vmatprep.subr.mxu0 %v4528
    %4849 = vmatpush1.msra.mxu0 %v4527
    %4850 = vmatprep.subr.mxu0 %v4532
    %4851 = vmatpush1.msra.mxu0 %v4531
    %4852 = vmatprep.subr.mxu0 %v4536
    %4853 = vmatpush1.msra.mxu0 %v4535
    %4854 = vmatprep.subr.mxu0 %v4540
    %4855 = vmatpush1.msra.mxu0 %v4539
    %4856 = vmatprep.subr.mxu0 %v4544
    %4857 = vmatpush1.msra.mxu0 %v4543
    %4858 = vmatprep.subr.mxu0 %v4548
    %4859 = vmatpush1.msra.mxu0 %v4547
    %4860 = vmatprep.subr.mxu0 %v4552
    %4861 = vmatpush1.msra.mxu0 %v4551
    %4862 = vmatprep.subr.mxu0 0.0
    %4863 = vmatpush1.msra.mxu0 0.0
    %4864 = vmatprep.subr.mxu0 0.0
    %4865 = vmatpush1.msra.mxu0 0.0
    %4866 = vmatprep.subr.mxu0 0.0
    %4867 = vmatpush1.msra.mxu0 0.0
    %4868 = vmatprep.subr.mxu0 0.0
    %4869 = vmatpush1.msra.mxu0 0.0
    %4870 = vmatprep.subr.mxu0 0.0
    %4871 = vmatpush1.msra.mxu0 0.0
    %4872 = vmatprep.subr.mxu0 0.0
    %4873 = vmatpush1.msra.mxu0 0.0
    %4874 = vmatprep.subr.mxu0 0.0
    %4875 = vmatpush1.msra.mxu0 0.0
    %4876 = vmatprep.subr.mxu0 0.0
    %4877 = vmatpush1.msra.mxu0 0.0
    %4878 = vmatprep.subr.mxu0 0.0
    %4879 = vmatpush1.msra.mxu0 0.0
    %4880 = vmatprep.subr.mxu0 0.0
    %4881 = vmatpush1.msra.mxu0 0.0
    %4882 = vmatprep.subr.mxu0 0.0
    %4883 = vmatpush1.msra.mxu0 0.0
    %4884 = vmatprep.subr.mxu0 0.0
    %4885 = vmatpush1.msra.mxu0 0.0
    %4886 = vmatprep.subr.mxu0 0.0
    %4887 = vmatpush1.msra.mxu0 0.0
    %4888 = vmatprep.subr.mxu0 0.0
    %4889 = vmatpush1.msra.mxu0 0.0
    %4890 = vmatprep.subr.mxu0 0.0
    %4891 = vmatpush1.msra.mxu0 0.0
    %4892 = vmatprep.subr.mxu0 0.0
    %4893 = vmatpush1.msra.mxu0 0.0
    %4894 = vmatprep.mubr.f32.mxu0 0.0
    %4895 = vmatmul.mubr.f32.gmra.mrb[0].mxu0 %v4488
    %v4896 = vpop.f32.mrb[0].mxu0
    %v4897 = vadd.f32 %v4755, %v4896
    %v4898 = vpop.f32.mrb[0].mxu0
    %v4899 = vadd.f32 %v4757, %v4898
    %4900 = vdwg.mxu0
    %v4901 = vadd.f32 %v4826, %v66
    %v4902 = vadd.f32 %v4828, %v70
    %v4903 = vadd.f32 %v4897, %v74
    %v4904 = vadd.f32 %v4899, %v78
    %v4905 = vmul.f32 %v4901, 0.5
    %v4906 = vtanh.pop %v4905
    %v4907 = vmul.f32 %v4906, 0.5
    %v4908 = vadd.f32 %v4907, 0.5
    %v4909 = vmul.f32 %v4902, 0.5
    %v4910 = vtanh.pop %v4909
    %v4911 = vmul.f32 %v4910, 0.5
    %v4912 = vadd.f32 %v4911, 0.5
    %v4913 = vtanh.pop %v4903
    %v4914 = vmul.f32 %v4904, 0.5
    %v4915 = vtanh.pop %v4914
    %v4916 = vmul.f32 %v4915, 0.5
    %v4917 = vadd.f32 %v4916, 0.5
    %v4918 = vmul.f32 %v4912, %v4228
    %v4919 = vmul.f32 %v4908, %v4913
    %v4920 = vadd.f32 %v4918, %v4919
    %v4921 = vtanh.pop %v4920
    %v4922 = vmul.f32 %v4917, %v4921
    %s4923 = scalar_lea.vmem %s5, 12
    %4924 = vst [vmem:[%s4923] sm:$0x3] %v4922
    %s4925 = scalar_lea.vmem %s0, 56
    %v4926 = vld [vmem:[%s4925] sm:$0xff]
    %v4927 = vld [vmem:[#allocation2] sm:$0xff]
    %v4928 = vld [vmem:[#allocation2 + $0x8] sm:$0xff]
    %v4929 = vld [vmem:[#allocation2 + $0x10] sm:$0xff]
    %v4930 = vld [vmem:[#allocation2 + $0x18] sm:$0xff]
    %v4931 = vld [vmem:[#allocation2 + $0x20] sm:$0xff]
    %v4932 = vld [vmem:[#allocation2 + $0x28] sm:$0xff]
    %v4933 = vld [vmem:[#allocation2 + $0x30] sm:$0xff]
    %v4934 = vld [vmem:[#allocation2 + $0x38] sm:$0xff]
    %v4935 = vld [vmem:[#allocation2 + $0x40] sm:$0xff]
    %v4936 = vld [vmem:[#allocation2 + $0x48] sm:$0xff]
    %v4937 = vld [vmem:[#allocation2 + $0x50] sm:$0xff]
    %v4938 = vld [vmem:[#allocation2 + $0x58] sm:$0xff]
    %v4939 = vld [vmem:[#allocation2 + $0x60] sm:$0xff]
    %v4940 = vld [vmem:[#allocation2 + $0x68] sm:$0xff]
    %v4941 = vld [vmem:[#allocation2 + $0x70] sm:$0xff]
    %v4942 = vld [vmem:[#allocation2 + $0x78] sm:$0xff]
    %v4943 = vld [vmem:[#allocation2 + $0x80] sm:$0xff]
    %v4944 = vld [vmem:[#allocation2 + $0x88] sm:$0xff]
    %v4945 = vld [vmem:[#allocation2 + $0x90] sm:$0xff]
    %v4946 = vld [vmem:[#allocation2 + $0x98] sm:$0xff]
    %v4947 = vld [vmem:[#allocation2 + $0xa0] sm:$0xff]
    %v4948 = vld [vmem:[#allocation2 + $0xa8] sm:$0xff]
    %v4949 = vld [vmem:[#allocation2 + $0xb0] sm:$0xff]
    %v4950 = vld [vmem:[#allocation2 + $0xb8] sm:$0xff]
    %v4951 = vld [vmem:[#allocation2 + $0xc0] sm:$0xff]
    %v4952 = vld [vmem:[#allocation2 + $0xc8] sm:$0xff]
    %v4953 = vld [vmem:[#allocation2 + $0xd0] sm:$0xff]
    %v4954 = vld [vmem:[#allocation2 + $0xd8] sm:$0xff]
    %v4955 = vld [vmem:[#allocation2 + $0xe0] sm:$0xff]
    %v4956 = vld [vmem:[#allocation2 + $0xe8] sm:$0xff]
    %v4957 = vld [vmem:[#allocation2 + $0xf0] sm:$0xff]
    %v4958 = vld [vmem:[#allocation2 + $0xf8] sm:$0xff]
    %v4959 = vld [vmem:[#allocation2 + $0x100] sm:$0xff]
    %v4960 = vld [vmem:[#allocation2 + $0x108] sm:$0xff]
    %v4961 = vld [vmem:[#allocation2 + $0x110] sm:$0xff]
    %v4962 = vld [vmem:[#allocation2 + $0x118] sm:$0xff]
    %v4963 = vld [vmem:[#allocation2 + $0x120] sm:$0xff]
    %v4964 = vld [vmem:[#allocation2 + $0x128] sm:$0xff]
    %v4965 = vld [vmem:[#allocation2 + $0x130] sm:$0xff]
    %v4966 = vld [vmem:[#allocation2 + $0x138] sm:$0xff]
    %v4967 = vld [vmem:[#allocation2 + $0x140] sm:$0xff]
    %v4968 = vld [vmem:[#allocation2 + $0x148] sm:$0xff]
    %v4969 = vld [vmem:[#allocation2 + $0x150] sm:$0xff]
    %v4970 = vld [vmem:[#allocation2 + $0x158] sm:$0xff]
    %v4971 = vld [vmem:[#allocation2 + $0x160] sm:$0xff]
    %v4972 = vld [vmem:[#allocation2 + $0x168] sm:$0xff]
    %v4973 = vld [vmem:[#allocation2 + $0x170] sm:$0xff]
    %v4974 = vld [vmem:[#allocation2 + $0x178] sm:$0xff]
    %v4975 = vld [vmem:[#allocation2 + $0x180] sm:$0xff]
    %v4976 = vld [vmem:[#allocation2 + $0x188] sm:$0xff]
    %v4977 = vld [vmem:[#allocation2 + $0x190] sm:$0xff]
    %v4978 = vld [vmem:[#allocation2 + $0x198] sm:$0xff]
    %v4979 = vld [vmem:[#allocation2 + $0x1a0] sm:$0xff]
    %v4980 = vld [vmem:[#allocation2 + $0x1a8] sm:$0xff]
    %v4981 = vld [vmem:[#allocation2 + $0x1b0] sm:$0xff]
    %v4982 = vld [vmem:[#allocation2 + $0x1b8] sm:$0xff]
    %v4983 = vld [vmem:[#allocation2 + $0x1c0] sm:$0xff]
    %v4984 = vld [vmem:[#allocation2 + $0x1c8] sm:$0xff]
    %v4985 = vld [vmem:[#allocation2 + $0x1d0] sm:$0xff]
    %v4986 = vld [vmem:[#allocation2 + $0x1d8] sm:$0xff]
    %v4987 = vld [vmem:[#allocation2 + $0x1e0] sm:$0xff]
    %v4988 = vld [vmem:[#allocation2 + $0x1e8] sm:$0xff]
    %v4989 = vld [vmem:[#allocation2 + $0x1f0] sm:$0xff]
    %v4990 = vld [vmem:[#allocation2 + $0x1f8] sm:$0xff]
    %4991 = vmatprep.subr.mxu0 %v4928
    %4992 = vmatpush1.msra.mxu0 %v4927
    %4993 = vmatprep.subr.mxu0 %v4932
    %4994 = vmatpush1.msra.mxu0 %v4931
    %4995 = vmatprep.subr.mxu0 %v4936
    %4996 = vmatpush1.msra.mxu0 %v4935
    %4997 = vmatprep.subr.mxu0 %v4940
    %4998 = vmatpush1.msra.mxu0 %v4939
    %4999 = vmatprep.subr.mxu0 %v4944
    %5000 = vmatpush1.msra.mxu0 %v4943
    %5001 = vmatprep.subr.mxu0 %v4948
    %5002 = vmatpush1.msra.mxu0 %v4947
    %5003 = vmatprep.subr.mxu0 %v4952
    %5004 = vmatpush1.msra.mxu0 %v4951
    %5005 = vmatprep.subr.mxu0 %v4956
    %5006 = vmatpush1.msra.mxu0 %v4955
    %5007 = vmatprep.subr.mxu0 %v4960
    %5008 = vmatpush1.msra.mxu0 %v4959
    %5009 = vmatprep.subr.mxu0 %v4964
    %5010 = vmatpush1.msra.mxu0 %v4963
    %5011 = vmatprep.subr.mxu0 %v4968
    %5012 = vmatpush1.msra.mxu0 %v4967
    %5013 = vmatprep.subr.mxu0 %v4972
    %5014 = vmatpush1.msra.mxu0 %v4971
    %5015 = vmatprep.subr.mxu0 %v4976
    %5016 = vmatpush1.msra.mxu0 %v4975
    %5017 = vmatprep.subr.mxu0 %v4980
    %5018 = vmatpush1.msra.mxu0 %v4979
    %5019 = vmatprep.subr.mxu0 %v4984
    %5020 = vmatpush1.msra.mxu0 %v4983
    %5021 = vmatprep.subr.mxu0 %v4988
    %5022 = vmatpush1.msra.mxu0 %v4987
    %5023 = vmatprep.subr.mxu0 0.0
    %5024 = vmatpush1.msra.mxu0 0.0
    %5025 = vmatprep.subr.mxu0 0.0
    %5026 = vmatpush1.msra.mxu0 0.0
    %5027 = vmatprep.subr.mxu0 0.0
    %5028 = vmatpush1.msra.mxu0 0.0
    %5029 = vmatprep.subr.mxu0 0.0
    %5030 = vmatpush1.msra.mxu0 0.0
    %5031 = vmatprep.subr.mxu0 0.0
    %5032 = vmatpush1.msra.mxu0 0.0
    %5033 = vmatprep.subr.mxu0 0.0
    %5034 = vmatpush1.msra.mxu0 0.0
    %5035 = vmatprep.subr.mxu0 0.0
    %5036 = vmatpush1.msra.mxu0 0.0
    %5037 = vmatprep.subr.mxu0 0.0
    %5038 = vmatpush1.msra.mxu0 0.0
    %5039 = vmatprep.subr.mxu0 0.0
    %5040 = vmatpush1.msra.mxu0 0.0
    %5041 = vmatprep.subr.mxu0 0.0
    %5042 = vmatpush1.msra.mxu0 0.0
    %5043 = vmatprep.subr.mxu0 0.0
    %5044 = vmatpush1.msra.mxu0 0.0
    %5045 = vmatprep.subr.mxu0 0.0
    %5046 = vmatpush1.msra.mxu0 0.0
    %5047 = vmatprep.subr.mxu0 0.0
    %5048 = vmatpush1.msra.mxu0 0.0
    %5049 = vmatprep.subr.mxu0 0.0
    %5050 = vmatpush1.msra.mxu0 0.0
    %5051 = vmatprep.subr.mxu0 0.0
    %5052 = vmatpush1.msra.mxu0 0.0
    %5053 = vmatprep.subr.mxu0 0.0
    %5054 = vmatpush1.msra.mxu0 0.0
    %5055 = vmatprep.mubr.f32.mxu0 0.0
    %5056 = vmatmul.mubr.f32.gmra.mrb[0].mxu0 %v4488
    %v5057 = vpop.f32.mrb[0].mxu0
    %v5058 = vadd.f32 0.0, %v5057
    %v5059 = vpop.f32.mrb[0].mxu0
    %v5060 = vadd.f32 0.0, %v5059
    %5061 = vdwg.mxu0
    %5062 = vmatprep.subr.mxu0 %v4930
    %5063 = vmatpush1.msra.mxu0 %v4929
    %5064 = vmatprep.subr.mxu0 %v4934
    %5065 = vmatpush1.msra.mxu0 %v4933
    %5066 = vmatprep.subr.mxu0 %v4938
    %5067 = vmatpush1.msra.mxu0 %v4937
    %5068 = vmatprep.subr.mxu0 %v4942
    %5069 = vmatpush1.msra.mxu0 %v4941
    %5070 = vmatprep.subr.mxu0 %v4946
    %5071 = vmatpush1.msra.mxu0 %v4945
    %5072 = vmatprep.subr.mxu0 %v4950
    %5073 = vmatpush1.msra.mxu0 %v4949
    %5074 = vmatprep.subr.mxu0 %v4954
    %5075 = vmatpush1.msra.mxu0 %v4953
    %5076 = vmatprep.subr.mxu0 %v4958
    %5077 = vmatpush1.msra.mxu0 %v4957
    %5078 = vmatprep.subr.mxu0 %v4962
    %5079 = vmatpush1.msra.mxu0 %v4961
    %5080 = vmatprep.subr.mxu0 %v4966
    %5081 = vmatpush1.msra.mxu0 %v4965
    %5082 = vmatprep.subr.mxu0 %v4970
    %5083 = vmatpush1.msra.mxu0 %v4969
    %5084 = vmatprep.subr.mxu0 %v4974
    %5085 = vmatpush1.msra.mxu0 %v4973
    %5086 = vmatprep.subr.mxu0 %v4978
    %5087 = vmatpush1.msra.mxu0 %v4977
    %5088 = vmatprep.subr.mxu0 %v4982
    %5089 = vmatpush1.msra.mxu0 %v4981
    %5090 = vmatprep.subr.mxu0 %v4986
    %5091 = vmatpush1.msra.mxu0 %v4985
    %5092 = vmatprep.subr.mxu0 %v4990
    %5093 = vmatpush1.msra.mxu0 %v4989
    %5094 = vmatprep.subr.mxu0 0.0
    %5095 = vmatpush1.msra.mxu0 0.0
    %5096 = vmatprep.subr.mxu0 0.0
    %5097 = vmatpush1.msra.mxu0 0.0
    %5098 = vmatprep.subr.mxu0 0.0
    %5099 = vmatpush1.msra.mxu0 0.0
    %5100 = vmatprep.subr.mxu0 0.0
    %5101 = vmatpush1.msra.mxu0 0.0
    %5102 = vmatprep.subr.mxu0 0.0
    %5103 = vmatpush1.msra.mxu0 0.0
    %5104 = vmatprep.subr.mxu0 0.0
    %5105 = vmatpush1.msra.mxu0 0.0
    %5106 = vmatprep.subr.mxu0 0.0
    %5107 = vmatpush1.msra.mxu0 0.0
    %5108 = vmatprep.subr.mxu0 0.0
    %5109 = vmatpush1.msra.mxu0 0.0
    %5110 = vmatprep.subr.mxu0 0.0
    %5111 = vmatpush1.msra.mxu0 0.0
    %5112 = vmatprep.subr.mxu0 0.0
    %5113 = vmatpush1.msra.mxu0 0.0
    %5114 = vmatprep.subr.mxu0 0.0
    %5115 = vmatpush1.msra.mxu0 0.0
    %5116 = vmatprep.subr.mxu0 0.0
    %5117 = vmatpush1.msra.mxu0 0.0
    %5118 = vmatprep.subr.mxu0 0.0
    %5119 = vmatpush1.msra.mxu0 0.0
    %5120 = vmatprep.subr.mxu0 0.0
    %5121 = vmatpush1.msra.mxu0 0.0
    %5122 = vmatprep.subr.mxu0 0.0
    %5123 = vmatpush1.msra.mxu0 0.0
    %5124 = vmatprep.subr.mxu0 0.0
    %5125 = vmatpush1.msra.mxu0 0.0
    %5126 = vmatprep.mubr.f32.mxu0 0.0
    %5127 = vmatmul.mubr.f32.gmra.mrb[0].mxu0 %v4488
    %v5128 = vpop.f32.mrb[0].mxu0
    %v5129 = vadd.f32 0.0, %v5128
    %v5130 = vpop.f32.mrb[0].mxu0
    %v5131 = vadd.f32 0.0, %v5130
    %5132 = vdwg.mxu0
    %v5137 = vcombine.low %v5058, %v5060
    %v5138 = vcombine.low %v5129, %v5131
    %v5140 = vunpack.c.l.s4 1983009808
    %v5141 = vunpack.c.0.s8 %v5140
    %v5142 = vlaneseq
    %v5143 = vshrl.u32 %v5142, 7
    %v5144 = vsub.s32 %v5141, %v5143
    %v5145 = vrot.slane %v5137, %v5144
    %v5147 = vunpack.c.l.s4 1983009808
    %v5148 = vunpack.c.0.s8 %v5147
    %v5149 = vlaneseq
    %v5150 = vshrl.u32 %v5149, 7
    %v5151 = vsub.s32 %v5148, %v5150
    %v5152 = vrot.slane %v5138, %v5151
    %v5153 = vcombine.low %v5145, %v5152
    %v5155 = vadd.f32 %v4926, %v5153
    %v5156 = vmul.f32 %v5155, 0.5
    %v5157 = vtanh.pop %v5156
    %v5158 = vmul.f32 %v5157, 0.5
    %v5159 = vadd.f32 %v5158, 0.5
    %v5161 = vrot.slane %v5155, 2
    %v5163 = vmul.f32 %v5161, 0.5
    %v5164 = vtanh.pop %v5163
    %v5165 = vmul.f32 %v5164, 0.5
    %v5166 = vadd.f32 %v5165, 0.5
    %v5167 = vrot.slane %v5155, 4
    %v5169 = vtanh.pop %v5167
    %v5170 = vrot.slane %v5155, 6
    %v5172 = vmul.f32 %v5170, 0.5
    %v5173 = vtanh.pop %v5172
    %v5174 = vmul.f32 %v5173, 0.5
    %v5175 = vadd.f32 %v5174, 0.5
    %v5176 = vmul.f32 %v5166, %v4486
    %v5177 = vmul.f32 %v5159, %v5169
    %v5178 = vadd.f32 %v5176, %v5177
    %v5179 = vtanh.pop %v5178
    %v5180 = vmul.f32 %v5175, %v5179
    %v5181 = vld [vmem:[#allocation4] sm:$0xff]
    %v5182 = vld [vmem:[#allocation4 + $0x8] sm:$0xff]
    %v5183 = vld [vmem:[#allocation4 + $0x10] sm:$0xff]
    %v5184 = vld [vmem:[#allocation4 + $0x18] sm:$0xff]
    %v5185 = vld [vmem:[#allocation4 + $0x20] sm:$0xff]
    %v5186 = vld [vmem:[#allocation4 + $0x28] sm:$0xff]
    %v5187 = vld [vmem:[#allocation4 + $0x30] sm:$0xff]
    %v5188 = vld [vmem:[#allocation4 + $0x38] sm:$0xff]
    %v5189 = vld [vmem:[#allocation4 + $0x40] sm:$0xff]
    %v5190 = vld [vmem:[#allocation4 + $0x48] sm:$0xff]
    %v5191 = vld [vmem:[#allocation4 + $0x50] sm:$0xff]
    %v5192 = vld [vmem:[#allocation4 + $0x58] sm:$0xff]
    %v5193 = vld [vmem:[#allocation4 + $0x60] sm:$0xff]
    %v5194 = vld [vmem:[#allocation4 + $0x68] sm:$0xff]
    %v5195 = vld [vmem:[#allocation4 + $0x70] sm:$0xff]
    %v5196 = vld [vmem:[#allocation4 + $0x78] sm:$0xff]
    %v5197 = vld [vmem:[#allocation4 + $0x80] sm:$0xff]
    %v5198 = vld [vmem:[#allocation4 + $0x88] sm:$0xff]
    %v5199 = vld [vmem:[#allocation4 + $0x90] sm:$0xff]
    %v5200 = vld [vmem:[#allocation4 + $0x98] sm:$0xff]
    %v5201 = vld [vmem:[#allocation4 + $0xa0] sm:$0xff]
    %v5202 = vld [vmem:[#allocation4 + $0xa8] sm:$0xff]
    %v5203 = vld [vmem:[#allocation4 + $0xb0] sm:$0xff]
    %v5204 = vld [vmem:[#allocation4 + $0xb8] sm:$0xff]
    %v5205 = vld [vmem:[#allocation4 + $0xc0] sm:$0xff]
    %v5206 = vld [vmem:[#allocation4 + $0xc8] sm:$0xff]
    %v5207 = vld [vmem:[#allocation4 + $0xd0] sm:$0xff]
    %v5208 = vld [vmem:[#allocation4 + $0xd8] sm:$0xff]
    %v5209 = vld [vmem:[#allocation4 + $0xe0] sm:$0xff]
    %v5210 = vld [vmem:[#allocation4 + $0xe8] sm:$0xff]
    %v5211 = vld [vmem:[#allocation4 + $0xf0] sm:$0xff]
    %v5212 = vld [vmem:[#allocation4 + $0xf8] sm:$0xff]
    %v5213 = vld [vmem:[#allocation4 + $0x100] sm:$0xff]
    %v5214 = vld [vmem:[#allocation4 + $0x108] sm:$0xff]
    %v5215 = vld [vmem:[#allocation4 + $0x110] sm:$0xff]
    %v5216 = vld [vmem:[#allocation4 + $0x118] sm:$0xff]
    %v5217 = vld [vmem:[#allocation4 + $0x120] sm:$0xff]
    %v5218 = vld [vmem:[#allocation4 + $0x128] sm:$0xff]
    %v5219 = vld [vmem:[#allocation4 + $0x130] sm:$0xff]
    %v5220 = vld [vmem:[#allocation4 + $0x138] sm:$0xff]
    %v5221 = vld [vmem:[#allocation4 + $0x140] sm:$0xff]
    %v5222 = vld [vmem:[#allocation4 + $0x148] sm:$0xff]
    %v5223 = vld [vmem:[#allocation4 + $0x150] sm:$0xff]
    %v5224 = vld [vmem:[#allocation4 + $0x158] sm:$0xff]
    %v5225 = vld [vmem:[#allocation4 + $0x160] sm:$0xff]
    %v5226 = vld [vmem:[#allocation4 + $0x168] sm:$0xff]
    %v5227 = vld [vmem:[#allocation4 + $0x170] sm:$0xff]
    %v5228 = vld [vmem:[#allocation4 + $0x178] sm:$0xff]
    %v5229 = vld [vmem:[#allocation4 + $0x180] sm:$0xff]
    %v5230 = vld [vmem:[#allocation4 + $0x188] sm:$0xff]
    %v5231 = vld [vmem:[#allocation4 + $0x190] sm:$0xff]
    %v5232 = vld [vmem:[#allocation4 + $0x198] sm:$0xff]
    %v5233 = vld [vmem:[#allocation4 + $0x1a0] sm:$0xff]
    %v5234 = vld [vmem:[#allocation4 + $0x1a8] sm:$0xff]
    %v5235 = vld [vmem:[#allocation4 + $0x1b0] sm:$0xff]
    %v5236 = vld [vmem:[#allocation4 + $0x1b8] sm:$0xff]
    %v5237 = vld [vmem:[#allocation4 + $0x1c0] sm:$0xff]
    %v5238 = vld [vmem:[#allocation4 + $0x1c8] sm:$0xff]
    %v5239 = vld [vmem:[#allocation4 + $0x1d0] sm:$0xff]
    %v5240 = vld [vmem:[#allocation4 + $0x1d8] sm:$0xff]
    %v5241 = vld [vmem:[#allocation4 + $0x1e0] sm:$0xff]
    %v5242 = vld [vmem:[#allocation4 + $0x1e8] sm:$0xff]
    %v5243 = vld [vmem:[#allocation4 + $0x1f0] sm:$0xff]
    %v5244 = vld [vmem:[#allocation4 + $0x1f8] sm:$0xff]
    %v5245 = vld [vmem:[#allocation6] sm:$0xff]
    %v5246 = vld [vmem:[#allocation6 + $0x8] sm:$0xff]
    %v5247 = vld [vmem:[#allocation6 + $0x10] sm:$0xff]
    %v5248 = vld [vmem:[#allocation6 + $0x18] sm:$0xff]
    %v5249 = vld [vmem:[#allocation6 + $0x20] sm:$0xff]
    %v5250 = vld [vmem:[#allocation6 + $0x28] sm:$0xff]
    %v5251 = vld [vmem:[#allocation6 + $0x30] sm:$0xff]
    %v5252 = vld [vmem:[#allocation6 + $0x38] sm:$0xff]
    %v5253 = vld [vmem:[#allocation6 + $0x40] sm:$0xff]
    %v5254 = vld [vmem:[#allocation6 + $0x48] sm:$0xff]
    %v5255 = vld [vmem:[#allocation6 + $0x50] sm:$0xff]
    %v5256 = vld [vmem:[#allocation6 + $0x58] sm:$0xff]
    %v5257 = vld [vmem:[#allocation6 + $0x60] sm:$0xff]
    %v5258 = vld [vmem:[#allocation6 + $0x68] sm:$0xff]
    %v5259 = vld [vmem:[#allocation6 + $0x70] sm:$0xff]
    %v5260 = vld [vmem:[#allocation6 + $0x78] sm:$0xff]
    %v5261 = vld [vmem:[#allocation6 + $0x80] sm:$0xff]
    %v5262 = vld [vmem:[#allocation6 + $0x88] sm:$0xff]
    %v5263 = vld [vmem:[#allocation6 + $0x90] sm:$0xff]
    %v5264 = vld [vmem:[#allocation6 + $0x98] sm:$0xff]
    %v5265 = vld [vmem:[#allocation6 + $0xa0] sm:$0xff]
    %v5266 = vld [vmem:[#allocation6 + $0xa8] sm:$0xff]
    %v5267 = vld [vmem:[#allocation6 + $0xb0] sm:$0xff]
    %v5268 = vld [vmem:[#allocation6 + $0xb8] sm:$0xff]
    %v5269 = vld [vmem:[#allocation6 + $0xc0] sm:$0xff]
    %v5270 = vld [vmem:[#allocation6 + $0xc8] sm:$0xff]
    %v5271 = vld [vmem:[#allocation6 + $0xd0] sm:$0xff]
    %v5272 = vld [vmem:[#allocation6 + $0xd8] sm:$0xff]
    %v5273 = vld [vmem:[#allocation6 + $0xe0] sm:$0xff]
    %v5274 = vld [vmem:[#allocation6 + $0xe8] sm:$0xff]
    %v5275 = vld [vmem:[#allocation6 + $0xf0] sm:$0xff]
    %v5276 = vld [vmem:[#allocation6 + $0xf8] sm:$0xff]
    %v5277 = vld [vmem:[#allocation6 + $0x100] sm:$0xff]
    %v5278 = vld [vmem:[#allocation6 + $0x108] sm:$0xff]
    %v5279 = vld [vmem:[#allocation6 + $0x110] sm:$0xff]
    %v5280 = vld [vmem:[#allocation6 + $0x118] sm:$0xff]
    %v5281 = vld [vmem:[#allocation6 + $0x120] sm:$0xff]
    %v5282 = vld [vmem:[#allocation6 + $0x128] sm:$0xff]
    %v5283 = vld [vmem:[#allocation6 + $0x130] sm:$0xff]
    %v5284 = vld [vmem:[#allocation6 + $0x138] sm:$0xff]
    %v5285 = vld [vmem:[#allocation6 + $0x140] sm:$0xff]
    %v5286 = vld [vmem:[#allocation6 + $0x148] sm:$0xff]
    %v5287 = vld [vmem:[#allocation6 + $0x150] sm:$0xff]
    %v5288 = vld [vmem:[#allocation6 + $0x158] sm:$0xff]
    %v5289 = vld [vmem:[#allocation6 + $0x160] sm:$0xff]
    %v5290 = vld [vmem:[#allocation6 + $0x168] sm:$0xff]
    %v5291 = vld [vmem:[#allocation6 + $0x170] sm:$0xff]
    %v5292 = vld [vmem:[#allocation6 + $0x178] sm:$0xff]
    %v5293 = vld [vmem:[#allocation6 + $0x180] sm:$0xff]
    %v5294 = vld [vmem:[#allocation6 + $0x188] sm:$0xff]
    %v5295 = vld [vmem:[#allocation6 + $0x190] sm:$0xff]
    %v5296 = vld [vmem:[#allocation6 + $0x198] sm:$0xff]
    %v5297 = vld [vmem:[#allocation6 + $0x1a0] sm:$0xff]
    %v5298 = vld [vmem:[#allocation6 + $0x1a8] sm:$0xff]
    %v5299 = vld [vmem:[#allocation6 + $0x1b0] sm:$0xff]
    %v5300 = vld [vmem:[#allocation6 + $0x1b8] sm:$0xff]
    %v5301 = vld [vmem:[#allocation6 + $0x1c0] sm:$0xff]
    %v5302 = vld [vmem:[#allocation6 + $0x1c8] sm:$0xff]
    %v5303 = vld [vmem:[#allocation6 + $0x1d0] sm:$0xff]
    %v5304 = vld [vmem:[#allocation6 + $0x1d8] sm:$0xff]
    %v5305 = vld [vmem:[#allocation6 + $0x1e0] sm:$0xff]
    %v5306 = vld [vmem:[#allocation6 + $0x1e8] sm:$0xff]
    %v5307 = vld [vmem:[#allocation6 + $0x1f0] sm:$0xff]
    %v5308 = vld [vmem:[#allocation6 + $0x1f8] sm:$0xff]
    %5309 = vmatprep.subr.mxu0 %v5246
    %5310 = vmatpush1.msra.mxu0 %v5245
    %5311 = vmatprep.subr.mxu0 %v5250
    %5312 = vmatpush1.msra.mxu0 %v5249
    %5313 = vmatprep.subr.mxu0 %v5254
    %5314 = vmatpush1.msra.mxu0 %v5253
    %5315 = vmatprep.subr.mxu0 %v5258
    %5316 = vmatpush1.msra.mxu0 %v5257
    %5317 = vmatprep.subr.mxu0 %v5262
    %5318 = vmatpush1.msra.mxu0 %v5261
    %5319 = vmatprep.subr.mxu0 %v5266
    %5320 = vmatpush1.msra.mxu0 %v5265
    %5321 = vmatprep.subr.mxu0 %v5270
    %5322 = vmatpush1.msra.mxu0 %v5269
    %5323 = vmatprep.subr.mxu0 %v5274
    %5324 = vmatpush1.msra.mxu0 %v5273
    %5325 = vmatprep.subr.mxu0 %v5278
    %5326 = vmatpush1.msra.mxu0 %v5277
    %5327 = vmatprep.subr.mxu0 %v5282
    %5328 = vmatpush1.msra.mxu0 %v5281
    %5329 = vmatprep.subr.mxu0 %v5286
    %5330 = vmatpush1.msra.mxu0 %v5285
    %5331 = vmatprep.subr.mxu0 %v5290
    %5332 = vmatpush1.msra.mxu0 %v5289
    %5333 = vmatprep.subr.mxu0 %v5294
    %5334 = vmatpush1.msra.mxu0 %v5293
    %5335 = vmatprep.subr.mxu0 %v5298
    %5336 = vmatpush1.msra.mxu0 %v5297
    %5337 = vmatprep.subr.mxu0 %v5302
    %5338 = vmatpush1.msra.mxu0 %v5301
    %5339 = vmatprep.subr.mxu0 %v5306
    %5340 = vmatpush1.msra.mxu0 %v5305
    %5341 = vmatprep.subr.mxu0 0.0
    %5342 = vmatpush1.msra.mxu0 0.0
    %5343 = vmatprep.subr.mxu0 0.0
    %5344 = vmatpush1.msra.mxu0 0.0
    %5345 = vmatprep.subr.mxu0 0.0
    %5346 = vmatpush1.msra.mxu0 0.0
    %5347 = vmatprep.subr.mxu0 0.0
    %5348 = vmatpush1.msra.mxu0 0.0
    %5349 = vmatprep.subr.mxu0 0.0
    %5350 = vmatpush1.msra.mxu0 0.0
    %5351 = vmatprep.subr.mxu0 0.0
    %5352 = vmatpush1.msra.mxu0 0.0
    %5353 = vmatprep.subr.mxu0 0.0
    %5354 = vmatpush1.msra.mxu0 0.0
    %5355 = vmatprep.subr.mxu0 0.0
    %5356 = vmatpush1.msra.mxu0 0.0
    %5357 = vmatprep.subr.mxu0 0.0
    %5358 = vmatpush1.msra.mxu0 0.0
    %5359 = vmatprep.subr.mxu0 0.0
    %5360 = vmatpush1.msra.mxu0 0.0
    %5361 = vmatprep.subr.mxu0 0.0
    %5362 = vmatpush1.msra.mxu0 0.0
    %5363 = vmatprep.subr.mxu0 0.0
    %5364 = vmatpush1.msra.mxu0 0.0
    %5365 = vmatprep.subr.mxu0 0.0
    %5366 = vmatpush1.msra.mxu0 0.0
    %5367 = vmatprep.subr.mxu0 0.0
    %5368 = vmatpush1.msra.mxu0 0.0
    %5369 = vmatprep.subr.mxu0 0.0
    %5370 = vmatpush1.msra.mxu0 0.0
    %5371 = vmatprep.subr.mxu0 0.0
    %5372 = vmatpush1.msra.mxu0 0.0
    %5373 = vmatprep.mubr.f32.mxu0 0.0
    %5374 = vmatmul.mubr.f32.gmra.mrb[0].mxu0 %v4922
    %v5375 = vpop.f32.mrb[0].mxu0
    %v5376 = vadd.f32 0.0, %v5375
    %v5377 = vpop.f32.mrb[0].mxu0
    %v5378 = vadd.f32 0.0, %v5377
    %5379 = vdwg.mxu0
    %5380 = vmatprep.subr.mxu0 %v5248
    %5381 = vmatpush1.msra.mxu0 %v5247
    %5382 = vmatprep.subr.mxu0 %v5252
    %5383 = vmatpush1.msra.mxu0 %v5251
    %5384 = vmatprep.subr.mxu0 %v5256
    %5385 = vmatpush1.msra.mxu0 %v5255
    %5386 = vmatprep.subr.mxu0 %v5260
    %5387 = vmatpush1.msra.mxu0 %v5259
    %5388 = vmatprep.subr.mxu0 %v5264
    %5389 = vmatpush1.msra.mxu0 %v5263
    %5390 = vmatprep.subr.mxu0 %v5268
    %5391 = vmatpush1.msra.mxu0 %v5267
    %5392 = vmatprep.subr.mxu0 %v5272
    %5393 = vmatpush1.msra.mxu0 %v5271
    %5394 = vmatprep.subr.mxu0 %v5276
    %5395 = vmatpush1.msra.mxu0 %v5275
    %5396 = vmatprep.subr.mxu0 %v5280
    %5397 = vmatpush1.msra.mxu0 %v5279
    %5398 = vmatprep.subr.mxu0 %v5284
    %5399 = vmatpush1.msra.mxu0 %v5283
    %5400 = vmatprep.subr.mxu0 %v5288
    %5401 = vmatpush1.msra.mxu0 %v5287
    %5402 = vmatprep.subr.mxu0 %v5292
    %5403 = vmatpush1.msra.mxu0 %v5291
    %5404 = vmatprep.subr.mxu0 %v5296
    %5405 = vmatpush1.msra.mxu0 %v5295
    %5406 = vmatprep.subr.mxu0 %v5300
    %5407 = vmatpush1.msra.mxu0 %v5299
    %5408 = vmatprep.subr.mxu0 %v5304
    %5409 = vmatpush1.msra.mxu0 %v5303
    %5410 = vmatprep.subr.mxu0 %v5308
    %5411 = vmatpush1.msra.mxu0 %v5307
    %5412 = vmatprep.subr.mxu0 0.0
    %5413 = vmatpush1.msra.mxu0 0.0
    %5414 = vmatprep.subr.mxu0 0.0
    %5415 = vmatpush1.msra.mxu0 0.0
    %5416 = vmatprep.subr.mxu0 0.0
    %5417 = vmatpush1.msra.mxu0 0.0
    %5418 = vmatprep.subr.mxu0 0.0
    %5419 = vmatpush1.msra.mxu0 0.0
    %5420 = vmatprep.subr.mxu0 0.0
    %5421 = vmatpush1.msra.mxu0 0.0
    %5422 = vmatprep.subr.mxu0 0.0
    %5423 = vmatpush1.msra.mxu0 0.0
    %5424 = vmatprep.subr.mxu0 0.0
    %5425 = vmatpush1.msra.mxu0 0.0
    %5426 = vmatprep.subr.mxu0 0.0
    %5427 = vmatpush1.msra.mxu0 0.0
    %5428 = vmatprep.subr.mxu0 0.0
    %5429 = vmatpush1.msra.mxu0 0.0
    %5430 = vmatprep.subr.mxu0 0.0
    %5431 = vmatpush1.msra.mxu0 0.0
    %5432 = vmatprep.subr.mxu0 0.0
    %5433 = vmatpush1.msra.mxu0 0.0
    %5434 = vmatprep.subr.mxu0 0.0
    %5435 = vmatpush1.msra.mxu0 0.0
    %5436 = vmatprep.subr.mxu0 0.0
    %5437 = vmatpush1.msra.mxu0 0.0
    %5438 = vmatprep.subr.mxu0 0.0
    %5439 = vmatpush1.msra.mxu0 0.0
    %5440 = vmatprep.subr.mxu0 0.0
    %5441 = vmatpush1.msra.mxu0 0.0
    %5442 = vmatprep.subr.mxu0 0.0
    %5443 = vmatpush1.msra.mxu0 0.0
    %5444 = vmatprep.mubr.f32.mxu0 0.0
    %5445 = vmatmul.mubr.f32.gmra.mrb[0].mxu0 %v4922
    %v5446 = vpop.f32.mrb[0].mxu0
    %v5447 = vadd.f32 0.0, %v5446
    %v5448 = vpop.f32.mrb[0].mxu0
    %v5449 = vadd.f32 0.0, %v5448
    %5450 = vdwg.mxu0
    %5451 = vmatprep.subr.mxu0 %v5182
    %5452 = vmatpush1.msra.mxu0 %v5181
    %5453 = vmatprep.subr.mxu0 %v5186
    %5454 = vmatpush1.msra.mxu0 %v5185
    %5455 = vmatprep.subr.mxu0 %v5190
    %5456 = vmatpush1.msra.mxu0 %v5189
    %5457 = vmatprep.subr.mxu0 %v5194
    %5458 = vmatpush1.msra.mxu0 %v5193
    %5459 = vmatprep.subr.mxu0 %v5198
    %5460 = vmatpush1.msra.mxu0 %v5197
    %5461 = vmatprep.subr.mxu0 %v5202
    %5462 = vmatpush1.msra.mxu0 %v5201
    %5463 = vmatprep.subr.mxu0 %v5206
    %5464 = vmatpush1.msra.mxu0 %v5205
    %5465 = vmatprep.subr.mxu0 %v5210
    %5466 = vmatpush1.msra.mxu0 %v5209
    %5467 = vmatprep.subr.mxu0 %v5214
    %5468 = vmatpush1.msra.mxu0 %v5213
    %5469 = vmatprep.subr.mxu0 %v5218
    %5470 = vmatpush1.msra.mxu0 %v5217
    %5471 = vmatprep.subr.mxu0 %v5222
    %5472 = vmatpush1.msra.mxu0 %v5221
    %5473 = vmatprep.subr.mxu0 %v5226
    %5474 = vmatpush1.msra.mxu0 %v5225
    %5475 = vmatprep.subr.mxu0 %v5230
    %5476 = vmatpush1.msra.mxu0 %v5229
    %5477 = vmatprep.subr.mxu0 %v5234
    %5478 = vmatpush1.msra.mxu0 %v5233
    %5479 = vmatprep.subr.mxu0 %v5238
    %5480 = vmatpush1.msra.mxu0 %v5237
    %5481 = vmatprep.subr.mxu0 %v5242
    %5482 = vmatpush1.msra.mxu0 %v5241
    %5483 = vmatprep.subr.mxu0 0.0
    %5484 = vmatpush1.msra.mxu0 0.0
    %5485 = vmatprep.subr.mxu0 0.0
    %5486 = vmatpush1.msra.mxu0 0.0
    %5487 = vmatprep.subr.mxu0 0.0
    %5488 = vmatpush1.msra.mxu0 0.0
    %5489 = vmatprep.subr.mxu0 0.0
    %5490 = vmatpush1.msra.mxu0 0.0
    %5491 = vmatprep.subr.mxu0 0.0
    %5492 = vmatpush1.msra.mxu0 0.0
    %5493 = vmatprep.subr.mxu0 0.0
    %5494 = vmatpush1.msra.mxu0 0.0
    %5495 = vmatprep.subr.mxu0 0.0
    %5496 = vmatpush1.msra.mxu0 0.0
    %5497 = vmatprep.subr.mxu0 0.0
    %5498 = vmatpush1.msra.mxu0 0.0
    %5499 = vmatprep.subr.mxu0 0.0
    %5500 = vmatpush1.msra.mxu0 0.0
    %5501 = vmatprep.subr.mxu0 0.0
    %5502 = vmatpush1.msra.mxu0 0.0
    %5503 = vmatprep.subr.mxu0 0.0
    %5504 = vmatpush1.msra.mxu0 0.0
    %5505 = vmatprep.subr.mxu0 0.0
    %5506 = vmatpush1.msra.mxu0 0.0
    %5507 = vmatprep.subr.mxu0 0.0
    %5508 = vmatpush1.msra.mxu0 0.0
    %5509 = vmatprep.subr.mxu0 0.0
    %5510 = vmatpush1.msra.mxu0 0.0
    %5511 = vmatprep.subr.mxu0 0.0
    %5512 = vmatpush1.msra.mxu0 0.0
    %5513 = vmatprep.subr.mxu0 0.0
    %5514 = vmatpush1.msra.mxu0 0.0
    %5515 = vmatprep.mubr.f32.mxu0 0.0
    %5516 = vmatmul.mubr.f32.gmra.mrb[0].mxu0 %v5180
    %v5517 = vpop.f32.mrb[0].mxu0
    %v5518 = vadd.f32 %v5376, %v5517
    %v5519 = vpop.f32.mrb[0].mxu0
    %v5520 = vadd.f32 %v5378, %v5519
    %5521 = vdwg.mxu0
    %5522 = vmatprep.subr.mxu0 %v5184
    %5523 = vmatpush1.msra.mxu0 %v5183
    %5524 = vmatprep.subr.mxu0 %v5188
    %5525 = vmatpush1.msra.mxu0 %v5187
    %5526 = vmatprep.subr.mxu0 %v5192
    %5527 = vmatpush1.msra.mxu0 %v5191
    %5528 = vmatprep.subr.mxu0 %v5196
    %5529 = vmatpush1.msra.mxu0 %v5195
    %5530 = vmatprep.subr.mxu0 %v5200
    %5531 = vmatpush1.msra.mxu0 %v5199
    %5532 = vmatprep.subr.mxu0 %v5204
    %5533 = vmatpush1.msra.mxu0 %v5203
    %5534 = vmatprep.subr.mxu0 %v5208
    %5535 = vmatpush1.msra.mxu0 %v5207
    %5536 = vmatprep.subr.mxu0 %v5212
    %5537 = vmatpush1.msra.mxu0 %v5211
    %5538 = vmatprep.subr.mxu0 %v5216
    %5539 = vmatpush1.msra.mxu0 %v5215
    %5540 = vmatprep.subr.mxu0 %v5220
    %5541 = vmatpush1.msra.mxu0 %v5219
    %5542 = vmatprep.subr.mxu0 %v5224
    %5543 = vmatpush1.msra.mxu0 %v5223
    %5544 = vmatprep.subr.mxu0 %v5228
    %5545 = vmatpush1.msra.mxu0 %v5227
    %5546 = vmatprep.subr.mxu0 %v5232
    %5547 = vmatpush1.msra.mxu0 %v5231
    %5548 = vmatprep.subr.mxu0 %v5236
    %5549 = vmatpush1.msra.mxu0 %v5235
    %5550 = vmatprep.subr.mxu0 %v5240
    %5551 = vmatpush1.msra.mxu0 %v5239
    %5552 = vmatprep.subr.mxu0 %v5244
    %5553 = vmatpush1.msra.mxu0 %v5243
    %5554 = vmatprep.subr.mxu0 0.0
    %5555 = vmatpush1.msra.mxu0 0.0
    %5556 = vmatprep.subr.mxu0 0.0
    %5557 = vmatpush1.msra.mxu0 0.0
    %5558 = vmatprep.subr.mxu0 0.0
    %5559 = vmatpush1.msra.mxu0 0.0
    %5560 = vmatprep.subr.mxu0 0.0
    %5561 = vmatpush1.msra.mxu0 0.0
    %5562 = vmatprep.subr.mxu0 0.0
    %5563 = vmatpush1.msra.mxu0 0.0
    %5564 = vmatprep.subr.mxu0 0.0
    %5565 = vmatpush1.msra.mxu0 0.0
    %5566 = vmatprep.subr.mxu0 0.0
    %5567 = vmatpush1.msra.mxu0 0.0
    %5568 = vmatprep.subr.mxu0 0.0
    %5569 = vmatpush1.msra.mxu0 0.0
    %5570 = vmatprep.subr.mxu0 0.0
    %5571 = vmatpush1.msra.mxu0 0.0
    %5572 = vmatprep.subr.mxu0 0.0
    %5573 = vmatpush1.msra.mxu0 0.0
    %5574 = vmatprep.subr.mxu0 0.0
    %5575 = vmatpush1.msra.mxu0 0.0
    %5576 = vmatprep.subr.mxu0 0.0
    %5577 = vmatpush1.msra.mxu0 0.0
    %5578 = vmatprep.subr.mxu0 0.0
    %5579 = vmatpush1.msra.mxu0 0.0
    %5580 = vmatprep.subr.mxu0 0.0
    %5581 = vmatpush1.msra.mxu0 0.0
    %5582 = vmatprep.subr.mxu0 0.0
    %5583 = vmatpush1.msra.mxu0 0.0
    %5584 = vmatprep.subr.mxu0 0.0
    %5585 = vmatpush1.msra.mxu0 0.0
    %5586 = vmatprep.mubr.f32.mxu0 0.0
    %5587 = vmatmul.mubr.f32.gmra.mrb[0].mxu0 %v5180
    %v5588 = vpop.f32.mrb[0].mxu0
    %v5589 = vadd.f32 %v5447, %v5588
    %v5590 = vpop.f32.mrb[0].mxu0
    %v5591 = vadd.f32 %v5449, %v5590
    %5592 = vdwg.mxu0
    %v5593 = vadd.f32 %v5518, %v66
    %v5594 = vadd.f32 %v5520, %v70
    %v5595 = vadd.f32 %v5589, %v74
    %v5596 = vadd.f32 %v5591, %v78
    %v5597 = vmul.f32 %v5593, 0.5
    %v5598 = vtanh.pop %v5597
    %v5599 = vmul.f32 %v5598, 0.5
    %v5600 = vadd.f32 %v5599, 0.5
    %v5601 = vmul.f32 %v5594, 0.5
    %v5602 = vtanh.pop %v5601
    %v5603 = vmul.f32 %v5602, 0.5
    %v5604 = vadd.f32 %v5603, 0.5
    %v5605 = vtanh.pop %v5595
    %v5606 = vmul.f32 %v5596, 0.5
    %v5607 = vtanh.pop %v5606
    %v5608 = vmul.f32 %v5607, 0.5
    %v5609 = vadd.f32 %v5608, 0.5
    %v5610 = vmul.f32 %v5604, %v4920
    %v5611 = vmul.f32 %v5600, %v5605
    %v5612 = vadd.f32 %v5610, %v5611
    %v5613 = vtanh.pop %v5612
    %v5614 = vmul.f32 %v5609, %v5613
    %s5615 = scalar_lea.vmem %s5, 14
    %5616 = vst [vmem:[%s5615] sm:$0x3] %v5614
    // Predicated region
    $region34: #{lstm_decoder_pallas.1} parent=1 // pred_check
      _
    $region35: #{lstm_decoder_pallas.1} parent=1 // pred_check_branch
      %5618 = sbr.rel (0) target = $region37
    $region36: #{lstm_decoder_pallas.1} parent=1 // pred_region
      _
    $region37: #{lstm_decoder_pallas.1} parent=1 // pred_fallthru
      _
    // Predicated region
    $region38: #{lstm_decoder_pallas.1} parent=1 // pred_check
      _
    $region39: #{lstm_decoder_pallas.1} parent=1 // pred_check_branch
      %5620 = sbr.rel (0) target = $region41
    $region40: #{lstm_decoder_pallas.1} parent=1 // pred_region
      _
    $region41: #{lstm_decoder_pallas.1} parent=1 // pred_fallthru
      _
    %5621 = vsyncpa [#allocation3], 1
    %5622 = vsyncpa [#allocation5], 1

</llo_original>
